<compile_context>
chip_gen: v7x
topology: tpu7x:2x2x1
jax: 0.10.0
libtpu: 0.0.40
codegen_flags: <defaults>
</compile_context>

<pallas_src>
import functools

import numpy as np

import jax
import jax.numpy as jnp
from jax.experimental import pallas as pl
from jax.experimental.pallas import tpu as pltpu

EPS = 1e-5        # SynchronizedBatchNorm2d default eps
LANE = 128


# ----------------------------------------------------------------------------
# small helpers
# ----------------------------------------------------------------------------
def _round_up(x, m):
    return (x + m - 1) // m * m


def _vmem_limit():
    """Generation-aware VMEM limit (v7x: 64 MiB/TC; v5e/v6e: 128 MiB)."""
    cap = 128 * 1024 * 1024
    try:
        cap = int(getattr(pltpu.get_tpu_info(), "vmem_capacity_bytes", cap))
    except Exception:
        pass
    if cap <= 64 * 1024 * 1024:          # v7x-class: leave headroom for the compiler
        return 40 * 1024 * 1024
    return min(cap * 3 // 4, 100 * 1024 * 1024)


def _pick_c_tile(c):
    for t in (256, 128):                 # 256 keeps the v6e/v7x 256x256 MXU full
        if c % t == 0:
            return t
    return c


def _pick_hw_tile(hwp, cap=2048):
    """Row tile for the flattened spatial dim.

    Returns (tile, nchw_out): nchw_out=True means kernel B can transpose in-kernel
    and emit NCHW-layout blocks directly (tile is a multiple of 128 -> lane-dense
    transposed stores); otherwise output stays channels-last and XLA transposes.
    """
    top = min(hwp, cap)
    for t in range(top - top % 128, 127, -128):
        if hwp % t == 0:
            return t, True
    for t in range(top - top % 8, 7, -8):
        if hwp % t == 0:
            return t, False
    return hwp, False


def _pad_cols(a, cpad):
    c = a.shape[-1]
    if c == cpad:
        return a
    return jnp.pad(a, [(0, 0)] * (a.ndim - 1) + [(0, cpad - c)])


# ----------------------------------------------------------------------------
# parameter folding: dw-1x1 scale/shift + eval BN folded into pointwise weights
# ----------------------------------------------------------------------------
def _bn_scale_shift(p):
    scale = p["gamma"] * jax.lax.rsqrt(p["rvar"] + EPS)
    shift = p["beta"] - p["rmean"] * scale
    return scale, shift


def fold_pw_1x1(p, cpad):
    scale, shift = _bn_scale_shift(p)
    w = p["dw_w"][:, None] * p["pw_w"] * scale[None, :]
    b = (p["dw_b"] @ p["pw_w"] + p["pw_b"]) * scale + shift
    return (_pad_cols(w, cpad).astype(jnp.bfloat16),
            _pad_cols(b, cpad).reshape(1, cpad).astype(jnp.float32))


def fold_dw3x3(p, cpad):
    scale, shift = _bn_scale_shift(p)
    w = p["pw_w"] * scale[None, :]
    b = (p["dw_b"] @ p["pw_w"] + p["pw_b"]) * scale + shift
    return (p["dw_w"].astype(jnp.float32),
            _pad_cols(w, cpad).astype(jnp.bfloat16),
            _pad_cols(b, cpad).reshape(1, cpad).astype(jnp.float32))


def fold_cat(p, cout, cpad):
    scale, shift = _bn_scale_shift(p)
    w = p["dw_w"][:, None] * p["pw_w"] * scale[None, :]          # (5*Cout, Cout)
    b = (p["dw_b"] @ p["pw_w"] + p["pw_b"]) * scale + shift      # (Cout,)
    w = w.reshape(5, cout, cout)
    # NOTE: zero padding of the extra in/out channels is what keeps the padded
    # branch channels out of the conv_cat sum -- do not change to non-zero pads.
    w = jnp.pad(w, ((0, 0), (0, cpad - cout), (0, cpad - cout)))
    return (w.astype(jnp.bfloat16),
            _pad_cols(b, cpad).reshape(1, cpad).astype(jnp.float32))


# ----------------------------------------------------------------------------
# Kernel A: one pass over x ->
#   * branch1 (1x1) + branches 2/3/4 (dilated 3x3 depthwise + pointwise),
#     each with folded BN, bias + ReLU at finalize, immediately multiplied by
#     their conv_cat weight slice and summed  -> S (N, HWp, Cpad) bf16
#   * per-channel spatial sums of x (for the global-average branch) -> xsum
# Reduction over Cin channel tiles on the inner ("arbitrary") grid axis.
# ----------------------------------------------------------------------------
def _branches_kernel(x_ref, dww_ref, pw_ref, wc_ref, b_ref,
                     s_ref, xsum_ref,
                     xpad_ref, a1_ref, a2_ref, a3_ref, a4_ref,
                     *, H, W8, dils, dmax):
    k = pl.program_id(1)
    hw = H * W8
    ct = x_ref.shape[-1]

    @pl.when(k == 0)
    def _init():
        # zero the padded slab once per image (borders never get rewritten)
        xpad_ref[...] = jnp.zeros_like(xpad_ref)
        a1_ref[...] = jnp.zeros_like(a1_ref)
        a2_ref[...] = jnp.zeros_like(a2_ref)
        a3_ref[...] = jnp.zeros_like(a3_ref)
        a4_ref[...] = jnp.zeros_like(a4_ref)

    # stage the activation channel tile into the zero-padded f32 slab (one cast)
    x = x_ref[0]                                          # (H, W8, ct) bf16
    xf = x.astype(jnp.float32)
    xpad_ref[dmax:dmax + H, dmax:dmax + W8, :] = xf

    # per-channel spatial sums for the global-average branch (branch5)
    xsum_ref[0] = jnp.sum(xf.reshape(hw, ct), axis=0, keepdims=True)

    # branch1: 1x1 pointwise (dw scale + BN already folded into pw_ref[0])
    a1_ref[...] += jnp.dot(x.reshape(hw, ct), pw_ref[0],
                           preferred_element_type=jnp.float32)

    # branches 2/3/4: dilated 3x3 depthwise as 9 shifted full-slab reads summed
    # in vregs (single accumulation chain, no scratch read-modify-write), then
    # the pointwise matmul on the MXU.
    dww = dww_ref[...]                                    # (3, 3, 3, ct) f32
    accs = (a2_ref, a3_ref, a4_ref)
    for bi, d in enumerate(dils):
        dw = None
        for di in range(3):
            for dj in range(3):
                oy = dmax + (di - 1) * d
                ox = dmax + (dj - 1) * d
                tap = xpad_ref[oy:oy + H, ox:ox + W8, :] * dww[bi, di, dj, :]
                dw = tap if dw is None else dw + tap
        dwv = dw.reshape(hw, ct).astype(jnp.bfloat16)
        accs[bi][...] += jnp.dot(dwv, pw_ref[bi + 1],
                                 preferred_element_type=jnp.float32)

    # finalize: bias + ReLU per branch, then the conv_cat contribution of the
    # four spatial branches (concat expressed as a sum of per-branch matmuls)
    @pl.when(k == pl.num_programs(1) - 1)
    def _finalize():
        s = jnp.dot(jnp.maximum(a1_ref[...] + b_ref[0], 0.0).astype(jnp.bfloat16),
                    wc_ref[0], preferred_element_type=jnp.float32)
        s = s + jnp.dot(jnp.maximum(a2_ref[...] + b_ref[1], 0.0).astype(jnp.bfloat16),
                        wc_ref[1], preferred_element_type=jnp.float32)
        s = s + jnp.dot(jnp.maximum(a3_ref[...] + b_ref[2], 0.0).astype(jnp.bfloat16),
                        wc_ref[2], preferred_element_type=jnp.float32)
        s = s + jnp.dot(jnp.maximum(a4_ref[...] + b_ref[3], 0.0).astype(jnp.bfloat16),
                        wc_ref[3], preferred_element_type=jnp.float32)
        s_ref[0] = s.astype(s_ref.dtype)


def aspp_branches(x_nhwc, dww, pww, wc14, bias14, dils, dmax, cpad, vmem_limit):
    N, H, W8, Cin = x_nhwc.shape
    HWp = H * W8
    ct = _pick_c_tile(Cin)
    Hp, Wp = H + 2 * dmax, W8 + 2 * dmax
    kern = functools.partial(_branches_kernel, H=H, W8=W8,
                             dils=tuple(dils), dmax=dmax)
    return pl.pallas_call(
        kern,
        out_shape=(jax.ShapeDtypeStruct((N, HWp, cpad), jnp.bfloat16),
                   jax.ShapeDtypeStruct((N, 1, Cin), jnp.float32)),
        grid=(N, Cin // ct),
        in_specs=[
            pl.BlockSpec((1, H, W8, ct), lambda n, k: (n, 0, 0, k)),
            pl.BlockSpec((3, 3, 3, ct), lambda n, k: (0, 0, 0, k)),
            pl.BlockSpec((4, ct, cpad), lambda n, k: (0, k, 0)),
            pl.BlockSpec((4, cpad, cpad), lambda n, k: (0, 0, 0)),
            pl.BlockSpec((4, 1, cpad), lambda n, k: (0, 0, 0)),
        ],
        out_specs=(
            pl.BlockSpec((1, HWp, cpad), lambda n, k: (n, 0, 0)),
            pl.BlockSpec((1, 1, ct), lambda n, k: (n, 0, k)),
        ),
        scratch_shapes=[pltpu.VMEM((Hp, Wp, ct), jnp.float32),
                        pltpu.VMEM((HWp, cpad), jnp.float32),
                        pltpu.VMEM((HWp, cpad), jnp.float32),
                        pltpu.VMEM((HWp, cpad), jnp.float32),
                        pltpu.VMEM((HWp, cpad), jnp.float32)],
        compiler_params=pltpu.CompilerParams(
            dimension_semantics=("parallel", "arbitrary"),
            vmem_limit_bytes=vmem_limit),
    )(x_nhwc, dww, pww, wc14, bias14)


# ----------------------------------------------------------------------------
# Kernel B: add the (broadcast) global-feature conv_cat term + bias + ReLU and
# write the result; when possible the tile is transposed in-kernel (XLU is idle
# here) so the output is emitted directly in NCHW layout.
# ----------------------------------------------------------------------------
def _cat_kernel(s_ref, g_ref, wc5_ref, bc_ref, o_ref, *, nchw_out):
    gc = jnp.dot(g_ref[0], wc5_ref[...], preferred_element_type=jnp.float32)  # (1,Cpad)
    y = jnp.maximum(s_ref[0].astype(jnp.float32) + gc + bc_ref[...], 0.0)
    if nchw_out:
        o_ref[0] = jnp.transpose(y).astype(o_ref.dtype)
    else:
        o_ref[0] = y.astype(o_ref.dtype)


def aspp_cat(S, g, wc5, biasc, t_hw, nchw_out, vmem_limit):
    N, HWp, Cpad = S.shape
    if nchw_out:
        out_shape = jax.ShapeDtypeStruct((N, Cpad, HWp), jnp.float32)
        out_spec = pl.BlockSpec((1, Cpad, t_hw), lambda n, t: (n, 0, t))
    else:
        out_shape = jax.ShapeDtypeStruct((N, HWp, Cpad), jnp.float32)
        out_spec = pl.BlockSpec((1, t_hw, Cpad), lambda n, t: (n, t, 0))
    kern = functools.partial(_cat_kernel, nchw_out=nchw_out)
    return pl.pallas_call(
        kern,
        out_shape=out_shape,
        grid=(N, HWp // t_hw),
        in_specs=[
            pl.BlockSpec((1, t_hw, Cpad), lambda n, t: (n, t, 0)),
            pl.BlockSpec((1, 1, Cpad), lambda n, t: (n, 0, 0)),
            pl.BlockSpec((Cpad, Cpad), lambda n, t: (0, 0)),
            pl.BlockSpec((1, Cpad), lambda n, t: (0, 0)),
        ],
        out_specs=out_spec,
        compiler_params=pltpu.CompilerParams(
            dimension_semantics=("parallel", "parallel"),
            vmem_limit_bytes=vmem_limit),
    )(S, g, wc5, biasc)


# ----------------------------------------------------------------------------
# Parameter construction (deterministic, synthetic)
# ----------------------------------------------------------------------------
def make_dsconv_bn_params(key, cin, cout, ksize):
    k = jax.random.split(key, 8)
    if ksize == 1:
        dw_w = 0.5 + 0.1 * jax.random.normal(k[0], (cin,), jnp.float32)
    else:
        dw_w = 0.1 * jax.random.normal(k[0], (ksize, ksize, cin), jnp.float32)
    return dict(
        dw_w=dw_w,
        dw_b=0.05 * jax.random.normal(k[1], (cin,), jnp.float32),
        pw_w=0.2 * jax.random.normal(k[2], (cin, cout), jnp.float32),
        pw_b=0.05 * jax.random.normal(k[3], (cout,), jnp.float32),
        gamma=1.0 + 0.1 * jax.random.normal(k[4], (cout,), jnp.float32),
        beta=0.1 * jax.random.normal(k[5], (cout,), jnp.float32),
        rmean=0.05 * jax.random.normal(k[6], (cout,), jnp.float32),
        rvar=1.0 + 0.1 * jax.random.uniform(k[7], (cout,), jnp.float32),
    )


# ----------------------------------------------------------------------------
# ASPP forward (Pallas)
# ----------------------------------------------------------------------------
def aspp_forward(x_nchw, params, rate=1):
    N, Cin, H, W = x_nchw.shape
    Cout = params["branch1"]["pw_w"].shape[1]
    Cpad = _round_up(Cout, LANE)
    W8 = _round_up(W, 8)
    HWp = H * W8
    dils = (6 * rate, 12 * rate, 18 * rate)
    dmax = dils[-1]
    t_hw, nchw_out = _pick_hw_tile(HWp)
    vmem = _vmem_limit()

    # one channels-last bf16 copy of the activation; width zero-padded to /8 so
    # the in-kernel (H,W8,ct)->(H*W8,ct) reshapes never cross (8,128) tiles.
    x_nhwc = jnp.transpose(x_nchw, (0, 2, 3, 1)).astype(jnp.bfloat16)
    if W8 != W:
        x_nhwc = jnp.pad(x_nhwc, ((0, 0), (0, 0), (0, W8 - W), (0, 0)))

    # fold dw-1x1 scale/shift + eval-mode BN into pointwise weights / biases
    w1, bias1 = fold_pw_1x1(params["branch1"], Cpad)
    w5, bias5 = fold_pw_1x1(params["branch5"], Cpad)
    dwa, w2, bias2 = fold_dw3x3(params["branch2"], Cpad)
    dwb, w3, bias3 = fold_dw3x3(params["branch3"], Cpad)
    dwc, w4, bias4 = fold_dw3x3(params["branch4"], Cpad)
    wc, biasc = fold_cat(params["conv_cat"], Cout, Cpad)        # (5,Cpad,Cpad)

    dww = jnp.stack([dwa, dwb, dwc], axis=0)                    # (3,3,3,Cin) f32
    pww = jnp.stack([w1, w2, w3, w4], axis=0)                   # (4,Cin,Cpad) bf16
    bias14 = jnp.stack([bias1, bias2, bias3, bias4], axis=0)    # (4,1,Cpad) f32

    # kernel A: single pass over x -> conv_cat partial sum of branches 1-4 plus
    # the per-channel spatial sums for the global-average branch.
    # TODO(synk): for very large feature maps a row-strip grid axis would bound
    #             kernel A's VMEM footprint (and add a 2nd parallel axis on v7x).
    S, xsum = aspp_branches(x_nhwc, dww, pww, wc[:4], bias14, dils, dmax, Cpad, vmem)

    # branch5 on the (N,1,Cin) global mean: 1x1 + BN + ReLU (tiny tensor -> jnp)
    mean = (xsum * (1.0 / float(H * W))).astype(jnp.bfloat16)
    g = jnp.maximum(jnp.dot(mean, w5, preferred_element_type=jnp.float32) + bias5, 0.0)
    g = g.astype(jnp.bfloat16)                                  # (N,1,Cpad)

    # kernel B: conv_cat finalize (global term broadcast == bilinear upsample of
    # a 1x1 map with align_corners=True), bias + ReLU, NCHW-layout stores.
    out = aspp_cat(S, g, wc[4], biasc, t_hw, nchw_out, vmem)

    if nchw_out:
        out = out[:, :Cout, :].reshape(N, Cout, H, W8)[:, :, :, :W]
    else:
        out = out[:, :, :Cout].reshape(N, H, W8, Cout)[:, :, :W, :]
        out = jnp.transpose(out, (0, 3, 1, 2))
    return out


# ----------------------------------------------------------------------------
# pure-JAX reference (unfolded math) for a numerical sanity check
# ----------------------------------------------------------------------------
def _ref_bn_relu(u, p):
    scale = p["gamma"] / jnp.sqrt(p["rvar"] + EPS)
    return jnp.maximum((u - p["rmean"]) * scale + p["beta"], 0.0)


def _ref_branch_1x1(x, p):
    z = x * p["dw_w"] + p["dw_b"]
    u = jnp.einsum("nhwc,cd->nhwd", z, p["pw_w"]) + p["pw_b"]
    return _ref_bn_relu(u, p)


def _ref_branch_3x3(x, p, d):
    N, H, W, C = x.shape
    xp = jnp.pad(x, ((0, 0), (d, d), (d, d), (0, 0)))
    acc = jnp.zeros_like(x)
    for di in range(3):
        for dj in range(3):
            acc = acc + xp[:, di * d:di * d + H, dj * d:dj * d + W, :] * p["dw_w"][di, dj, :]
    u = jnp.einsum("nhwc,cd->nhwd", acc + p["dw_b"], p["pw_w"]) + p["pw_b"]
    return _ref_bn_relu(u, p)


def aspp_reference(x_nchw, params, rate=1):
    x = jnp.transpose(x_nchw, (0, 2, 3, 1)).astype(jnp.float32)
    b1 = _ref_branch_1x1(x, params["branch1"])
    b2 = _ref_branch_3x3(x, params["branch2"], 6 * rate)
    b3 = _ref_branch_3x3(x, params["branch3"], 12 * rate)
    b4 = _ref_branch_3x3(x, params["branch4"], 18 * rate)
    gm = jnp.mean(x, axis=(1, 2), keepdims=True)
    g = _ref_branch_1x1(gm, params["branch5"])
    g = jnp.broadcast_to(g, b1.shape[:3] + (g.shape[-1],))
    cat = jnp.concatenate([b1, b2, b3, b4, g], axis=-1)
    out = _ref_branch_1x1(cat, params["conv_cat"])
    return jnp.transpose(out, (0, 3, 1, 2))


# ----------------------------------------------------------------------------
if __name__ == "__main__":
    key = jax.random.PRNGKey(0)
    dim_in, dim_out = 4, 8
    N, H, W = 2, 16, 16
    keys = jax.random.split(key, 7)
    params = {
        "branch1": make_dsconv_bn_params(keys[0], dim_in, dim_out, 1),
        "branch2": make_dsconv_bn_params(keys[1], dim_in, dim_out, 3),
        "branch3": make_dsconv_bn_params(keys[2], dim_in, dim_out, 3),
        "branch4": make_dsconv_bn_params(keys[3], dim_in, dim_out, 3),
        "branch5": make_dsconv_bn_params(keys[4], dim_in, dim_out, 1),
        "conv_cat": make_dsconv_bn_params(keys[5], dim_out * 5, dim_out, 1),
    }
    x = jax.random.normal(keys[6], (N, dim_in, H, W), dtype=jnp.float32)

    aspp = jax.jit(functools.partial(aspp_forward, rate=1))
    out = jax.block_until_ready(aspp(x, params))

    assert out.shape == (N, dim_out, H, W), out.shape
    assert bool(jnp.all(jnp.isfinite(out)))

    ref = jax.block_until_ready(aspp_reference(x, params, rate=1))
    np.testing.assert_allclose(np.asarray(out), np.asarray(ref),
                               rtol=1e-1, atol=1e-1)
    print("KERNEL_OK")
</pallas_src>

<mosaic_0001>
module attributes {stable_mosaic.version = 11 : i64} {
  func.func @_cat_kernel(%arg0: i32, %arg1: i32, %arg2: memref<1x256x128xbf16, #tpu.memory_space<vmem>>, %arg3: memref<1x1x128xbf16, #tpu.memory_space<vmem>>, %arg4: memref<128x128xbf16, #tpu.memory_space<vmem>>, %arg5: memref<1x128xf32, #tpu.memory_space<vmem>>, %arg6: memref<1x128x256xf32, #tpu.memory_space<vmem>>) attributes {dimension_semantics = [#tpu.dimension_semantics<parallel>, #tpu.dimension_semantics<parallel>], iteration_bounds = array<i64: 2, 1>, scalar_prefetch = 0 : i64, scratch_operands = 0 : i64, tpu.core_type = #tpu.core_type<tc>, window_params = [{transform_indices = @transform_0, window_bounds = array<i64: 1, 256, 128>}, {transform_indices = @transform_1, window_bounds = array<i64: 1, 1, 128>}, {pipeline_mode = #tpu.pipeline_mode<synchronous>, transform_indices = @transform_2, window_bounds = array<i64: 128, 128>}, {pipeline_mode = #tpu.pipeline_mode<synchronous>, transform_indices = @transform_3, window_bounds = array<i64: 1, 128>}, {transform_indices = @transform_4, window_bounds = array<i64: 1, 128, 256>}]} {
    %c0 = arith.constant 0 : index
    %c0_0 = arith.constant 0 : index
    %c0_1 = arith.constant 0 : index
    %0 = vector.load %arg3[%c0, %c0_0, %c0_1] : memref<1x1x128xbf16, #tpu.memory_space<vmem>>, vector<1x1x128xbf16>
    %1 = vector.shape_cast %0 : vector<1x1x128xbf16> to vector<1x128xbf16>
    %c0_2 = arith.constant 0 : index
    %c0_3 = arith.constant 0 : index
    %2 = vector.load %arg4[%c0_2, %c0_3] : memref<128x128xbf16, #tpu.memory_space<vmem>>, vector<128x128xbf16>
    %cst = arith.constant dense<0.000000e+00> : vector<1x128xf32>
    %3 = tpu.matmul %1, %2, %cst {dimension_numbers = #tpu.dot_dimension_numbers<[1], [0], [0], [1], [0, 0, 1, 1], [], []>} : vector<1x128xbf16>, vector<128x128xbf16>, vector<1x128xf32> -> vector<1x128xf32>
    %c0_4 = arith.constant 0 : index
    %c0_5 = arith.constant 0 : index
    %c0_6 = arith.constant 0 : index
    %4 = vector.load %arg2[%c0_4, %c0_5, %c0_6] : memref<1x256x128xbf16, #tpu.memory_space<vmem>>, vector<1x256x128xbf16>
    %5 = vector.shape_cast %4 : vector<1x256x128xbf16> to vector<256x128xbf16>
    %6 = arith.extf %5 : vector<256x128xbf16> to vector<256x128xf32>
    %7 = vector.broadcast %3 : vector<1x128xf32> to vector<256x128xf32>
    %8 = arith.addf %6, %7 : vector<256x128xf32>
    %c0_7 = arith.constant 0 : index
    %c0_8 = arith.constant 0 : index
    %9 = vector.load %arg5[%c0_7, %c0_8] : memref<1x128xf32, #tpu.memory_space<vmem>>, vector<1x128xf32>
    %10 = vector.broadcast %9 : vector<1x128xf32> to vector<256x128xf32>
    %11 = arith.addf %8, %10 : vector<256x128xf32>
    %cst_9 = arith.constant 0.000000e+00 : f32
    %12 = vector.broadcast %cst_9 : f32 to vector<256x128xf32>
    %13 = arith.maximumf %11, %12 : vector<256x128xf32>
    %14 = tpu.transpose %13, [1, 0] : vector<256x128xf32> -> vector<128x256xf32>
    %c0_10 = arith.constant 0 : index
    %c0_11 = arith.constant 0 : index
    %c0_12 = arith.constant 0 : index
    %15 = vector.load %arg6[%c0_10, %c0_11, %c0_12] : memref<1x128x256xf32, #tpu.memory_space<vmem>>, vector<1x128x256xf32>
    %16 = vector.shape_cast %15 : vector<1x128x256xf32> to vector<128x256xf32>
    %17 = vector.shape_cast %14 : vector<128x256xf32> to vector<1x128x256xf32>
    tpu.vector_store %arg6[%c0_10, %c0_11, %c0_12], %17 {strides = array<i32>} : memref<1x128x256xf32, #tpu.memory_space<vmem>>, vector<1x128x256xf32>,
    return
  }
  func.func @transform_0(%arg0: i32, %arg1: i32) -> (i32, i32, i32) {
    %c0_i32 = arith.constant 0 : i32
    %c0_i32_0 = arith.constant 0 : i32
    return %arg0, %arg1, %c0_i32 : i32, i32, i32
  }
  func.func @transform_1(%arg0: i32, %arg1: i32) -> (i32, i32, i32) {
    %c0_i32 = arith.constant 0 : i32
    %c0_i32_0 = arith.constant 0 : i32
    %c0_i32_1 = arith.constant 0 : i32
    return %arg0, %c0_i32, %c0_i32_0 : i32, i32, i32
  }
  func.func @transform_2(%arg0: i32, %arg1: i32) -> (i32, i32) {
    %c0_i32 = arith.constant 0 : i32
    %c0_i32_0 = arith.constant 0 : i32
    %c0_i32_1 = arith.constant 0 : i32
    return %c0_i32, %c0_i32_0 : i32, i32
  }
  func.func @transform_3(%arg0: i32, %arg1: i32) -> (i32, i32) {
    %c0_i32 = arith.constant 0 : i32
    %c0_i32_0 = arith.constant 0 : i32
    %c0_i32_1 = arith.constant 0 : i32
    return %c0_i32, %c0_i32_0 : i32, i32
  }
  func.func @transform_4(%arg0: i32, %arg1: i32) -> (i32, i32, i32) {
    %c0_i32 = arith.constant 0 : i32
    %c0_i32_0 = arith.constant 0 : i32
    return %arg0, %c0_i32, %arg1 : i32, i32, i32
  }
}

module attributes {stable_mosaic.version = 11 : i64} {
  func.func @_branches_kernel(%arg0: i32, %arg1: i32, %arg2: memref<1x16x16x4xbf16, #tpu.memory_space<vmem>>, %arg3: memref<3x3x3x4xf32, #tpu.memory_space<vmem>>, %arg4: memref<4x4x128xbf16, #tpu.memory_space<vmem>>, %arg5: memref<4x128x128xbf16, #tpu.memory_space<vmem>>, %arg6: memref<4x1x128xf32, #tpu.memory_space<vmem>>, %arg7: memref<1x256x128xbf16, #tpu.memory_space<vmem>>, %arg8: memref<1x1x4xf32, #tpu.memory_space<vmem>>, %arg9: memref<52x52x4xf32, #tpu.memory_space<vmem>>, %arg10: memref<256x128xf32, #tpu.memory_space<vmem>>, %arg11: memref<256x128xf32, #tpu.memory_space<vmem>>, %arg12: memref<256x128xf32, #tpu.memory_space<vmem>>, %arg13: memref<256x128xf32, #tpu.memory_space<vmem>>) attributes {dimension_semantics = [#tpu.dimension_semantics<parallel>, #tpu.dimension_semantics<arbitrary>], iteration_bounds = array<i64: 2, 1>, scalar_prefetch = 0 : i64, scratch_operands = 5 : i64, tpu.core_type = #tpu.core_type<tc>, window_params = [{transform_indices = @transform_0, window_bounds = array<i64: 1, 16, 16, 4>}, {transform_indices = @transform_1, window_bounds = array<i64: 3, 3, 3, 4>}, {transform_indices = @transform_2, window_bounds = array<i64: 4, 4, 128>}, {pipeline_mode = #tpu.pipeline_mode<synchronous>, transform_indices = @transform_3, window_bounds = array<i64: 4, 128, 128>}, {pipeline_mode = #tpu.pipeline_mode<synchronous>, transform_indices = @transform_4, window_bounds = array<i64: 4, 1, 128>}, {transform_indices = @transform_5, window_bounds = array<i64: 1, 256, 128>}, {transform_indices = @transform_6, window_bounds = array<i64: 1, 1, 4>}]} {
    %c0_i32 = arith.constant 0 : i32
    %0 = arith.cmpi eq, %arg1, %c0_i32 : i32
    %1 = arith.extui %0 : i1 to i32
    %c0_i32_0 = arith.constant 0 : i32
    %2 = arith.cmpi ne, %1, %c0_i32_0 : i32
    scf.if %2 {
      %cst_120 = arith.constant 0.000000e+00 : f32
      %234 = vector.broadcast %cst_120 : f32 to vector<52x52x4xf32>
      %c0_121 = arith.constant 0 : index
      %c0_122 = arith.constant 0 : index
      %c0_123 = arith.constant 0 : index
      %235 = vector.load %arg9[%c0_121, %c0_122, %c0_123] : memref<52x52x4xf32, #tpu.memory_space<vmem>>, vector<52x52x4xf32>
      tpu.vector_store %arg9[%c0_121, %c0_122, %c0_123], %234 {strides = array<i32>} : memref<52x52x4xf32, #tpu.memory_space<vmem>>, vector<52x52x4xf32>,
      %cst_124 = arith.constant 0.000000e+00 : f32
      %236 = vector.broadcast %cst_124 : f32 to vector<256x128xf32>
      %c0_125 = arith.constant 0 : index
      %c0_126 = arith.constant 0 : index
      %237 = vector.load %arg10[%c0_125, %c0_126] : memref<256x128xf32, #tpu.memory_space<vmem>>, vector<256x128xf32>
      tpu.vector_store %arg10[%c0_125, %c0_126], %236 {strides = array<i32>} : memref<256x128xf32, #tpu.memory_space<vmem>>, vector<256x128xf32>,
      %cst_127 = arith.constant 0.000000e+00 : f32
      %238 = vector.broadcast %cst_127 : f32 to vector<256x128xf32>
      %c0_128 = arith.constant 0 : index
      %c0_129 = arith.constant 0 : index
      %239 = vector.load %arg11[%c0_128, %c0_129] : memref<256x128xf32, #tpu.memory_space<vmem>>, vector<256x128xf32>
      tpu.vector_store %arg11[%c0_128, %c0_129], %238 {strides = array<i32>} : memref<256x128xf32, #tpu.memory_space<vmem>>, vector<256x128xf32>,
      %cst_130 = arith.constant 0.000000e+00 : f32
      %240 = vector.broadcast %cst_130 : f32 to vector<256x128xf32>
      %c0_131 = arith.constant 0 : index
      %c0_132 = arith.constant 0 : index
      %241 = vector.load %arg12[%c0_131, %c0_132] : memref<256x128xf32, #tpu.memory_space<vmem>>, vector<256x128xf32>
      tpu.vector_store %arg12[%c0_131, %c0_132], %240 {strides = array<i32>} : memref<256x128xf32, #tpu.memory_space<vmem>>, vector<256x128xf32>,
      %cst_133 = arith.constant 0.000000e+00 : f32
      %242 = vector.broadcast %cst_133 : f32 to vector<256x128xf32>
      %c0_134 = arith.constant 0 : index
      %c0_135 = arith.constant 0 : index
      %243 = vector.load %arg13[%c0_134, %c0_135] : memref<256x128xf32, #tpu.memory_space<vmem>>, vector<256x128xf32>
      tpu.vector_store %arg13[%c0_134, %c0_135], %242 {strides = array<i32>} : memref<256x128xf32, #tpu.memory_space<vmem>>, vector<256x128xf32>,
    } else {
    }
    %c0 = arith.constant 0 : index
    %c0_1 = arith.constant 0 : index
    %c0_2 = arith.constant 0 : index
    %c0_3 = arith.constant 0 : index
    %3 = vector.load %arg2[%c0, %c0_1, %c0_2, %c0_3] : memref<1x16x16x4xbf16, #tpu.memory_space<vmem>>, vector<1x16x16x4xbf16>
    %4 = vector.shape_cast %3 : vector<1x16x16x4xbf16> to vector<16x16x4xbf16>
    %5 = arith.extf %4 : vector<16x16x4xbf16> to vector<16x16x4xf32>
    %c18 = arith.constant 18 : index
    %c18_4 = arith.constant 18 : index
    %c0_5 = arith.constant 0 : index
    %6 = vector.load %arg9[%c18, %c18_4, %c0_5] : memref<52x52x4xf32, #tpu.memory_space<vmem>>, vector<16x16x4xf32>
    tpu.vector_store %arg9[%c18, %c18_4, %c0_5], %5 {strides = array<i32>} : memref<52x52x4xf32, #tpu.memory_space<vmem>>, vector<16x16x4xf32>,
    %7 = vector.shape_cast %5 : vector<16x16x4xf32> to vector<256x4xf32>
    %cst = arith.constant dense<0.000000e+00> : vector<4xf32>
    %8 = vector.multi_reduction <add>, %7, %cst [0] : vector<256x4xf32> to vector<4xf32>
    %9 = vector.shape_cast %8 : vector<4xf32> to vector<1x4xf32>
    %c0_6 = arith.constant 0 : index
    %c0_7 = arith.constant 0 : index
    %c0_8 = arith.constant 0 : index
    %10 = vector.load %arg8[%c0_6, %c0_7, %c0_8] : memref<1x1x4xf32, #tpu.memory_space<vmem>>, vector<1x1x4xf32>
    %11 = vector.shape_cast %10 : vector<1x1x4xf32> to vector<1x4xf32>
    %12 = vector.shape_cast %9 : vector<1x4xf32> to vector<1x1x4xf32>
    tpu.vector_store %arg8[%c0_6, %c0_7, %c0_8], %12 {strides = array<i32>} : memref<1x1x4xf32, #tpu.memory_space<vmem>>, vector<1x1x4xf32>,
    %c0_9 = arith.constant 0 : index
    %c0_10 = arith.constant 0 : index
    %13 = vector.load %arg10[%c0_9, %c0_10] : memref<256x128xf32, #tpu.memory_space<vmem>>, vector<256x128xf32>
    %14 = vector.shape_cast %4 : vector<16x16x4xbf16> to vector<256x4xbf16>
    %c0_11 = arith.constant 0 : index
    %c0_12 = arith.constant 0 : index
    %c0_13 = arith.constant 0 : index
    %15 = vector.load %arg4[%c0_11, %c0_12, %c0_13] : memref<4x4x128xbf16, #tpu.memory_space<vmem>>, vector<1x4x128xbf16>
    %16 = vector.shape_cast %15 : vector<1x4x128xbf16> to vector<4x128xbf16>
    %cst_14 = arith.constant dense<0.000000e+00> : vector<256x128xf32>
    %17 = tpu.matmul %14, %16, %cst_14 {dimension_numbers = #tpu.dot_dimension_numbers<[1], [0], [0], [1], [0, 0, 1, 1], [], []>} : vector<256x4xbf16>, vector<4x128xbf16>, vector<256x128xf32> -> vector<256x128xf32>
    %18 = arith.addf %13, %17 : vector<256x128xf32>
    %c0_15 = arith.constant 0 : index
    %c0_16 = arith.constant 0 : index
    %19 = vector.load %arg10[%c0_15, %c0_16] : memref<256x128xf32, #tpu.memory_space<vmem>>, vector<256x128xf32>
    tpu.vector_store %arg10[%c0_15, %c0_16], %18 {strides = array<i32>} : memref<256x128xf32, #tpu.memory_space<vmem>>, vector<256x128xf32>,
    %c0_17 = arith.constant 0 : index
    %c0_18 = arith.constant 0 : index
    %c0_19 = arith.constant 0 : index
    %c0_20 = arith.constant 0 : index
    %20 = vector.load %arg3[%c0_17, %c0_18, %c0_19, %c0_20] : memref<3x3x3x4xf32, #tpu.memory_space<vmem>>, vector<3x3x3x4xf32>
    %c12 = arith.constant 12 : index
    %c12_21 = arith.constant 12 : index
    %c0_22 = arith.constant 0 : index
    %21 = vector.load %arg9[%c12, %c12_21, %c0_22] : memref<52x52x4xf32, #tpu.memory_space<vmem>>, vector<16x16x4xf32>
    %22 = vector.extract_strided_slice %20 {offsets = [0, 0, 0, 0], sizes = [1, 1, 1, 4], strides = [1, 1, 1, 1]} : vector<3x3x3x4xf32> to vector<1x1x1x4xf32>
    %23 = vector.shape_cast %22 : vector<1x1x1x4xf32> to vector<4xf32>
    %24 = vector.shape_cast %23 : vector<4xf32> to vector<1x1x4xf32>
    %25 = vector.broadcast %24 : vector<1x1x4xf32> to vector<16x16x4xf32>
    %26 = arith.mulf %21, %25 : vector<16x16x4xf32>
    %c12_23 = arith.constant 12 : index
    %c18_24 = arith.constant 18 : index
    %c0_25 = arith.constant 0 : index
    %27 = vector.load %arg9[%c12_23, %c18_24, %c0_25] : memref<52x52x4xf32, #tpu.memory_space<vmem>>, vector<16x16x4xf32>
    %28 = vector.extract_strided_slice %20 {offsets = [0, 0, 1, 0], sizes = [1, 1, 1, 4], strides = [1, 1, 1, 1]} : vector<3x3x3x4xf32> to vector<1x1x1x4xf32>
    %29 = vector.shape_cast %28 : vector<1x1x1x4xf32> to vector<4xf32>
    %30 = vector.shape_cast %29 : vector<4xf32> to vector<1x1x4xf32>
    %31 = vector.broadcast %30 : vector<1x1x4xf32> to vector<16x16x4xf32>
    %32 = arith.mulf %27, %31 : vector<16x16x4xf32>
    %33 = arith.addf %26, %32 : vector<16x16x4xf32>
    %c12_26 = arith.constant 12 : index
    %c24 = arith.constant 24 : index
    %c0_27 = arith.constant 0 : index
    %34 = vector.load %arg9[%c12_26, %c24, %c0_27] : memref<52x52x4xf32, #tpu.memory_space<vmem>>, vector<16x16x4xf32>
    %35 = vector.extract_strided_slice %20 {offsets = [0, 0, 2, 0], sizes = [1, 1, 1, 4], strides = [1, 1, 1, 1]} : vector<3x3x3x4xf32> to vector<1x1x1x4xf32>
    %36 = vector.shape_cast %35 : vector<1x1x1x4xf32> to vector<4xf32>
    %37 = vector.shape_cast %36 : vector<4xf32> to vector<1x1x4xf32>
    %38 = vector.broadcast %37 : vector<1x1x4xf32> to vector<16x16x4xf32>
    %39 = arith.mulf %34, %38 : vector<16x16x4xf32>
    %40 = arith.addf %33, %39 : vector<16x16x4xf32>
    %c18_28 = arith.constant 18 : index
    %c12_29 = arith.constant 12 : index
    %c0_30 = arith.constant 0 : index
    %41 = vector.load %arg9[%c18_28, %c12_29, %c0_30] : memref<52x52x4xf32, #tpu.memory_space<vmem>>, vector<16x16x4xf32>
    %42 = vector.extract_strided_slice %20 {offsets = [0, 1, 0, 0], sizes = [1, 1, 1, 4], strides = [1, 1, 1, 1]} : vector<3x3x3x4xf32> to vector<1x1x1x4xf32>
    %43 = vector.shape_cast %42 : vector<1x1x1x4xf32> to vector<4xf32>
    %44 = vector.shape_cast %43 : vector<4xf32> to vector<1x1x4xf32>
    %45 = vector.broadcast %44 : vector<1x1x4xf32> to vector<16x16x4xf32>
    %46 = arith.mulf %41, %45 : vector<16x16x4xf32>
    %47 = arith.addf %40, %46 : vector<16x16x4xf32>
    %c18_31 = arith.constant 18 : index
    %c18_32 = arith.constant 18 : index
    %c0_33 = arith.constant 0 : index
    %48 = vector.load %arg9[%c18_31, %c18_32, %c0_33] : memref<52x52x4xf32, #tpu.memory_space<vmem>>, vector<16x16x4xf32>
    %49 = vector.extract_strided_slice %20 {offsets = [0, 1, 1, 0], sizes = [1, 1, 1, 4], strides = [1, 1, 1, 1]} : vector<3x3x3x4xf32> to vector<1x1x1x4xf32>
    %50 = vector.shape_cast %49 : vector<1x1x1x4xf32> to vector<4xf32>
    %51 = vector.shape_cast %50 : vector<4xf32> to vector<1x1x4xf32>
    %52 = vector.broadcast %51 : vector<1x1x4xf32> to vector<16x16x4xf32>
    %53 = arith.mulf %48, %52 : vector<16x16x4xf32>
    %54 = arith.addf %47, %53 : vector<16x16x4xf32>
    %c18_34 = arith.constant 18 : index
    %c24_35 = arith.constant 24 : index
    %c0_36 = arith.constant 0 : index
    %55 = vector.load %arg9[%c18_34, %c24_35, %c0_36] : memref<52x52x4xf32, #tpu.memory_space<vmem>>, vector<16x16x4xf32>
    %56 = vector.extract_strided_slice %20 {offsets = [0, 1, 2, 0], sizes = [1, 1, 1, 4], strides = [1, 1, 1, 1]} : vector<3x3x3x4xf32> to vector<1x1x1x4xf32>
    %57 = vector.shape_cast %56 : vector<1x1x1x4xf32> to vector<4xf32>
    %58 = vector.shape_cast %57 : vector<4xf32> to vector<1x1x4xf32>
    %59 = vector.broadcast %58 : vector<1x1x4xf32> to vector<16x16x4xf32>
    %60 = arith.mulf %55, %59 : vector<16x16x4xf32>
    %61 = arith.addf %54, %60 : vector<16x16x4xf32>
    %c24_37 = arith.constant 24 : index
    %c12_38 = arith.constant 12 : index
    %c0_39 = arith.constant 0 : index
    %62 = vector.load %arg9[%c24_37, %c12_38, %c0_39] : memref<52x52x4xf32, #tpu.memory_space<vmem>>, vector<16x16x4xf32>
    %63 = vector.extract_strided_slice %20 {offsets = [0, 2, 0, 0], sizes = [1, 1, 1, 4], strides = [1, 1, 1, 1]} : vector<3x3x3x4xf32> to vector<1x1x1x4xf32>
    %64 = vector.shape_cast %63 : vector<1x1x1x4xf32> to vector<4xf32>
    %65 = vector.shape_cast %64 : vector<4xf32> to vector<1x1x4xf32>
    %66 = vector.broadcast %65 : vector<1x1x4xf32> to vector<16x16x4xf32>
    %67 = arith.mulf %62, %66 : vector<16x16x4xf32>
    %68 = arith.addf %61, %67 : vector<16x16x4xf32>
    %c24_40 = arith.constant 24 : index
    %c18_41 = arith.constant 18 : index
    %c0_42 = arith.constant 0 : index
    %69 = vector.load %arg9[%c24_40, %c18_41, %c0_42] : memref<52x52x4xf32, #tpu.memory_space<vmem>>, vector<16x16x4xf32>
    %70 = vector.extract_strided_slice %20 {offsets = [0, 2, 1, 0], sizes = [1, 1, 1, 4], strides = [1, 1, 1, 1]} : vector<3x3x3x4xf32> to vector<1x1x1x4xf32>
    %71 = vector.shape_cast %70 : vector<1x1x1x4xf32> to vector<4xf32>
    %72 = vector.shape_cast %71 : vector<4xf32> to vector<1x1x4xf32>
    %73 = vector.broadcast %72 : vector<1x1x4xf32> to vector<16x16x4xf32>
    %74 = arith.mulf %69, %73 : vector<16x16x4xf32>
    %75 = arith.addf %68, %74 : vector<16x16x4xf32>
    %c24_43 = arith.constant 24 : index
    %c24_44 = arith.constant 24 : index
    %c0_45 = arith.constant 0 : index
    %76 = vector.load %arg9[%c24_43, %c24_44, %c0_45] : memref<52x52x4xf32, #tpu.memory_space<vmem>>, vector<16x16x4xf32>
    %77 = vector.extract_strided_slice %20 {offsets = [0, 2, 2, 0], sizes = [1, 1, 1, 4], strides = [1, 1, 1, 1]} : vector<3x3x3x4xf32> to vector<1x1x1x4xf32>
    %78 = vector.shape_cast %77 : vector<1x1x1x4xf32> to vector<4xf32>
    %79 = vector.shape_cast %78 : vector<4xf32> to vector<1x1x4xf32>
    %80 = vector.broadcast %79 : vector<1x1x4xf32> to vector<16x16x4xf32>
    %81 = arith.mulf %76, %80 : vector<16x16x4xf32>
    %82 = arith.addf %75, %81 : vector<16x16x4xf32>
    %83 = vector.shape_cast %82 : vector<16x16x4xf32> to vector<256x4xf32>
    %84 = arith.truncf %83 : vector<256x4xf32> to vector<256x4xbf16>
    %c0_46 = arith.constant 0 : index
    %c0_47 = arith.constant 0 : index
    %85 = vector.load %arg11[%c0_46, %c0_47] : memref<256x128xf32, #tpu.memory_space<vmem>>, vector<256x128xf32>
    %c1 = arith.constant 1 : index
    %c0_48 = arith.constant 0 : index
    %c0_49 = arith.constant 0 : index
    %86 = vector.load %arg4[%c1, %c0_48, %c0_49] : memref<4x4x128xbf16, #tpu.memory_space<vmem>>, vector<1x4x128xbf16>
    %87 = vector.shape_cast %86 : vector<1x4x128xbf16> to vector<4x128xbf16>
    %cst_50 = arith.constant dense<0.000000e+00> : vector<256x128xf32>
    %88 = tpu.matmul %84, %87, %cst_50 {dimension_numbers = #tpu.dot_dimension_numbers<[1], [0], [0], [1], [0, 0, 1, 1], [], []>} : vector<256x4xbf16>, vector<4x128xbf16>, vector<256x128xf32> -> vector<256x128xf32>
    %89 = arith.addf %85, %88 : vector<256x128xf32>
    %c0_51 = arith.constant 0 : index
    %c0_52 = arith.constant 0 : index
    %90 = vector.load %arg11[%c0_51, %c0_52] : memref<256x128xf32, #tpu.memory_space<vmem>>, vector<256x128xf32>
    tpu.vector_store %arg11[%c0_51, %c0_52], %89 {strides = array<i32>} : memref<256x128xf32, #tpu.memory_space<vmem>>, vector<256x128xf32>,
    %c6 = arith.constant 6 : index
    %c6_53 = arith.constant 6 : index
    %c0_54 = arith.constant 0 : index
    %91 = vector.load %arg9[%c6, %c6_53, %c0_54] : memref<52x52x4xf32, #tpu.memory_space<vmem>>, vector<16x16x4xf32>
    %92 = vector.extract_strided_slice %20 {offsets = [1, 0, 0, 0], sizes = [1, 1, 1, 4], strides = [1, 1, 1, 1]} : vector<3x3x3x4xf32> to vector<1x1x1x4xf32>
    %93 = vector.shape_cast %92 : vector<1x1x1x4xf32> to vector<4xf32>
    %94 = vector.shape_cast %93 : vector<4xf32> to vector<1x1x4xf32>
    %95 = vector.broadcast %94 : vector<1x1x4xf32> to vector<16x16x4xf32>
    %96 = arith.mulf %91, %95 : vector<16x16x4xf32>
    %c6_55 = arith.constant 6 : index
    %c18_56 = arith.constant 18 : index
    %c0_57 = arith.constant 0 : index
    %97 = vector.load %arg9[%c6_55, %c18_56, %c0_57] : memref<52x52x4xf32, #tpu.memory_space<vmem>>, vector<16x16x4xf32>
    %98 = vector.extract_strided_slice %20 {offsets = [1, 0, 1, 0], sizes = [1, 1, 1, 4], strides = [1, 1, 1, 1]} : vector<3x3x3x4xf32> to vector<1x1x1x4xf32>
    %99 = vector.shape_cast %98 : vector<1x1x1x4xf32> to vector<4xf32>
    %100 = vector.shape_cast %99 : vector<4xf32> to vector<1x1x4xf32>
    %101 = vector.broadcast %100 : vector<1x1x4xf32> to vector<16x16x4xf32>
    %102 = arith.mulf %97, %101 : vector<16x16x4xf32>
    %103 = arith.addf %96, %102 : vector<16x16x4xf32>
    %c6_58 = arith.constant 6 : index
    %c30 = arith.constant 30 : index
    %c0_59 = arith.constant 0 : index
    %104 = vector.load %arg9[%c6_58, %c30, %c0_59] : memref<52x52x4xf32, #tpu.memory_space<vmem>>, vector<16x16x4xf32>
    %105 = vector.extract_strided_slice %20 {offsets = [1, 0, 2, 0], sizes = [1, 1, 1, 4], strides = [1, 1, 1, 1]} : vector<3x3x3x4xf32> to vector<1x1x1x4xf32>
    %106 = vector.shape_cast %105 : vector<1x1x1x4xf32> to vector<4xf32>
    %107 = vector.shape_cast %106 : vector<4xf32> to vector<1x1x4xf32>
    %108 = vector.broadcast %107 : vector<1x1x4xf32> to vector<16x16x4xf32>
    %109 = arith.mulf %104, %108 : vector<16x16x4xf32>
    %110 = arith.addf %103, %109 : vector<16x16x4xf32>
    %c18_60 = arith.constant 18 : index
    %c6_61 = arith.constant 6 : index
    %c0_62 = arith.constant 0 : index
    %111 = vector.load %arg9[%c18_60, %c6_61, %c0_62] : memref<52x52x4xf32, #tpu.memory_space<vmem>>, vector<16x16x4xf32>
    %112 = vector.extract_strided_slice %20 {offsets = [1, 1, 0, 0], sizes = [1, 1, 1, 4], strides = [1, 1, 1, 1]} : vector<3x3x3x4xf32> to vector<1x1x1x4xf32>
    %113 = vector.shape_cast %112 : vector<1x1x1x4xf32> to vector<4xf32>
    %114 = vector.shape_cast %113 : vector<4xf32> to vector<1x1x4xf32>
    %115 = vector.broadcast %114 : vector<1x1x4xf32> to vector<16x16x4xf32>
    %116 = arith.mulf %111, %115 : vector<16x16x4xf32>
    %117 = arith.addf %110, %116 : vector<16x16x4xf32>
    %c18_63 = arith.constant 18 : index
    %c18_64 = arith.constant 18 : index
    %c0_65 = arith.constant 0 : index
    %118 = vector.load %arg9[%c18_63, %c18_64, %c0_65] : memref<52x52x4xf32, #tpu.memory_space<vmem>>, vector<16x16x4xf32>
    %119 = vector.extract_strided_slice %20 {offsets = [1, 1, 1, 0], sizes = [1, 1, 1, 4], strides = [1, 1, 1, 1]} : vector<3x3x3x4xf32> to vector<1x1x1x4xf32>
    %120 = vector.shape_cast %119 : vector<1x1x1x4xf32> to vector<4xf32>
    %121 = vector.shape_cast %120 : vector<4xf32> to vector<1x1x4xf32>
    %122 = vector.broadcast %121 : vector<1x1x4xf32> to vector<16x16x4xf32>
    %123 = arith.mulf %118, %122 : vector<16x16x4xf32>
    %124 = arith.addf %117, %123 : vector<16x16x4xf32>
    %c18_66 = arith.constant 18 : index
    %c30_67 = arith.constant 30 : index
    %c0_68 = arith.constant 0 : index
    %125 = vector.load %arg9[%c18_66, %c30_67, %c0_68] : memref<52x52x4xf32, #tpu.memory_space<vmem>>, vector<16x16x4xf32>
    %126 = vector.extract_strided_slice %20 {offsets = [1, 1, 2, 0], sizes = [1, 1, 1, 4], strides = [1, 1, 1, 1]} : vector<3x3x3x4xf32> to vector<1x1x1x4xf32>
    %127 = vector.shape_cast %126 : vector<1x1x1x4xf32> to vector<4xf32>
    %128 = vector.shape_cast %127 : vector<4xf32> to vector<1x1x4xf32>
    %129 = vector.broadcast %128 : vector<1x1x4xf32> to vector<16x16x4xf32>
    %130 = arith.mulf %125, %129 : vector<16x16x4xf32>
    %131 = arith.addf %124, %130 : vector<16x16x4xf32>
    %c30_69 = arith.constant 30 : index
    %c6_70 = arith.constant 6 : index
    %c0_71 = arith.constant 0 : index
    %132 = vector.load %arg9[%c30_69, %c6_70, %c0_71] : memref<52x52x4xf32, #tpu.memory_space<vmem>>, vector<16x16x4xf32>
    %133 = vector.extract_strided_slice %20 {offsets = [1, 2, 0, 0], sizes = [1, 1, 1, 4], strides = [1, 1, 1, 1]} : vector<3x3x3x4xf32> to vector<1x1x1x4xf32>
    %134 = vector.shape_cast %133 : vector<1x1x1x4xf32> to vector<4xf32>
    %135 = vector.shape_cast %134 : vector<4xf32> to vector<1x1x4xf32>
    %136 = vector.broadcast %135 : vector<1x1x4xf32> to vector<16x16x4xf32>
    %137 = arith.mulf %132, %136 : vector<16x16x4xf32>
    %138 = arith.addf %131, %137 : vector<16x16x4xf32>
    %c30_72 = arith.constant 30 : index
    %c18_73 = arith.constant 18 : index
    %c0_74 = arith.constant 0 : index
    %139 = vector.load %arg9[%c30_72, %c18_73, %c0_74] : memref<52x52x4xf32, #tpu.memory_space<vmem>>, vector<16x16x4xf32>
    %140 = vector.extract_strided_slice %20 {offsets = [1, 2, 1, 0], sizes = [1, 1, 1, 4], strides = [1, 1, 1, 1]} : vector<3x3x3x4xf32> to vector<1x1x1x4xf32>
    %141 = vector.shape_cast %140 : vector<1x1x1x4xf32> to vector<4xf32>
    %142 = vector.shape_cast %141 : vector<4xf32> to vector<1x1x4xf32>
    %143 = vector.broadcast %142 : vector<1x1x4xf32> to vector<16x16x4xf32>
    %144 = arith.mulf %139, %143 : vector<16x16x4xf32>
    %145 = arith.addf %138, %144 : vector<16x16x4xf32>
    %c30_75 = arith.constant 30 : index
    %c30_76 = arith.constant 30 : index
    %c0_77 = arith.constant 0 : index
    %146 = vector.load %arg9[%c30_75, %c30_76, %c0_77] : memref<52x52x4xf32, #tpu.memory_space<vmem>>, vector<16x16x4xf32>
    %147 = vector.extract_strided_slice %20 {offsets = [1, 2, 2, 0], sizes = [1, 1, 1, 4], strides = [1, 1, 1, 1]} : vector<3x3x3x4xf32> to vector<1x1x1x4xf32>
    %148 = vector.shape_cast %147 : vector<1x1x1x4xf32> to vector<4xf32>
    %149 = vector.shape_cast %148 : vector<4xf32> to vector<1x1x4xf32>
    %150 = vector.broadcast %149 : vector<1x1x4xf32> to vector<16x16x4xf32>
    %151 = arith.mulf %146, %150 : vector<16x16x4xf32>
    %152 = arith.addf %145, %151 : vector<16x16x4xf32>
    %153 = vector.shape_cast %152 : vector<16x16x4xf32> to vector<256x4xf32>
    %154 = arith.truncf %153 : vector<256x4xf32> to vector<256x4xbf16>
    %c0_78 = arith.constant 0 : index
    %c0_79 = arith.constant 0 : index
    %155 = vector.load %arg12[%c0_78, %c0_79] : memref<256x128xf32, #tpu.memory_space<vmem>>, vector<256x128xf32>
    %c2 = arith.constant 2 : index
    %c0_80 = arith.constant 0 : index
    %c0_81 = arith.constant 0 : index
    %156 = vector.load %arg4[%c2, %c0_80, %c0_81] : memref<4x4x128xbf16, #tpu.memory_space<vmem>>, vector<1x4x128xbf16>
    %157 = vector.shape_cast %156 : vector<1x4x128xbf16> to vector<4x128xbf16>
    %cst_82 = arith.constant dense<0.000000e+00> : vector<256x128xf32>
    %158 = tpu.matmul %154, %157, %cst_82 {dimension_numbers = #tpu.dot_dimension_numbers<[1], [0], [0], [1], [0, 0, 1, 1], [], []>} : vector<256x4xbf16>, vector<4x128xbf16>, vector<256x128xf32> -> vector<256x128xf32>
    %159 = arith.addf %155, %158 : vector<256x128xf32>
    %c0_83 = arith.constant 0 : index
    %c0_84 = arith.constant 0 : index
    %160 = vector.load %arg12[%c0_83, %c0_84] : memref<256x128xf32, #tpu.memory_space<vmem>>, vector<256x128xf32>
    tpu.vector_store %arg12[%c0_83, %c0_84], %159 {strides = array<i32>} : memref<256x128xf32, #tpu.memory_space<vmem>>, vector<256x128xf32>,
    %c0_85 = arith.constant 0 : index
    %c0_86 = arith.constant 0 : index
    %c0_87 = arith.constant 0 : index
    %161 = vector.load %arg9[%c0_85, %c0_86, %c0_87] : memref<52x52x4xf32, #tpu.memory_space<vmem>>, vector<16x16x4xf32>
    %162 = vector.extract_strided_slice %20 {offsets = [2, 0, 0, 0], sizes = [1, 1, 1, 4], strides = [1, 1, 1, 1]} : vector<3x3x3x4xf32> to vector<1x1x1x4xf32>
    %163 = vector.shape_cast %162 : vector<1x1x1x4xf32> to vector<4xf32>
    %164 = vector.shape_cast %163 : vector<4xf32> to vector<1x1x4xf32>
    %165 = vector.broadcast %164 : vector<1x1x4xf32> to vector<16x16x4xf32>
    %166 = arith.mulf %161, %165 : vector<16x16x4xf32>
    %c0_88 = arith.constant 0 : index
    %c18_89 = arith.constant 18 : index
    %c0_90 = arith.constant 0 : index
    %167 = vector.load %arg9[%c0_88, %c18_89, %c0_90] : memref<52x52x4xf32, #tpu.memory_space<vmem>>, vector<16x16x4xf32>
    %168 = vector.extract_strided_slice %20 {offsets = [2, 0, 1, 0], sizes = [1, 1, 1, 4], strides = [1, 1, 1, 1]} : vector<3x3x3x4xf32> to vector<1x1x1x4xf32>
    %169 = vector.shape_cast %168 : vector<1x1x1x4xf32> to vector<4xf32>
    %170 = vector.shape_cast %169 : vector<4xf32> to vector<1x1x4xf32>
    %171 = vector.broadcast %170 : vector<1x1x4xf32> to vector<16x16x4xf32>
    %172 = arith.mulf %167, %171 : vector<16x16x4xf32>
    %173 = arith.addf %166, %172 : vector<16x16x4xf32>
    %c0_91 = arith.constant 0 : index
    %c36 = arith.constant 36 : index
    %c0_92 = arith.constant 0 : index
    %174 = vector.load %arg9[%c0_91, %c36, %c0_92] : memref<52x52x4xf32, #tpu.memory_space<vmem>>, vector<16x16x4xf32>
    %175 = vector.extract_strided_slice %20 {offsets = [2, 0, 2, 0], sizes = [1, 1, 1, 4], strides = [1, 1, 1, 1]} : vector<3x3x3x4xf32> to vector<1x1x1x4xf32>
    %176 = vector.shape_cast %175 : vector<1x1x1x4xf32> to vector<4xf32>
    %177 = vector.shape_cast %176 : vector<4xf32> to vector<1x1x4xf32>
    %178 = vector.broadcast %177 : vector<1x1x4xf32> to vector<16x16x4xf32>
    %179 = arith.mulf %174, %178 : vector<16x16x4xf32>
    %180 = arith.addf %173, %179 : vector<16x16x4xf32>
    %c18_93 = arith.constant 18 : index
    %c0_94 = arith.constant 0 : index
    %c0_95 = arith.constant 0 : index
    %181 = vector.load %arg9[%c18_93, %c0_94, %c0_95] : memref<52x52x4xf32, #tpu.memory_space<vmem>>, vector<16x16x4xf32>
    %182 = vector.extract_strided_slice %20 {offsets = [2, 1, 0, 0], sizes = [1, 1, 1, 4], strides = [1, 1, 1, 1]} : vector<3x3x3x4xf32> to vector<1x1x1x4xf32>
    %183 = vector.shape_cast %182 : vector<1x1x1x4xf32> to vector<4xf32>
    %184 = vector.shape_cast %183 : vector<4xf32> to vector<1x1x4xf32>
    %185 = vector.broadcast %184 : vector<1x1x4xf32> to vector<16x16x4xf32>
    %186 = arith.mulf %181, %185 : vector<16x16x4xf32>
    %187 = arith.addf %180, %186 : vector<16x16x4xf32>
    %c18_96 = arith.constant 18 : index
    %c18_97 = arith.constant 18 : index
    %c0_98 = arith.constant 0 : index
    %188 = vector.load %arg9[%c18_96, %c18_97, %c0_98] : memref<52x52x4xf32, #tpu.memory_space<vmem>>, vector<16x16x4xf32>
    %189 = vector.extract_strided_slice %20 {offsets = [2, 1, 1, 0], sizes = [1, 1, 1, 4], strides = [1, 1, 1, 1]} : vector<3x3x3x4xf32> to vector<1x1x1x4xf32>
    %190 = vector.shape_cast %189 : vector<1x1x1x4xf32> to vector<4xf32>
    %191 = vector.shape_cast %190 : vector<4xf32> to vector<1x1x4xf32>
    %192 = vector.broadcast %191 : vector<1x1x4xf32> to vector<16x16x4xf32>
    %193 = arith.mulf %188, %192 : vector<16x16x4xf32>
    %194 = arith.addf %187, %193 : vector<16x16x4xf32>
    %c18_99 = arith.constant 18 : index
    %c36_100 = arith.constant 36 : index
    %c0_101 = arith.constant 0 : index
    %195 = vector.load %arg9[%c18_99, %c36_100, %c0_101] : memref<52x52x4xf32, #tpu.memory_space<vmem>>, vector<16x16x4xf32>
    %196 = vector.extract_strided_slice %20 {offsets = [2, 1, 2, 0], sizes = [1, 1, 1, 4], strides = [1, 1, 1, 1]} : vector<3x3x3x4xf32> to vector<1x1x1x4xf32>
    %197 = vector.shape_cast %196 : vector<1x1x1x4xf32> to vector<4xf32>
    %198 = vector.shape_cast %197 : vector<4xf32> to vector<1x1x4xf32>
    %199 = vector.broadcast %198 : vector<1x1x4xf32> to vector<16x16x4xf32>
    %200 = arith.mulf %195, %199 : vector<16x16x4xf32>
    %201 = arith.addf %194, %200 : vector<16x16x4xf32>
    %c36_102 = arith.constant 36 : index
    %c0_103 = arith.constant 0 : index
    %c0_104 = arith.constant 0 : index
    %202 = vector.load %arg9[%c36_102, %c0_103, %c0_104] : memref<52x52x4xf32, #tpu.memory_space<vmem>>, vector<16x16x4xf32>
    %203 = vector.extract_strided_slice %20 {offsets = [2, 2, 0, 0], sizes = [1, 1, 1, 4], strides = [1, 1, 1, 1]} : vector<3x3x3x4xf32> to vector<1x1x1x4xf32>
    %204 = vector.shape_cast %203 : vector<1x1x1x4xf32> to vector<4xf32>
    %205 = vector.shape_cast %204 : vector<4xf32> to vector<1x1x4xf32>
    %206 = vector.broadcast %205 : vector<1x1x4xf32> to vector<16x16x4xf32>
    %207 = arith.mulf %202, %206 : vector<16x16x4xf32>
    %208 = arith.addf %201, %207 : vector<16x16x4xf32>
    %c36_105 = arith.constant 36 : index
    %c18_106 = arith.constant 18 : index
    %c0_107 = arith.constant 0 : index
    %209 = vector.load %arg9[%c36_105, %c18_106, %c0_107] : memref<52x52x4xf32, #tpu.memory_space<vmem>>, vector<16x16x4xf32>
    %210 = vector.extract_strided_slice %20 {offsets = [2, 2, 1, 0], sizes = [1, 1, 1, 4], strides = [1, 1, 1, 1]} : vector<3x3x3x4xf32> to vector<1x1x1x4xf32>
    %211 = vector.shape_cast %210 : vector<1x1x1x4xf32> to vector<4xf32>
    %212 = vector.shape_cast %211 : vector<4xf32> to vector<1x1x4xf32>
    %213 = vector.broadcast %212 : vector<1x1x4xf32> to vector<16x16x4xf32>
    %214 = arith.mulf %209, %213 : vector<16x16x4xf32>
    %215 = arith.addf %208, %214 : vector<16x16x4xf32>
    %c36_108 = arith.constant 36 : index
    %c36_109 = arith.constant 36 : index
    %c0_110 = arith.constant 0 : index
    %216 = vector.load %arg9[%c36_108, %c36_109, %c0_110] : memref<52x52x4xf32, #tpu.memory_space<vmem>>, vector<16x16x4xf32>
    %217 = vector.extract_strided_slice %20 {offsets = [2, 2, 2, 0], sizes = [1, 1, 1, 4], strides = [1, 1, 1, 1]} : vector<3x3x3x4xf32> to vector<1x1x1x4xf32>
    %218 = vector.shape_cast %217 : vector<1x1x1x4xf32> to vector<4xf32>
    %219 = vector.shape_cast %218 : vector<4xf32> to vector<1x1x4xf32>
    %220 = vector.broadcast %219 : vector<1x1x4xf32> to vector<16x16x4xf32>
    %221 = arith.mulf %216, %220 : vector<16x16x4xf32>
    %222 = arith.addf %215, %221 : vector<16x16x4xf32>
    %223 = vector.shape_cast %222 : vector<16x16x4xf32> to vector<256x4xf32>
    %224 = arith.truncf %223 : vector<256x4xf32> to vector<256x4xbf16>
    %c0_111 = arith.constant 0 : index
    %c0_112 = arith.constant 0 : index
    %225 = vector.load %arg13[%c0_111, %c0_112] : memref<256x128xf32, #tpu.memory_space<vmem>>, vector<256x128xf32>
    %c3 = arith.constant 3 : index
    %c0_113 = arith.constant 0 : index
    %c0_114 = arith.constant 0 : index
    %226 = vector.load %arg4[%c3, %c0_113, %c0_114] : memref<4x4x128xbf16, #tpu.memory_space<vmem>>, vector<1x4x128xbf16>
    %227 = vector.shape_cast %226 : vector<1x4x128xbf16> to vector<4x128xbf16>
    %cst_115 = arith.constant dense<0.000000e+00> : vector<256x128xf32>
    %228 = tpu.matmul %224, %227, %cst_115 {dimension_numbers = #tpu.dot_dimension_numbers<[1], [0], [0], [1], [0, 0, 1, 1], [], []>} : vector<256x4xbf16>, vector<4x128xbf16>, vector<256x128xf32> -> vector<256x128xf32>
    %229 = arith.addf %225, %228 : vector<256x128xf32>
    %c0_116 = arith.constant 0 : index
    %c0_117 = arith.constant 0 : index
    %230 = vector.load %arg13[%c0_116, %c0_117] : memref<256x128xf32, #tpu.memory_space<vmem>>, vector<256x128xf32>
    tpu.vector_store %arg13[%c0_116, %c0_117], %229 {strides = array<i32>} : memref<256x128xf32, #tpu.memory_space<vmem>>, vector<256x128xf32>,
    %c0_i32_118 = arith.constant 0 : i32
    %231 = arith.cmpi eq, %arg1, %c0_i32_118 : i32
    %232 = arith.extui %231 : i1 to i32
    %c0_i32_119 = arith.constant 0 : i32
    %233 = arith.cmpi ne, %232, %c0_i32_119 : i32
    scf.if %233 {
      %c0_120 = arith.constant 0 : index
      %c0_121 = arith.constant 0 : index
      %234 = vector.load %arg10[%c0_120, %c0_121] : memref<256x128xf32, #tpu.memory_space<vmem>>, vector<256x128xf32>
      %c0_122 = arith.constant 0 : index
      %c0_123 = arith.constant 0 : index
      %c0_124 = arith.constant 0 : index
      %235 = vector.load %arg6[%c0_122, %c0_123, %c0_124] : memref<4x1x128xf32, #tpu.memory_space<vmem>>, vector<1x1x128xf32>
      %236 = vector.shape_cast %235 : vector<1x1x128xf32> to vector<1x128xf32>
      %237 = vector.broadcast %236 : vector<1x128xf32> to vector<256x128xf32>
      %238 = arith.addf %234, %237 : vector<256x128xf32>
      %cst_125 = arith.constant 0.000000e+00 : f32
      %239 = vector.broadcast %cst_125 : f32 to vector<256x128xf32>
      %240 = arith.maximumf %238, %239 : vector<256x128xf32>
      %241 = arith.truncf %240 : vector<256x128xf32> to vector<256x128xbf16>
      %c0_126 = arith.constant 0 : index
      %c0_127 = arith.constant 0 : index
      %c0_128 = arith.constant 0 : index
      %242 = vector.load %arg5[%c0_126, %c0_127, %c0_128] : memref<4x128x128xbf16, #tpu.memory_space<vmem>>, vector<1x128x128xbf16>
      %243 = vector.shape_cast %242 : vector<1x128x128xbf16> to vector<128x128xbf16>
      %cst_129 = arith.constant dense<0.000000e+00> : vector<256x128xf32>
      %244 = tpu.matmul %241, %243, %cst_129 {dimension_numbers = #tpu.dot_dimension_numbers<[1], [0], [0], [1], [0, 0, 1, 1], [], []>} : vector<256x128xbf16>, vector<128x128xbf16>, vector<256x128xf32> -> vector<256x128xf32>
      %c0_130 = arith.constant 0 : index
      %c0_131 = arith.constant 0 : index
      %245 = vector.load %arg11[%c0_130, %c0_131] : memref<256x128xf32, #tpu.memory_space<vmem>>, vector<256x128xf32>
      %c1_132 = arith.constant 1 : index
      %c0_133 = arith.constant 0 : index
      %c0_134 = arith.constant 0 : index
      %246 = vector.load %arg6[%c1_132, %c0_133, %c0_134] : memref<4x1x128xf32, #tpu.memory_space<vmem>>, vector<1x1x128xf32>
      %247 = vector.shape_cast %246 : vector<1x1x128xf32> to vector<1x128xf32>
      %248 = vector.broadcast %247 : vector<1x128xf32> to vector<256x128xf32>
      %249 = arith.addf %245, %248 : vector<256x128xf32>
      %cst_135 = arith.constant 0.000000e+00 : f32
      %250 = vector.broadcast %cst_135 : f32 to vector<256x128xf32>
      %251 = arith.maximumf %249, %250 : vector<256x128xf32>
      %252 = arith.truncf %251 : vector<256x128xf32> to vector<256x128xbf16>
      %c1_136 = arith.constant 1 : index
      %c0_137 = arith.constant 0 : index
      %c0_138 = arith.constant 0 : index
      %253 = vector.load %arg5[%c1_136, %c0_137, %c0_138] : memref<4x128x128xbf16, #tpu.memory_space<vmem>>, vector<1x128x128xbf16>
      %254 = vector.shape_cast %253 : vector<1x128x128xbf16> to vector<128x128xbf16>
      %cst_139 = arith.constant dense<0.000000e+00> : vector<256x128xf32>
      %255 = tpu.matmul %252, %254, %cst_139 {dimension_numbers = #tpu.dot_dimension_numbers<[1], [0], [0], [1], [0, 0, 1, 1], [], []>} : vector<256x128xbf16>, vector<128x128xbf16>, vector<256x128xf32> -> vector<256x128xf32>
      %256 = arith.addf %244, %255 : vector<256x128xf32>
      %c0_140 = arith.constant 0 : index
      %c0_141 = arith.constant 0 : index
      %257 = vector.load %arg12[%c0_140, %c0_141] : memref<256x128xf32, #tpu.memory_space<vmem>>, vector<256x128xf32>
      %c2_142 = arith.constant 2 : index
      %c0_143 = arith.constant 0 : index
      %c0_144 = arith.constant 0 : index
      %258 = vector.load %arg6[%c2_142, %c0_143, %c0_144] : memref<4x1x128xf32, #tpu.memory_space<vmem>>, vector<1x1x128xf32>
      %259 = vector.shape_cast %258 : vector<1x1x128xf32> to vector<1x128xf32>
      %260 = vector.broadcast %259 : vector<1x128xf32> to vector<256x128xf32>
      %261 = arith.addf %257, %260 : vector<256x128xf32>
      %cst_145 = arith.constant 0.000000e+00 : f32
      %262 = vector.broadcast %cst_145 : f32 to vector<256x128xf32>
      %263 = arith.maximumf %261, %262 : vector<256x128xf32>
      %264 = arith.truncf %263 : vector<256x128xf32> to vector<256x128xbf16>
      %c2_146 = arith.constant 2 : index
      %c0_147 = arith.constant 0 : index
      %c0_148 = arith.constant 0 : index
      %265 = vector.load %arg5[%c2_146, %c0_147, %c0_148] : memref<4x128x128xbf16, #tpu.memory_space<vmem>>, vector<1x128x128xbf16>
      %266 = vector.shape_cast %265 : vector<1x128x128xbf16> to vector<128x128xbf16>
      %cst_149 = arith.constant dense<0.000000e+00> : vector<256x128xf32>
      %267 = tpu.matmul %264, %266, %cst_149 {dimension_numbers = #tpu.dot_dimension_numbers<[1], [0], [0], [1], [0, 0, 1, 1], [], []>} : vector<256x128xbf16>, vector<128x128xbf16>, vector<256x128xf32> -> vector<256x128xf32>
      %268 = arith.addf %256, %267 : vector<256x128xf32>
      %c0_150 = arith.constant 0 : index
      %c0_151 = arith.constant 0 : index
      %269 = vector.load %arg13[%c0_150, %c0_151] : memref<256x128xf32, #tpu.memory_space<vmem>>, vector<256x128xf32>
      %c3_152 = arith.constant 3 : index
      %c0_153 = arith.constant 0 : index
      %c0_154 = arith.constant 0 : index
      %270 = vector.load %arg6[%c3_152, %c0_153, %c0_154] : memref<4x1x128xf32, #tpu.memory_space<vmem>>, vector<1x1x128xf32>
      %271 = vector.shape_cast %270 : vector<1x1x128xf32> to vector<1x128xf32>
      %272 = vector.broadcast %271 : vector<1x128xf32> to vector<256x128xf32>
      %273 = arith.addf %269, %272 : vector<256x128xf32>
      %cst_155 = arith.constant 0.000000e+00 : f32
      %274 = vector.broadcast %cst_155 : f32 to vector<256x128xf32>
      %275 = arith.maximumf %273, %274 : vector<256x128xf32>
      %276 = arith.truncf %275 : vector<256x128xf32> to vector<256x128xbf16>
      %c3_156 = arith.constant 3 : index
      %c0_157 = arith.constant 0 : index
      %c0_158 = arith.constant 0 : index
      %277 = vector.load %arg5[%c3_156, %c0_157, %c0_158] : memref<4x128x128xbf16, #tpu.memory_space<vmem>>, vector<1x128x128xbf16>
      %278 = vector.shape_cast %277 : vector<1x128x128xbf16> to vector<128x128xbf16>
      %cst_159 = arith.constant dense<0.000000e+00> : vector<256x128xf32>
      %279 = tpu.matmul %276, %278, %cst_159 {dimension_numbers = #tpu.dot_dimension_numbers<[1], [0], [0], [1], [0, 0, 1, 1], [], []>} : vector<256x128xbf16>, vector<128x128xbf16>, vector<256x128xf32> -> vector<256x128xf32>
      %280 = arith.addf %268, %279 : vector<256x128xf32>
      %281 = arith.truncf %280 : vector<256x128xf32> to vector<256x128xbf16>
      %c0_160 = arith.constant 0 : index
      %c0_161 = arith.constant 0 : index
      %c0_162 = arith.constant 0 : index
      %282 = vector.load %arg7[%c0_160, %c0_161, %c0_162] : memref<1x256x128xbf16, #tpu.memory_space<vmem>>, vector<1x256x128xbf16>
      %283 = vector.shape_cast %282 : vector<1x256x128xbf16> to vector<256x128xbf16>
      %284 = vector.shape_cast %281 : vector<256x128xbf16> to vector<1x256x128xbf16>
      tpu.vector_store %arg7[%c0_160, %c0_161, %c0_162], %284 {strides = array<i32>} : memref<1x256x128xbf16, #tpu.memory_space<vmem>>, vector<1x256x128xbf16>,
    } else {
    }
    return
  }
  func.func @transform_0(%arg0: i32, %arg1: i32) -> (i32, i32, i32, i32) {
    %c0_i32 = arith.constant 0 : i32
    %c0_i32_0 = arith.constant 0 : i32
    %c0_i32_1 = arith.constant 0 : i32
    return %arg0, %c0_i32, %c0_i32_0, %arg1 : i32, i32, i32, i32
  }
  func.func @transform_1(%arg0: i32, %arg1: i32) -> (i32, i32, i32, i32) {
    %c0_i32 = arith.constant 0 : i32
    %c0_i32_0 = arith.constant 0 : i32
    %c0_i32_1 = arith.constant 0 : i32
    %c0_i32_2 = arith.constant 0 : i32
    return %c0_i32, %c0_i32_0, %c0_i32_1, %arg1 : i32, i32, i32, i32
  }
  func.func @transform_2(%arg0: i32, %arg1: i32) -> (i32, i32, i32) {
    %c0_i32 = arith.constant 0 : i32
    %c0_i32_0 = arith.constant 0 : i32
    %c0_i32_1 = arith.constant 0 : i32
    return %c0_i32, %arg1, %c0_i32_0 : i32, i32, i32
  }
  func.func @transform_3(%arg0: i32, %arg1: i32) -> (i32, i32, i32) {
    %c0_i32 = arith.constant 0 : i32
    %c0_i32_0 = arith.constant 0 : i32
    %c0_i32_1 = arith.constant 0 : i32
    %c0_i32_2 = arith.constant 0 : i32
    return %c0_i32, %c0_i32_0, %c0_i32_1 : i32, i32, i32
  }
  func.func @transform_4(%arg0: i32, %arg1: i32) -> (i32, i32, i32) {
    %c0_i32 = arith.constant 0 : i32
    %c0_i32_0 = arith.constant 0 : i32
    %c0_i32_1 = arith.constant 0 : i32
    %c0_i32_2 = arith.constant 0 : i32
    return %c0_i32, %c0_i32_0, %c0_i32_1 : i32, i32, i32
  }
  func.func @transform_5(%arg0: i32, %arg1: i32) -> (i32, i32, i32) {
    %c0_i32 = arith.constant 0 : i32
    %c0_i32_0 = arith.constant 0 : i32
    %c0_i32_1 = arith.constant 0 : i32
    return %arg0, %c0_i32, %c0_i32_0 : i32, i32, i32
  }
  func.func @transform_6(%arg0: i32, %arg1: i32) -> (i32, i32, i32) {
    %c0_i32 = arith.constant 0 : i32
    %c0_i32_0 = arith.constant 0 : i32
    return %arg0, %c0_i32, %arg1 : i32, i32, i32
  }
}

</mosaic_0001>

<llo_original>
// kernel: aspp_forward.3
$region0: #{aspp_forward.3}
  #allocation0 [shape = 'u32[]', space=smem, size = 0x4, offset = 0x4, fixed_abs, tag = 'smem constant byte address 0x4 - core index']
  #allocation1 [shape = 'u32[144,128]{1,0:T(1,128)}', space=vmem, size = 0x12000, scoped, tag = 'internal scratch']
  %s0 = inlined_call_operand.hbm [shape: bf16[2,256,128], index: 0, kind: input, shape index: {}]
  %s1 = inlined_call_operand.hbm [shape: bf16[2,1,128], index: 1, kind: input, shape index: {}]
  %s2 = inlined_call_operand.hbm [shape: bf16[128,128], index: 2, kind: input, shape index: {}]
  %s3 = inlined_call_operand.hbm [shape: f32[1,128], index: 3, kind: input, shape index: {}]
  %s4 = inlined_call_operand.hbm [shape: f32[2,128,256], index: 4, kind: output, shape index: {}]
  %s5 = sld [smem:[#allocation0]]
  $region65: #{aspp_forward.3} parent=0
    _
  %s7 = ssub.s32 1, %s5
  %s8 = scalar_select 0, %s7, %s5
  $region1: #{aspp_forward.3} parent=0
    #allocation2 [shape = 'u8[131072]{0}', space=vmem, size = 0x20000, scoped, tag = 'input window, operand 0']
    #allocation3 [shape = 's32[2]{0}', space=sflag, size = 0x8, scoped, tag = 'scoped memory for aspp_forward.3']
    #allocation4 [shape = 's32[2]{0}', space=sflag, size = 0x8, scoped, tag = 'scoped memory for aspp_forward.3']
    #allocation5 [shape = 'u8[1024]{0}', space=vmem, size = 0x400, scoped, tag = 'input window, operand 1']
    #allocation6 [shape = 's32[2]{0}', space=sflag, size = 0x8, scoped, tag = 'scoped memory for aspp_forward.3']
    #allocation7 [shape = 'u8[32768]{0}', space=vmem, size = 0x8000, scoped, tag = 'input window, operand 2, single buffered']
    #allocation8 [shape = 'u8[512]{0}', space=vmem, size = 0x400, scoped, tag = 'input window, operand 3, single buffered']
    #allocation9 [shape = 's32[1]{0}', space=sflag, size = 0x4, scoped, tag = 'scoped memory for aspp_forward.3']
    #allocation10 [shape = 'u8[262144]{0}', space=vmem, size = 0x40000, scoped, tag = 'output window, operand 0']
    %9 = vsyncpa [#allocation3], 0
    %s10 = scalar_lea.sflag [#allocation3], 1
    %11 = vsyncpa %s10, 0
    %12 = vsyncpa [#allocation6], 0
    %s13 = scalar_lea.sflag [#allocation6], 1
    %14 = vsyncpa %s13, 0
    %15 = vsyncpa [#allocation9], 0
    %16 = vsyncpa [#allocation4], 0
    %s17 = scalar_lea.sflag [#allocation4], 1
    %18 = vsyncpa %s17, 0
    loop: start=0, step=1, limit=4
    $region2: #{aspp_forward.3} parent=1 // loop_pre_header
      _
    $region3: #{aspp_forward.3} parent=1 // loop_header
      %s20 = sphi 0, %s24
      %p21 = scmp.ge.s32.totalorder %s20, 4
      %s27 = sphi 0, %s39
      %s28 = sphi 0, %s35
      %s29 = sphi 0, %s27
      %s30 = sphi 0, %s28
      %s31 = sphi 0, %s29
      %s32 = sphi 0, %s30
      %s44 = sphi 0, %s46
      %s47 = sphi 0, %s44
      %s48 = sphi 0, %s47
      %s64 = sphi 0, %s48
      %s70 = sphi 0, %s72
      %s73 = sphi 0, %s70
      %s74 = sphi 0, %s73
      %s90 = sphi 0, %s74
      %s94 = sphi 0, %s94
      %s96 = sphi 0, %s94
      %s97 = sphi 0, %s96
      %s111 = sphi 0, %s97
      %s115 = sphi 0, %s115
      %s117 = sphi 0, %s115
      %s118 = sphi 0, %s117
      %s132 = sphi 0, %s118
      %s140 = sphi 0, %s142
      %s143 = sphi 0, %s140
      %s144 = sphi 0, %s143
      %s160 = sphi 0, %s144
    $region4: #{aspp_forward.3} parent=1 // loop_header_branch
      %23 = sbr.rel (%p21) target = $region8
    $region5: #{aspp_forward.3} parent=1 // loop_body
      %s25 = ssub.s32 %s20, 1
      %s26 = ssub.s32 %s20, 2
      %s33 = sadd.s32 1, %s28
      %p34 = scmp.ge.s32.totalorder %s33, 1
      %s35 = scalar_select %p34, 0, %s33
      %s36 = sadd.s32 1, %s27
      %s37 = scalar_select %p34, %s36, %s27
      %p38 = scmp.ge.s32.totalorder %s37, 2
      %s39 = scalar_select %p38, 0, %s37
      %s40 = ssub.s32 %s27, %s39
      %s41 = ssub.s32 %s28, %s35
      %s42 = sor.u32 %s40, %s41
      %p43 = scmp.eq.s32.totalorder %s42, 0
      %s45 = sadd.s32 %s44, 1
      %s46 = scalar_select %p43, %s44, %s45
      %p49 = pneg %p43
      %p50 = scmp.eq.s32.totalorder %s20, 1
      %p51 = por %p49, %p50
      %p52 = scmp.ne.s32.totalorder %s44, %s47
      %p53 = scmp.eq.s32.totalorder %s20, 0
      %p54 = por %p52, %p53
      %p55 = scmp.ne.s32.totalorder %s44, %s47
      %p56 = scmp.eq.s32.totalorder %s25, 1
      %p57 = por %p55, %p56
      %p58 = scmp.ne.s32.totalorder %s47, %s48
      %p59 = scmp.eq.s32.totalorder %s25, 0
      %p60 = por %p58, %p59
      %p61 = scmp.ne.s32.totalorder %s47, %s48
      %p62 = scmp.eq.s32.totalorder %s26, 1
      %p63 = por %p61, %p62
      %p65 = scmp.ne.s32.totalorder %s48, %s64
      %p66 = scmp.eq.s32.totalorder %s26, 0
      %p67 = por %p65, %p66
      %s68 = ssub.s32 %s27, %s39
      %p69 = scmp.eq.s32.totalorder %s68, 0
      %s71 = sadd.s32 %s70, 1
      %s72 = scalar_select %p69, %s70, %s71
      %p75 = pneg %p69
      %p76 = scmp.eq.s32.totalorder %s20, 1
      %p77 = por %p75, %p76
      %p78 = scmp.ne.s32.totalorder %s70, %s73
      %p79 = scmp.eq.s32.totalorder %s20, 0
      %p80 = por %p78, %p79
      %p81 = scmp.ne.s32.totalorder %s70, %s73
      %p82 = scmp.eq.s32.totalorder %s25, 1
      %p83 = por %p81, %p82
      %p84 = scmp.ne.s32.totalorder %s73, %s74
      %p85 = scmp.eq.s32.totalorder %s25, 0
      %p86 = por %p84, %p85
      %p87 = scmp.ne.s32.totalorder %s73, %s74
      %p88 = scmp.eq.s32.totalorder %s26, 1
      %p89 = por %p87, %p88
      %p91 = scmp.ne.s32.totalorder %s74, %s90
      %p92 = scmp.eq.s32.totalorder %s26, 0
      %p93 = por %p91, %p92
      %s95 = sadd.s32 %s94, 1
      %p98 = scmp.eq.s32.totalorder %s20, 1
      %p99 = scmp.ne.s32.totalorder %s94, %s96
      %p100 = scmp.eq.s32.totalorder %s20, 0
      %p101 = por %p99, %p100
      %p102 = scmp.ne.s32.totalorder %s94, %s96
      %p103 = scmp.eq.s32.totalorder %s25, 1
      %p104 = por %p102, %p103
      %p105 = scmp.ne.s32.totalorder %s96, %s97
      %p106 = scmp.eq.s32.totalorder %s25, 0
      %p107 = por %p105, %p106
      %p108 = scmp.ne.s32.totalorder %s96, %s97
      %p109 = scmp.eq.s32.totalorder %s26, 1
      %p110 = por %p108, %p109
      %p112 = scmp.ne.s32.totalorder %s97, %s111
      %p113 = scmp.eq.s32.totalorder %s26, 0
      %p114 = por %p112, %p113
      %s116 = sadd.s32 %s115, 1
      %p119 = scmp.eq.s32.totalorder %s20, 1
      %p120 = scmp.ne.s32.totalorder %s115, %s117
      %p121 = scmp.eq.s32.totalorder %s20, 0
      %p122 = por %p120, %p121
      %p123 = scmp.ne.s32.totalorder %s115, %s117
      %p124 = scmp.eq.s32.totalorder %s25, 1
      %p125 = por %p123, %p124
      %p126 = scmp.ne.s32.totalorder %s117, %s118
      %p127 = scmp.eq.s32.totalorder %s25, 0
      %p128 = por %p126, %p127
      %p129 = scmp.ne.s32.totalorder %s117, %s118
      %p130 = scmp.eq.s32.totalorder %s26, 1
      %p131 = por %p129, %p130
      %p133 = scmp.ne.s32.totalorder %s118, %s132
      %p134 = scmp.eq.s32.totalorder %s26, 0
      %p135 = por %p133, %p134
      %s136 = ssub.s32 %s27, %s39
      %s137 = ssub.s32 %s28, %s35
      %s138 = sor.u32 %s136, %s137
      %p139 = scmp.eq.s32.totalorder %s138, 0
      %s141 = sadd.s32 %s140, 1
      %s142 = scalar_select %p139, %s140, %s141
      %p145 = pneg %p139
      %p146 = scmp.eq.s32.totalorder %s20, 1
      %p147 = por %p145, %p146
      %p148 = scmp.ne.s32.totalorder %s140, %s143
      %p149 = scmp.eq.s32.totalorder %s20, 0
      %p150 = por %p148, %p149
      %p151 = scmp.ne.s32.totalorder %s140, %s143
      %p152 = scmp.eq.s32.totalorder %s25, 1
      %p153 = por %p151, %p152
      %p154 = scmp.ne.s32.totalorder %s143, %s144
      %p155 = scmp.eq.s32.totalorder %s25, 0
      %p156 = por %p154, %p155
      %p157 = scmp.ne.s32.totalorder %s143, %s144
      %p158 = scmp.eq.s32.totalorder %s26, 1
      %p159 = por %p157, %p158
      %p161 = scmp.ne.s32.totalorder %s144, %s160
      %p162 = scmp.eq.s32.totalorder %s26, 0
      %p163 = por %p161, %p162
      %p164 = scmp.le.s32.totalorder 1, %s20
      %p165 = scmp.lt.s32.totalorder %s20, 3
      %p166 = pnand %p164, %p165
      %p167 = pneg %p166
      // Predicated region
      $region9: #{aspp_forward.3} parent=5 // pred_check
        _
      $region10: #{aspp_forward.3} parent=5 // pred_check_branch
        %169 = sbr.rel (%p166) target = $region12
      $region11: #{aspp_forward.3} parent=5 // pred_region
        %s170 = ssub.s32 %s20, 1
        // Predicated region
        $region13: #{aspp_forward.3} parent=11 // pred_check
          %p171 = pneg %p107
        $region14: #{aspp_forward.3} parent=11 // pred_check_branch
          %173 = sbr.rel (%p171) target = $region16
        $region15: #{aspp_forward.3} parent=11 // pred_region
          %s175 = ssub.s32 1024, 1024
          %176 = vsyncadd [#allocation6], %s175
          %s177 = sshll.u32 [#allocation7], 4
          %s178 = int_to_ptr.vmem [resolvable:$true] %s177
          %183 = dma.hbm_to_vmem [thread:$0]  %s2, 1024, %s178, [#allocation6], 64, 64, 4
        $region16: #{aspp_forward.3} parent=11 // pred_fallthru
          _
        // Predicated region
        $region17: #{aspp_forward.3} parent=11 // pred_check
          %p184 = pneg %p128
        $region18: #{aspp_forward.3} parent=11 // pred_check_branch
          %186 = sbr.rel (%p184) target = $region20
        $region19: #{aspp_forward.3} parent=11 // pred_region
          %s188 = ssub.s32 16, 16
          %189 = vsyncadd [#allocation9], %s188
          %s191 = sshll.u32 [#allocation8], 4
          %s192 = int_to_ptr.vmem [resolvable:$true] %s191
          %194 = dma.hbm_to_vmem [thread:$0]  %s3, 16, %s192, [#allocation9]
        $region20: #{aspp_forward.3} parent=11 // pred_fallthru
          _
      $region12: #{aspp_forward.3} parent=5 // pred_fallthru
        _
      %p195 = scmp.lt.s32.totalorder %s20, 2
      // Predicated region
      $region21: #{aspp_forward.3} parent=5 // pred_check
        %p196 = pneg %p195
      $region22: #{aspp_forward.3} parent=5 // pred_check_branch
        %198 = sbr.rel (%p196) target = $region24
      $region23: #{aspp_forward.3} parent=5 // pred_region
        // Predicated region
        $region25: #{aspp_forward.3} parent=23 // pred_check
          %p199 = pneg %p54
        $region26: #{aspp_forward.3} parent=23 // pred_check_branch
          %201 = sbr.rel (%p199) target = $region28
        $region27: #{aspp_forward.3} parent=23 // pred_region
          %s202 = sand.u32 %s44, 1
          %s203 = scalar_lea.sflag [#allocation3], %s202
          %s204 = sand.u32 %s44, 1
          %s205 = smul.addr %s204, 128
          %s206 = scalar_lea.vmem [#allocation2], %s205
          %s207 = smul.u32 32, %s28
          %s209 = ssub.s32 2048, 2048
          %210 = vsyncadd %s203, %s209
          %s211 = smul.addr %s27, 32
          %s212 = sadd.s32 %s207, %s211
          %s213 = smul.addr %s212, 64
          %s214 = scalar_lea.hbm %s0, %s213
          %s215 = sshll.u32 %s206, 4
          %s216 = int_to_ptr.vmem [resolvable:$true] %s215
          %221 = dma.hbm_to_vmem [thread:$0]  %s214, 2048, %s216, %s203, 64, 64, 4
        $region28: #{aspp_forward.3} parent=23 // pred_fallthru
          _
        // Predicated region
        $region29: #{aspp_forward.3} parent=23 // pred_check
          %p222 = pneg %p80
        $region30: #{aspp_forward.3} parent=23 // pred_check_branch
          %224 = sbr.rel (%p222) target = $region32
        $region31: #{aspp_forward.3} parent=23 // pred_region
          %s225 = sand.u32 %s20, 1
          %s226 = scalar_lea.sflag [#allocation6], %s225
          %s227 = sand.u32 %s70, 1
          %s228 = scalar_lea.vmem [#allocation5], %s227
          %s230 = ssub.s32 16, 16
          %231 = vsyncadd %s226, %s230
          %s232 = smul.addr %s27, 16
          %s233 = scalar_lea.hbm %s1, %s232
          %s235 = sshll.u32 %s228, 4
          %s236 = int_to_ptr.vmem [resolvable:$true] %s235
          %238 = dma.hbm_to_vmem [thread:$0]  %s233, 16, %s236, %s226
        $region32: #{aspp_forward.3} parent=23 // pred_fallthru
          _
      $region24: #{aspp_forward.3} parent=5 // pred_fallthru
        _
      %p239 = scmp.le.s32.totalorder 1, %s20
      %p240 = scmp.lt.s32.totalorder %s20, 3
      %p241 = pnand %p239, %p240
      %p242 = pneg %p241
      // Predicated region
      $region33: #{aspp_forward.3} parent=5 // pred_check
        _
      $region34: #{aspp_forward.3} parent=5 // pred_check_branch
        %244 = sbr.rel (%p241) target = $region36
      $region35: #{aspp_forward.3} parent=5 // pred_region
        %s245 = ssub.s32 %s20, 1
        %s246 = sand.u32 %s47, 1
        %s247 = scalar_lea.sflag [#allocation3], %s246
        %s248 = sand.u32 %s47, 1
        %s249 = smul.addr %s248, 128
        %s250 = scalar_lea.vmem [#allocation2], %s249
        // Predicated region
        $region37: #{aspp_forward.3} parent=35 // pred_check
          %p251 = pneg %p60
        $region38: #{aspp_forward.3} parent=35 // pred_check_branch
          %253 = sbr.rel (%p251) target = $region40
        $region39: #{aspp_forward.3} parent=35 // pred_region
          %254 = dma.done %s247, 2048
        $region40: #{aspp_forward.3} parent=35 // pred_fallthru
          _
        %s255 = sand.u32 %s25, 1
        %s256 = scalar_lea.sflag [#allocation6], %s255
        %s257 = sand.u32 %s73, 1
        %s258 = scalar_lea.vmem [#allocation5], %s257
        // Predicated region
        $region41: #{aspp_forward.3} parent=35 // pred_check
          %p259 = pneg %p86
        $region42: #{aspp_forward.3} parent=35 // pred_check_branch
          %261 = sbr.rel (%p259) target = $region44
        $region43: #{aspp_forward.3} parent=35 // pred_region
          %262 = dma.done %s256, 16
        $region44: #{aspp_forward.3} parent=35 // pred_fallthru
          _
        // Predicated region
        $region45: #{aspp_forward.3} parent=35 // pred_check
          %p263 = pneg %p107
        $region46: #{aspp_forward.3} parent=35 // pred_check_branch
          %265 = sbr.rel (%p263) target = $region48
        $region47: #{aspp_forward.3} parent=35 // pred_region
          %266 = dma.done [#allocation6], 1024
        $region48: #{aspp_forward.3} parent=35 // pred_fallthru
          _
        // Predicated region
        $region49: #{aspp_forward.3} parent=35 // pred_check
          %p267 = pneg %p128
        $region50: #{aspp_forward.3} parent=35 // pred_check_branch
          %269 = sbr.rel (%p267) target = $region52
        $region51: #{aspp_forward.3} parent=35 // pred_region
          %270 = dma.done [#allocation9], 16
        $region52: #{aspp_forward.3} parent=35 // pred_fallthru
          _
        %s271 = sand.u32 %s47, 1
        %s272 = scalar_lea.sflag [#allocation3], %s271
        %s273 = sand.u32 %s47, 1
        %s274 = smul.addr %s273, 128
        %s275 = scalar_lea.vmem [#allocation2], %s274
        %p276 = pneg %p60
        %p277 = pneg %p57
        %s278 = sand.u32 %s25, 1
        %s279 = scalar_lea.sflag [#allocation6], %s278
        %s280 = sand.u32 %s73, 1
        %s281 = scalar_lea.vmem [#allocation5], %s280
        %p282 = pneg %p86
        %p283 = pneg %p83
        %p284 = pneg %p107
        %p285 = pneg %p104
        %p286 = pneg %p128
        %p287 = pneg %p125
        %p288 = pneg %p156
        %p289 = pneg %p153
        %s290 = sand.u32 %s143, 1
        %s291 = scalar_lea.sflag [#allocation4], %s290
        %s292 = sand.u32 %s143, 1
        %s293 = smul.addr %s292, 256
        %s294 = scalar_lea.vmem [#allocation10], %s293
        %s295 = smul.u32 32, %s30
        %s296 = smul.u32 2, %s30
        %v298 = vld [vmem:[%s258] sm:$0x1]
        %v299 = vld [vmem:[#allocation7] sm:$0xf]
        %v300 = vld [vmem:[#allocation7 + $0x4] sm:$0xf]
        %v301 = vld [vmem:[#allocation7 + $0x8] sm:$0xf]
        %v302 = vld [vmem:[#allocation7 + $0xc] sm:$0xf]
        %v303 = vld [vmem:[#allocation7 + $0x10] sm:$0xf]
        %v304 = vld [vmem:[#allocation7 + $0x14] sm:$0xf]
        %v305 = vld [vmem:[#allocation7 + $0x18] sm:$0xf]
        %v306 = vld [vmem:[#allocation7 + $0x1c] sm:$0xf]
        %v307 = vld [vmem:[#allocation7 + $0x20] sm:$0xf]
        %v308 = vld [vmem:[#allocation7 + $0x24] sm:$0xf]
        %v309 = vld [vmem:[#allocation7 + $0x28] sm:$0xf]
        %v310 = vld [vmem:[#allocation7 + $0x2c] sm:$0xf]
        %v311 = vld [vmem:[#allocation7 + $0x30] sm:$0xf]
        %v312 = vld [vmem:[#allocation7 + $0x34] sm:$0xf]
        %v313 = vld [vmem:[#allocation7 + $0x38] sm:$0xf]
        %v314 = vld [vmem:[#allocation7 + $0x3c] sm:$0xf]
        %v331 = vunpack.c.l.b16 %v299
        %v332 = vunpack.c.l.b16 %v300
        %v333 = vunpack.c.l.b16 %v301
        %v334 = vunpack.c.l.b16 %v302
        %v335 = vunpack.c.l.b16 %v303
        %v336 = vunpack.c.l.b16 %v304
        %v337 = vunpack.c.l.b16 %v305
        %v338 = vunpack.c.l.b16 %v306
        %v339 = vunpack.c.l.b16 %v307
        %v340 = vunpack.c.l.b16 %v308
        %v341 = vunpack.c.l.b16 %v309
        %v342 = vunpack.c.l.b16 %v310
        %v343 = vunpack.c.l.b16 %v311
        %v344 = vunpack.c.l.b16 %v312
        %v345 = vunpack.c.l.b16 %v313
        %v346 = vunpack.c.l.b16 %v314
        %v347 = vpack.c.b16 %v332, %v331
        %v348 = vpack.c.b16 %v334, %v333
        %v349 = vpack.c.b16 %v336, %v335
        %v350 = vpack.c.b16 %v338, %v337
        %v351 = vpack.c.b16 %v340, %v339
        %v352 = vpack.c.b16 %v342, %v341
        %v353 = vpack.c.b16 %v344, %v343
        %v354 = vpack.c.b16 %v346, %v345
        %363 = vmatprep.subr.bf16.mxu0 0
        %364 = vmatpush1.bf16.msra.mxu0 %v347
        %365 = vmatprep.subr.bf16.mxu0 0
        %366 = vmatpush1.bf16.msra.mxu0 %v348
        %367 = vmatprep.subr.bf16.mxu0 0
        %368 = vmatpush1.bf16.msra.mxu0 %v349
        %369 = vmatprep.subr.bf16.mxu0 0
        %370 = vmatpush1.bf16.msra.mxu0 %v350
        %371 = vmatprep.subr.bf16.mxu0 0
        %372 = vmatpush1.bf16.msra.mxu0 %v351
        %373 = vmatprep.subr.bf16.mxu0 0
        %374 = vmatpush1.bf16.msra.mxu0 %v352
        %375 = vmatprep.subr.bf16.mxu0 0
        %376 = vmatpush1.bf16.msra.mxu0 %v353
        %377 = vmatprep.subr.bf16.mxu0 0
        %378 = vmatpush1.bf16.msra.mxu0 %v354
        %379 = vmatprep.subr.bf16.mxu0 0
        %380 = vmatpush1.bf16.msra.mxu0 0
        %381 = vmatprep.subr.bf16.mxu0 0
        %382 = vmatpush1.bf16.msra.mxu0 0
        %383 = vmatprep.subr.bf16.mxu0 0
        %384 = vmatpush1.bf16.msra.mxu0 0
        %385 = vmatprep.subr.bf16.mxu0 0
        %386 = vmatpush1.bf16.msra.mxu0 0
        %387 = vmatprep.subr.bf16.mxu0 0
        %388 = vmatpush1.bf16.msra.mxu0 0
        %389 = vmatprep.subr.bf16.mxu0 0
        %390 = vmatpush1.bf16.msra.mxu0 0
        %391 = vmatprep.subr.bf16.mxu0 0
        %392 = vmatpush1.bf16.msra.mxu0 0
        %393 = vmatprep.subr.bf16.mxu0 0
        %394 = vmatpush1.bf16.msra.mxu0 0
        %395 = vmatprep.mubr.bf16.mxu0 0
        %396 = vmatmul.mubr.bf16.gmra.mrb[0].mxu0 %v298
        %v397 = vpop.f32.mrb[0].mxu0
        %v398 = vadd.f32 0.0, %v397
        %v399 = vpop.f32.mrb[0].mxu0
        %v400 = vpop.f32.mrb[0].mxu0
        %v401 = vpop.f32.mrb[0].mxu0
        %402 = vdwg.mxu0
        %v403 = vld [vmem:[%s250] sm:$0xf]
        %v404 = vld [vmem:[%s250 + $0x4] sm:$0xf]
        %v405 = vld [vmem:[%s250 + $0x8] sm:$0xf]
        %v406 = vld [vmem:[%s250 + $0xc] sm:$0xf]
        %v407 = vld [vmem:[%s250 + $0x10] sm:$0xf]
        %v408 = vld [vmem:[%s250 + $0x14] sm:$0xf]
        %v409 = vld [vmem:[%s250 + $0x18] sm:$0xf]
        %v410 = vld [vmem:[%s250 + $0x1c] sm:$0xf]
        %v411 = vld [vmem:[%s250 + $0x20] sm:$0xf]
        %v412 = vld [vmem:[%s250 + $0x24] sm:$0xf]
        %v413 = vld [vmem:[%s250 + $0x28] sm:$0xf]
        %v414 = vld [vmem:[%s250 + $0x2c] sm:$0xf]
        %v415 = vld [vmem:[%s250 + $0x30] sm:$0xf]
        %v416 = vld [vmem:[%s250 + $0x34] sm:$0xf]
        %v417 = vld [vmem:[%s250 + $0x38] sm:$0xf]
        %v418 = vld [vmem:[%s250 + $0x3c] sm:$0xf]
        %v419 = vld [vmem:[%s250 + $0x40] sm:$0xf]
        %v420 = vld [vmem:[%s250 + $0x44] sm:$0xf]
        %v421 = vld [vmem:[%s250 + $0x48] sm:$0xf]
        %v422 = vld [vmem:[%s250 + $0x4c] sm:$0xf]
        %v423 = vld [vmem:[%s250 + $0x50] sm:$0xf]
        %v424 = vld [vmem:[%s250 + $0x54] sm:$0xf]
        %v425 = vld [vmem:[%s250 + $0x58] sm:$0xf]
        %v426 = vld [vmem:[%s250 + $0x5c] sm:$0xf]
        %v427 = vld [vmem:[%s250 + $0x60] sm:$0xf]
        %v428 = vld [vmem:[%s250 + $0x64] sm:$0xf]
        %v429 = vld [vmem:[%s250 + $0x68] sm:$0xf]
        %v430 = vld [vmem:[%s250 + $0x6c] sm:$0xf]
        %v431 = vld [vmem:[%s250 + $0x70] sm:$0xf]
        %v432 = vld [vmem:[%s250 + $0x74] sm:$0xf]
        %v433 = vld [vmem:[%s250 + $0x78] sm:$0xf]
        %v434 = vld [vmem:[%s250 + $0x7c] sm:$0xf]
        %v435 = vunpack.c.l.bf16 %v403
        %v436 = vunpack.c.l.bf16 %v404
        %v437 = vunpack.c.l.bf16 %v405
        %v438 = vunpack.c.l.bf16 %v406
        %v439 = vunpack.c.l.bf16 %v407
        %v440 = vunpack.c.l.bf16 %v408
        %v441 = vunpack.c.l.bf16 %v409
        %v442 = vunpack.c.l.bf16 %v410
        %v443 = vunpack.c.l.bf16 %v411
        %v444 = vunpack.c.l.bf16 %v412
        %v445 = vunpack.c.l.bf16 %v413
        %v446 = vunpack.c.l.bf16 %v414
        %v447 = vunpack.c.l.bf16 %v415
        %v448 = vunpack.c.l.bf16 %v416
        %v449 = vunpack.c.l.bf16 %v417
        %v450 = vunpack.c.l.bf16 %v418
        %v451 = vunpack.c.l.bf16 %v419
        %v452 = vunpack.c.l.bf16 %v420
        %v453 = vunpack.c.l.bf16 %v421
        %v454 = vunpack.c.l.bf16 %v422
        %v455 = vunpack.c.l.bf16 %v423
        %v456 = vunpack.c.l.bf16 %v424
        %v457 = vunpack.c.l.bf16 %v425
        %v458 = vunpack.c.l.bf16 %v426
        %v459 = vunpack.c.l.bf16 %v427
        %v460 = vunpack.c.l.bf16 %v428
        %v461 = vunpack.c.l.bf16 %v429
        %v462 = vunpack.c.l.bf16 %v430
        %v463 = vunpack.c.l.bf16 %v431
        %v464 = vunpack.c.l.bf16 %v432
        %v465 = vunpack.c.l.bf16 %v433
        %v466 = vunpack.c.l.bf16 %v434
        %v467 = vlaneseq
        %v468 = vshrl.u32 %v467, 7
        %v469 = vsub.s32 0, %v468
        %v470 = vrot.slane %v398, %v469
        %v471 = vadd.f32 %v435, %v470
        %v472 = vadd.f32 %v436, %v470
        %v473 = vadd.f32 %v437, %v470
        %v474 = vadd.f32 %v438, %v470
        %v475 = vadd.f32 %v439, %v470
        %v476 = vadd.f32 %v440, %v470
        %v477 = vadd.f32 %v441, %v470
        %v478 = vadd.f32 %v442, %v470
        %v479 = vadd.f32 %v443, %v470
        %v480 = vadd.f32 %v444, %v470
        %v481 = vadd.f32 %v445, %v470
        %v482 = vadd.f32 %v446, %v470
        %v483 = vadd.f32 %v447, %v470
        %v484 = vadd.f32 %v448, %v470
        %v485 = vadd.f32 %v449, %v470
        %v486 = vadd.f32 %v450, %v470
        %v487 = vadd.f32 %v451, %v470
        %v488 = vadd.f32 %v452, %v470
        %v489 = vadd.f32 %v453, %v470
        %v490 = vadd.f32 %v454, %v470
        %v491 = vadd.f32 %v455, %v470
        %v492 = vadd.f32 %v456, %v470
        %v493 = vadd.f32 %v457, %v470
        %v494 = vadd.f32 %v458, %v470
        %v495 = vadd.f32 %v459, %v470
        %v496 = vadd.f32 %v460, %v470
        %v497 = vadd.f32 %v461, %v470
        %v498 = vadd.f32 %v462, %v470
        %v499 = vadd.f32 %v463, %v470
        %v500 = vadd.f32 %v464, %v470
        %v501 = vadd.f32 %v465, %v470
        %v502 = vadd.f32 %v466, %v470
        %v503 = vld [vmem:[#allocation8] sm:$0x1]
        %v505 = vlaneseq
        %v506 = vshrl.u32 %v505, 7
        %v507 = vsub.s32 0, %v506
        %v508 = vrot.slane %v503, %v507
        %v510 = vadd.f32 %v471, %v508
        %v511 = vadd.f32 %v472, %v508
        %v512 = vadd.f32 %v473, %v508
        %v513 = vadd.f32 %v474, %v508
        %v514 = vadd.f32 %v475, %v508
        %v515 = vadd.f32 %v476, %v508
        %v516 = vadd.f32 %v477, %v508
        %v517 = vadd.f32 %v478, %v508
        %v518 = vadd.f32 %v479, %v508
        %v519 = vadd.f32 %v480, %v508
        %v520 = vadd.f32 %v481, %v508
        %v521 = vadd.f32 %v482, %v508
        %v522 = vadd.f32 %v483, %v508
        %v523 = vadd.f32 %v484, %v508
        %v524 = vadd.f32 %v485, %v508
        %v525 = vadd.f32 %v486, %v508
        %v526 = vadd.f32 %v487, %v508
        %v527 = vadd.f32 %v488, %v508
        %v528 = vadd.f32 %v489, %v508
        %v529 = vadd.f32 %v490, %v508
        %v530 = vadd.f32 %v491, %v508
        %v531 = vadd.f32 %v492, %v508
        %v532 = vadd.f32 %v493, %v508
        %v533 = vadd.f32 %v494, %v508
        %v534 = vadd.f32 %v495, %v508
        %v535 = vadd.f32 %v496, %v508
        %v536 = vadd.f32 %v497, %v508
        %v537 = vadd.f32 %v498, %v508
        %v538 = vadd.f32 %v499, %v508
        %v539 = vadd.f32 %v500, %v508
        %v540 = vadd.f32 %v501, %v508
        %v541 = vadd.f32 %v502, %v508
        %v542 = vmax.f32 %v510, 0.0
        %v543 = vmax.f32 %v511, 0.0
        %v544 = vmax.f32 %v512, 0.0
        %v545 = vmax.f32 %v513, 0.0
        %v546 = vmax.f32 %v514, 0.0
        %v547 = vmax.f32 %v515, 0.0
        %v548 = vmax.f32 %v516, 0.0
        %v549 = vmax.f32 %v517, 0.0
        %v550 = vmax.f32 %v518, 0.0
        %v551 = vmax.f32 %v519, 0.0
        %v552 = vmax.f32 %v520, 0.0
        %v553 = vmax.f32 %v521, 0.0
        %v554 = vmax.f32 %v522, 0.0
        %v555 = vmax.f32 %v523, 0.0
        %v556 = vmax.f32 %v524, 0.0
        %v557 = vmax.f32 %v525, 0.0
        %v558 = vmax.f32 %v526, 0.0
        %v559 = vmax.f32 %v527, 0.0
        %v560 = vmax.f32 %v528, 0.0
        %v561 = vmax.f32 %v529, 0.0
        %v562 = vmax.f32 %v530, 0.0
        %v563 = vmax.f32 %v531, 0.0
        %v564 = vmax.f32 %v532, 0.0
        %v565 = vmax.f32 %v533, 0.0
        %v566 = vmax.f32 %v534, 0.0
        %v567 = vmax.f32 %v535, 0.0
        %v568 = vmax.f32 %v536, 0.0
        %v569 = vmax.f32 %v537, 0.0
        %v570 = vmax.f32 %v538, 0.0
        %v571 = vmax.f32 %v539, 0.0
        %v572 = vmax.f32 %v540, 0.0
        %v573 = vmax.f32 %v541, 0.0
        %574 = vxpose.xlu0.b32.start [1/16] %v542, 128
        %575 = vxpose.xlu0.b32.cont [2/16] %v543, 128
        %576 = vxpose.xlu0.b32.cont [3/16] %v544, 128
        %577 = vxpose.xlu0.b32.cont [4/16] %v545, 128
        %578 = vxpose.xlu0.b32.cont [5/16] %v546, 128
        %579 = vxpose.xlu0.b32.cont [6/16] %v547, 128
        %580 = vxpose.xlu0.b32.cont [7/16] %v548, 128
        %581 = vxpose.xlu0.b32.cont [8/16] %v549, 128
        %582 = vxpose.xlu0.b32.cont [9/16] %v550, 128
        %583 = vxpose.xlu0.b32.cont [10/16] %v551, 128
        %584 = vxpose.xlu0.b32.cont [11/16] %v552, 128
        %585 = vxpose.xlu0.b32.cont [12/16] %v553, 128
        %586 = vxpose.xlu0.b32.cont [13/16] %v554, 128
        %587 = vxpose.xlu0.b32.cont [14/16] %v555, 128
        %588 = vxpose.xlu0.b32.cont [15/16] %v556, 128
        %589 = vxpose.xlu0.b32.end [16/16] %v557, 128
        %v590 = vpop.trf.xlu0
        %v591 = vpop.trf.xlu0
        %v592 = vpop.trf.xlu0
        %v593 = vpop.trf.xlu0
        %v594 = vpop.trf.xlu0
        %v595 = vpop.trf.xlu0
        %v596 = vpop.trf.xlu0
        %v597 = vpop.trf.xlu0
        %v598 = vpop.trf.xlu0
        %v599 = vpop.trf.xlu0
        %v600 = vpop.trf.xlu0
        %v601 = vpop.trf.xlu0
        %v602 = vpop.trf.xlu0
        %v603 = vpop.trf.xlu0
        %v604 = vpop.trf.xlu0
        %v605 = vpop.trf.xlu0
        %606 = vxpose.xlu0.b32.start [1/16] %v558, 128
        %607 = vxpose.xlu0.b32.cont [2/16] %v559, 128
        %608 = vxpose.xlu0.b32.cont [3/16] %v560, 128
        %609 = vxpose.xlu0.b32.cont [4/16] %v561, 128
        %610 = vxpose.xlu0.b32.cont [5/16] %v562, 128
        %611 = vxpose.xlu0.b32.cont [6/16] %v563, 128
        %612 = vxpose.xlu0.b32.cont [7/16] %v564, 128
        %613 = vxpose.xlu0.b32.cont [8/16] %v565, 128
        %614 = vxpose.xlu0.b32.cont [9/16] %v566, 128
        %615 = vxpose.xlu0.b32.cont [10/16] %v567, 128
        %616 = vxpose.xlu0.b32.cont [11/16] %v568, 128
        %617 = vxpose.xlu0.b32.cont [12/16] %v569, 128
        %618 = vxpose.xlu0.b32.cont [13/16] %v570, 128
        %619 = vxpose.xlu0.b32.cont [14/16] %v571, 128
        %620 = vxpose.xlu0.b32.cont [15/16] %v572, 128
        %621 = vxpose.xlu0.b32.end [16/16] %v573, 128
        %v622 = vpop.trf.xlu0
        %v623 = vpop.trf.xlu0
        %v624 = vpop.trf.xlu0
        %v625 = vpop.trf.xlu0
        %v626 = vpop.trf.xlu0
        %v627 = vpop.trf.xlu0
        %v628 = vpop.trf.xlu0
        %v629 = vpop.trf.xlu0
        %v630 = vpop.trf.xlu0
        %v631 = vpop.trf.xlu0
        %v632 = vpop.trf.xlu0
        %v633 = vpop.trf.xlu0
        %v634 = vpop.trf.xlu0
        %v635 = vpop.trf.xlu0
        %v636 = vpop.trf.xlu0
        %v637 = vpop.trf.xlu0
        %638 = vst [vmem:[%s294] sm:$0xff] %v590
        %639 = vst [vmem:[%s294 + $0x8] sm:$0xff] %v622
        %640 = vst [vmem:[%s294 + $0x10] sm:$0xff] %v591
        %641 = vst [vmem:[%s294 + $0x18] sm:$0xff] %v623
        %642 = vst [vmem:[%s294 + $0x20] sm:$0xff] %v592
        %643 = vst [vmem:[%s294 + $0x28] sm:$0xff] %v624
        %644 = vst [vmem:[%s294 + $0x30] sm:$0xff] %v593
        %645 = vst [vmem:[%s294 + $0x38] sm:$0xff] %v625
        %646 = vst [vmem:[%s294 + $0x40] sm:$0xff] %v594
        %647 = vst [vmem:[%s294 + $0x48] sm:$0xff] %v626
        %648 = vst [vmem:[%s294 + $0x50] sm:$0xff] %v595
        %649 = vst [vmem:[%s294 + $0x58] sm:$0xff] %v627
        %650 = vst [vmem:[%s294 + $0x60] sm:$0xff] %v596
        %651 = vst [vmem:[%s294 + $0x68] sm:$0xff] %v628
        %652 = vst [vmem:[%s294 + $0x70] sm:$0xff] %v597
        %653 = vst [vmem:[%s294 + $0x78] sm:$0xff] %v629
        %654 = vst [vmem:[%s294 + $0x80] sm:$0xff] %v598
        %655 = vst [vmem:[%s294 + $0x88] sm:$0xff] %v630
        %656 = vst [vmem:[%s294 + $0x90] sm:$0xff] %v599
        %657 = vst [vmem:[%s294 + $0x98] sm:$0xff] %v631
        %658 = vst [vmem:[%s294 + $0xa0] sm:$0xff] %v600
        %659 = vst [vmem:[%s294 + $0xa8] sm:$0xff] %v632
        %660 = vst [vmem:[%s294 + $0xb0] sm:$0xff] %v601
        %661 = vst [vmem:[%s294 + $0xb8] sm:$0xff] %v633
        %662 = vst [vmem:[%s294 + $0xc0] sm:$0xff] %v602
        %663 = vst [vmem:[%s294 + $0xc8] sm:$0xff] %v634
        %664 = vst [vmem:[%s294 + $0xd0] sm:$0xff] %v603
        %665 = vst [vmem:[%s294 + $0xd8] sm:$0xff] %v635
        %666 = vst [vmem:[%s294 + $0xe0] sm:$0xff] %v604
        %667 = vst [vmem:[%s294 + $0xe8] sm:$0xff] %v636
        %668 = vst [vmem:[%s294 + $0xf0] sm:$0xff] %v605
        %669 = vst [vmem:[%s294 + $0xf8] sm:$0xff] %v637
        %s670 = sand.u32 %s143, 1
        %s671 = scalar_lea.sflag [#allocation4], %s670
        %s672 = sand.u32 %s143, 1
        %s673 = smul.addr %s672, 256
        %s674 = scalar_lea.vmem [#allocation10], %s673
        // Predicated region
        $region53: #{aspp_forward.3} parent=35 // pred_check
          %p675 = pneg %p153
        $region54: #{aspp_forward.3} parent=35 // pred_check_branch
          %677 = sbr.rel (%p675) target = $region56
        $region55: #{aspp_forward.3} parent=35 // pred_region
          %s678 = smul.u32 2, %s30
          %s680 = ssub.s32 4096, 4096
          %681 = vsyncadd %s671, %s680
          %s682 = smul.addr %s29, 32
          %s683 = sadd.s32 %s678, %s682
          %s684 = smul.addr %s683, 128
          %s685 = scalar_lea.hbm %s4, %s684
          %s686 = sshll.u32 %s674, 4
          %s687 = int_to_ptr.vmem [resolvable:$true] %s686
          %692 = dma.vmem_to_hbm [thread:$0]  %s687, 4096, %s685, %s671, 256, 256, 16
        $region56: #{aspp_forward.3} parent=35 // pred_fallthru
          _
      $region36: #{aspp_forward.3} parent=5 // pred_fallthru
        _
      %p693 = scmp.le.s32.totalorder 2, %s20
      // Predicated region
      $region57: #{aspp_forward.3} parent=5 // pred_check
        %p694 = pneg %p693
      $region58: #{aspp_forward.3} parent=5 // pred_check_branch
        %696 = sbr.rel (%p694) target = $region60
      $region59: #{aspp_forward.3} parent=5 // pred_region
        %s697 = ssub.s32 %s20, 2
        // Predicated region
        $region61: #{aspp_forward.3} parent=59 // pred_check
          %p698 = pneg %p159
        $region62: #{aspp_forward.3} parent=59 // pred_check_branch
          %700 = sbr.rel (%p698) target = $region64
        $region63: #{aspp_forward.3} parent=59 // pred_region
          %s701 = sand.u32 %s144, 1
          %s702 = scalar_lea.sflag [#allocation4], %s701
          %s703 = sand.u32 %s144, 1
          %s704 = smul.addr %s703, 256
          %s705 = scalar_lea.vmem [#allocation10], %s704
          %706 = dma.done %s702, 4096
        $region64: #{aspp_forward.3} parent=59 // pred_fallthru
          _
      $region60: #{aspp_forward.3} parent=5 // pred_fallthru
        _
    $region6: #{aspp_forward.3} parent=1 // loop_footer
      %s24 = sadd.s32 1, %s20
    $region7: #{aspp_forward.3} parent=1 // loop_footer_branch
      %19 = sbr.rel target = $region3
    $region8: #{aspp_forward.3} parent=1 // loop_exit
      _
    %707 = vsyncpa [#allocation3], 1
    %s708 = scalar_lea.sflag [#allocation3], 1
    %709 = vsyncpa %s708, 1
    %710 = vsyncpa [#allocation6], 1
    %s711 = scalar_lea.sflag [#allocation6], 1
    %712 = vsyncpa %s711, 1
    %713 = vsyncpa [#allocation9], 1
    %714 = vsyncpa [#allocation4], 1
    %s715 = scalar_lea.sflag [#allocation4], 1
    %716 = vsyncpa %s715, 1

// kernel: aspp_forward.2
$region0: #{aspp_forward.2}
  #allocation0 [shape = 'u32[]', space=smem, size = 0x4, offset = 0x4, fixed_abs, tag = 'smem constant byte address 0x4 - core index']
  #allocation1 [shape = 'u32[144,128]{1,0:T(1,128)}', space=vmem, size = 0x12000, scoped, tag = 'internal scratch']
  #allocation2 [shape = 'f32[52,52,4]{2,1,0:T(8,128)}', space=vmem, size = 0x16c000, scoped, tag = 'scratch operand']
  #allocation3 [shape = 'f32[256,128]{1,0:T(8,128)}', space=vmem, size = 0x20000, scoped, tag = 'scratch operand']
  #allocation4 [shape = 'f32[256,128]{1,0:T(8,128)}', space=vmem, size = 0x20000, scoped, tag = 'scratch operand']
  #allocation5 [shape = 'f32[256,128]{1,0:T(8,128)}', space=vmem, size = 0x20000, scoped, tag = 'scratch operand']
  #allocation6 [shape = 'f32[256,128]{1,0:T(8,128)}', space=vmem, size = 0x20000, scoped, tag = 'scratch operand']
  %s0 = inlined_call_operand.hbm [shape: bf16[2,16,16,4], index: 0, kind: input, shape index: {}]
  %s1 = inlined_call_operand.hbm [shape: f32[3,3,3,4], index: 1, kind: input, shape index: {}]
  %s2 = inlined_call_operand.hbm [shape: bf16[4,4,128], index: 2, kind: input, shape index: {}]
  %s3 = inlined_call_operand.hbm [shape: bf16[4,128,128], index: 3, kind: input, shape index: {}]
  %s4 = inlined_call_operand.hbm [shape: f32[4,1,128], index: 4, kind: input, shape index: {}]
  %s5 = inlined_call_operand.hbm [shape: bf16[2,256,128], index: 5, kind: output, shape index: {0}]
  %s6 = inlined_call_operand.hbm [shape: f32[2,1,4], index: 6, kind: output, shape index: {1}]
  %7 = xla_tuple %s5, %s6
  %s8 = sld [smem:[#allocation0]]
  $region89: #{aspp_forward.2} parent=0
    _
  %s10 = ssub.s32 1, %s8
  %s11 = scalar_select 0, %s10, %s8
  $region1: #{aspp_forward.2} parent=0
    #allocation7 [shape = 'u8[131072]{0}', space=vmem, size = 0x20000, scoped, tag = 'input window, operand 0']
    #allocation8 [shape = 's32[2]{0}', space=sflag, size = 0x8, scoped, tag = 'scoped memory for aspp_forward.2']
    #allocation9 [shape = 's32[2]{0}', space=sflag, size = 0x8, scoped, tag = 'scoped memory for aspp_forward.2']
    #allocation10 [shape = 'u8[18432]{0}', space=vmem, size = 0x4800, scoped, tag = 'input window, operand 1, single buffered']
    #allocation11 [shape = 's32[1]{0}', space=sflag, size = 0x4, scoped, tag = 'scoped memory for aspp_forward.2']
    #allocation12 [shape = 'u8[4096]{0}', space=vmem, size = 0x1000, scoped, tag = 'input window, operand 2, single buffered']
    #allocation13 [shape = 'u8[131072]{0}', space=vmem, size = 0x20000, scoped, tag = 'input window, operand 3, single buffered']
    #allocation14 [shape = 's32[1]{0}', space=sflag, size = 0x4, scoped, tag = 'scoped memory for aspp_forward.2']
    #allocation15 [shape = 'u8[2048]{0}', space=vmem, size = 0x800, scoped, tag = 'input window, operand 4, single buffered']
    #allocation16 [shape = 'u8[131072]{0}', space=vmem, size = 0x20000, scoped, tag = 'output window, operand 0']
    #allocation17 [shape = 'u8[1024]{0}', space=vmem, size = 0x400, scoped, tag = 'output window, operand 1']
    #allocation18 [shape = 's32[2]{0}', space=sflag, size = 0x8, scoped, tag = 'scoped memory for aspp_forward.2']
    %12 = vsyncpa [#allocation8], 0
    %s13 = scalar_lea.sflag [#allocation8], 1
    %14 = vsyncpa %s13, 0
    %15 = vsyncpa [#allocation11], 0
    %16 = vsyncpa [#allocation14], 0
    %17 = vsyncpa [#allocation9], 0
    %s18 = scalar_lea.sflag [#allocation9], 1
    %19 = vsyncpa %s18, 0
    %20 = vsyncpa [#allocation18], 0
    %s21 = scalar_lea.sflag [#allocation18], 1
    %22 = vsyncpa %s21, 0
    loop: start=0, step=1, limit=4
    $region2: #{aspp_forward.2} parent=1 // loop_pre_header
      _
    $region3: #{aspp_forward.2} parent=1 // loop_header
      %s24 = sphi 0, %s28
      %p25 = scmp.ge.s32.totalorder %s24, 4
      %s31 = sphi 0, %s43
      %s32 = sphi 0, %s39
      %s33 = sphi 0, %s31
      %s34 = sphi 0, %s32
      %s35 = sphi 0, %s33
      %s36 = sphi 0, %s34
      %s48 = sphi 0, %s50
      %s51 = sphi 0, %s48
      %s52 = sphi 0, %s51
      %s68 = sphi 0, %s52
      %s74 = sphi 0, %s76
      %s77 = sphi 0, %s74
      %s78 = sphi 0, %s77
      %s94 = sphi 0, %s78
      %s100 = sphi 0, %s102
      %s103 = sphi 0, %s100
      %s104 = sphi 0, %s103
      %s120 = sphi 0, %s104
      %s124 = sphi 0, %s124
      %s126 = sphi 0, %s124
      %s127 = sphi 0, %s126
      %s141 = sphi 0, %s127
      %s145 = sphi 0, %s145
      %s147 = sphi 0, %s145
      %s148 = sphi 0, %s147
      %s162 = sphi 0, %s148
      %s168 = sphi 0, %s170
      %s171 = sphi 0, %s168
      %s172 = sphi 0, %s171
      %s188 = sphi 0, %s172
      %s196 = sphi 0, %s198
      %s199 = sphi 0, %s196
      %s200 = sphi 0, %s199
      %s216 = sphi 0, %s200
    $region4: #{aspp_forward.2} parent=1 // loop_header_branch
      %27 = sbr.rel (%p25) target = $region8
    $region5: #{aspp_forward.2} parent=1 // loop_body
      %s29 = ssub.s32 %s24, 1
      %s30 = ssub.s32 %s24, 2
      %s37 = sadd.s32 1, %s32
      %p38 = scmp.ge.s32.totalorder %s37, 1
      %s39 = scalar_select %p38, 0, %s37
      %s40 = sadd.s32 1, %s31
      %s41 = scalar_select %p38, %s40, %s31
      %p42 = scmp.ge.s32.totalorder %s41, 2
      %s43 = scalar_select %p42, 0, %s41
      %s44 = ssub.s32 %s31, %s43
      %s45 = ssub.s32 %s32, %s39
      %s46 = sor.u32 %s44, %s45
      %p47 = scmp.eq.s32.totalorder %s46, 0
      %s49 = sadd.s32 %s48, 1
      %s50 = scalar_select %p47, %s48, %s49
      %p53 = pneg %p47
      %p54 = scmp.eq.s32.totalorder %s24, 1
      %p55 = por %p53, %p54
      %p56 = scmp.ne.s32.totalorder %s48, %s51
      %p57 = scmp.eq.s32.totalorder %s24, 0
      %p58 = por %p56, %p57
      %p59 = scmp.ne.s32.totalorder %s48, %s51
      %p60 = scmp.eq.s32.totalorder %s29, 1
      %p61 = por %p59, %p60
      %p62 = scmp.ne.s32.totalorder %s51, %s52
      %p63 = scmp.eq.s32.totalorder %s29, 0
      %p64 = por %p62, %p63
      %p65 = scmp.ne.s32.totalorder %s51, %s52
      %p66 = scmp.eq.s32.totalorder %s30, 1
      %p67 = por %p65, %p66
      %p69 = scmp.ne.s32.totalorder %s52, %s68
      %p70 = scmp.eq.s32.totalorder %s30, 0
      %p71 = por %p69, %p70
      %s72 = ssub.s32 %s32, %s39
      %p73 = scmp.eq.s32.totalorder %s72, 0
      %s75 = sadd.s32 %s74, 1
      %s76 = scalar_select %p73, %s74, %s75
      %p79 = pneg %p73
      %p80 = scmp.eq.s32.totalorder %s24, 1
      %p81 = por %p79, %p80
      %p82 = scmp.ne.s32.totalorder %s74, %s77
      %p83 = scmp.eq.s32.totalorder %s24, 0
      %p84 = por %p82, %p83
      %p85 = scmp.ne.s32.totalorder %s74, %s77
      %p86 = scmp.eq.s32.totalorder %s29, 1
      %p87 = por %p85, %p86
      %p88 = scmp.ne.s32.totalorder %s77, %s78
      %p89 = scmp.eq.s32.totalorder %s29, 0
      %p90 = por %p88, %p89
      %p91 = scmp.ne.s32.totalorder %s77, %s78
      %p92 = scmp.eq.s32.totalorder %s30, 1
      %p93 = por %p91, %p92
      %p95 = scmp.ne.s32.totalorder %s78, %s94
      %p96 = scmp.eq.s32.totalorder %s30, 0
      %p97 = por %p95, %p96
      %s98 = ssub.s32 %s32, %s39
      %p99 = scmp.eq.s32.totalorder %s98, 0
      %s101 = sadd.s32 %s100, 1
      %s102 = scalar_select %p99, %s100, %s101
      %p105 = pneg %p99
      %p106 = scmp.eq.s32.totalorder %s24, 1
      %p107 = por %p105, %p106
      %p108 = scmp.ne.s32.totalorder %s100, %s103
      %p109 = scmp.eq.s32.totalorder %s24, 0
      %p110 = por %p108, %p109
      %p111 = scmp.ne.s32.totalorder %s100, %s103
      %p112 = scmp.eq.s32.totalorder %s29, 1
      %p113 = por %p111, %p112
      %p114 = scmp.ne.s32.totalorder %s103, %s104
      %p115 = scmp.eq.s32.totalorder %s29, 0
      %p116 = por %p114, %p115
      %p117 = scmp.ne.s32.totalorder %s103, %s104
      %p118 = scmp.eq.s32.totalorder %s30, 1
      %p119 = por %p117, %p118
      %p121 = scmp.ne.s32.totalorder %s104, %s120
      %p122 = scmp.eq.s32.totalorder %s30, 0
      %p123 = por %p121, %p122
      %s125 = sadd.s32 %s124, 1
      %p128 = scmp.eq.s32.totalorder %s24, 1
      %p129 = scmp.ne.s32.totalorder %s124, %s126
      %p130 = scmp.eq.s32.totalorder %s24, 0
      %p131 = por %p129, %p130
      %p132 = scmp.ne.s32.totalorder %s124, %s126
      %p133 = scmp.eq.s32.totalorder %s29, 1
      %p134 = por %p132, %p133
      %p135 = scmp.ne.s32.totalorder %s126, %s127
      %p136 = scmp.eq.s32.totalorder %s29, 0
      %p137 = por %p135, %p136
      %p138 = scmp.ne.s32.totalorder %s126, %s127
      %p139 = scmp.eq.s32.totalorder %s30, 1
      %p140 = por %p138, %p139
      %p142 = scmp.ne.s32.totalorder %s127, %s141
      %p143 = scmp.eq.s32.totalorder %s30, 0
      %p144 = por %p142, %p143
      %s146 = sadd.s32 %s145, 1
      %p149 = scmp.eq.s32.totalorder %s24, 1
      %p150 = scmp.ne.s32.totalorder %s145, %s147
      %p151 = scmp.eq.s32.totalorder %s24, 0
      %p152 = por %p150, %p151
      %p153 = scmp.ne.s32.totalorder %s145, %s147
      %p154 = scmp.eq.s32.totalorder %s29, 1
      %p155 = por %p153, %p154
      %p156 = scmp.ne.s32.totalorder %s147, %s148
      %p157 = scmp.eq.s32.totalorder %s29, 0
      %p158 = por %p156, %p157
      %p159 = scmp.ne.s32.totalorder %s147, %s148
      %p160 = scmp.eq.s32.totalorder %s30, 1
      %p161 = por %p159, %p160
      %p163 = scmp.ne.s32.totalorder %s148, %s162
      %p164 = scmp.eq.s32.totalorder %s30, 0
      %p165 = por %p163, %p164
      %s166 = ssub.s32 %s31, %s43
      %p167 = scmp.eq.s32.totalorder %s166, 0
      %s169 = sadd.s32 %s168, 1
      %s170 = scalar_select %p167, %s168, %s169
      %p173 = pneg %p167
      %p174 = scmp.eq.s32.totalorder %s24, 1
      %p175 = por %p173, %p174
      %p176 = scmp.ne.s32.totalorder %s168, %s171
      %p177 = scmp.eq.s32.totalorder %s24, 0
      %p178 = por %p176, %p177
      %p179 = scmp.ne.s32.totalorder %s168, %s171
      %p180 = scmp.eq.s32.totalorder %s29, 1
      %p181 = por %p179, %p180
      %p182 = scmp.ne.s32.totalorder %s171, %s172
      %p183 = scmp.eq.s32.totalorder %s29, 0
      %p184 = por %p182, %p183
      %p185 = scmp.ne.s32.totalorder %s171, %s172
      %p186 = scmp.eq.s32.totalorder %s30, 1
      %p187 = por %p185, %p186
      %p189 = scmp.ne.s32.totalorder %s172, %s188
      %p190 = scmp.eq.s32.totalorder %s30, 0
      %p191 = por %p189, %p190
      %s192 = ssub.s32 %s31, %s43
      %s193 = ssub.s32 %s32, %s39
      %s194 = sor.u32 %s192, %s193
      %p195 = scmp.eq.s32.totalorder %s194, 0
      %s197 = sadd.s32 %s196, 1
      %s198 = scalar_select %p195, %s196, %s197
      %p201 = pneg %p195
      %p202 = scmp.eq.s32.totalorder %s24, 1
      %p203 = por %p201, %p202
      %p204 = scmp.ne.s32.totalorder %s196, %s199
      %p205 = scmp.eq.s32.totalorder %s24, 0
      %p206 = por %p204, %p205
      %p207 = scmp.ne.s32.totalorder %s196, %s199
      %p208 = scmp.eq.s32.totalorder %s29, 1
      %p209 = por %p207, %p208
      %p210 = scmp.ne.s32.totalorder %s199, %s200
      %p211 = scmp.eq.s32.totalorder %s29, 0
      %p212 = por %p210, %p211
      %p213 = scmp.ne.s32.totalorder %s199, %s200
      %p214 = scmp.eq.s32.totalorder %s30, 1
      %p215 = por %p213, %p214
      %p217 = scmp.ne.s32.totalorder %s200, %s216
      %p218 = scmp.eq.s32.totalorder %s30, 0
      %p219 = por %p217, %p218
      %p220 = scmp.le.s32.totalorder 1, %s24
      %p221 = scmp.lt.s32.totalorder %s24, 3
      %p222 = pnand %p220, %p221
      %p223 = pneg %p222
      // Predicated region
      $region9: #{aspp_forward.2} parent=5 // pred_check
        _
      $region10: #{aspp_forward.2} parent=5 // pred_check_branch
        %225 = sbr.rel (%p222) target = $region12
      $region11: #{aspp_forward.2} parent=5 // pred_region
        %s226 = ssub.s32 %s24, 1
        // Predicated region
        $region13: #{aspp_forward.2} parent=11 // pred_check
          %p227 = pneg %p90
        $region14: #{aspp_forward.2} parent=11 // pred_check_branch
          %229 = sbr.rel (%p227) target = $region16
        $region15: #{aspp_forward.2} parent=11 // pred_region
          %s231 = ssub.s32 576, 576
          %232 = vsyncadd [#allocation11], %s231
          %s233 = smul.addr %s34, 64
          %s234 = scalar_lea.hbm %s1, %s233
          %s235 = sshll.u32 [#allocation10], 4
          %s236 = int_to_ptr.vmem [resolvable:$true] %s235
          %241 = dma.hbm_to_vmem [thread:$0]  %s234, 576, %s236, [#allocation11], 64, 64, 4
        $region16: #{aspp_forward.2} parent=11 // pred_fallthru
          _
        // Predicated region
        $region17: #{aspp_forward.2} parent=11 // pred_check
          %p242 = pneg %p116
        $region18: #{aspp_forward.2} parent=11 // pred_check_branch
          %244 = sbr.rel (%p242) target = $region20
        $region19: #{aspp_forward.2} parent=11 // pred_region
          %s246 = ssub.s32 128, 128
          %247 = vsyncadd [#allocation11], %s246
          %s248 = smul.addr %s34, 32
          %s249 = scalar_lea.hbm %s2, %s248
          %s250 = sshll.u32 [#allocation12], 4
          %s251 = int_to_ptr.vmem [resolvable:$true] %s250
          %256 = dma.hbm_to_vmem [thread:$0]  %s249, 128, %s251, [#allocation11], 32, 32, 2
        $region20: #{aspp_forward.2} parent=11 // pred_fallthru
          _
        // Predicated region
        $region21: #{aspp_forward.2} parent=11 // pred_check
          %p257 = pneg %p137
        $region22: #{aspp_forward.2} parent=11 // pred_check_branch
          %259 = sbr.rel (%p257) target = $region24
        $region23: #{aspp_forward.2} parent=11 // pred_region
          %s261 = ssub.s32 4096, 4096
          %262 = vsyncadd [#allocation14], %s261
          %s263 = sshll.u32 [#allocation13], 4
          %s264 = int_to_ptr.vmem [resolvable:$true] %s263
          %269 = dma.hbm_to_vmem [thread:$0]  %s3, 4096, %s264, [#allocation14], 64, 64, 4
        $region24: #{aspp_forward.2} parent=11 // pred_fallthru
          _
        // Predicated region
        $region25: #{aspp_forward.2} parent=11 // pred_check
          %p270 = pneg %p158
        $region26: #{aspp_forward.2} parent=11 // pred_check_branch
          %272 = sbr.rel (%p270) target = $region28
        $region27: #{aspp_forward.2} parent=11 // pred_region
          %s274 = ssub.s32 64, 64
          %275 = vsyncadd [#allocation14], %s274
          %s276 = sshll.u32 [#allocation15], 4
          %s277 = int_to_ptr.vmem [resolvable:$true] %s276
          %282 = dma.hbm_to_vmem [thread:$0]  %s4, 64, %s277, [#allocation14], 16, 16, 1
        $region28: #{aspp_forward.2} parent=11 // pred_fallthru
          _
      $region12: #{aspp_forward.2} parent=5 // pred_fallthru
        _
      %p283 = scmp.lt.s32.totalorder %s24, 2
      // Predicated region
      $region29: #{aspp_forward.2} parent=5 // pred_check
        %p284 = pneg %p283
      $region30: #{aspp_forward.2} parent=5 // pred_check_branch
        %286 = sbr.rel (%p284) target = $region32
      $region31: #{aspp_forward.2} parent=5 // pred_region
        // Predicated region
        $region33: #{aspp_forward.2} parent=31 // pred_check
          %p287 = pneg %p58
        $region34: #{aspp_forward.2} parent=31 // pred_check_branch
          %289 = sbr.rel (%p287) target = $region36
        $region35: #{aspp_forward.2} parent=31 // pred_region
          %s290 = sand.u32 %s48, 1
          %s291 = scalar_lea.sflag [#allocation8], %s290
          %s292 = sand.u32 %s48, 1
          %s293 = smul.addr %s292, 128
          %s294 = scalar_lea.vmem [#allocation7], %s293
          %s296 = ssub.s32 2048, 2048
          %297 = vsyncadd %s291, %s296
          %s298 = smul.addr %s31, 32
          %s299 = sadd.s32 %s32, %s298
          %s300 = smul.addr %s299, 64
          %s301 = scalar_lea.hbm %s0, %s300
          %s302 = sshll.u32 %s294, 4
          %s303 = int_to_ptr.vmem [resolvable:$true] %s302
          %308 = dma.hbm_to_vmem [thread:$0]  %s301, 2048, %s303, %s291, 64, 64, 4
        $region36: #{aspp_forward.2} parent=31 // pred_fallthru
          _
      $region32: #{aspp_forward.2} parent=5 // pred_fallthru
        _
      %p309 = scmp.le.s32.totalorder 1, %s24
      %p310 = scmp.lt.s32.totalorder %s24, 3
      %p311 = pnand %p309, %p310
      %p312 = pneg %p311
      // Predicated region
      $region37: #{aspp_forward.2} parent=5 // pred_check
        _
      $region38: #{aspp_forward.2} parent=5 // pred_check_branch
        %314 = sbr.rel (%p311) target = $region40
      $region39: #{aspp_forward.2} parent=5 // pred_region
        %s315 = ssub.s32 %s24, 1
        %s316 = sand.u32 %s51, 1
        %s317 = scalar_lea.sflag [#allocation8], %s316
        %s318 = sand.u32 %s51, 1
        %s319 = smul.addr %s318, 128
        %s320 = scalar_lea.vmem [#allocation7], %s319
        // Predicated region
        $region41: #{aspp_forward.2} parent=39 // pred_check
          %p321 = pneg %p64
        $region42: #{aspp_forward.2} parent=39 // pred_check_branch
          %323 = sbr.rel (%p321) target = $region44
        $region43: #{aspp_forward.2} parent=39 // pred_region
          %324 = dma.done %s317, 2048
        $region44: #{aspp_forward.2} parent=39 // pred_fallthru
          _
        // Predicated region
        $region45: #{aspp_forward.2} parent=39 // pred_check
          %p325 = pneg %p90
        $region46: #{aspp_forward.2} parent=39 // pred_check_branch
          %327 = sbr.rel (%p325) target = $region48
        $region47: #{aspp_forward.2} parent=39 // pred_region
          %328 = dma.done [#allocation11], 576
        $region48: #{aspp_forward.2} parent=39 // pred_fallthru
          _
        // Predicated region
        $region49: #{aspp_forward.2} parent=39 // pred_check
          %p329 = pneg %p116
        $region50: #{aspp_forward.2} parent=39 // pred_check_branch
          %331 = sbr.rel (%p329) target = $region52
        $region51: #{aspp_forward.2} parent=39 // pred_region
          %332 = dma.done [#allocation11], 128
        $region52: #{aspp_forward.2} parent=39 // pred_fallthru
          _
        // Predicated region
        $region53: #{aspp_forward.2} parent=39 // pred_check
          %p333 = pneg %p137
        $region54: #{aspp_forward.2} parent=39 // pred_check_branch
          %335 = sbr.rel (%p333) target = $region56
        $region55: #{aspp_forward.2} parent=39 // pred_region
          %336 = dma.done [#allocation14], 4096
        $region56: #{aspp_forward.2} parent=39 // pred_fallthru
          _
        // Predicated region
        $region57: #{aspp_forward.2} parent=39 // pred_check
          %p337 = pneg %p158
        $region58: #{aspp_forward.2} parent=39 // pred_check_branch
          %339 = sbr.rel (%p337) target = $region60
        $region59: #{aspp_forward.2} parent=39 // pred_region
          %340 = dma.done [#allocation14], 64
        $region60: #{aspp_forward.2} parent=39 // pred_fallthru
          _
        %s341 = sand.u32 %s51, 1
        %s342 = scalar_lea.sflag [#allocation8], %s341
        %s343 = sand.u32 %s51, 1
        %s344 = smul.addr %s343, 128
        %s345 = scalar_lea.vmem [#allocation7], %s344
        %p346 = pneg %p64
        %p347 = pneg %p61
        %p348 = pneg %p90
        %p349 = pneg %p87
        %p350 = pneg %p116
        %p351 = pneg %p113
        %p352 = pneg %p137
        %p353 = pneg %p134
        %p354 = pneg %p158
        %p355 = pneg %p155
        %p356 = pneg %p184
        %p357 = pneg %p181
        %s358 = sand.u32 %s171, 1
        %s359 = scalar_lea.sflag [#allocation9], %s358
        %s360 = sand.u32 %s171, 1
        %s361 = smul.addr %s360, 128
        %s362 = scalar_lea.vmem [#allocation16], %s361
        %p363 = pneg %p212
        %p364 = pneg %p209
        %s365 = sand.u32 %s199, 1
        %s366 = scalar_lea.sflag [#allocation18], %s365
        %s367 = sand.u32 %s199, 1
        %s368 = scalar_lea.vmem [#allocation17], %s367
        %p370 = scmp.eq.s32.totalorder %s34, 0
        // Predicated region
        $region61: #{aspp_forward.2} parent=39 // pred_check
          %p371 = pneg %p370
        $region62: #{aspp_forward.2} parent=39 // pred_check_branch
          %373 = sbr.rel (%p371) target = $region64
        $region63: #{aspp_forward.2} parent=39 // pred_region
          %vm374 = vcmask 31744
          %375 = vst.msk [vmem:[#allocation2] sm:$0xff] %vm374, 0.0
          %376 = vst.msk [vmem:[#allocation2 + $0x8] sm:$0xff] %vm374, 0.0
          %377 = vst.msk [vmem:[#allocation2 + $0x10] sm:$0xff] %vm374, 0.0
          %378 = vst.msk [vmem:[#allocation2 + $0x18] sm:$0xff] %vm374, 0.0
          %379 = vst.msk [vmem:[#allocation2 + $0x20] sm:$0xff] %vm374, 0.0
          %380 = vst.msk [vmem:[#allocation2 + $0x28] sm:$0xff] %vm374, 0.0
          %vm381 = vcmask 27648
          %382 = vst.msk [vmem:[#allocation2 + $0x30] sm:$0xf] %vm381, 0.0
          %383 = vst.msk [vmem:[#allocation2 + $0x38] sm:$0xff] %vm374, 0.0
          %384 = vst.msk [vmem:[#allocation2 + $0x40] sm:$0xff] %vm374, 0.0
          %385 = vst.msk [vmem:[#allocation2 + $0x48] sm:$0xff] %vm374, 0.0
          %386 = vst.msk [vmem:[#allocation2 + $0x50] sm:$0xff] %vm374, 0.0
          %387 = vst.msk [vmem:[#allocation2 + $0x58] sm:$0xff] %vm374, 0.0
          %388 = vst.msk [vmem:[#allocation2 + $0x60] sm:$0xff] %vm374, 0.0
          %389 = vst.msk [vmem:[#allocation2 + $0x68] sm:$0xf] %vm381, 0.0
          %390 = vst.msk [vmem:[#allocation2 + $0x70] sm:$0xff] %vm374, 0.0
          %391 = vst.msk [vmem:[#allocation2 + $0x78] sm:$0xff] %vm374, 0.0
          %392 = vst.msk [vmem:[#allocation2 + $0x80] sm:$0xff] %vm374, 0.0
          %393 = vst.msk [vmem:[#allocation2 + $0x88] sm:$0xff] %vm374, 0.0
          %394 = vst.msk [vmem:[#allocation2 + $0x90] sm:$0xff] %vm374, 0.0
          %395 = vst.msk [vmem:[#allocation2 + $0x98] sm:$0xff] %vm374, 0.0
          %396 = vst.msk [vmem:[#allocation2 + $0xa0] sm:$0xf] %vm381, 0.0
          %397 = vst.msk [vmem:[#allocation2 + $0xa8] sm:$0xff] %vm374, 0.0
          %398 = vst.msk [vmem:[#allocation2 + $0xb0] sm:$0xff] %vm374, 0.0
          %399 = vst.msk [vmem:[#allocation2 + $0xb8] sm:$0xff] %vm374, 0.0
          %400 = vst.msk [vmem:[#allocation2 + $0xc0] sm:$0xff] %vm374, 0.0
          %401 = vst.msk [vmem:[#allocation2 + $0xc8] sm:$0xff] %vm374, 0.0
          %402 = vst.msk [vmem:[#allocation2 + $0xd0] sm:$0xff] %vm374, 0.0
          %403 = vst.msk [vmem:[#allocation2 + $0xd8] sm:$0xf] %vm381, 0.0
          %404 = vst.msk [vmem:[#allocation2 + $0xe0] sm:$0xff] %vm374, 0.0
          %405 = vst.msk [vmem:[#allocation2 + $0xe8] sm:$0xff] %vm374, 0.0
          %406 = vst.msk [vmem:[#allocation2 + $0xf0] sm:$0xff] %vm374, 0.0
          %407 = vst.msk [vmem:[#allocation2 + $0xf8] sm:$0xff] %vm374, 0.0
          %408 = vst.msk [vmem:[#allocation2 + $0x100] sm:$0xff] %vm374, 0.0
          %409 = vst.msk [vmem:[#allocation2 + $0x108] sm:$0xff] %vm374, 0.0
          %410 = vst.msk [vmem:[#allocation2 + $0x110] sm:$0xf] %vm381, 0.0
          %411 = vst.msk [vmem:[#allocation2 + $0x118] sm:$0xff] %vm374, 0.0
          %412 = vst.msk [vmem:[#allocation2 + $0x120] sm:$0xff] %vm374, 0.0
          %413 = vst.msk [vmem:[#allocation2 + $0x128] sm:$0xff] %vm374, 0.0
          %414 = vst.msk [vmem:[#allocation2 + $0x130] sm:$0xff] %vm374, 0.0
          %415 = vst.msk [vmem:[#allocation2 + $0x138] sm:$0xff] %vm374, 0.0
          %416 = vst.msk [vmem:[#allocation2 + $0x140] sm:$0xff] %vm374, 0.0
          %417 = vst.msk [vmem:[#allocation2 + $0x148] sm:$0xf] %vm381, 0.0
          %418 = vst.msk [vmem:[#allocation2 + $0x150] sm:$0xff] %vm374, 0.0
          %419 = vst.msk [vmem:[#allocation2 + $0x158] sm:$0xff] %vm374, 0.0
          %420 = vst.msk [vmem:[#allocation2 + $0x160] sm:$0xff] %vm374, 0.0
          %421 = vst.msk [vmem:[#allocation2 + $0x168] sm:$0xff] %vm374, 0.0
          %422 = vst.msk [vmem:[#allocation2 + $0x170] sm:$0xff] %vm374, 0.0
          %423 = vst.msk [vmem:[#allocation2 + $0x178] sm:$0xff] %vm374, 0.0
          %424 = vst.msk [vmem:[#allocation2 + $0x180] sm:$0xf] %vm381, 0.0
          %425 = vst.msk [vmem:[#allocation2 + $0x188] sm:$0xff] %vm374, 0.0
          %426 = vst.msk [vmem:[#allocation2 + $0x190] sm:$0xff] %vm374, 0.0
          %427 = vst.msk [vmem:[#allocation2 + $0x198] sm:$0xff] %vm374, 0.0
          %428 = vst.msk [vmem:[#allocation2 + $0x1a0] sm:$0xff] %vm374, 0.0
          %429 = vst.msk [vmem:[#allocation2 + $0x1a8] sm:$0xff] %vm374, 0.0
          %430 = vst.msk [vmem:[#allocation2 + $0x1b0] sm:$0xff] %vm374, 0.0
          %431 = vst.msk [vmem:[#allocation2 + $0x1b8] sm:$0xf] %vm381, 0.0
          %432 = vst.msk [vmem:[#allocation2 + $0x1c0] sm:$0xff] %vm374, 0.0
          %433 = vst.msk [vmem:[#allocation2 + $0x1c8] sm:$0xff] %vm374, 0.0
          %434 = vst.msk [vmem:[#allocation2 + $0x1d0] sm:$0xff] %vm374, 0.0
          %435 = vst.msk [vmem:[#allocation2 + $0x1d8] sm:$0xff] %vm374, 0.0
          %436 = vst.msk [vmem:[#allocation2 + $0x1e0] sm:$0xff] %vm374, 0.0
          %437 = vst.msk [vmem:[#allocation2 + $0x1e8] sm:$0xff] %vm374, 0.0
          %438 = vst.msk [vmem:[#allocation2 + $0x1f0] sm:$0xf] %vm381, 0.0
          %439 = vst.msk [vmem:[#allocation2 + $0x1f8] sm:$0xff] %vm374, 0.0
          %440 = vst.msk [vmem:[#allocation2 + $0x200] sm:$0xff] %vm374, 0.0
          %441 = vst.msk [vmem:[#allocation2 + $0x208] sm:$0xff] %vm374, 0.0
          %442 = vst.msk [vmem:[#allocation2 + $0x210] sm:$0xff] %vm374, 0.0
          %443 = vst.msk [vmem:[#allocation2 + $0x218] sm:$0xff] %vm374, 0.0
          %444 = vst.msk [vmem:[#allocation2 + $0x220] sm:$0xff] %vm374, 0.0
          %445 = vst.msk [vmem:[#allocation2 + $0x228] sm:$0xf] %vm381, 0.0
          %446 = vst.msk [vmem:[#allocation2 + $0x230] sm:$0xff] %vm374, 0.0
          %447 = vst.msk [vmem:[#allocation2 + $0x238] sm:$0xff] %vm374, 0.0
          %448 = vst.msk [vmem:[#allocation2 + $0x240] sm:$0xff] %vm374, 0.0
          %449 = vst.msk [vmem:[#allocation2 + $0x248] sm:$0xff] %vm374, 0.0
          %450 = vst.msk [vmem:[#allocation2 + $0x250] sm:$0xff] %vm374, 0.0
          %451 = vst.msk [vmem:[#allocation2 + $0x258] sm:$0xff] %vm374, 0.0
          %452 = vst.msk [vmem:[#allocation2 + $0x260] sm:$0xf] %vm381, 0.0
          %453 = vst.msk [vmem:[#allocation2 + $0x268] sm:$0xff] %vm374, 0.0
          %454 = vst.msk [vmem:[#allocation2 + $0x270] sm:$0xff] %vm374, 0.0
          %455 = vst.msk [vmem:[#allocation2 + $0x278] sm:$0xff] %vm374, 0.0
          %456 = vst.msk [vmem:[#allocation2 + $0x280] sm:$0xff] %vm374, 0.0
          %457 = vst.msk [vmem:[#allocation2 + $0x288] sm:$0xff] %vm374, 0.0
          %458 = vst.msk [vmem:[#allocation2 + $0x290] sm:$0xff] %vm374, 0.0
          %459 = vst.msk [vmem:[#allocation2 + $0x298] sm:$0xf] %vm381, 0.0
          %460 = vst.msk [vmem:[#allocation2 + $0x2a0] sm:$0xff] %vm374, 0.0
          %461 = vst.msk [vmem:[#allocation2 + $0x2a8] sm:$0xff] %vm374, 0.0
          %462 = vst.msk [vmem:[#allocation2 + $0x2b0] sm:$0xff] %vm374, 0.0
          %463 = vst.msk [vmem:[#allocation2 + $0x2b8] sm:$0xff] %vm374, 0.0
          %464 = vst.msk [vmem:[#allocation2 + $0x2c0] sm:$0xff] %vm374, 0.0
          %465 = vst.msk [vmem:[#allocation2 + $0x2c8] sm:$0xff] %vm374, 0.0
          %466 = vst.msk [vmem:[#allocation2 + $0x2d0] sm:$0xf] %vm381, 0.0
          %467 = vst.msk [vmem:[#allocation2 + $0x2d8] sm:$0xff] %vm374, 0.0
          %468 = vst.msk [vmem:[#allocation2 + $0x2e0] sm:$0xff] %vm374, 0.0
          %469 = vst.msk [vmem:[#allocation2 + $0x2e8] sm:$0xff] %vm374, 0.0
          %470 = vst.msk [vmem:[#allocation2 + $0x2f0] sm:$0xff] %vm374, 0.0
          %471 = vst.msk [vmem:[#allocation2 + $0x2f8] sm:$0xff] %vm374, 0.0
          %472 = vst.msk [vmem:[#allocation2 + $0x300] sm:$0xff] %vm374, 0.0
          %473 = vst.msk [vmem:[#allocation2 + $0x308] sm:$0xf] %vm381, 0.0
          %474 = vst.msk [vmem:[#allocation2 + $0x310] sm:$0xff] %vm374, 0.0
          %475 = vst.msk [vmem:[#allocation2 + $0x318] sm:$0xff] %vm374, 0.0
          %476 = vst.msk [vmem:[#allocation2 + $0x320] sm:$0xff] %vm374, 0.0
          %477 = vst.msk [vmem:[#allocation2 + $0x328] sm:$0xff] %vm374, 0.0
          %478 = vst.msk [vmem:[#allocation2 + $0x330] sm:$0xff] %vm374, 0.0
          %479 = vst.msk [vmem:[#allocation2 + $0x338] sm:$0xff] %vm374, 0.0
          %480 = vst.msk [vmem:[#allocation2 + $0x340] sm:$0xf] %vm381, 0.0
          %481 = vst.msk [vmem:[#allocation2 + $0x348] sm:$0xff] %vm374, 0.0
          %482 = vst.msk [vmem:[#allocation2 + $0x350] sm:$0xff] %vm374, 0.0
          %483 = vst.msk [vmem:[#allocation2 + $0x358] sm:$0xff] %vm374, 0.0
          %484 = vst.msk [vmem:[#allocation2 + $0x360] sm:$0xff] %vm374, 0.0
          %485 = vst.msk [vmem:[#allocation2 + $0x368] sm:$0xff] %vm374, 0.0
          %486 = vst.msk [vmem:[#allocation2 + $0x370] sm:$0xff] %vm374, 0.0
          %487 = vst.msk [vmem:[#allocation2 + $0x378] sm:$0xf] %vm381, 0.0
          %488 = vst.msk [vmem:[#allocation2 + $0x380] sm:$0xff] %vm374, 0.0
          %489 = vst.msk [vmem:[#allocation2 + $0x388] sm:$0xff] %vm374, 0.0
          %490 = vst.msk [vmem:[#allocation2 + $0x390] sm:$0xff] %vm374, 0.0
          %491 = vst.msk [vmem:[#allocation2 + $0x398] sm:$0xff] %vm374, 0.0
          %492 = vst.msk [vmem:[#allocation2 + $0x3a0] sm:$0xff] %vm374, 0.0
          %493 = vst.msk [vmem:[#allocation2 + $0x3a8] sm:$0xff] %vm374, 0.0
          %494 = vst.msk [vmem:[#allocation2 + $0x3b0] sm:$0xf] %vm381, 0.0
          %495 = vst.msk [vmem:[#allocation2 + $0x3b8] sm:$0xff] %vm374, 0.0
          %496 = vst.msk [vmem:[#allocation2 + $0x3c0] sm:$0xff] %vm374, 0.0
          %497 = vst.msk [vmem:[#allocation2 + $0x3c8] sm:$0xff] %vm374, 0.0
          %498 = vst.msk [vmem:[#allocation2 + $0x3d0] sm:$0xff] %vm374, 0.0
          %499 = vst.msk [vmem:[#allocation2 + $0x3d8] sm:$0xff] %vm374, 0.0
          %500 = vst.msk [vmem:[#allocation2 + $0x3e0] sm:$0xff] %vm374, 0.0
          %501 = vst.msk [vmem:[#allocation2 + $0x3e8] sm:$0xf] %vm381, 0.0
          %502 = vst.msk [vmem:[#allocation2 + $0x3f0] sm:$0xff] %vm374, 0.0
          %503 = vst.msk [vmem:[#allocation2 + $0x3f8] sm:$0xff] %vm374, 0.0
          %504 = vst.msk [vmem:[#allocation2 + $0x400] sm:$0xff] %vm374, 0.0
          %505 = vst.msk [vmem:[#allocation2 + $0x408] sm:$0xff] %vm374, 0.0
          %506 = vst.msk [vmem:[#allocation2 + $0x410] sm:$0xff] %vm374, 0.0
          %507 = vst.msk [vmem:[#allocation2 + $0x418] sm:$0xff] %vm374, 0.0
          %508 = vst.msk [vmem:[#allocation2 + $0x420] sm:$0xf] %vm381, 0.0
          %509 = vst.msk [vmem:[#allocation2 + $0x428] sm:$0xff] %vm374, 0.0
          %510 = vst.msk [vmem:[#allocation2 + $0x430] sm:$0xff] %vm374, 0.0
          %511 = vst.msk [vmem:[#allocation2 + $0x438] sm:$0xff] %vm374, 0.0
          %512 = vst.msk [vmem:[#allocation2 + $0x440] sm:$0xff] %vm374, 0.0
          %513 = vst.msk [vmem:[#allocation2 + $0x448] sm:$0xff] %vm374, 0.0
          %514 = vst.msk [vmem:[#allocation2 + $0x450] sm:$0xff] %vm374, 0.0
          %515 = vst.msk [vmem:[#allocation2 + $0x458] sm:$0xf] %vm381, 0.0
          %516 = vst.msk [vmem:[#allocation2 + $0x460] sm:$0xff] %vm374, 0.0
          %517 = vst.msk [vmem:[#allocation2 + $0x468] sm:$0xff] %vm374, 0.0
          %518 = vst.msk [vmem:[#allocation2 + $0x470] sm:$0xff] %vm374, 0.0
          %519 = vst.msk [vmem:[#allocation2 + $0x478] sm:$0xff] %vm374, 0.0
          %520 = vst.msk [vmem:[#allocation2 + $0x480] sm:$0xff] %vm374, 0.0
          %521 = vst.msk [vmem:[#allocation2 + $0x488] sm:$0xff] %vm374, 0.0
          %522 = vst.msk [vmem:[#allocation2 + $0x490] sm:$0xf] %vm381, 0.0
          %523 = vst.msk [vmem:[#allocation2 + $0x498] sm:$0xff] %vm374, 0.0
          %524 = vst.msk [vmem:[#allocation2 + $0x4a0] sm:$0xff] %vm374, 0.0
          %525 = vst.msk [vmem:[#allocation2 + $0x4a8] sm:$0xff] %vm374, 0.0
          %526 = vst.msk [vmem:[#allocation2 + $0x4b0] sm:$0xff] %vm374, 0.0
          %527 = vst.msk [vmem:[#allocation2 + $0x4b8] sm:$0xff] %vm374, 0.0
          %528 = vst.msk [vmem:[#allocation2 + $0x4c0] sm:$0xff] %vm374, 0.0
          %529 = vst.msk [vmem:[#allocation2 + $0x4c8] sm:$0xf] %vm381, 0.0
          %530 = vst.msk [vmem:[#allocation2 + $0x4d0] sm:$0xff] %vm374, 0.0
          %531 = vst.msk [vmem:[#allocation2 + $0x4d8] sm:$0xff] %vm374, 0.0
          %532 = vst.msk [vmem:[#allocation2 + $0x4e0] sm:$0xff] %vm374, 0.0
          %533 = vst.msk [vmem:[#allocation2 + $0x4e8] sm:$0xff] %vm374, 0.0
          %534 = vst.msk [vmem:[#allocation2 + $0x4f0] sm:$0xff] %vm374, 0.0
          %535 = vst.msk [vmem:[#allocation2 + $0x4f8] sm:$0xff] %vm374, 0.0
          %536 = vst.msk [vmem:[#allocation2 + $0x500] sm:$0xf] %vm381, 0.0
          %537 = vst.msk [vmem:[#allocation2 + $0x508] sm:$0xff] %vm374, 0.0
          %538 = vst.msk [vmem:[#allocation2 + $0x510] sm:$0xff] %vm374, 0.0
          %539 = vst.msk [vmem:[#allocation2 + $0x518] sm:$0xff] %vm374, 0.0
          %540 = vst.msk [vmem:[#allocation2 + $0x520] sm:$0xff] %vm374, 0.0
          %541 = vst.msk [vmem:[#allocation2 + $0x528] sm:$0xff] %vm374, 0.0
          %542 = vst.msk [vmem:[#allocation2 + $0x530] sm:$0xff] %vm374, 0.0
          %543 = vst.msk [vmem:[#allocation2 + $0x538] sm:$0xf] %vm381, 0.0
          %544 = vst.msk [vmem:[#allocation2 + $0x540] sm:$0xff] %vm374, 0.0
          %545 = vst.msk [vmem:[#allocation2 + $0x548] sm:$0xff] %vm374, 0.0
          %546 = vst.msk [vmem:[#allocation2 + $0x550] sm:$0xff] %vm374, 0.0
          %547 = vst.msk [vmem:[#allocation2 + $0x558] sm:$0xff] %vm374, 0.0
          %548 = vst.msk [vmem:[#allocation2 + $0x560] sm:$0xff] %vm374, 0.0
          %549 = vst.msk [vmem:[#allocation2 + $0x568] sm:$0xff] %vm374, 0.0
          %550 = vst.msk [vmem:[#allocation2 + $0x570] sm:$0xf] %vm381, 0.0
          %551 = vst.msk [vmem:[#allocation2 + $0x578] sm:$0xff] %vm374, 0.0
          %552 = vst.msk [vmem:[#allocation2 + $0x580] sm:$0xff] %vm374, 0.0
          %553 = vst.msk [vmem:[#allocation2 + $0x588] sm:$0xff] %vm374, 0.0
          %554 = vst.msk [vmem:[#allocation2 + $0x590] sm:$0xff] %vm374, 0.0
          %555 = vst.msk [vmem:[#allocation2 + $0x598] sm:$0xff] %vm374, 0.0
          %556 = vst.msk [vmem:[#allocation2 + $0x5a0] sm:$0xff] %vm374, 0.0
          %557 = vst.msk [vmem:[#allocation2 + $0x5a8] sm:$0xf] %vm381, 0.0
          %558 = vst.msk [vmem:[#allocation2 + $0x5b0] sm:$0xff] %vm374, 0.0
          %559 = vst.msk [vmem:[#allocation2 + $0x5b8] sm:$0xff] %vm374, 0.0
          %560 = vst.msk [vmem:[#allocation2 + $0x5c0] sm:$0xff] %vm374, 0.0
          %561 = vst.msk [vmem:[#allocation2 + $0x5c8] sm:$0xff] %vm374, 0.0
          %562 = vst.msk [vmem:[#allocation2 + $0x5d0] sm:$0xff] %vm374, 0.0
          %563 = vst.msk [vmem:[#allocation2 + $0x5d8] sm:$0xff] %vm374, 0.0
          %564 = vst.msk [vmem:[#allocation2 + $0x5e0] sm:$0xf] %vm381, 0.0
          %565 = vst.msk [vmem:[#allocation2 + $0x5e8] sm:$0xff] %vm374, 0.0
          %566 = vst.msk [vmem:[#allocation2 + $0x5f0] sm:$0xff] %vm374, 0.0
          %567 = vst.msk [vmem:[#allocation2 + $0x5f8] sm:$0xff] %vm374, 0.0
          %568 = vst.msk [vmem:[#allocation2 + $0x600] sm:$0xff] %vm374, 0.0
          %569 = vst.msk [vmem:[#allocation2 + $0x608] sm:$0xff] %vm374, 0.0
          %570 = vst.msk [vmem:[#allocation2 + $0x610] sm:$0xff] %vm374, 0.0
          %571 = vst.msk [vmem:[#allocation2 + $0x618] sm:$0xf] %vm381, 0.0
          %572 = vst.msk [vmem:[#allocation2 + $0x620] sm:$0xff] %vm374, 0.0
          %573 = vst.msk [vmem:[#allocation2 + $0x628] sm:$0xff] %vm374, 0.0
          %574 = vst.msk [vmem:[#allocation2 + $0x630] sm:$0xff] %vm374, 0.0
          %575 = vst.msk [vmem:[#allocation2 + $0x638] sm:$0xff] %vm374, 0.0
          %576 = vst.msk [vmem:[#allocation2 + $0x640] sm:$0xff] %vm374, 0.0
          %577 = vst.msk [vmem:[#allocation2 + $0x648] sm:$0xff] %vm374, 0.0
          %578 = vst.msk [vmem:[#allocation2 + $0x650] sm:$0xf] %vm381, 0.0
          %579 = vst.msk [vmem:[#allocation2 + $0x658] sm:$0xff] %vm374, 0.0
          %580 = vst.msk [vmem:[#allocation2 + $0x660] sm:$0xff] %vm374, 0.0
          %581 = vst.msk [vmem:[#allocation2 + $0x668] sm:$0xff] %vm374, 0.0
          %582 = vst.msk [vmem:[#allocation2 + $0x670] sm:$0xff] %vm374, 0.0
          %583 = vst.msk [vmem:[#allocation2 + $0x678] sm:$0xff] %vm374, 0.0
          %584 = vst.msk [vmem:[#allocation2 + $0x680] sm:$0xff] %vm374, 0.0
          %585 = vst.msk [vmem:[#allocation2 + $0x688] sm:$0xf] %vm381, 0.0
          %586 = vst.msk [vmem:[#allocation2 + $0x690] sm:$0xff] %vm374, 0.0
          %587 = vst.msk [vmem:[#allocation2 + $0x698] sm:$0xff] %vm374, 0.0
          %588 = vst.msk [vmem:[#allocation2 + $0x6a0] sm:$0xff] %vm374, 0.0
          %589 = vst.msk [vmem:[#allocation2 + $0x6a8] sm:$0xff] %vm374, 0.0
          %590 = vst.msk [vmem:[#allocation2 + $0x6b0] sm:$0xff] %vm374, 0.0
          %591 = vst.msk [vmem:[#allocation2 + $0x6b8] sm:$0xff] %vm374, 0.0
          %592 = vst.msk [vmem:[#allocation2 + $0x6c0] sm:$0xf] %vm381, 0.0
          %593 = vst.msk [vmem:[#allocation2 + $0x6c8] sm:$0xff] %vm374, 0.0
          %594 = vst.msk [vmem:[#allocation2 + $0x6d0] sm:$0xff] %vm374, 0.0
          %595 = vst.msk [vmem:[#allocation2 + $0x6d8] sm:$0xff] %vm374, 0.0
          %596 = vst.msk [vmem:[#allocation2 + $0x6e0] sm:$0xff] %vm374, 0.0
          %597 = vst.msk [vmem:[#allocation2 + $0x6e8] sm:$0xff] %vm374, 0.0
          %598 = vst.msk [vmem:[#allocation2 + $0x6f0] sm:$0xff] %vm374, 0.0
          %599 = vst.msk [vmem:[#allocation2 + $0x6f8] sm:$0xf] %vm381, 0.0
          %600 = vst.msk [vmem:[#allocation2 + $0x700] sm:$0xff] %vm374, 0.0
          %601 = vst.msk [vmem:[#allocation2 + $0x708] sm:$0xff] %vm374, 0.0
          %602 = vst.msk [vmem:[#allocation2 + $0x710] sm:$0xff] %vm374, 0.0
          %603 = vst.msk [vmem:[#allocation2 + $0x718] sm:$0xff] %vm374, 0.0
          %604 = vst.msk [vmem:[#allocation2 + $0x720] sm:$0xff] %vm374, 0.0
          %605 = vst.msk [vmem:[#allocation2 + $0x728] sm:$0xff] %vm374, 0.0
          %606 = vst.msk [vmem:[#allocation2 + $0x730] sm:$0xf] %vm381, 0.0
          %607 = vst.msk [vmem:[#allocation2 + $0x738] sm:$0xff] %vm374, 0.0
          %608 = vst.msk [vmem:[#allocation2 + $0x740] sm:$0xff] %vm374, 0.0
          %609 = vst.msk [vmem:[#allocation2 + $0x748] sm:$0xff] %vm374, 0.0
          %610 = vst.msk [vmem:[#allocation2 + $0x750] sm:$0xff] %vm374, 0.0
          %611 = vst.msk [vmem:[#allocation2 + $0x758] sm:$0xff] %vm374, 0.0
          %612 = vst.msk [vmem:[#allocation2 + $0x760] sm:$0xff] %vm374, 0.0
          %613 = vst.msk [vmem:[#allocation2 + $0x768] sm:$0xf] %vm381, 0.0
          %614 = vst.msk [vmem:[#allocation2 + $0x770] sm:$0xff] %vm374, 0.0
          %615 = vst.msk [vmem:[#allocation2 + $0x778] sm:$0xff] %vm374, 0.0
          %616 = vst.msk [vmem:[#allocation2 + $0x780] sm:$0xff] %vm374, 0.0
          %617 = vst.msk [vmem:[#allocation2 + $0x788] sm:$0xff] %vm374, 0.0
          %618 = vst.msk [vmem:[#allocation2 + $0x790] sm:$0xff] %vm374, 0.0
          %619 = vst.msk [vmem:[#allocation2 + $0x798] sm:$0xff] %vm374, 0.0
          %620 = vst.msk [vmem:[#allocation2 + $0x7a0] sm:$0xf] %vm381, 0.0
          %621 = vst.msk [vmem:[#allocation2 + $0x7a8] sm:$0xff] %vm374, 0.0
          %622 = vst.msk [vmem:[#allocation2 + $0x7b0] sm:$0xff] %vm374, 0.0
          %623 = vst.msk [vmem:[#allocation2 + $0x7b8] sm:$0xff] %vm374, 0.0
          %624 = vst.msk [vmem:[#allocation2 + $0x7c0] sm:$0xff] %vm374, 0.0
          %625 = vst.msk [vmem:[#allocation2 + $0x7c8] sm:$0xff] %vm374, 0.0
          %626 = vst.msk [vmem:[#allocation2 + $0x7d0] sm:$0xff] %vm374, 0.0
          %627 = vst.msk [vmem:[#allocation2 + $0x7d8] sm:$0xf] %vm381, 0.0
          %628 = vst.msk [vmem:[#allocation2 + $0x7e0] sm:$0xff] %vm374, 0.0
          %629 = vst.msk [vmem:[#allocation2 + $0x7e8] sm:$0xff] %vm374, 0.0
          %630 = vst.msk [vmem:[#allocation2 + $0x7f0] sm:$0xff] %vm374, 0.0
          %631 = vst.msk [vmem:[#allocation2 + $0x7f8] sm:$0xff] %vm374, 0.0
          %632 = vst.msk [vmem:[#allocation2 + $0x800] sm:$0xff] %vm374, 0.0
          %633 = vst.msk [vmem:[#allocation2 + $0x808] sm:$0xff] %vm374, 0.0
          %634 = vst.msk [vmem:[#allocation2 + $0x810] sm:$0xf] %vm381, 0.0
          %635 = vst.msk [vmem:[#allocation2 + $0x818] sm:$0xff] %vm374, 0.0
          %636 = vst.msk [vmem:[#allocation2 + $0x820] sm:$0xff] %vm374, 0.0
          %637 = vst.msk [vmem:[#allocation2 + $0x828] sm:$0xff] %vm374, 0.0
          %638 = vst.msk [vmem:[#allocation2 + $0x830] sm:$0xff] %vm374, 0.0
          %639 = vst.msk [vmem:[#allocation2 + $0x838] sm:$0xff] %vm374, 0.0
          %640 = vst.msk [vmem:[#allocation2 + $0x840] sm:$0xff] %vm374, 0.0
          %641 = vst.msk [vmem:[#allocation2 + $0x848] sm:$0xf] %vm381, 0.0
          %642 = vst.msk [vmem:[#allocation2 + $0x850] sm:$0xff] %vm374, 0.0
          %643 = vst.msk [vmem:[#allocation2 + $0x858] sm:$0xff] %vm374, 0.0
          %644 = vst.msk [vmem:[#allocation2 + $0x860] sm:$0xff] %vm374, 0.0
          %645 = vst.msk [vmem:[#allocation2 + $0x868] sm:$0xff] %vm374, 0.0
          %646 = vst.msk [vmem:[#allocation2 + $0x870] sm:$0xff] %vm374, 0.0
          %647 = vst.msk [vmem:[#allocation2 + $0x878] sm:$0xff] %vm374, 0.0
          %648 = vst.msk [vmem:[#allocation2 + $0x880] sm:$0xf] %vm381, 0.0
          %649 = vst.msk [vmem:[#allocation2 + $0x888] sm:$0xff] %vm374, 0.0
          %650 = vst.msk [vmem:[#allocation2 + $0x890] sm:$0xff] %vm374, 0.0
          %651 = vst.msk [vmem:[#allocation2 + $0x898] sm:$0xff] %vm374, 0.0
          %652 = vst.msk [vmem:[#allocation2 + $0x8a0] sm:$0xff] %vm374, 0.0
          %653 = vst.msk [vmem:[#allocation2 + $0x8a8] sm:$0xff] %vm374, 0.0
          %654 = vst.msk [vmem:[#allocation2 + $0x8b0] sm:$0xff] %vm374, 0.0
          %655 = vst.msk [vmem:[#allocation2 + $0x8b8] sm:$0xf] %vm381, 0.0
          %656 = vst.msk [vmem:[#allocation2 + $0x8c0] sm:$0xff] %vm374, 0.0
          %657 = vst.msk [vmem:[#allocation2 + $0x8c8] sm:$0xff] %vm374, 0.0
          %658 = vst.msk [vmem:[#allocation2 + $0x8d0] sm:$0xff] %vm374, 0.0
          %659 = vst.msk [vmem:[#allocation2 + $0x8d8] sm:$0xff] %vm374, 0.0
          %660 = vst.msk [vmem:[#allocation2 + $0x8e0] sm:$0xff] %vm374, 0.0
          %661 = vst.msk [vmem:[#allocation2 + $0x8e8] sm:$0xff] %vm374, 0.0
          %662 = vst.msk [vmem:[#allocation2 + $0x8f0] sm:$0xf] %vm381, 0.0
          %663 = vst.msk [vmem:[#allocation2 + $0x8f8] sm:$0xff] %vm374, 0.0
          %664 = vst.msk [vmem:[#allocation2 + $0x900] sm:$0xff] %vm374, 0.0
          %665 = vst.msk [vmem:[#allocation2 + $0x908] sm:$0xff] %vm374, 0.0
          %666 = vst.msk [vmem:[#allocation2 + $0x910] sm:$0xff] %vm374, 0.0
          %667 = vst.msk [vmem:[#allocation2 + $0x918] sm:$0xff] %vm374, 0.0
          %668 = vst.msk [vmem:[#allocation2 + $0x920] sm:$0xff] %vm374, 0.0
          %669 = vst.msk [vmem:[#allocation2 + $0x928] sm:$0xf] %vm381, 0.0
          %670 = vst.msk [vmem:[#allocation2 + $0x930] sm:$0xff] %vm374, 0.0
          %671 = vst.msk [vmem:[#allocation2 + $0x938] sm:$0xff] %vm374, 0.0
          %672 = vst.msk [vmem:[#allocation2 + $0x940] sm:$0xff] %vm374, 0.0
          %673 = vst.msk [vmem:[#allocation2 + $0x948] sm:$0xff] %vm374, 0.0
          %674 = vst.msk [vmem:[#allocation2 + $0x950] sm:$0xff] %vm374, 0.0
          %675 = vst.msk [vmem:[#allocation2 + $0x958] sm:$0xff] %vm374, 0.0
          %676 = vst.msk [vmem:[#allocation2 + $0x960] sm:$0xf] %vm381, 0.0
          %677 = vst.msk [vmem:[#allocation2 + $0x968] sm:$0xff] %vm374, 0.0
          %678 = vst.msk [vmem:[#allocation2 + $0x970] sm:$0xff] %vm374, 0.0
          %679 = vst.msk [vmem:[#allocation2 + $0x978] sm:$0xff] %vm374, 0.0
          %680 = vst.msk [vmem:[#allocation2 + $0x980] sm:$0xff] %vm374, 0.0
          %681 = vst.msk [vmem:[#allocation2 + $0x988] sm:$0xff] %vm374, 0.0
          %682 = vst.msk [vmem:[#allocation2 + $0x990] sm:$0xff] %vm374, 0.0
          %683 = vst.msk [vmem:[#allocation2 + $0x998] sm:$0xf] %vm381, 0.0
          %684 = vst.msk [vmem:[#allocation2 + $0x9a0] sm:$0xff] %vm374, 0.0
          %685 = vst.msk [vmem:[#allocation2 + $0x9a8] sm:$0xff] %vm374, 0.0
          %686 = vst.msk [vmem:[#allocation2 + $0x9b0] sm:$0xff] %vm374, 0.0
          %687 = vst.msk [vmem:[#allocation2 + $0x9b8] sm:$0xff] %vm374, 0.0
          %688 = vst.msk [vmem:[#allocation2 + $0x9c0] sm:$0xff] %vm374, 0.0
          %689 = vst.msk [vmem:[#allocation2 + $0x9c8] sm:$0xff] %vm374, 0.0
          %690 = vst.msk [vmem:[#allocation2 + $0x9d0] sm:$0xf] %vm381, 0.0
          %691 = vst.msk [vmem:[#allocation2 + $0x9d8] sm:$0xff] %vm374, 0.0
          %692 = vst.msk [vmem:[#allocation2 + $0x9e0] sm:$0xff] %vm374, 0.0
          %693 = vst.msk [vmem:[#allocation2 + $0x9e8] sm:$0xff] %vm374, 0.0
          %694 = vst.msk [vmem:[#allocation2 + $0x9f0] sm:$0xff] %vm374, 0.0
          %695 = vst.msk [vmem:[#allocation2 + $0x9f8] sm:$0xff] %vm374, 0.0
          %696 = vst.msk [vmem:[#allocation2 + $0xa00] sm:$0xff] %vm374, 0.0
          %697 = vst.msk [vmem:[#allocation2 + $0xa08] sm:$0xf] %vm381, 0.0
          %698 = vst.msk [vmem:[#allocation2 + $0xa10] sm:$0xff] %vm374, 0.0
          %699 = vst.msk [vmem:[#allocation2 + $0xa18] sm:$0xff] %vm374, 0.0
          %700 = vst.msk [vmem:[#allocation2 + $0xa20] sm:$0xff] %vm374, 0.0
          %701 = vst.msk [vmem:[#allocation2 + $0xa28] sm:$0xff] %vm374, 0.0
          %702 = vst.msk [vmem:[#allocation2 + $0xa30] sm:$0xff] %vm374, 0.0
          %703 = vst.msk [vmem:[#allocation2 + $0xa38] sm:$0xff] %vm374, 0.0
          %704 = vst.msk [vmem:[#allocation2 + $0xa40] sm:$0xf] %vm381, 0.0
          %705 = vst.msk [vmem:[#allocation2 + $0xa48] sm:$0xff] %vm374, 0.0
          %706 = vst.msk [vmem:[#allocation2 + $0xa50] sm:$0xff] %vm374, 0.0
          %707 = vst.msk [vmem:[#allocation2 + $0xa58] sm:$0xff] %vm374, 0.0
          %708 = vst.msk [vmem:[#allocation2 + $0xa60] sm:$0xff] %vm374, 0.0
          %709 = vst.msk [vmem:[#allocation2 + $0xa68] sm:$0xff] %vm374, 0.0
          %710 = vst.msk [vmem:[#allocation2 + $0xa70] sm:$0xff] %vm374, 0.0
          %711 = vst.msk [vmem:[#allocation2 + $0xa78] sm:$0xf] %vm381, 0.0
          %712 = vst.msk [vmem:[#allocation2 + $0xa80] sm:$0xff] %vm374, 0.0
          %713 = vst.msk [vmem:[#allocation2 + $0xa88] sm:$0xff] %vm374, 0.0
          %714 = vst.msk [vmem:[#allocation2 + $0xa90] sm:$0xff] %vm374, 0.0
          %715 = vst.msk [vmem:[#allocation2 + $0xa98] sm:$0xff] %vm374, 0.0
          %716 = vst.msk [vmem:[#allocation2 + $0xaa0] sm:$0xff] %vm374, 0.0
          %717 = vst.msk [vmem:[#allocation2 + $0xaa8] sm:$0xff] %vm374, 0.0
          %718 = vst.msk [vmem:[#allocation2 + $0xab0] sm:$0xf] %vm381, 0.0
          %719 = vst.msk [vmem:[#allocation2 + $0xab8] sm:$0xff] %vm374, 0.0
          %720 = vst.msk [vmem:[#allocation2 + $0xac0] sm:$0xff] %vm374, 0.0
          %721 = vst.msk [vmem:[#allocation2 + $0xac8] sm:$0xff] %vm374, 0.0
          %722 = vst.msk [vmem:[#allocation2 + $0xad0] sm:$0xff] %vm374, 0.0
          %723 = vst.msk [vmem:[#allocation2 + $0xad8] sm:$0xff] %vm374, 0.0
          %724 = vst.msk [vmem:[#allocation2 + $0xae0] sm:$0xff] %vm374, 0.0
          %725 = vst.msk [vmem:[#allocation2 + $0xae8] sm:$0xf] %vm381, 0.0
          %726 = vst.msk [vmem:[#allocation2 + $0xaf0] sm:$0xff] %vm374, 0.0
          %727 = vst.msk [vmem:[#allocation2 + $0xaf8] sm:$0xff] %vm374, 0.0
          %728 = vst.msk [vmem:[#allocation2 + $0xb00] sm:$0xff] %vm374, 0.0
          %729 = vst.msk [vmem:[#allocation2 + $0xb08] sm:$0xff] %vm374, 0.0
          %730 = vst.msk [vmem:[#allocation2 + $0xb10] sm:$0xff] %vm374, 0.0
          %731 = vst.msk [vmem:[#allocation2 + $0xb18] sm:$0xff] %vm374, 0.0
          %732 = vst.msk [vmem:[#allocation2 + $0xb20] sm:$0xf] %vm381, 0.0
          %733 = vst.msk [vmem:[#allocation2 + $0xb28] sm:$0xff] %vm374, 0.0
          %734 = vst.msk [vmem:[#allocation2 + $0xb30] sm:$0xff] %vm374, 0.0
          %735 = vst.msk [vmem:[#allocation2 + $0xb38] sm:$0xff] %vm374, 0.0
          %736 = vst.msk [vmem:[#allocation2 + $0xb40] sm:$0xff] %vm374, 0.0
          %737 = vst.msk [vmem:[#allocation2 + $0xb48] sm:$0xff] %vm374, 0.0
          %738 = vst.msk [vmem:[#allocation2 + $0xb50] sm:$0xff] %vm374, 0.0
          %739 = vst.msk [vmem:[#allocation2 + $0xb58] sm:$0xf] %vm381, 0.0
          %740 = vst [vmem:[#allocation3] sm:$0xff] 0.0
          %741 = vst [vmem:[#allocation3 + $0x8] sm:$0xff] 0.0
          %742 = vst [vmem:[#allocation3 + $0x10] sm:$0xff] 0.0
          %743 = vst [vmem:[#allocation3 + $0x18] sm:$0xff] 0.0
          %744 = vst [vmem:[#allocation3 + $0x20] sm:$0xff] 0.0
          %745 = vst [vmem:[#allocation3 + $0x28] sm:$0xff] 0.0
          %746 = vst [vmem:[#allocation3 + $0x30] sm:$0xff] 0.0
          %747 = vst [vmem:[#allocation3 + $0x38] sm:$0xff] 0.0
          %748 = vst [vmem:[#allocation3 + $0x40] sm:$0xff] 0.0
          %749 = vst [vmem:[#allocation3 + $0x48] sm:$0xff] 0.0
          %750 = vst [vmem:[#allocation3 + $0x50] sm:$0xff] 0.0
          %751 = vst [vmem:[#allocation3 + $0x58] sm:$0xff] 0.0
          %752 = vst [vmem:[#allocation3 + $0x60] sm:$0xff] 0.0
          %753 = vst [vmem:[#allocation3 + $0x68] sm:$0xff] 0.0
          %754 = vst [vmem:[#allocation3 + $0x70] sm:$0xff] 0.0
          %755 = vst [vmem:[#allocation3 + $0x78] sm:$0xff] 0.0
          %756 = vst [vmem:[#allocation3 + $0x80] sm:$0xff] 0.0
          %757 = vst [vmem:[#allocation3 + $0x88] sm:$0xff] 0.0
          %758 = vst [vmem:[#allocation3 + $0x90] sm:$0xff] 0.0
          %759 = vst [vmem:[#allocation3 + $0x98] sm:$0xff] 0.0
          %760 = vst [vmem:[#allocation3 + $0xa0] sm:$0xff] 0.0
          %761 = vst [vmem:[#allocation3 + $0xa8] sm:$0xff] 0.0
          %762 = vst [vmem:[#allocation3 + $0xb0] sm:$0xff] 0.0
          %763 = vst [vmem:[#allocation3 + $0xb8] sm:$0xff] 0.0
          %764 = vst [vmem:[#allocation3 + $0xc0] sm:$0xff] 0.0
          %765 = vst [vmem:[#allocation3 + $0xc8] sm:$0xff] 0.0
          %766 = vst [vmem:[#allocation3 + $0xd0] sm:$0xff] 0.0
          %767 = vst [vmem:[#allocation3 + $0xd8] sm:$0xff] 0.0
          %768 = vst [vmem:[#allocation3 + $0xe0] sm:$0xff] 0.0
          %769 = vst [vmem:[#allocation3 + $0xe8] sm:$0xff] 0.0
          %770 = vst [vmem:[#allocation3 + $0xf0] sm:$0xff] 0.0
          %771 = vst [vmem:[#allocation3 + $0xf8] sm:$0xff] 0.0
          %772 = vst [vmem:[#allocation4] sm:$0xff] 0.0
          %773 = vst [vmem:[#allocation4 + $0x8] sm:$0xff] 0.0
          %774 = vst [vmem:[#allocation4 + $0x10] sm:$0xff] 0.0
          %775 = vst [vmem:[#allocation4 + $0x18] sm:$0xff] 0.0
          %776 = vst [vmem:[#allocation4 + $0x20] sm:$0xff] 0.0
          %777 = vst [vmem:[#allocation4 + $0x28] sm:$0xff] 0.0
          %778 = vst [vmem:[#allocation4 + $0x30] sm:$0xff] 0.0
          %779 = vst [vmem:[#allocation4 + $0x38] sm:$0xff] 0.0
          %780 = vst [vmem:[#allocation4 + $0x40] sm:$0xff] 0.0
          %781 = vst [vmem:[#allocation4 + $0x48] sm:$0xff] 0.0
          %782 = vst [vmem:[#allocation4 + $0x50] sm:$0xff] 0.0
          %783 = vst [vmem:[#allocation4 + $0x58] sm:$0xff] 0.0
          %784 = vst [vmem:[#allocation4 + $0x60] sm:$0xff] 0.0
          %785 = vst [vmem:[#allocation4 + $0x68] sm:$0xff] 0.0
          %786 = vst [vmem:[#allocation4 + $0x70] sm:$0xff] 0.0
          %787 = vst [vmem:[#allocation4 + $0x78] sm:$0xff] 0.0
          %788 = vst [vmem:[#allocation4 + $0x80] sm:$0xff] 0.0
          %789 = vst [vmem:[#allocation4 + $0x88] sm:$0xff] 0.0
          %790 = vst [vmem:[#allocation4 + $0x90] sm:$0xff] 0.0
          %791 = vst [vmem:[#allocation4 + $0x98] sm:$0xff] 0.0
          %792 = vst [vmem:[#allocation4 + $0xa0] sm:$0xff] 0.0
          %793 = vst [vmem:[#allocation4 + $0xa8] sm:$0xff] 0.0
          %794 = vst [vmem:[#allocation4 + $0xb0] sm:$0xff] 0.0
          %795 = vst [vmem:[#allocation4 + $0xb8] sm:$0xff] 0.0
          %796 = vst [vmem:[#allocation4 + $0xc0] sm:$0xff] 0.0
          %797 = vst [vmem:[#allocation4 + $0xc8] sm:$0xff] 0.0
          %798 = vst [vmem:[#allocation4 + $0xd0] sm:$0xff] 0.0
          %799 = vst [vmem:[#allocation4 + $0xd8] sm:$0xff] 0.0
          %800 = vst [vmem:[#allocation4 + $0xe0] sm:$0xff] 0.0
          %801 = vst [vmem:[#allocation4 + $0xe8] sm:$0xff] 0.0
          %802 = vst [vmem:[#allocation4 + $0xf0] sm:$0xff] 0.0
          %803 = vst [vmem:[#allocation4 + $0xf8] sm:$0xff] 0.0
          %804 = vst [vmem:[#allocation5] sm:$0xff] 0.0
          %805 = vst [vmem:[#allocation5 + $0x8] sm:$0xff] 0.0
          %806 = vst [vmem:[#allocation5 + $0x10] sm:$0xff] 0.0
          %807 = vst [vmem:[#allocation5 + $0x18] sm:$0xff] 0.0
          %808 = vst [vmem:[#allocation5 + $0x20] sm:$0xff] 0.0
          %809 = vst [vmem:[#allocation5 + $0x28] sm:$0xff] 0.0
          %810 = vst [vmem:[#allocation5 + $0x30] sm:$0xff] 0.0
          %811 = vst [vmem:[#allocation5 + $0x38] sm:$0xff] 0.0
          %812 = vst [vmem:[#allocation5 + $0x40] sm:$0xff] 0.0
          %813 = vst [vmem:[#allocation5 + $0x48] sm:$0xff] 0.0
          %814 = vst [vmem:[#allocation5 + $0x50] sm:$0xff] 0.0
          %815 = vst [vmem:[#allocation5 + $0x58] sm:$0xff] 0.0
          %816 = vst [vmem:[#allocation5 + $0x60] sm:$0xff] 0.0
          %817 = vst [vmem:[#allocation5 + $0x68] sm:$0xff] 0.0
          %818 = vst [vmem:[#allocation5 + $0x70] sm:$0xff] 0.0
          %819 = vst [vmem:[#allocation5 + $0x78] sm:$0xff] 0.0
          %820 = vst [vmem:[#allocation5 + $0x80] sm:$0xff] 0.0
          %821 = vst [vmem:[#allocation5 + $0x88] sm:$0xff] 0.0
          %822 = vst [vmem:[#allocation5 + $0x90] sm:$0xff] 0.0
          %823 = vst [vmem:[#allocation5 + $0x98] sm:$0xff] 0.0
          %824 = vst [vmem:[#allocation5 + $0xa0] sm:$0xff] 0.0
          %825 = vst [vmem:[#allocation5 + $0xa8] sm:$0xff] 0.0
          %826 = vst [vmem:[#allocation5 + $0xb0] sm:$0xff] 0.0
          %827 = vst [vmem:[#allocation5 + $0xb8] sm:$0xff] 0.0
          %828 = vst [vmem:[#allocation5 + $0xc0] sm:$0xff] 0.0
          %829 = vst [vmem:[#allocation5 + $0xc8] sm:$0xff] 0.0
          %830 = vst [vmem:[#allocation5 + $0xd0] sm:$0xff] 0.0
          %831 = vst [vmem:[#allocation5 + $0xd8] sm:$0xff] 0.0
          %832 = vst [vmem:[#allocation5 + $0xe0] sm:$0xff] 0.0
          %833 = vst [vmem:[#allocation5 + $0xe8] sm:$0xff] 0.0
          %834 = vst [vmem:[#allocation5 + $0xf0] sm:$0xff] 0.0
          %835 = vst [vmem:[#allocation5 + $0xf8] sm:$0xff] 0.0
          %836 = vst [vmem:[#allocation6] sm:$0xff] 0.0
          %837 = vst [vmem:[#allocation6 + $0x8] sm:$0xff] 0.0
          %838 = vst [vmem:[#allocation6 + $0x10] sm:$0xff] 0.0
          %839 = vst [vmem:[#allocation6 + $0x18] sm:$0xff] 0.0
          %840 = vst [vmem:[#allocation6 + $0x20] sm:$0xff] 0.0
          %841 = vst [vmem:[#allocation6 + $0x28] sm:$0xff] 0.0
          %842 = vst [vmem:[#allocation6 + $0x30] sm:$0xff] 0.0
          %843 = vst [vmem:[#allocation6 + $0x38] sm:$0xff] 0.0
          %844 = vst [vmem:[#allocation6 + $0x40] sm:$0xff] 0.0
          %845 = vst [vmem:[#allocation6 + $0x48] sm:$0xff] 0.0
          %846 = vst [vmem:[#allocation6 + $0x50] sm:$0xff] 0.0
          %847 = vst [vmem:[#allocation6 + $0x58] sm:$0xff] 0.0
          %848 = vst [vmem:[#allocation6 + $0x60] sm:$0xff] 0.0
          %849 = vst [vmem:[#allocation6 + $0x68] sm:$0xff] 0.0
          %850 = vst [vmem:[#allocation6 + $0x70] sm:$0xff] 0.0
          %851 = vst [vmem:[#allocation6 + $0x78] sm:$0xff] 0.0
          %852 = vst [vmem:[#allocation6 + $0x80] sm:$0xff] 0.0
          %853 = vst [vmem:[#allocation6 + $0x88] sm:$0xff] 0.0
          %854 = vst [vmem:[#allocation6 + $0x90] sm:$0xff] 0.0
          %855 = vst [vmem:[#allocation6 + $0x98] sm:$0xff] 0.0
          %856 = vst [vmem:[#allocation6 + $0xa0] sm:$0xff] 0.0
          %857 = vst [vmem:[#allocation6 + $0xa8] sm:$0xff] 0.0
          %858 = vst [vmem:[#allocation6 + $0xb0] sm:$0xff] 0.0
          %859 = vst [vmem:[#allocation6 + $0xb8] sm:$0xff] 0.0
          %860 = vst [vmem:[#allocation6 + $0xc0] sm:$0xff] 0.0
          %861 = vst [vmem:[#allocation6 + $0xc8] sm:$0xff] 0.0
          %862 = vst [vmem:[#allocation6 + $0xd0] sm:$0xff] 0.0
          %863 = vst [vmem:[#allocation6 + $0xd8] sm:$0xff] 0.0
          %864 = vst [vmem:[#allocation6 + $0xe0] sm:$0xff] 0.0
          %865 = vst [vmem:[#allocation6 + $0xe8] sm:$0xff] 0.0
          %866 = vst [vmem:[#allocation6 + $0xf0] sm:$0xff] 0.0
          %867 = vst [vmem:[#allocation6 + $0xf8] sm:$0xff] 0.0
        $region64: #{aspp_forward.2} parent=39 // pred_fallthru
          _
        %v868 = vld [vmem:[%s320] sm:$0xf]
        %v869 = vld [vmem:[%s320 + $0x4] sm:$0xf]
        %v870 = vld [vmem:[%s320 + $0x8] sm:$0xf]
        %v871 = vld [vmem:[%s320 + $0xc] sm:$0xf]
        %v872 = vld [vmem:[%s320 + $0x10] sm:$0xf]
        %v873 = vld [vmem:[%s320 + $0x14] sm:$0xf]
        %v874 = vld [vmem:[%s320 + $0x18] sm:$0xf]
        %v875 = vld [vmem:[%s320 + $0x1c] sm:$0xf]
        %v876 = vld [vmem:[%s320 + $0x20] sm:$0xf]
        %v877 = vld [vmem:[%s320 + $0x24] sm:$0xf]
        %v878 = vld [vmem:[%s320 + $0x28] sm:$0xf]
        %v879 = vld [vmem:[%s320 + $0x2c] sm:$0xf]
        %v880 = vld [vmem:[%s320 + $0x30] sm:$0xf]
        %v881 = vld [vmem:[%s320 + $0x34] sm:$0xf]
        %v882 = vld [vmem:[%s320 + $0x38] sm:$0xf]
        %v883 = vld [vmem:[%s320 + $0x3c] sm:$0xf]
        %v884 = vld [vmem:[%s320 + $0x40] sm:$0xf]
        %v885 = vld [vmem:[%s320 + $0x44] sm:$0xf]
        %v886 = vld [vmem:[%s320 + $0x48] sm:$0xf]
        %v887 = vld [vmem:[%s320 + $0x4c] sm:$0xf]
        %v888 = vld [vmem:[%s320 + $0x50] sm:$0xf]
        %v889 = vld [vmem:[%s320 + $0x54] sm:$0xf]
        %v890 = vld [vmem:[%s320 + $0x58] sm:$0xf]
        %v891 = vld [vmem:[%s320 + $0x5c] sm:$0xf]
        %v892 = vld [vmem:[%s320 + $0x60] sm:$0xf]
        %v893 = vld [vmem:[%s320 + $0x64] sm:$0xf]
        %v894 = vld [vmem:[%s320 + $0x68] sm:$0xf]
        %v895 = vld [vmem:[%s320 + $0x6c] sm:$0xf]
        %v896 = vld [vmem:[%s320 + $0x70] sm:$0xf]
        %v897 = vld [vmem:[%s320 + $0x74] sm:$0xf]
        %v898 = vld [vmem:[%s320 + $0x78] sm:$0xf]
        %v899 = vld [vmem:[%s320 + $0x7c] sm:$0xf]
        %v900 = vunpack.c.l.bf16 %v868
        %v901 = vunpack.c.l.bf16 %v869
        %v902 = vunpack.c.l.bf16 %v870
        %v903 = vunpack.c.l.bf16 %v871
        %v904 = vunpack.c.l.bf16 %v872
        %v905 = vunpack.c.l.bf16 %v873
        %v906 = vunpack.c.l.bf16 %v874
        %v907 = vunpack.c.l.bf16 %v875
        %v908 = vunpack.c.l.bf16 %v876
        %v909 = vunpack.c.l.bf16 %v877
        %v910 = vunpack.c.l.bf16 %v878
        %v911 = vunpack.c.l.bf16 %v879
        %v912 = vunpack.c.l.bf16 %v880
        %v913 = vunpack.c.l.bf16 %v881
        %v914 = vunpack.c.l.bf16 %v882
        %v915 = vunpack.c.l.bf16 %v883
        %v916 = vunpack.c.l.bf16 %v884
        %v917 = vunpack.c.l.bf16 %v885
        %v918 = vunpack.c.l.bf16 %v886
        %v919 = vunpack.c.l.bf16 %v887
        %v920 = vunpack.c.l.bf16 %v888
        %v921 = vunpack.c.l.bf16 %v889
        %v922 = vunpack.c.l.bf16 %v890
        %v923 = vunpack.c.l.bf16 %v891
        %v924 = vunpack.c.l.bf16 %v892
        %v925 = vunpack.c.l.bf16 %v893
        %v926 = vunpack.c.l.bf16 %v894
        %v927 = vunpack.c.l.bf16 %v895
        %v928 = vunpack.c.l.bf16 %v896
        %v929 = vunpack.c.l.bf16 %v897
        %v930 = vunpack.c.l.bf16 %v898
        %v931 = vunpack.c.l.bf16 %v899
        %s932 = scalar_lea.vmem [#allocation2], 1008
        %vm933 = vcmask 31744
        %934 = vst.msk [vmem:[%s932 + $0x12] sm:$0xff] %vm933, %v900
        %935 = vst.msk [vmem:[%s932 + $0x1a] sm:$0xff] %vm933, %v901
        %936 = vst.msk [vmem:[%s932 + $0x4a] sm:$0xff] %vm933, %v902
        %937 = vst.msk [vmem:[%s932 + $0x52] sm:$0xff] %vm933, %v903
        %938 = vst.msk [vmem:[%s932 + $0x82] sm:$0xff] %vm933, %v904
        %939 = vst.msk [vmem:[%s932 + $0x8a] sm:$0xff] %vm933, %v905
        %940 = vst.msk [vmem:[%s932 + $0xba] sm:$0xff] %vm933, %v906
        %941 = vst.msk [vmem:[%s932 + $0xc2] sm:$0xff] %vm933, %v907
        %942 = vst.msk [vmem:[%s932 + $0xf2] sm:$0xff] %vm933, %v908
        %943 = vst.msk [vmem:[%s932 + $0xfa] sm:$0xff] %vm933, %v909
        %944 = vst.msk [vmem:[%s932 + $0x12a] sm:$0xff] %vm933, %v910
        %945 = vst.msk [vmem:[%s932 + $0x132] sm:$0xff] %vm933, %v911
        %946 = vst.msk [vmem:[%s932 + $0x162] sm:$0xff] %vm933, %v912
        %947 = vst.msk [vmem:[%s932 + $0x16a] sm:$0xff] %vm933, %v913
        %948 = vst.msk [vmem:[%s932 + $0x19a] sm:$0xff] %vm933, %v914
        %949 = vst.msk [vmem:[%s932 + $0x1a2] sm:$0xff] %vm933, %v915
        %950 = vst.msk [vmem:[%s932 + $0x1d2] sm:$0xff] %vm933, %v916
        %951 = vst.msk [vmem:[%s932 + $0x1da] sm:$0xff] %vm933, %v917
        %952 = vst.msk [vmem:[%s932 + $0x20a] sm:$0xff] %vm933, %v918
        %953 = vst.msk [vmem:[%s932 + $0x212] sm:$0xff] %vm933, %v919
        %954 = vst.msk [vmem:[%s932 + $0x242] sm:$0xff] %vm933, %v920
        %955 = vst.msk [vmem:[%s932 + $0x24a] sm:$0xff] %vm933, %v921
        %956 = vst.msk [vmem:[%s932 + $0x27a] sm:$0xff] %vm933, %v922
        %957 = vst.msk [vmem:[%s932 + $0x282] sm:$0xff] %vm933, %v923
        %958 = vst.msk [vmem:[%s932 + $0x2b2] sm:$0xff] %vm933, %v924
        %959 = vst.msk [vmem:[%s932 + $0x2ba] sm:$0xff] %vm933, %v925
        %960 = vst.msk [vmem:[%s932 + $0x2ea] sm:$0xff] %vm933, %v926
        %961 = vst.msk [vmem:[%s932 + $0x2f2] sm:$0xff] %vm933, %v927
        %962 = vst.msk [vmem:[%s932 + $0x322] sm:$0xff] %vm933, %v928
        %963 = vst.msk [vmem:[%s932 + $0x32a] sm:$0xff] %vm933, %v929
        %964 = vst.msk [vmem:[%s932 + $0x35a] sm:$0xff] %vm933, %v930
        %965 = vst.msk [vmem:[%s932 + $0x362] sm:$0xff] %vm933, %v931
        %v966 = vsel %vm933, %v900, 0.0
        %v967 = vsel %vm933, %v901, 0.0
        %v968 = vadd.f32 %v966, %v967
        %v969 = vsel %vm933, %v902, 0.0
        %v970 = vadd.f32 %v968, %v969
        %v971 = vsel %vm933, %v903, 0.0
        %v972 = vadd.f32 %v970, %v971
        %v973 = vsel %vm933, %v904, 0.0
        %v974 = vadd.f32 %v972, %v973
        %v975 = vsel %vm933, %v905, 0.0
        %v976 = vadd.f32 %v974, %v975
        %v977 = vsel %vm933, %v906, 0.0
        %v978 = vadd.f32 %v976, %v977
        %v979 = vsel %vm933, %v907, 0.0
        %v980 = vadd.f32 %v978, %v979
        %v981 = vsel %vm933, %v908, 0.0
        %v982 = vadd.f32 %v980, %v981
        %v983 = vsel %vm933, %v909, 0.0
        %v984 = vadd.f32 %v982, %v983
        %v985 = vsel %vm933, %v910, 0.0
        %v986 = vadd.f32 %v984, %v985
        %v987 = vsel %vm933, %v911, 0.0
        %v988 = vadd.f32 %v986, %v987
        %v989 = vsel %vm933, %v912, 0.0
        %v990 = vadd.f32 %v988, %v989
        %v991 = vsel %vm933, %v913, 0.0
        %v992 = vadd.f32 %v990, %v991
        %v993 = vsel %vm933, %v914, 0.0
        %v994 = vadd.f32 %v992, %v993
        %v995 = vsel %vm933, %v915, 0.0
        %v996 = vadd.f32 %v994, %v995
        %v997 = vsel %vm933, %v916, 0.0
        %v998 = vadd.f32 %v996, %v997
        %v999 = vsel %vm933, %v917, 0.0
        %v1000 = vadd.f32 %v998, %v999
        %v1001 = vsel %vm933, %v918, 0.0
        %v1002 = vadd.f32 %v1000, %v1001
        %v1003 = vsel %vm933, %v919, 0.0
        %v1004 = vadd.f32 %v1002, %v1003
        %v1005 = vsel %vm933, %v920, 0.0
        %v1006 = vadd.f32 %v1004, %v1005
        %v1007 = vsel %vm933, %v921, 0.0
        %v1008 = vadd.f32 %v1006, %v1007
        %v1009 = vsel %vm933, %v922, 0.0
        %v1010 = vadd.f32 %v1008, %v1009
        %v1011 = vsel %vm933, %v923, 0.0
        %v1012 = vadd.f32 %v1010, %v1011
        %v1013 = vsel %vm933, %v924, 0.0
        %v1014 = vadd.f32 %v1012, %v1013
        %v1015 = vsel %vm933, %v925, 0.0
        %v1016 = vadd.f32 %v1014, %v1015
        %v1017 = vsel %vm933, %v926, 0.0
        %v1018 = vadd.f32 %v1016, %v1017
        %v1019 = vsel %vm933, %v927, 0.0
        %v1020 = vadd.f32 %v1018, %v1019
        %v1021 = vsel %vm933, %v928, 0.0
        %v1022 = vadd.f32 %v1020, %v1021
        %v1023 = vsel %vm933, %v929, 0.0
        %v1024 = vadd.f32 %v1022, %v1023
        %v1025 = vsel %vm933, %v930, 0.0
        %v1026 = vadd.f32 %v1024, %v1025
        %v1027 = vsel %vm933, %v931, 0.0
        %v1028 = vadd.f32 %v1026, %v1027
        %v1029 = vrot.slane %v1028, 4
        %v1030 = vadd.f32 %v1028, %v1029
        %v1031 = vrot.slane %v1030, 2
        %v1032 = vadd.f32 %v1030, %v1031
        %v1033 = vrot.slane %v1032, 1
        %v1034 = vadd.f32 %v1032, %v1033
        %vm1035 = vcmask 24576
        %1036 = vst.msk [vmem:[%s368] sm:$0x1] %vm1035, %v1034
        %v1037 = vld [vmem:[#allocation3] sm:$0xff]
        %v1038 = vld [vmem:[#allocation3 + $0x8] sm:$0xff]
        %v1039 = vld [vmem:[#allocation3 + $0x10] sm:$0xff]
        %v1040 = vld [vmem:[#allocation3 + $0x18] sm:$0xff]
        %v1041 = vld [vmem:[#allocation3 + $0x20] sm:$0xff]
        %v1042 = vld [vmem:[#allocation3 + $0x28] sm:$0xff]
        %v1043 = vld [vmem:[#allocation3 + $0x30] sm:$0xff]
        %v1044 = vld [vmem:[#allocation3 + $0x38] sm:$0xff]
        %v1045 = vld [vmem:[#allocation3 + $0x40] sm:$0xff]
        %v1046 = vld [vmem:[#allocation3 + $0x48] sm:$0xff]
        %v1047 = vld [vmem:[#allocation3 + $0x50] sm:$0xff]
        %v1048 = vld [vmem:[#allocation3 + $0x58] sm:$0xff]
        %v1049 = vld [vmem:[#allocation3 + $0x60] sm:$0xff]
        %v1050 = vld [vmem:[#allocation3 + $0x68] sm:$0xff]
        %v1051 = vld [vmem:[#allocation3 + $0x70] sm:$0xff]
        %v1052 = vld [vmem:[#allocation3 + $0x78] sm:$0xff]
        %v1053 = vld [vmem:[#allocation3 + $0x80] sm:$0xff]
        %v1054 = vld [vmem:[#allocation3 + $0x88] sm:$0xff]
        %v1055 = vld [vmem:[#allocation3 + $0x90] sm:$0xff]
        %v1056 = vld [vmem:[#allocation3 + $0x98] sm:$0xff]
        %v1057 = vld [vmem:[#allocation3 + $0xa0] sm:$0xff]
        %v1058 = vld [vmem:[#allocation3 + $0xa8] sm:$0xff]
        %v1059 = vld [vmem:[#allocation3 + $0xb0] sm:$0xff]
        %v1060 = vld [vmem:[#allocation3 + $0xb8] sm:$0xff]
        %v1061 = vld [vmem:[#allocation3 + $0xc0] sm:$0xff]
        %v1062 = vld [vmem:[#allocation3 + $0xc8] sm:$0xff]
        %v1063 = vld [vmem:[#allocation3 + $0xd0] sm:$0xff]
        %v1064 = vld [vmem:[#allocation3 + $0xd8] sm:$0xff]
        %v1065 = vld [vmem:[#allocation3 + $0xe0] sm:$0xff]
        %v1066 = vld [vmem:[#allocation3 + $0xe8] sm:$0xff]
        %v1067 = vld [vmem:[#allocation3 + $0xf0] sm:$0xff]
        %v1068 = vld [vmem:[#allocation3 + $0xf8] sm:$0xff]
        %v1069 = vld [vmem:[#allocation12] sm:$0x3]
        %v1102 = vunpack.c.l.b16 %v868
        %v1103 = vunpack.c.l.b16 %v869
        %v1104 = vunpack.c.l.b16 %v870
        %v1105 = vunpack.c.l.b16 %v871
        %v1106 = vunpack.c.l.b16 %v872
        %v1107 = vunpack.c.l.b16 %v873
        %v1108 = vunpack.c.l.b16 %v874
        %v1109 = vunpack.c.l.b16 %v875
        %v1110 = vunpack.c.l.b16 %v876
        %v1111 = vunpack.c.l.b16 %v877
        %v1112 = vunpack.c.l.b16 %v878
        %v1113 = vunpack.c.l.b16 %v879
        %v1114 = vunpack.c.l.b16 %v880
        %v1115 = vunpack.c.l.b16 %v881
        %v1116 = vunpack.c.l.b16 %v882
        %v1117 = vunpack.c.l.b16 %v883
        %v1118 = vunpack.c.l.b16 %v884
        %v1119 = vunpack.c.l.b16 %v885
        %v1120 = vunpack.c.l.b16 %v886
        %v1121 = vunpack.c.l.b16 %v887
        %v1122 = vunpack.c.l.b16 %v888
        %v1123 = vunpack.c.l.b16 %v889
        %v1124 = vunpack.c.l.b16 %v890
        %v1125 = vunpack.c.l.b16 %v891
        %v1126 = vunpack.c.l.b16 %v892
        %v1127 = vunpack.c.l.b16 %v893
        %v1128 = vunpack.c.l.b16 %v894
        %v1129 = vunpack.c.l.b16 %v895
        %v1130 = vunpack.c.l.b16 %v896
        %v1131 = vunpack.c.l.b16 %v897
        %v1132 = vunpack.c.l.b16 %v898
        %v1133 = vunpack.c.l.b16 %v899
        %v1134 = vpack.c.b16 %v1103, %v1102
        %v1135 = vpack.c.b16 %v1105, %v1104
        %v1136 = vpack.c.b16 %v1107, %v1106
        %v1137 = vpack.c.b16 %v1109, %v1108
        %v1138 = vpack.c.b16 %v1111, %v1110
        %v1139 = vpack.c.b16 %v1113, %v1112
        %v1140 = vpack.c.b16 %v1115, %v1114
        %v1141 = vpack.c.b16 %v1117, %v1116
        %v1142 = vpack.c.b16 %v1119, %v1118
        %v1143 = vpack.c.b16 %v1121, %v1120
        %v1144 = vpack.c.b16 %v1123, %v1122
        %v1145 = vpack.c.b16 %v1125, %v1124
        %v1146 = vpack.c.b16 %v1127, %v1126
        %v1147 = vpack.c.b16 %v1129, %v1128
        %v1148 = vpack.c.b16 %v1131, %v1130
        %v1149 = vpack.c.b16 %v1133, %v1132
        %v1151 = vsel %vm933, %v1134, 0
        %v1154 = vsel %vm933, %v1135, 0
        %v1157 = vsel %vm933, %v1136, 0
        %v1160 = vsel %vm933, %v1137, 0
        %v1163 = vsel %vm933, %v1138, 0
        %v1166 = vsel %vm933, %v1139, 0
        %v1169 = vsel %vm933, %v1140, 0
        %v1172 = vsel %vm933, %v1141, 0
        %v1175 = vsel %vm933, %v1142, 0
        %v1178 = vsel %vm933, %v1143, 0
        %v1181 = vsel %vm933, %v1144, 0
        %v1184 = vsel %vm933, %v1145, 0
        %v1187 = vsel %vm933, %v1146, 0
        %v1190 = vsel %vm933, %v1147, 0
        %v1193 = vsel %vm933, %v1148, 0
        %v1196 = vsel %vm933, %v1149, 0
        %vm1198 = vcmask 1041408
        %v1200 = vsel %vm1198, %v1069, 0
        %1202 = vmatprep.subr.bf16.mxu0 0
        %1203 = vmatpush1.bf16.msra.mxu0 %v1200
        %1204 = vmatprep.subr.bf16.mxu0 0
        %1205 = vmatpush1.bf16.msra.mxu0 0
        %1206 = vmatprep.subr.bf16.mxu0 0
        %1207 = vmatpush1.bf16.msra.mxu0 0
        %1208 = vmatprep.subr.bf16.mxu0 0
        %1209 = vmatpush1.bf16.msra.mxu0 0
        %1210 = vmatprep.subr.bf16.mxu0 0
        %1211 = vmatpush1.bf16.msra.mxu0 0
        %1212 = vmatprep.subr.bf16.mxu0 0
        %1213 = vmatpush1.bf16.msra.mxu0 0
        %1214 = vmatprep.subr.bf16.mxu0 0
        %1215 = vmatpush1.bf16.msra.mxu0 0
        %1216 = vmatprep.subr.bf16.mxu0 0
        %1217 = vmatpush1.bf16.msra.mxu0 0
        %1218 = vmatprep.subr.bf16.mxu0 0
        %1219 = vmatpush1.bf16.msra.mxu0 0
        %1220 = vmatprep.subr.bf16.mxu0 0
        %1221 = vmatpush1.bf16.msra.mxu0 0
        %1222 = vmatprep.subr.bf16.mxu0 0
        %1223 = vmatpush1.bf16.msra.mxu0 0
        %1224 = vmatprep.subr.bf16.mxu0 0
        %1225 = vmatpush1.bf16.msra.mxu0 0
        %1226 = vmatprep.subr.bf16.mxu0 0
        %1227 = vmatpush1.bf16.msra.mxu0 0
        %1228 = vmatprep.subr.bf16.mxu0 0
        %1229 = vmatpush1.bf16.msra.mxu0 0
        %1230 = vmatprep.subr.bf16.mxu0 0
        %1231 = vmatpush1.bf16.msra.mxu0 0
        %1232 = vmatprep.subr.bf16.mxu0 0
        %1233 = vmatpush1.bf16.msra.mxu0 0
        %1234 = vmatprep.mubr.bf16.mxu0 0
        %1235 = vmatmul.mubr.bf16.gmra.mrb[0].mxu0 %v1151
        %v1236 = vpop.f32.mrb[0].mxu0
        %v1237 = vadd.f32 0.0, %v1236
        %v1238 = vpop.f32.mrb[0].mxu0
        %v1239 = vpop.f32.mrb[0].mxu0
        %v1240 = vadd.f32 0.0, %v1239
        %v1241 = vpop.f32.mrb[0].mxu0
        %1242 = vmatprep.mubr.bf16.mxu0 0
        %1243 = vmatmul.mubr.bf16.gmra.mrb[0].mxu0 %v1154
        %v1244 = vpop.f32.mrb[0].mxu0
        %v1245 = vadd.f32 0.0, %v1244
        %v1246 = vpop.f32.mrb[0].mxu0
        %v1247 = vpop.f32.mrb[0].mxu0
        %v1248 = vadd.f32 0.0, %v1247
        %v1249 = vpop.f32.mrb[0].mxu0
        %1250 = vmatprep.mubr.bf16.mxu0 0
        %1251 = vmatmul.mubr.bf16.gmra.mrb[0].mxu0 %v1157
        %v1252 = vpop.f32.mrb[0].mxu0
        %v1253 = vadd.f32 0.0, %v1252
        %v1254 = vpop.f32.mrb[0].mxu0
        %v1255 = vpop.f32.mrb[0].mxu0
        %v1256 = vadd.f32 0.0, %v1255
        %v1257 = vpop.f32.mrb[0].mxu0
        %1258 = vmatprep.mubr.bf16.mxu0 0
        %1259 = vmatmul.mubr.bf16.gmra.mrb[0].mxu0 %v1160
        %v1260 = vpop.f32.mrb[0].mxu0
        %v1261 = vadd.f32 0.0, %v1260
        %v1262 = vpop.f32.mrb[0].mxu0
        %v1263 = vpop.f32.mrb[0].mxu0
        %v1264 = vadd.f32 0.0, %v1263
        %v1265 = vpop.f32.mrb[0].mxu0
        %1266 = vmatprep.mubr.bf16.mxu0 0
        %1267 = vmatmul.mubr.bf16.gmra.mrb[0].mxu0 %v1163
        %v1268 = vpop.f32.mrb[0].mxu0
        %v1269 = vadd.f32 0.0, %v1268
        %v1270 = vpop.f32.mrb[0].mxu0
        %v1271 = vpop.f32.mrb[0].mxu0
        %v1272 = vadd.f32 0.0, %v1271
        %v1273 = vpop.f32.mrb[0].mxu0
        %1274 = vmatprep.mubr.bf16.mxu0 0
        %1275 = vmatmul.mubr.bf16.gmra.mrb[0].mxu0 %v1166
        %v1276 = vpop.f32.mrb[0].mxu0
        %v1277 = vadd.f32 0.0, %v1276
        %v1278 = vpop.f32.mrb[0].mxu0
        %v1279 = vpop.f32.mrb[0].mxu0
        %v1280 = vadd.f32 0.0, %v1279
        %v1281 = vpop.f32.mrb[0].mxu0
        %1282 = vmatprep.mubr.bf16.mxu0 0
        %1283 = vmatmul.mubr.bf16.gmra.mrb[0].mxu0 %v1169
        %v1284 = vpop.f32.mrb[0].mxu0
        %v1285 = vadd.f32 0.0, %v1284
        %v1286 = vpop.f32.mrb[0].mxu0
        %v1287 = vpop.f32.mrb[0].mxu0
        %v1288 = vadd.f32 0.0, %v1287
        %v1289 = vpop.f32.mrb[0].mxu0
        %1290 = vmatprep.mubr.bf16.mxu0 0
        %1291 = vmatmul.mubr.bf16.gmra.mrb[0].mxu0 %v1172
        %v1292 = vpop.f32.mrb[0].mxu0
        %v1293 = vadd.f32 0.0, %v1292
        %v1294 = vpop.f32.mrb[0].mxu0
        %v1295 = vpop.f32.mrb[0].mxu0
        %v1296 = vadd.f32 0.0, %v1295
        %v1297 = vpop.f32.mrb[0].mxu0
        %1298 = vmatprep.mubr.bf16.mxu0 0
        %1299 = vmatmul.mubr.bf16.gmra.mrb[0].mxu0 %v1175
        %v1300 = vpop.f32.mrb[0].mxu0
        %v1301 = vadd.f32 0.0, %v1300
        %v1302 = vpop.f32.mrb[0].mxu0
        %v1303 = vpop.f32.mrb[0].mxu0
        %v1304 = vadd.f32 0.0, %v1303
        %v1305 = vpop.f32.mrb[0].mxu0
        %1306 = vmatprep.mubr.bf16.mxu0 0
        %1307 = vmatmul.mubr.bf16.gmra.mrb[0].mxu0 %v1178
        %v1308 = vpop.f32.mrb[0].mxu0
        %v1309 = vadd.f32 0.0, %v1308
        %v1310 = vpop.f32.mrb[0].mxu0
        %v1311 = vpop.f32.mrb[0].mxu0
        %v1312 = vadd.f32 0.0, %v1311
        %v1313 = vpop.f32.mrb[0].mxu0
        %1314 = vmatprep.mubr.bf16.mxu0 0
        %1315 = vmatmul.mubr.bf16.gmra.mrb[0].mxu0 %v1181
        %v1316 = vpop.f32.mrb[0].mxu0
        %v1317 = vadd.f32 0.0, %v1316
        %v1318 = vpop.f32.mrb[0].mxu0
        %v1319 = vpop.f32.mrb[0].mxu0
        %v1320 = vadd.f32 0.0, %v1319
        %v1321 = vpop.f32.mrb[0].mxu0
        %1322 = vmatprep.mubr.bf16.mxu0 0
        %1323 = vmatmul.mubr.bf16.gmra.mrb[0].mxu0 %v1184
        %v1324 = vpop.f32.mrb[0].mxu0
        %v1325 = vadd.f32 0.0, %v1324
        %v1326 = vpop.f32.mrb[0].mxu0
        %v1327 = vpop.f32.mrb[0].mxu0
        %v1328 = vadd.f32 0.0, %v1327
        %v1329 = vpop.f32.mrb[0].mxu0
        %1330 = vmatprep.mubr.bf16.mxu0 0
        %1331 = vmatmul.mubr.bf16.gmra.mrb[0].mxu0 %v1187
        %v1332 = vpop.f32.mrb[0].mxu0
        %v1333 = vadd.f32 0.0, %v1332
        %v1334 = vpop.f32.mrb[0].mxu0
        %v1335 = vpop.f32.mrb[0].mxu0
        %v1336 = vadd.f32 0.0, %v1335
        %v1337 = vpop.f32.mrb[0].mxu0
        %1338 = vmatprep.mubr.bf16.mxu0 0
        %1339 = vmatmul.mubr.bf16.gmra.mrb[0].mxu0 %v1190
        %v1340 = vpop.f32.mrb[0].mxu0
        %v1341 = vadd.f32 0.0, %v1340
        %v1342 = vpop.f32.mrb[0].mxu0
        %v1343 = vpop.f32.mrb[0].mxu0
        %v1344 = vadd.f32 0.0, %v1343
        %v1345 = vpop.f32.mrb[0].mxu0
        %1346 = vmatprep.mubr.bf16.mxu0 0
        %1347 = vmatmul.mubr.bf16.gmra.mrb[0].mxu0 %v1193
        %v1348 = vpop.f32.mrb[0].mxu0
        %v1349 = vadd.f32 0.0, %v1348
        %v1350 = vpop.f32.mrb[0].mxu0
        %v1351 = vpop.f32.mrb[0].mxu0
        %v1352 = vadd.f32 0.0, %v1351
        %v1353 = vpop.f32.mrb[0].mxu0
        %1354 = vmatprep.mubr.bf16.mxu0 0
        %1355 = vmatmul.mubr.bf16.gmra.mrb[0].mxu0 %v1196
        %v1356 = vpop.f32.mrb[0].mxu0
        %v1357 = vadd.f32 0.0, %v1356
        %v1358 = vpop.f32.mrb[0].mxu0
        %v1359 = vpop.f32.mrb[0].mxu0
        %v1360 = vadd.f32 0.0, %v1359
        %v1361 = vpop.f32.mrb[0].mxu0
        %1362 = vdwg.mxu0
        %v1363 = vadd.f32 %v1037, %v1237
        %v1364 = vadd.f32 %v1038, %v1240
        %v1365 = vadd.f32 %v1039, %v1245
        %v1366 = vadd.f32 %v1040, %v1248
        %v1367 = vadd.f32 %v1041, %v1253
        %v1368 = vadd.f32 %v1042, %v1256
        %v1369 = vadd.f32 %v1043, %v1261
        %v1370 = vadd.f32 %v1044, %v1264
        %v1371 = vadd.f32 %v1045, %v1269
        %v1372 = vadd.f32 %v1046, %v1272
        %v1373 = vadd.f32 %v1047, %v1277
        %v1374 = vadd.f32 %v1048, %v1280
        %v1375 = vadd.f32 %v1049, %v1285
        %v1376 = vadd.f32 %v1050, %v1288
        %v1377 = vadd.f32 %v1051, %v1293
        %v1378 = vadd.f32 %v1052, %v1296
        %v1379 = vadd.f32 %v1053, %v1301
        %v1380 = vadd.f32 %v1054, %v1304
        %v1381 = vadd.f32 %v1055, %v1309
        %v1382 = vadd.f32 %v1056, %v1312
        %v1383 = vadd.f32 %v1057, %v1317
        %v1384 = vadd.f32 %v1058, %v1320
        %v1385 = vadd.f32 %v1059, %v1325
        %v1386 = vadd.f32 %v1060, %v1328
        %v1387 = vadd.f32 %v1061, %v1333
        %v1388 = vadd.f32 %v1062, %v1336
        %v1389 = vadd.f32 %v1063, %v1341
        %v1390 = vadd.f32 %v1064, %v1344
        %v1391 = vadd.f32 %v1065, %v1349
        %v1392 = vadd.f32 %v1066, %v1352
        %v1393 = vadd.f32 %v1067, %v1357
        %v1394 = vadd.f32 %v1068, %v1360
        %1395 = vst [vmem:[#allocation3] sm:$0xff] %v1363
        %1396 = vst [vmem:[#allocation3 + $0x8] sm:$0xff] %v1364
        %1397 = vst [vmem:[#allocation3 + $0x10] sm:$0xff] %v1365
        %1398 = vst [vmem:[#allocation3 + $0x18] sm:$0xff] %v1366
        %1399 = vst [vmem:[#allocation3 + $0x20] sm:$0xff] %v1367
        %1400 = vst [vmem:[#allocation3 + $0x28] sm:$0xff] %v1368
        %1401 = vst [vmem:[#allocation3 + $0x30] sm:$0xff] %v1369
        %1402 = vst [vmem:[#allocation3 + $0x38] sm:$0xff] %v1370
        %1403 = vst [vmem:[#allocation3 + $0x40] sm:$0xff] %v1371
        %1404 = vst [vmem:[#allocation3 + $0x48] sm:$0xff] %v1372
        %1405 = vst [vmem:[#allocation3 + $0x50] sm:$0xff] %v1373
        %1406 = vst [vmem:[#allocation3 + $0x58] sm:$0xff] %v1374
        %1407 = vst [vmem:[#allocation3 + $0x60] sm:$0xff] %v1375
        %1408 = vst [vmem:[#allocation3 + $0x68] sm:$0xff] %v1376
        %1409 = vst [vmem:[#allocation3 + $0x70] sm:$0xff] %v1377
        %1410 = vst [vmem:[#allocation3 + $0x78] sm:$0xff] %v1378
        %1411 = vst [vmem:[#allocation3 + $0x80] sm:$0xff] %v1379
        %1412 = vst [vmem:[#allocation3 + $0x88] sm:$0xff] %v1380
        %1413 = vst [vmem:[#allocation3 + $0x90] sm:$0xff] %v1381
        %1414 = vst [vmem:[#allocation3 + $0x98] sm:$0xff] %v1382
        %1415 = vst [vmem:[#allocation3 + $0xa0] sm:$0xff] %v1383
        %1416 = vst [vmem:[#allocation3 + $0xa8] sm:$0xff] %v1384
        %1417 = vst [vmem:[#allocation3 + $0xb0] sm:$0xff] %v1385
        %1418 = vst [vmem:[#allocation3 + $0xb8] sm:$0xff] %v1386
        %1419 = vst [vmem:[#allocation3 + $0xc0] sm:$0xff] %v1387
        %1420 = vst [vmem:[#allocation3 + $0xc8] sm:$0xff] %v1388
        %1421 = vst [vmem:[#allocation3 + $0xd0] sm:$0xff] %v1389
        %1422 = vst [vmem:[#allocation3 + $0xd8] sm:$0xff] %v1390
        %1423 = vst [vmem:[#allocation3 + $0xe0] sm:$0xff] %v1391
        %1424 = vst [vmem:[#allocation3 + $0xe8] sm:$0xff] %v1392
        %1425 = vst [vmem:[#allocation3 + $0xf0] sm:$0xff] %v1393
        %1426 = vst [vmem:[#allocation3 + $0xf8] sm:$0xff] %v1394
        %v1427 = vld [vmem:[#allocation10] sm:$0x7]
        %v1428 = vld [vmem:[#allocation10 + $0x4] sm:$0x7]
        %v1429 = vld [vmem:[#allocation10 + $0x8] sm:$0x7]
        %v1430 = vld [vmem:[#allocation10 + $0xc] sm:$0x7]
        %v1431 = vld [vmem:[#allocation10 + $0x10] sm:$0x7]
        %v1432 = vld [vmem:[#allocation10 + $0x14] sm:$0x7]
        %v1433 = vld [vmem:[#allocation10 + $0x18] sm:$0x7]
        %v1434 = vld [vmem:[#allocation10 + $0x1c] sm:$0x7]
        %v1435 = vld [vmem:[#allocation10 + $0x20] sm:$0x7]
        %s1436 = scalar_lea.vmem [#allocation2], 672
        %v1437 = vld [vmem:[%s1436 + $0xc] sm:$0xff]
        %v1438 = vld [vmem:[%s1436 + $0x14] sm:$0xff]
        %v1439 = vld [vmem:[%s1436 + $0x44] sm:$0xff]
        %v1440 = vld [vmem:[%s1436 + $0x4c] sm:$0xff]
        %v1441 = vld [vmem:[%s1436 + $0x7c] sm:$0xff]
        %v1442 = vld [vmem:[%s1436 + $0x84] sm:$0xff]
        %v1443 = vld [vmem:[%s1436 + $0xb4] sm:$0xff]
        %v1444 = vld [vmem:[%s1436 + $0xbc] sm:$0xff]
        %v1445 = vld [vmem:[%s1436 + $0xec] sm:$0xff]
        %v1446 = vld [vmem:[%s1436 + $0xf4] sm:$0xff]
        %v1447 = vld [vmem:[%s1436 + $0x124] sm:$0xff]
        %v1448 = vld [vmem:[%s1436 + $0x12c] sm:$0xff]
        %v1449 = vld [vmem:[%s1436 + $0x15c] sm:$0xff]
        %v1450 = vld [vmem:[%s1436 + $0x164] sm:$0xff]
        %v1451 = vld [vmem:[%s1436 + $0x194] sm:$0xff]
        %v1452 = vld [vmem:[%s1436 + $0x19c] sm:$0xff]
        %v1453 = vld [vmem:[%s1436 + $0x1cc] sm:$0xff]
        %v1454 = vld [vmem:[%s1436 + $0x1d4] sm:$0xff]
        %v1455 = vld [vmem:[%s1436 + $0x204] sm:$0xff]
        %v1456 = vld [vmem:[%s1436 + $0x20c] sm:$0xff]
        %v1457 = vld [vmem:[%s1436 + $0x23c] sm:$0xff]
        %v1458 = vld [vmem:[%s1436 + $0x244] sm:$0xff]
        %v1459 = vld [vmem:[%s1436 + $0x274] sm:$0xff]
        %v1460 = vld [vmem:[%s1436 + $0x27c] sm:$0xff]
        %v1461 = vld [vmem:[%s1436 + $0x2ac] sm:$0xff]
        %v1462 = vld [vmem:[%s1436 + $0x2b4] sm:$0xff]
        %v1463 = vld [vmem:[%s1436 + $0x2e4] sm:$0xff]
        %v1464 = vld [vmem:[%s1436 + $0x2ec] sm:$0xff]
        %v1465 = vld [vmem:[%s1436 + $0x31c] sm:$0xff]
        %v1466 = vld [vmem:[%s1436 + $0x324] sm:$0xff]
        %v1467 = vld [vmem:[%s1436 + $0x354] sm:$0xff]
        %v1468 = vld [vmem:[%s1436 + $0x35c] sm:$0xff]
        %v1469 = vlaneseq
        %v1470 = vshrl.u32 %v1469, 7
        %v1471 = vsub.s32 0, %v1470
        %v1472 = vrot.slane %v1427, %v1471
        %v1473 = vmul.f32 %v1437, %v1472
        %v1474 = vmul.f32 %v1438, %v1472
        %v1475 = vmul.f32 %v1439, %v1472
        %v1476 = vmul.f32 %v1440, %v1472
        %v1477 = vmul.f32 %v1441, %v1472
        %v1478 = vmul.f32 %v1442, %v1472
        %v1479 = vmul.f32 %v1443, %v1472
        %v1480 = vmul.f32 %v1444, %v1472
        %v1481 = vmul.f32 %v1445, %v1472
        %v1482 = vmul.f32 %v1446, %v1472
        %v1483 = vmul.f32 %v1447, %v1472
        %v1484 = vmul.f32 %v1448, %v1472
        %v1485 = vmul.f32 %v1449, %v1472
        %v1486 = vmul.f32 %v1450, %v1472
        %v1487 = vmul.f32 %v1451, %v1472
        %v1488 = vmul.f32 %v1452, %v1472
        %v1489 = vmul.f32 %v1453, %v1472
        %v1490 = vmul.f32 %v1454, %v1472
        %v1491 = vmul.f32 %v1455, %v1472
        %v1492 = vmul.f32 %v1456, %v1472
        %v1493 = vmul.f32 %v1457, %v1472
        %v1494 = vmul.f32 %v1458, %v1472
        %v1495 = vmul.f32 %v1459, %v1472
        %v1496 = vmul.f32 %v1460, %v1472
        %v1497 = vmul.f32 %v1461, %v1472
        %v1498 = vmul.f32 %v1462, %v1472
        %v1499 = vmul.f32 %v1463, %v1472
        %v1500 = vmul.f32 %v1464, %v1472
        %v1501 = vmul.f32 %v1465, %v1472
        %v1502 = vmul.f32 %v1466, %v1472
        %v1503 = vmul.f32 %v1467, %v1472
        %v1504 = vmul.f32 %v1468, %v1472
        %v1505 = vld [vmem:[%s1436 + $0x12] sm:$0xff]
        %v1506 = vld [vmem:[%s1436 + $0x1a] sm:$0xff]
        %v1507 = vld [vmem:[%s1436 + $0x4a] sm:$0xff]
        %v1508 = vld [vmem:[%s1436 + $0x52] sm:$0xff]
        %v1509 = vld [vmem:[%s1436 + $0x82] sm:$0xff]
        %v1510 = vld [vmem:[%s1436 + $0x8a] sm:$0xff]
        %v1511 = vld [vmem:[%s1436 + $0xba] sm:$0xff]
        %v1512 = vld [vmem:[%s1436 + $0xc2] sm:$0xff]
        %v1513 = vld [vmem:[%s1436 + $0xf2] sm:$0xff]
        %v1514 = vld [vmem:[%s1436 + $0xfa] sm:$0xff]
        %v1515 = vld [vmem:[%s1436 + $0x12a] sm:$0xff]
        %v1516 = vld [vmem:[%s1436 + $0x132] sm:$0xff]
        %v1517 = vld [vmem:[%s1436 + $0x162] sm:$0xff]
        %v1518 = vld [vmem:[%s1436 + $0x16a] sm:$0xff]
        %v1519 = vld [vmem:[%s1436 + $0x19a] sm:$0xff]
        %v1520 = vld [vmem:[%s1436 + $0x1a2] sm:$0xff]
        %v1521 = vld [vmem:[%s1436 + $0x1d2] sm:$0xff]
        %v1522 = vld [vmem:[%s1436 + $0x1da] sm:$0xff]
        %v1523 = vld [vmem:[%s1436 + $0x20a] sm:$0xff]
        %v1524 = vld [vmem:[%s1436 + $0x212] sm:$0xff]
        %v1525 = vld [vmem:[%s1436 + $0x242] sm:$0xff]
        %v1526 = vld [vmem:[%s1436 + $0x24a] sm:$0xff]
        %v1527 = vld [vmem:[%s1436 + $0x27a] sm:$0xff]
        %v1528 = vld [vmem:[%s1436 + $0x282] sm:$0xff]
        %v1529 = vld [vmem:[%s1436 + $0x2b2] sm:$0xff]
        %v1530 = vld [vmem:[%s1436 + $0x2ba] sm:$0xff]
        %v1531 = vld [vmem:[%s1436 + $0x2ea] sm:$0xff]
        %v1532 = vld [vmem:[%s1436 + $0x2f2] sm:$0xff]
        %v1533 = vld [vmem:[%s1436 + $0x322] sm:$0xff]
        %v1534 = vld [vmem:[%s1436 + $0x32a] sm:$0xff]
        %v1535 = vld [vmem:[%s1436 + $0x35a] sm:$0xff]
        %v1536 = vld [vmem:[%s1436 + $0x362] sm:$0xff]
        %v1537 = vlaneseq
        %v1538 = vshrl.u32 %v1537, 7
        %v1539 = vsub.s32 1, %v1538
        %v1540 = vrot.slane %v1427, %v1539
        %v1541 = vmul.f32 %v1505, %v1540
        %v1542 = vmul.f32 %v1506, %v1540
        %v1543 = vmul.f32 %v1507, %v1540
        %v1544 = vmul.f32 %v1508, %v1540
        %v1545 = vmul.f32 %v1509, %v1540
        %v1546 = vmul.f32 %v1510, %v1540
        %v1547 = vmul.f32 %v1511, %v1540
        %v1548 = vmul.f32 %v1512, %v1540
        %v1549 = vmul.f32 %v1513, %v1540
        %v1550 = vmul.f32 %v1514, %v1540
        %v1551 = vmul.f32 %v1515, %v1540
        %v1552 = vmul.f32 %v1516, %v1540
        %v1553 = vmul.f32 %v1517, %v1540
        %v1554 = vmul.f32 %v1518, %v1540
        %v1555 = vmul.f32 %v1519, %v1540
        %v1556 = vmul.f32 %v1520, %v1540
        %v1557 = vmul.f32 %v1521, %v1540
        %v1558 = vmul.f32 %v1522, %v1540
        %v1559 = vmul.f32 %v1523, %v1540
        %v1560 = vmul.f32 %v1524, %v1540
        %v1561 = vmul.f32 %v1525, %v1540
        %v1562 = vmul.f32 %v1526, %v1540
        %v1563 = vmul.f32 %v1527, %v1540
        %v1564 = vmul.f32 %v1528, %v1540
        %v1565 = vmul.f32 %v1529, %v1540
        %v1566 = vmul.f32 %v1530, %v1540
        %v1567 = vmul.f32 %v1531, %v1540
        %v1568 = vmul.f32 %v1532, %v1540
        %v1569 = vmul.f32 %v1533, %v1540
        %v1570 = vmul.f32 %v1534, %v1540
        %v1571 = vmul.f32 %v1535, %v1540
        %v1572 = vmul.f32 %v1536, %v1540
        %v1573 = vadd.f32 %v1473, %v1541
        %v1574 = vadd.f32 %v1474, %v1542
        %v1575 = vadd.f32 %v1475, %v1543
        %v1576 = vadd.f32 %v1476, %v1544
        %v1577 = vadd.f32 %v1477, %v1545
        %v1578 = vadd.f32 %v1478, %v1546
        %v1579 = vadd.f32 %v1479, %v1547
        %v1580 = vadd.f32 %v1480, %v1548
        %v1581 = vadd.f32 %v1481, %v1549
        %v1582 = vadd.f32 %v1482, %v1550
        %v1583 = vadd.f32 %v1483, %v1551
        %v1584 = vadd.f32 %v1484, %v1552
        %v1585 = vadd.f32 %v1485, %v1553
        %v1586 = vadd.f32 %v1486, %v1554
        %v1587 = vadd.f32 %v1487, %v1555
        %v1588 = vadd.f32 %v1488, %v1556
        %v1589 = vadd.f32 %v1489, %v1557
        %v1590 = vadd.f32 %v1490, %v1558
        %v1591 = vadd.f32 %v1491, %v1559
        %v1592 = vadd.f32 %v1492, %v1560
        %v1593 = vadd.f32 %v1493, %v1561
        %v1594 = vadd.f32 %v1494, %v1562
        %v1595 = vadd.f32 %v1495, %v1563
        %v1596 = vadd.f32 %v1496, %v1564
        %v1597 = vadd.f32 %v1497, %v1565
        %v1598 = vadd.f32 %v1498, %v1566
        %v1599 = vadd.f32 %v1499, %v1567
        %v1600 = vadd.f32 %v1500, %v1568
        %v1601 = vadd.f32 %v1501, %v1569
        %v1602 = vadd.f32 %v1502, %v1570
        %v1603 = vadd.f32 %v1503, %v1571
        %v1604 = vadd.f32 %v1504, %v1572
        %v1605 = vld [vmem:[%s1436 + $0x18] sm:$0xff]
        %v1606 = vld [vmem:[%s1436 + $0x20] sm:$0xff]
        %v1607 = vld [vmem:[%s1436 + $0x50] sm:$0xff]
        %v1608 = vld [vmem:[%s1436 + $0x58] sm:$0xff]
        %v1609 = vld [vmem:[%s1436 + $0x88] sm:$0xff]
        %v1610 = vld [vmem:[%s1436 + $0x90] sm:$0xff]
        %v1611 = vld [vmem:[%s1436 + $0xc0] sm:$0xff]
        %v1612 = vld [vmem:[%s1436 + $0xc8] sm:$0xff]
        %v1613 = vld [vmem:[%s1436 + $0xf8] sm:$0xff]
        %v1614 = vld [vmem:[%s1436 + $0x100] sm:$0xff]
        %v1615 = vld [vmem:[%s1436 + $0x130] sm:$0xff]
        %v1616 = vld [vmem:[%s1436 + $0x138] sm:$0xff]
        %v1617 = vld [vmem:[%s1436 + $0x168] sm:$0xff]
        %v1618 = vld [vmem:[%s1436 + $0x170] sm:$0xff]
        %v1619 = vld [vmem:[%s1436 + $0x1a0] sm:$0xff]
        %v1620 = vld [vmem:[%s1436 + $0x1a8] sm:$0xff]
        %v1621 = vld [vmem:[%s1436 + $0x1d8] sm:$0xff]
        %v1622 = vld [vmem:[%s1436 + $0x1e0] sm:$0xff]
        %v1623 = vld [vmem:[%s1436 + $0x210] sm:$0xff]
        %v1624 = vld [vmem:[%s1436 + $0x218] sm:$0xff]
        %v1625 = vld [vmem:[%s1436 + $0x248] sm:$0xff]
        %v1626 = vld [vmem:[%s1436 + $0x250] sm:$0xff]
        %v1627 = vld [vmem:[%s1436 + $0x280] sm:$0xff]
        %v1628 = vld [vmem:[%s1436 + $0x288] sm:$0xff]
        %v1629 = vld [vmem:[%s1436 + $0x2b8] sm:$0xff]
        %v1630 = vld [vmem:[%s1436 + $0x2c0] sm:$0xff]
        %v1631 = vld [vmem:[%s1436 + $0x2f0] sm:$0xff]
        %v1632 = vld [vmem:[%s1436 + $0x2f8] sm:$0xff]
        %v1633 = vld [vmem:[%s1436 + $0x328] sm:$0xff]
        %v1634 = vld [vmem:[%s1436 + $0x330] sm:$0xff]
        %v1635 = vld [vmem:[%s1436 + $0x360] sm:$0xff]
        %v1636 = vld [vmem:[%s1436 + $0x368] sm:$0xff]
        %v1637 = vlaneseq
        %v1638 = vshrl.u32 %v1637, 7
        %v1639 = vsub.s32 2, %v1638
        %v1640 = vrot.slane %v1427, %v1639
        %v1641 = vmul.f32 %v1605, %v1640
        %v1642 = vmul.f32 %v1606, %v1640
        %v1643 = vmul.f32 %v1607, %v1640
        %v1644 = vmul.f32 %v1608, %v1640
        %v1645 = vmul.f32 %v1609, %v1640
        %v1646 = vmul.f32 %v1610, %v1640
        %v1647 = vmul.f32 %v1611, %v1640
        %v1648 = vmul.f32 %v1612, %v1640
        %v1649 = vmul.f32 %v1613, %v1640
        %v1650 = vmul.f32 %v1614, %v1640
        %v1651 = vmul.f32 %v1615, %v1640
        %v1652 = vmul.f32 %v1616, %v1640
        %v1653 = vmul.f32 %v1617, %v1640
        %v1654 = vmul.f32 %v1618, %v1640
        %v1655 = vmul.f32 %v1619, %v1640
        %v1656 = vmul.f32 %v1620, %v1640
        %v1657 = vmul.f32 %v1621, %v1640
        %v1658 = vmul.f32 %v1622, %v1640
        %v1659 = vmul.f32 %v1623, %v1640
        %v1660 = vmul.f32 %v1624, %v1640
        %v1661 = vmul.f32 %v1625, %v1640
        %v1662 = vmul.f32 %v1626, %v1640
        %v1663 = vmul.f32 %v1627, %v1640
        %v1664 = vmul.f32 %v1628, %v1640
        %v1665 = vmul.f32 %v1629, %v1640
        %v1666 = vmul.f32 %v1630, %v1640
        %v1667 = vmul.f32 %v1631, %v1640
        %v1668 = vmul.f32 %v1632, %v1640
        %v1669 = vmul.f32 %v1633, %v1640
        %v1670 = vmul.f32 %v1634, %v1640
        %v1671 = vmul.f32 %v1635, %v1640
        %v1672 = vmul.f32 %v1636, %v1640
        %v1673 = vadd.f32 %v1573, %v1641
        %v1674 = vadd.f32 %v1574, %v1642
        %v1675 = vadd.f32 %v1575, %v1643
        %v1676 = vadd.f32 %v1576, %v1644
        %v1677 = vadd.f32 %v1577, %v1645
        %v1678 = vadd.f32 %v1578, %v1646
        %v1679 = vadd.f32 %v1579, %v1647
        %v1680 = vadd.f32 %v1580, %v1648
        %v1681 = vadd.f32 %v1581, %v1649
        %v1682 = vadd.f32 %v1582, %v1650
        %v1683 = vadd.f32 %v1583, %v1651
        %v1684 = vadd.f32 %v1584, %v1652
        %v1685 = vadd.f32 %v1585, %v1653
        %v1686 = vadd.f32 %v1586, %v1654
        %v1687 = vadd.f32 %v1587, %v1655
        %v1688 = vadd.f32 %v1588, %v1656
        %v1689 = vadd.f32 %v1589, %v1657
        %v1690 = vadd.f32 %v1590, %v1658
        %v1691 = vadd.f32 %v1591, %v1659
        %v1692 = vadd.f32 %v1592, %v1660
        %v1693 = vadd.f32 %v1593, %v1661
        %v1694 = vadd.f32 %v1594, %v1662
        %v1695 = vadd.f32 %v1595, %v1663
        %v1696 = vadd.f32 %v1596, %v1664
        %v1697 = vadd.f32 %v1597, %v1665
        %v1698 = vadd.f32 %v1598, %v1666
        %v1699 = vadd.f32 %v1599, %v1667
        %v1700 = vadd.f32 %v1600, %v1668
        %v1701 = vadd.f32 %v1601, %v1669
        %v1702 = vadd.f32 %v1602, %v1670
        %v1703 = vadd.f32 %v1603, %v1671
        %v1704 = vadd.f32 %v1604, %v1672
        %v1705 = vld [vmem:[%s932 + $0xc] sm:$0xff]
        %v1706 = vld [vmem:[%s932 + $0x14] sm:$0xff]
        %v1707 = vld [vmem:[%s932 + $0x44] sm:$0xff]
        %v1708 = vld [vmem:[%s932 + $0x4c] sm:$0xff]
        %v1709 = vld [vmem:[%s932 + $0x7c] sm:$0xff]
        %v1710 = vld [vmem:[%s932 + $0x84] sm:$0xff]
        %v1711 = vld [vmem:[%s932 + $0xb4] sm:$0xff]
        %v1712 = vld [vmem:[%s932 + $0xbc] sm:$0xff]
        %v1713 = vld [vmem:[%s932 + $0xec] sm:$0xff]
        %v1714 = vld [vmem:[%s932 + $0xf4] sm:$0xff]
        %v1715 = vld [vmem:[%s932 + $0x124] sm:$0xff]
        %v1716 = vld [vmem:[%s932 + $0x12c] sm:$0xff]
        %v1717 = vld [vmem:[%s932 + $0x15c] sm:$0xff]
        %v1718 = vld [vmem:[%s932 + $0x164] sm:$0xff]
        %v1719 = vld [vmem:[%s932 + $0x194] sm:$0xff]
        %v1720 = vld [vmem:[%s932 + $0x19c] sm:$0xff]
        %v1721 = vld [vmem:[%s932 + $0x1cc] sm:$0xff]
        %v1722 = vld [vmem:[%s932 + $0x1d4] sm:$0xff]
        %v1723 = vld [vmem:[%s932 + $0x204] sm:$0xff]
        %v1724 = vld [vmem:[%s932 + $0x20c] sm:$0xff]
        %v1725 = vld [vmem:[%s932 + $0x23c] sm:$0xff]
        %v1726 = vld [vmem:[%s932 + $0x244] sm:$0xff]
        %v1727 = vld [vmem:[%s932 + $0x274] sm:$0xff]
        %v1728 = vld [vmem:[%s932 + $0x27c] sm:$0xff]
        %v1729 = vld [vmem:[%s932 + $0x2ac] sm:$0xff]
        %v1730 = vld [vmem:[%s932 + $0x2b4] sm:$0xff]
        %v1731 = vld [vmem:[%s932 + $0x2e4] sm:$0xff]
        %v1732 = vld [vmem:[%s932 + $0x2ec] sm:$0xff]
        %v1733 = vld [vmem:[%s932 + $0x31c] sm:$0xff]
        %v1734 = vld [vmem:[%s932 + $0x324] sm:$0xff]
        %v1735 = vld [vmem:[%s932 + $0x354] sm:$0xff]
        %v1736 = vld [vmem:[%s932 + $0x35c] sm:$0xff]
        %v1737 = vlaneseq
        %v1738 = vshrl.u32 %v1737, 7
        %v1739 = vsub.s32 0, %v1738
        %v1740 = vrot.slane %v1428, %v1739
        %v1741 = vmul.f32 %v1705, %v1740
        %v1742 = vmul.f32 %v1706, %v1740
        %v1743 = vmul.f32 %v1707, %v1740
        %v1744 = vmul.f32 %v1708, %v1740
        %v1745 = vmul.f32 %v1709, %v1740
        %v1746 = vmul.f32 %v1710, %v1740
        %v1747 = vmul.f32 %v1711, %v1740
        %v1748 = vmul.f32 %v1712, %v1740
        %v1749 = vmul.f32 %v1713, %v1740
        %v1750 = vmul.f32 %v1714, %v1740
        %v1751 = vmul.f32 %v1715, %v1740
        %v1752 = vmul.f32 %v1716, %v1740
        %v1753 = vmul.f32 %v1717, %v1740
        %v1754 = vmul.f32 %v1718, %v1740
        %v1755 = vmul.f32 %v1719, %v1740
        %v1756 = vmul.f32 %v1720, %v1740
        %v1757 = vmul.f32 %v1721, %v1740
        %v1758 = vmul.f32 %v1722, %v1740
        %v1759 = vmul.f32 %v1723, %v1740
        %v1760 = vmul.f32 %v1724, %v1740
        %v1761 = vmul.f32 %v1725, %v1740
        %v1762 = vmul.f32 %v1726, %v1740
        %v1763 = vmul.f32 %v1727, %v1740
        %v1764 = vmul.f32 %v1728, %v1740
        %v1765 = vmul.f32 %v1729, %v1740
        %v1766 = vmul.f32 %v1730, %v1740
        %v1767 = vmul.f32 %v1731, %v1740
        %v1768 = vmul.f32 %v1732, %v1740
        %v1769 = vmul.f32 %v1733, %v1740
        %v1770 = vmul.f32 %v1734, %v1740
        %v1771 = vmul.f32 %v1735, %v1740
        %v1772 = vmul.f32 %v1736, %v1740
        %v1773 = vadd.f32 %v1673, %v1741
        %v1774 = vadd.f32 %v1674, %v1742
        %v1775 = vadd.f32 %v1675, %v1743
        %v1776 = vadd.f32 %v1676, %v1744
        %v1777 = vadd.f32 %v1677, %v1745
        %v1778 = vadd.f32 %v1678, %v1746
        %v1779 = vadd.f32 %v1679, %v1747
        %v1780 = vadd.f32 %v1680, %v1748
        %v1781 = vadd.f32 %v1681, %v1749
        %v1782 = vadd.f32 %v1682, %v1750
        %v1783 = vadd.f32 %v1683, %v1751
        %v1784 = vadd.f32 %v1684, %v1752
        %v1785 = vadd.f32 %v1685, %v1753
        %v1786 = vadd.f32 %v1686, %v1754
        %v1787 = vadd.f32 %v1687, %v1755
        %v1788 = vadd.f32 %v1688, %v1756
        %v1789 = vadd.f32 %v1689, %v1757
        %v1790 = vadd.f32 %v1690, %v1758
        %v1791 = vadd.f32 %v1691, %v1759
        %v1792 = vadd.f32 %v1692, %v1760
        %v1793 = vadd.f32 %v1693, %v1761
        %v1794 = vadd.f32 %v1694, %v1762
        %v1795 = vadd.f32 %v1695, %v1763
        %v1796 = vadd.f32 %v1696, %v1764
        %v1797 = vadd.f32 %v1697, %v1765
        %v1798 = vadd.f32 %v1698, %v1766
        %v1799 = vadd.f32 %v1699, %v1767
        %v1800 = vadd.f32 %v1700, %v1768
        %v1801 = vadd.f32 %v1701, %v1769
        %v1802 = vadd.f32 %v1702, %v1770
        %v1803 = vadd.f32 %v1703, %v1771
        %v1804 = vadd.f32 %v1704, %v1772
        %v1805 = vld [vmem:[%s932 + $0x12] sm:$0xff]
        %v1806 = vld [vmem:[%s932 + $0x1a] sm:$0xff]
        %v1807 = vld [vmem:[%s932 + $0x4a] sm:$0xff]
        %v1808 = vld [vmem:[%s932 + $0x52] sm:$0xff]
        %v1809 = vld [vmem:[%s932 + $0x82] sm:$0xff]
        %v1810 = vld [vmem:[%s932 + $0x8a] sm:$0xff]
        %v1811 = vld [vmem:[%s932 + $0xba] sm:$0xff]
        %v1812 = vld [vmem:[%s932 + $0xc2] sm:$0xff]
        %v1813 = vld [vmem:[%s932 + $0xf2] sm:$0xff]
        %v1814 = vld [vmem:[%s932 + $0xfa] sm:$0xff]
        %v1815 = vld [vmem:[%s932 + $0x12a] sm:$0xff]
        %v1816 = vld [vmem:[%s932 + $0x132] sm:$0xff]
        %v1817 = vld [vmem:[%s932 + $0x162] sm:$0xff]
        %v1818 = vld [vmem:[%s932 + $0x16a] sm:$0xff]
        %v1819 = vld [vmem:[%s932 + $0x19a] sm:$0xff]
        %v1820 = vld [vmem:[%s932 + $0x1a2] sm:$0xff]
        %v1821 = vld [vmem:[%s932 + $0x1d2] sm:$0xff]
        %v1822 = vld [vmem:[%s932 + $0x1da] sm:$0xff]
        %v1823 = vld [vmem:[%s932 + $0x20a] sm:$0xff]
        %v1824 = vld [vmem:[%s932 + $0x212] sm:$0xff]
        %v1825 = vld [vmem:[%s932 + $0x242] sm:$0xff]
        %v1826 = vld [vmem:[%s932 + $0x24a] sm:$0xff]
        %v1827 = vld [vmem:[%s932 + $0x27a] sm:$0xff]
        %v1828 = vld [vmem:[%s932 + $0x282] sm:$0xff]
        %v1829 = vld [vmem:[%s932 + $0x2b2] sm:$0xff]
        %v1830 = vld [vmem:[%s932 + $0x2ba] sm:$0xff]
        %v1831 = vld [vmem:[%s932 + $0x2ea] sm:$0xff]
        %v1832 = vld [vmem:[%s932 + $0x2f2] sm:$0xff]
        %v1833 = vld [vmem:[%s932 + $0x322] sm:$0xff]
        %v1834 = vld [vmem:[%s932 + $0x32a] sm:$0xff]
        %v1835 = vld [vmem:[%s932 + $0x35a] sm:$0xff]
        %v1836 = vld [vmem:[%s932 + $0x362] sm:$0xff]
        %v1837 = vlaneseq
        %v1838 = vshrl.u32 %v1837, 7
        %v1839 = vsub.s32 1, %v1838
        %v1840 = vrot.slane %v1428, %v1839
        %v1841 = vmul.f32 %v1805, %v1840
        %v1842 = vmul.f32 %v1806, %v1840
        %v1843 = vmul.f32 %v1807, %v1840
        %v1844 = vmul.f32 %v1808, %v1840
        %v1845 = vmul.f32 %v1809, %v1840
        %v1846 = vmul.f32 %v1810, %v1840
        %v1847 = vmul.f32 %v1811, %v1840
        %v1848 = vmul.f32 %v1812, %v1840
        %v1849 = vmul.f32 %v1813, %v1840
        %v1850 = vmul.f32 %v1814, %v1840
        %v1851 = vmul.f32 %v1815, %v1840
        %v1852 = vmul.f32 %v1816, %v1840
        %v1853 = vmul.f32 %v1817, %v1840
        %v1854 = vmul.f32 %v1818, %v1840
        %v1855 = vmul.f32 %v1819, %v1840
        %v1856 = vmul.f32 %v1820, %v1840
        %v1857 = vmul.f32 %v1821, %v1840
        %v1858 = vmul.f32 %v1822, %v1840
        %v1859 = vmul.f32 %v1823, %v1840
        %v1860 = vmul.f32 %v1824, %v1840
        %v1861 = vmul.f32 %v1825, %v1840
        %v1862 = vmul.f32 %v1826, %v1840
        %v1863 = vmul.f32 %v1827, %v1840
        %v1864 = vmul.f32 %v1828, %v1840
        %v1865 = vmul.f32 %v1829, %v1840
        %v1866 = vmul.f32 %v1830, %v1840
        %v1867 = vmul.f32 %v1831, %v1840
        %v1868 = vmul.f32 %v1832, %v1840
        %v1869 = vmul.f32 %v1833, %v1840
        %v1870 = vmul.f32 %v1834, %v1840
        %v1871 = vmul.f32 %v1835, %v1840
        %v1872 = vmul.f32 %v1836, %v1840
        %v1873 = vadd.f32 %v1773, %v1841
        %v1874 = vadd.f32 %v1774, %v1842
        %v1875 = vadd.f32 %v1775, %v1843
        %v1876 = vadd.f32 %v1776, %v1844
        %v1877 = vadd.f32 %v1777, %v1845
        %v1878 = vadd.f32 %v1778, %v1846
        %v1879 = vadd.f32 %v1779, %v1847
        %v1880 = vadd.f32 %v1780, %v1848
        %v1881 = vadd.f32 %v1781, %v1849
        %v1882 = vadd.f32 %v1782, %v1850
        %v1883 = vadd.f32 %v1783, %v1851
        %v1884 = vadd.f32 %v1784, %v1852
        %v1885 = vadd.f32 %v1785, %v1853
        %v1886 = vadd.f32 %v1786, %v1854
        %v1887 = vadd.f32 %v1787, %v1855
        %v1888 = vadd.f32 %v1788, %v1856
        %v1889 = vadd.f32 %v1789, %v1857
        %v1890 = vadd.f32 %v1790, %v1858
        %v1891 = vadd.f32 %v1791, %v1859
        %v1892 = vadd.f32 %v1792, %v1860
        %v1893 = vadd.f32 %v1793, %v1861
        %v1894 = vadd.f32 %v1794, %v1862
        %v1895 = vadd.f32 %v1795, %v1863
        %v1896 = vadd.f32 %v1796, %v1864
        %v1897 = vadd.f32 %v1797, %v1865
        %v1898 = vadd.f32 %v1798, %v1866
        %v1899 = vadd.f32 %v1799, %v1867
        %v1900 = vadd.f32 %v1800, %v1868
        %v1901 = vadd.f32 %v1801, %v1869
        %v1902 = vadd.f32 %v1802, %v1870
        %v1903 = vadd.f32 %v1803, %v1871
        %v1904 = vadd.f32 %v1804, %v1872
        %v1905 = vld [vmem:[%s932 + $0x18] sm:$0xff]
        %v1906 = vld [vmem:[%s932 + $0x20] sm:$0xff]
        %v1907 = vld [vmem:[%s932 + $0x50] sm:$0xff]
        %v1908 = vld [vmem:[%s932 + $0x58] sm:$0xff]
        %v1909 = vld [vmem:[%s932 + $0x88] sm:$0xff]
        %v1910 = vld [vmem:[%s932 + $0x90] sm:$0xff]
        %v1911 = vld [vmem:[%s932 + $0xc0] sm:$0xff]
        %v1912 = vld [vmem:[%s932 + $0xc8] sm:$0xff]
        %v1913 = vld [vmem:[%s932 + $0xf8] sm:$0xff]
        %v1914 = vld [vmem:[%s932 + $0x100] sm:$0xff]
        %v1915 = vld [vmem:[%s932 + $0x130] sm:$0xff]
        %v1916 = vld [vmem:[%s932 + $0x138] sm:$0xff]
        %v1917 = vld [vmem:[%s932 + $0x168] sm:$0xff]
        %v1918 = vld [vmem:[%s932 + $0x170] sm:$0xff]
        %v1919 = vld [vmem:[%s932 + $0x1a0] sm:$0xff]
        %v1920 = vld [vmem:[%s932 + $0x1a8] sm:$0xff]
        %v1921 = vld [vmem:[%s932 + $0x1d8] sm:$0xff]
        %v1922 = vld [vmem:[%s932 + $0x1e0] sm:$0xff]
        %v1923 = vld [vmem:[%s932 + $0x210] sm:$0xff]
        %v1924 = vld [vmem:[%s932 + $0x218] sm:$0xff]
        %v1925 = vld [vmem:[%s932 + $0x248] sm:$0xff]
        %v1926 = vld [vmem:[%s932 + $0x250] sm:$0xff]
        %v1927 = vld [vmem:[%s932 + $0x280] sm:$0xff]
        %v1928 = vld [vmem:[%s932 + $0x288] sm:$0xff]
        %v1929 = vld [vmem:[%s932 + $0x2b8] sm:$0xff]
        %v1930 = vld [vmem:[%s932 + $0x2c0] sm:$0xff]
        %v1931 = vld [vmem:[%s932 + $0x2f0] sm:$0xff]
        %v1932 = vld [vmem:[%s932 + $0x2f8] sm:$0xff]
        %v1933 = vld [vmem:[%s932 + $0x328] sm:$0xff]
        %v1934 = vld [vmem:[%s932 + $0x330] sm:$0xff]
        %v1935 = vld [vmem:[%s932 + $0x360] sm:$0xff]
        %v1936 = vld [vmem:[%s932 + $0x368] sm:$0xff]
        %v1937 = vlaneseq
        %v1938 = vshrl.u32 %v1937, 7
        %v1939 = vsub.s32 2, %v1938
        %v1940 = vrot.slane %v1428, %v1939
        %v1941 = vmul.f32 %v1905, %v1940
        %v1942 = vmul.f32 %v1906, %v1940
        %v1943 = vmul.f32 %v1907, %v1940
        %v1944 = vmul.f32 %v1908, %v1940
        %v1945 = vmul.f32 %v1909, %v1940
        %v1946 = vmul.f32 %v1910, %v1940
        %v1947 = vmul.f32 %v1911, %v1940
        %v1948 = vmul.f32 %v1912, %v1940
        %v1949 = vmul.f32 %v1913, %v1940
        %v1950 = vmul.f32 %v1914, %v1940
        %v1951 = vmul.f32 %v1915, %v1940
        %v1952 = vmul.f32 %v1916, %v1940
        %v1953 = vmul.f32 %v1917, %v1940
        %v1954 = vmul.f32 %v1918, %v1940
        %v1955 = vmul.f32 %v1919, %v1940
        %v1956 = vmul.f32 %v1920, %v1940
        %v1957 = vmul.f32 %v1921, %v1940
        %v1958 = vmul.f32 %v1922, %v1940
        %v1959 = vmul.f32 %v1923, %v1940
        %v1960 = vmul.f32 %v1924, %v1940
        %v1961 = vmul.f32 %v1925, %v1940
        %v1962 = vmul.f32 %v1926, %v1940
        %v1963 = vmul.f32 %v1927, %v1940
        %v1964 = vmul.f32 %v1928, %v1940
        %v1965 = vmul.f32 %v1929, %v1940
        %v1966 = vmul.f32 %v1930, %v1940
        %v1967 = vmul.f32 %v1931, %v1940
        %v1968 = vmul.f32 %v1932, %v1940
        %v1969 = vmul.f32 %v1933, %v1940
        %v1970 = vmul.f32 %v1934, %v1940
        %v1971 = vmul.f32 %v1935, %v1940
        %v1972 = vmul.f32 %v1936, %v1940
        %v1973 = vadd.f32 %v1873, %v1941
        %v1974 = vadd.f32 %v1874, %v1942
        %v1975 = vadd.f32 %v1875, %v1943
        %v1976 = vadd.f32 %v1876, %v1944
        %v1977 = vadd.f32 %v1877, %v1945
        %v1978 = vadd.f32 %v1878, %v1946
        %v1979 = vadd.f32 %v1879, %v1947
        %v1980 = vadd.f32 %v1880, %v1948
        %v1981 = vadd.f32 %v1881, %v1949
        %v1982 = vadd.f32 %v1882, %v1950
        %v1983 = vadd.f32 %v1883, %v1951
        %v1984 = vadd.f32 %v1884, %v1952
        %v1985 = vadd.f32 %v1885, %v1953
        %v1986 = vadd.f32 %v1886, %v1954
        %v1987 = vadd.f32 %v1887, %v1955
        %v1988 = vadd.f32 %v1888, %v1956
        %v1989 = vadd.f32 %v1889, %v1957
        %v1990 = vadd.f32 %v1890, %v1958
        %v1991 = vadd.f32 %v1891, %v1959
        %v1992 = vadd.f32 %v1892, %v1960
        %v1993 = vadd.f32 %v1893, %v1961
        %v1994 = vadd.f32 %v1894, %v1962
        %v1995 = vadd.f32 %v1895, %v1963
        %v1996 = vadd.f32 %v1896, %v1964
        %v1997 = vadd.f32 %v1897, %v1965
        %v1998 = vadd.f32 %v1898, %v1966
        %v1999 = vadd.f32 %v1899, %v1967
        %v2000 = vadd.f32 %v1900, %v1968
        %v2001 = vadd.f32 %v1901, %v1969
        %v2002 = vadd.f32 %v1902, %v1970
        %v2003 = vadd.f32 %v1903, %v1971
        %v2004 = vadd.f32 %v1904, %v1972
        %s2005 = scalar_lea.vmem [#allocation2], 1344
        %v2006 = vld [vmem:[%s2005 + $0xc] sm:$0xff]
        %v2007 = vld [vmem:[%s2005 + $0x14] sm:$0xff]
        %v2008 = vld [vmem:[%s2005 + $0x44] sm:$0xff]
        %v2009 = vld [vmem:[%s2005 + $0x4c] sm:$0xff]
        %v2010 = vld [vmem:[%s2005 + $0x7c] sm:$0xff]
        %v2011 = vld [vmem:[%s2005 + $0x84] sm:$0xff]
        %v2012 = vld [vmem:[%s2005 + $0xb4] sm:$0xff]
        %v2013 = vld [vmem:[%s2005 + $0xbc] sm:$0xff]
        %v2014 = vld [vmem:[%s2005 + $0xec] sm:$0xff]
        %v2015 = vld [vmem:[%s2005 + $0xf4] sm:$0xff]
        %v2016 = vld [vmem:[%s2005 + $0x124] sm:$0xff]
        %v2017 = vld [vmem:[%s2005 + $0x12c] sm:$0xff]
        %v2018 = vld [vmem:[%s2005 + $0x15c] sm:$0xff]
        %v2019 = vld [vmem:[%s2005 + $0x164] sm:$0xff]
        %v2020 = vld [vmem:[%s2005 + $0x194] sm:$0xff]
        %v2021 = vld [vmem:[%s2005 + $0x19c] sm:$0xff]
        %v2022 = vld [vmem:[%s2005 + $0x1cc] sm:$0xff]
        %v2023 = vld [vmem:[%s2005 + $0x1d4] sm:$0xff]
        %v2024 = vld [vmem:[%s2005 + $0x204] sm:$0xff]
        %v2025 = vld [vmem:[%s2005 + $0x20c] sm:$0xff]
        %v2026 = vld [vmem:[%s2005 + $0x23c] sm:$0xff]
        %v2027 = vld [vmem:[%s2005 + $0x244] sm:$0xff]
        %v2028 = vld [vmem:[%s2005 + $0x274] sm:$0xff]
        %v2029 = vld [vmem:[%s2005 + $0x27c] sm:$0xff]
        %v2030 = vld [vmem:[%s2005 + $0x2ac] sm:$0xff]
        %v2031 = vld [vmem:[%s2005 + $0x2b4] sm:$0xff]
        %v2032 = vld [vmem:[%s2005 + $0x2e4] sm:$0xff]
        %v2033 = vld [vmem:[%s2005 + $0x2ec] sm:$0xff]
        %v2034 = vld [vmem:[%s2005 + $0x31c] sm:$0xff]
        %v2035 = vld [vmem:[%s2005 + $0x324] sm:$0xff]
        %v2036 = vld [vmem:[%s2005 + $0x354] sm:$0xff]
        %v2037 = vld [vmem:[%s2005 + $0x35c] sm:$0xff]
        %v2038 = vlaneseq
        %v2039 = vshrl.u32 %v2038, 7
        %v2040 = vsub.s32 0, %v2039
        %v2041 = vrot.slane %v1429, %v2040
        %v2042 = vmul.f32 %v2006, %v2041
        %v2043 = vmul.f32 %v2007, %v2041
        %v2044 = vmul.f32 %v2008, %v2041
        %v2045 = vmul.f32 %v2009, %v2041
        %v2046 = vmul.f32 %v2010, %v2041
        %v2047 = vmul.f32 %v2011, %v2041
        %v2048 = vmul.f32 %v2012, %v2041
        %v2049 = vmul.f32 %v2013, %v2041
        %v2050 = vmul.f32 %v2014, %v2041
        %v2051 = vmul.f32 %v2015, %v2041
        %v2052 = vmul.f32 %v2016, %v2041
        %v2053 = vmul.f32 %v2017, %v2041
        %v2054 = vmul.f32 %v2018, %v2041
        %v2055 = vmul.f32 %v2019, %v2041
        %v2056 = vmul.f32 %v2020, %v2041
        %v2057 = vmul.f32 %v2021, %v2041
        %v2058 = vmul.f32 %v2022, %v2041
        %v2059 = vmul.f32 %v2023, %v2041
        %v2060 = vmul.f32 %v2024, %v2041
        %v2061 = vmul.f32 %v2025, %v2041
        %v2062 = vmul.f32 %v2026, %v2041
        %v2063 = vmul.f32 %v2027, %v2041
        %v2064 = vmul.f32 %v2028, %v2041
        %v2065 = vmul.f32 %v2029, %v2041
        %v2066 = vmul.f32 %v2030, %v2041
        %v2067 = vmul.f32 %v2031, %v2041
        %v2068 = vmul.f32 %v2032, %v2041
        %v2069 = vmul.f32 %v2033, %v2041
        %v2070 = vmul.f32 %v2034, %v2041
        %v2071 = vmul.f32 %v2035, %v2041
        %v2072 = vmul.f32 %v2036, %v2041
        %v2073 = vmul.f32 %v2037, %v2041
        %v2074 = vadd.f32 %v1973, %v2042
        %v2075 = vadd.f32 %v1974, %v2043
        %v2076 = vadd.f32 %v1975, %v2044
        %v2077 = vadd.f32 %v1976, %v2045
        %v2078 = vadd.f32 %v1977, %v2046
        %v2079 = vadd.f32 %v1978, %v2047
        %v2080 = vadd.f32 %v1979, %v2048
        %v2081 = vadd.f32 %v1980, %v2049
        %v2082 = vadd.f32 %v1981, %v2050
        %v2083 = vadd.f32 %v1982, %v2051
        %v2084 = vadd.f32 %v1983, %v2052
        %v2085 = vadd.f32 %v1984, %v2053
        %v2086 = vadd.f32 %v1985, %v2054
        %v2087 = vadd.f32 %v1986, %v2055
        %v2088 = vadd.f32 %v1987, %v2056
        %v2089 = vadd.f32 %v1988, %v2057
        %v2090 = vadd.f32 %v1989, %v2058
        %v2091 = vadd.f32 %v1990, %v2059
        %v2092 = vadd.f32 %v1991, %v2060
        %v2093 = vadd.f32 %v1992, %v2061
        %v2094 = vadd.f32 %v1993, %v2062
        %v2095 = vadd.f32 %v1994, %v2063
        %v2096 = vadd.f32 %v1995, %v2064
        %v2097 = vadd.f32 %v1996, %v2065
        %v2098 = vadd.f32 %v1997, %v2066
        %v2099 = vadd.f32 %v1998, %v2067
        %v2100 = vadd.f32 %v1999, %v2068
        %v2101 = vadd.f32 %v2000, %v2069
        %v2102 = vadd.f32 %v2001, %v2070
        %v2103 = vadd.f32 %v2002, %v2071
        %v2104 = vadd.f32 %v2003, %v2072
        %v2105 = vadd.f32 %v2004, %v2073
        %v2106 = vld [vmem:[%s2005 + $0x12] sm:$0xff]
        %v2107 = vld [vmem:[%s2005 + $0x1a] sm:$0xff]
        %v2108 = vld [vmem:[%s2005 + $0x4a] sm:$0xff]
        %v2109 = vld [vmem:[%s2005 + $0x52] sm:$0xff]
        %v2110 = vld [vmem:[%s2005 + $0x82] sm:$0xff]
        %v2111 = vld [vmem:[%s2005 + $0x8a] sm:$0xff]
        %v2112 = vld [vmem:[%s2005 + $0xba] sm:$0xff]
        %v2113 = vld [vmem:[%s2005 + $0xc2] sm:$0xff]
        %v2114 = vld [vmem:[%s2005 + $0xf2] sm:$0xff]
        %v2115 = vld [vmem:[%s2005 + $0xfa] sm:$0xff]
        %v2116 = vld [vmem:[%s2005 + $0x12a] sm:$0xff]
        %v2117 = vld [vmem:[%s2005 + $0x132] sm:$0xff]
        %v2118 = vld [vmem:[%s2005 + $0x162] sm:$0xff]
        %v2119 = vld [vmem:[%s2005 + $0x16a] sm:$0xff]
        %v2120 = vld [vmem:[%s2005 + $0x19a] sm:$0xff]
        %v2121 = vld [vmem:[%s2005 + $0x1a2] sm:$0xff]
        %v2122 = vld [vmem:[%s2005 + $0x1d2] sm:$0xff]
        %v2123 = vld [vmem:[%s2005 + $0x1da] sm:$0xff]
        %v2124 = vld [vmem:[%s2005 + $0x20a] sm:$0xff]
        %v2125 = vld [vmem:[%s2005 + $0x212] sm:$0xff]
        %v2126 = vld [vmem:[%s2005 + $0x242] sm:$0xff]
        %v2127 = vld [vmem:[%s2005 + $0x24a] sm:$0xff]
        %v2128 = vld [vmem:[%s2005 + $0x27a] sm:$0xff]
        %v2129 = vld [vmem:[%s2005 + $0x282] sm:$0xff]
        %v2130 = vld [vmem:[%s2005 + $0x2b2] sm:$0xff]
        %v2131 = vld [vmem:[%s2005 + $0x2ba] sm:$0xff]
        %v2132 = vld [vmem:[%s2005 + $0x2ea] sm:$0xff]
        %v2133 = vld [vmem:[%s2005 + $0x2f2] sm:$0xff]
        %v2134 = vld [vmem:[%s2005 + $0x322] sm:$0xff]
        %v2135 = vld [vmem:[%s2005 + $0x32a] sm:$0xff]
        %v2136 = vld [vmem:[%s2005 + $0x35a] sm:$0xff]
        %v2137 = vld [vmem:[%s2005 + $0x362] sm:$0xff]
        %v2138 = vlaneseq
        %v2139 = vshrl.u32 %v2138, 7
        %v2140 = vsub.s32 1, %v2139
        %v2141 = vrot.slane %v1429, %v2140
        %v2142 = vmul.f32 %v2106, %v2141
        %v2143 = vmul.f32 %v2107, %v2141
        %v2144 = vmul.f32 %v2108, %v2141
        %v2145 = vmul.f32 %v2109, %v2141
        %v2146 = vmul.f32 %v2110, %v2141
        %v2147 = vmul.f32 %v2111, %v2141
        %v2148 = vmul.f32 %v2112, %v2141
        %v2149 = vmul.f32 %v2113, %v2141
        %v2150 = vmul.f32 %v2114, %v2141
        %v2151 = vmul.f32 %v2115, %v2141
        %v2152 = vmul.f32 %v2116, %v2141
        %v2153 = vmul.f32 %v2117, %v2141
        %v2154 = vmul.f32 %v2118, %v2141
        %v2155 = vmul.f32 %v2119, %v2141
        %v2156 = vmul.f32 %v2120, %v2141
        %v2157 = vmul.f32 %v2121, %v2141
        %v2158 = vmul.f32 %v2122, %v2141
        %v2159 = vmul.f32 %v2123, %v2141
        %v2160 = vmul.f32 %v2124, %v2141
        %v2161 = vmul.f32 %v2125, %v2141
        %v2162 = vmul.f32 %v2126, %v2141
        %v2163 = vmul.f32 %v2127, %v2141
        %v2164 = vmul.f32 %v2128, %v2141
        %v2165 = vmul.f32 %v2129, %v2141
        %v2166 = vmul.f32 %v2130, %v2141
        %v2167 = vmul.f32 %v2131, %v2141
        %v2168 = vmul.f32 %v2132, %v2141
        %v2169 = vmul.f32 %v2133, %v2141
        %v2170 = vmul.f32 %v2134, %v2141
        %v2171 = vmul.f32 %v2135, %v2141
        %v2172 = vmul.f32 %v2136, %v2141
        %v2173 = vmul.f32 %v2137, %v2141
        %v2174 = vadd.f32 %v2074, %v2142
        %v2175 = vadd.f32 %v2075, %v2143
        %v2176 = vadd.f32 %v2076, %v2144
        %v2177 = vadd.f32 %v2077, %v2145
        %v2178 = vadd.f32 %v2078, %v2146
        %v2179 = vadd.f32 %v2079, %v2147
        %v2180 = vadd.f32 %v2080, %v2148
        %v2181 = vadd.f32 %v2081, %v2149
        %v2182 = vadd.f32 %v2082, %v2150
        %v2183 = vadd.f32 %v2083, %v2151
        %v2184 = vadd.f32 %v2084, %v2152
        %v2185 = vadd.f32 %v2085, %v2153
        %v2186 = vadd.f32 %v2086, %v2154
        %v2187 = vadd.f32 %v2087, %v2155
        %v2188 = vadd.f32 %v2088, %v2156
        %v2189 = vadd.f32 %v2089, %v2157
        %v2190 = vadd.f32 %v2090, %v2158
        %v2191 = vadd.f32 %v2091, %v2159
        %v2192 = vadd.f32 %v2092, %v2160
        %v2193 = vadd.f32 %v2093, %v2161
        %v2194 = vadd.f32 %v2094, %v2162
        %v2195 = vadd.f32 %v2095, %v2163
        %v2196 = vadd.f32 %v2096, %v2164
        %v2197 = vadd.f32 %v2097, %v2165
        %v2198 = vadd.f32 %v2098, %v2166
        %v2199 = vadd.f32 %v2099, %v2167
        %v2200 = vadd.f32 %v2100, %v2168
        %v2201 = vadd.f32 %v2101, %v2169
        %v2202 = vadd.f32 %v2102, %v2170
        %v2203 = vadd.f32 %v2103, %v2171
        %v2204 = vadd.f32 %v2104, %v2172
        %v2205 = vadd.f32 %v2105, %v2173
        %v2206 = vld [vmem:[%s2005 + $0x18] sm:$0xff]
        %v2207 = vld [vmem:[%s2005 + $0x20] sm:$0xff]
        %v2208 = vld [vmem:[%s2005 + $0x50] sm:$0xff]
        %v2209 = vld [vmem:[%s2005 + $0x58] sm:$0xff]
        %v2210 = vld [vmem:[%s2005 + $0x88] sm:$0xff]
        %v2211 = vld [vmem:[%s2005 + $0x90] sm:$0xff]
        %v2212 = vld [vmem:[%s2005 + $0xc0] sm:$0xff]
        %v2213 = vld [vmem:[%s2005 + $0xc8] sm:$0xff]
        %v2214 = vld [vmem:[%s2005 + $0xf8] sm:$0xff]
        %v2215 = vld [vmem:[%s2005 + $0x100] sm:$0xff]
        %v2216 = vld [vmem:[%s2005 + $0x130] sm:$0xff]
        %v2217 = vld [vmem:[%s2005 + $0x138] sm:$0xff]
        %v2218 = vld [vmem:[%s2005 + $0x168] sm:$0xff]
        %v2219 = vld [vmem:[%s2005 + $0x170] sm:$0xff]
        %v2220 = vld [vmem:[%s2005 + $0x1a0] sm:$0xff]
        %v2221 = vld [vmem:[%s2005 + $0x1a8] sm:$0xff]
        %v2222 = vld [vmem:[%s2005 + $0x1d8] sm:$0xff]
        %v2223 = vld [vmem:[%s2005 + $0x1e0] sm:$0xff]
        %v2224 = vld [vmem:[%s2005 + $0x210] sm:$0xff]
        %v2225 = vld [vmem:[%s2005 + $0x218] sm:$0xff]
        %v2226 = vld [vmem:[%s2005 + $0x248] sm:$0xff]
        %v2227 = vld [vmem:[%s2005 + $0x250] sm:$0xff]
        %v2228 = vld [vmem:[%s2005 + $0x280] sm:$0xff]
        %v2229 = vld [vmem:[%s2005 + $0x288] sm:$0xff]
        %v2230 = vld [vmem:[%s2005 + $0x2b8] sm:$0xff]
        %v2231 = vld [vmem:[%s2005 + $0x2c0] sm:$0xff]
        %v2232 = vld [vmem:[%s2005 + $0x2f0] sm:$0xff]
        %v2233 = vld [vmem:[%s2005 + $0x2f8] sm:$0xff]
        %v2234 = vld [vmem:[%s2005 + $0x328] sm:$0xff]
        %v2235 = vld [vmem:[%s2005 + $0x330] sm:$0xff]
        %v2236 = vld [vmem:[%s2005 + $0x360] sm:$0xff]
        %v2237 = vld [vmem:[%s2005 + $0x368] sm:$0xff]
        %v2238 = vlaneseq
        %v2239 = vshrl.u32 %v2238, 7
        %v2240 = vsub.s32 2, %v2239
        %v2241 = vrot.slane %v1429, %v2240
        %v2242 = vmul.f32 %v2206, %v2241
        %v2243 = vmul.f32 %v2207, %v2241
        %v2244 = vmul.f32 %v2208, %v2241
        %v2245 = vmul.f32 %v2209, %v2241
        %v2246 = vmul.f32 %v2210, %v2241
        %v2247 = vmul.f32 %v2211, %v2241
        %v2248 = vmul.f32 %v2212, %v2241
        %v2249 = vmul.f32 %v2213, %v2241
        %v2250 = vmul.f32 %v2214, %v2241
        %v2251 = vmul.f32 %v2215, %v2241
        %v2252 = vmul.f32 %v2216, %v2241
        %v2253 = vmul.f32 %v2217, %v2241
        %v2254 = vmul.f32 %v2218, %v2241
        %v2255 = vmul.f32 %v2219, %v2241
        %v2256 = vmul.f32 %v2220, %v2241
        %v2257 = vmul.f32 %v2221, %v2241
        %v2258 = vmul.f32 %v2222, %v2241
        %v2259 = vmul.f32 %v2223, %v2241
        %v2260 = vmul.f32 %v2224, %v2241
        %v2261 = vmul.f32 %v2225, %v2241
        %v2262 = vmul.f32 %v2226, %v2241
        %v2263 = vmul.f32 %v2227, %v2241
        %v2264 = vmul.f32 %v2228, %v2241
        %v2265 = vmul.f32 %v2229, %v2241
        %v2266 = vmul.f32 %v2230, %v2241
        %v2267 = vmul.f32 %v2231, %v2241
        %v2268 = vmul.f32 %v2232, %v2241
        %v2269 = vmul.f32 %v2233, %v2241
        %v2270 = vmul.f32 %v2234, %v2241
        %v2271 = vmul.f32 %v2235, %v2241
        %v2272 = vmul.f32 %v2236, %v2241
        %v2273 = vmul.f32 %v2237, %v2241
        %v2274 = vadd.f32 %v2174, %v2242
        %v2275 = vadd.f32 %v2175, %v2243
        %v2276 = vadd.f32 %v2176, %v2244
        %v2277 = vadd.f32 %v2177, %v2245
        %v2278 = vadd.f32 %v2178, %v2246
        %v2279 = vadd.f32 %v2179, %v2247
        %v2280 = vadd.f32 %v2180, %v2248
        %v2281 = vadd.f32 %v2181, %v2249
        %v2282 = vadd.f32 %v2182, %v2250
        %v2283 = vadd.f32 %v2183, %v2251
        %v2284 = vadd.f32 %v2184, %v2252
        %v2285 = vadd.f32 %v2185, %v2253
        %v2286 = vadd.f32 %v2186, %v2254
        %v2287 = vadd.f32 %v2187, %v2255
        %v2288 = vadd.f32 %v2188, %v2256
        %v2289 = vadd.f32 %v2189, %v2257
        %v2290 = vadd.f32 %v2190, %v2258
        %v2291 = vadd.f32 %v2191, %v2259
        %v2292 = vadd.f32 %v2192, %v2260
        %v2293 = vadd.f32 %v2193, %v2261
        %v2294 = vadd.f32 %v2194, %v2262
        %v2295 = vadd.f32 %v2195, %v2263
        %v2296 = vadd.f32 %v2196, %v2264
        %v2297 = vadd.f32 %v2197, %v2265
        %v2298 = vadd.f32 %v2198, %v2266
        %v2299 = vadd.f32 %v2199, %v2267
        %v2300 = vadd.f32 %v2200, %v2268
        %v2301 = vadd.f32 %v2201, %v2269
        %v2302 = vadd.f32 %v2202, %v2270
        %v2303 = vadd.f32 %v2203, %v2271
        %v2304 = vadd.f32 %v2204, %v2272
        %v2305 = vadd.f32 %v2205, %v2273
        %v2306 = vpack.c.bf16 %v2275, %v2274
        %v2307 = vpack.c.bf16 %v2277, %v2276
        %v2308 = vpack.c.bf16 %v2279, %v2278
        %v2309 = vpack.c.bf16 %v2281, %v2280
        %v2310 = vpack.c.bf16 %v2283, %v2282
        %v2311 = vpack.c.bf16 %v2285, %v2284
        %v2312 = vpack.c.bf16 %v2287, %v2286
        %v2313 = vpack.c.bf16 %v2289, %v2288
        %v2314 = vpack.c.bf16 %v2291, %v2290
        %v2315 = vpack.c.bf16 %v2293, %v2292
        %v2316 = vpack.c.bf16 %v2295, %v2294
        %v2317 = vpack.c.bf16 %v2297, %v2296
        %v2318 = vpack.c.bf16 %v2299, %v2298
        %v2319 = vpack.c.bf16 %v2301, %v2300
        %v2320 = vpack.c.bf16 %v2303, %v2302
        %v2321 = vpack.c.bf16 %v2305, %v2304
        %v2322 = vld [vmem:[#allocation4] sm:$0xff]
        %v2323 = vld [vmem:[#allocation4 + $0x8] sm:$0xff]
        %v2324 = vld [vmem:[#allocation4 + $0x10] sm:$0xff]
        %v2325 = vld [vmem:[#allocation4 + $0x18] sm:$0xff]
        %v2326 = vld [vmem:[#allocation4 + $0x20] sm:$0xff]
        %v2327 = vld [vmem:[#allocation4 + $0x28] sm:$0xff]
        %v2328 = vld [vmem:[#allocation4 + $0x30] sm:$0xff]
        %v2329 = vld [vmem:[#allocation4 + $0x38] sm:$0xff]
        %v2330 = vld [vmem:[#allocation4 + $0x40] sm:$0xff]
        %v2331 = vld [vmem:[#allocation4 + $0x48] sm:$0xff]
        %v2332 = vld [vmem:[#allocation4 + $0x50] sm:$0xff]
        %v2333 = vld [vmem:[#allocation4 + $0x58] sm:$0xff]
        %v2334 = vld [vmem:[#allocation4 + $0x60] sm:$0xff]
        %v2335 = vld [vmem:[#allocation4 + $0x68] sm:$0xff]
        %v2336 = vld [vmem:[#allocation4 + $0x70] sm:$0xff]
        %v2337 = vld [vmem:[#allocation4 + $0x78] sm:$0xff]
        %v2338 = vld [vmem:[#allocation4 + $0x80] sm:$0xff]
        %v2339 = vld [vmem:[#allocation4 + $0x88] sm:$0xff]
        %v2340 = vld [vmem:[#allocation4 + $0x90] sm:$0xff]
        %v2341 = vld [vmem:[#allocation4 + $0x98] sm:$0xff]
        %v2342 = vld [vmem:[#allocation4 + $0xa0] sm:$0xff]
        %v2343 = vld [vmem:[#allocation4 + $0xa8] sm:$0xff]
        %v2344 = vld [vmem:[#allocation4 + $0xb0] sm:$0xff]
        %v2345 = vld [vmem:[#allocation4 + $0xb8] sm:$0xff]
        %v2346 = vld [vmem:[#allocation4 + $0xc0] sm:$0xff]
        %v2347 = vld [vmem:[#allocation4 + $0xc8] sm:$0xff]
        %v2348 = vld [vmem:[#allocation4 + $0xd0] sm:$0xff]
        %v2349 = vld [vmem:[#allocation4 + $0xd8] sm:$0xff]
        %v2350 = vld [vmem:[#allocation4 + $0xe0] sm:$0xff]
        %v2351 = vld [vmem:[#allocation4 + $0xe8] sm:$0xff]
        %v2352 = vld [vmem:[#allocation4 + $0xf0] sm:$0xff]
        %v2353 = vld [vmem:[#allocation4 + $0xf8] sm:$0xff]
        %s2354 = scalar_lea.vmem [#allocation12], 2
        %v2355 = vld [vmem:[%s2354] sm:$0x3]
        %v2357 = vsel %vm933, %v2306, 0
        %v2360 = vsel %vm933, %v2307, 0
        %v2363 = vsel %vm933, %v2308, 0
        %v2366 = vsel %vm933, %v2309, 0
        %v2369 = vsel %vm933, %v2310, 0
        %v2372 = vsel %vm933, %v2311, 0
        %v2375 = vsel %vm933, %v2312, 0
        %v2378 = vsel %vm933, %v2313, 0
        %v2381 = vsel %vm933, %v2314, 0
        %v2384 = vsel %vm933, %v2315, 0
        %v2387 = vsel %vm933, %v2316, 0
        %v2390 = vsel %vm933, %v2317, 0
        %v2393 = vsel %vm933, %v2318, 0
        %v2396 = vsel %vm933, %v2319, 0
        %v2399 = vsel %vm933, %v2320, 0
        %v2402 = vsel %vm933, %v2321, 0
        %v2405 = vsel %vm1198, %v2355, 0
        %2407 = vmatprep.subr.bf16.mxu0 0
        %2408 = vmatpush1.bf16.msra.mxu0 %v2405
        %2409 = vmatprep.subr.bf16.mxu0 0
        %2410 = vmatpush1.bf16.msra.mxu0 0
        %2411 = vmatprep.subr.bf16.mxu0 0
        %2412 = vmatpush1.bf16.msra.mxu0 0
        %2413 = vmatprep.subr.bf16.mxu0 0
        %2414 = vmatpush1.bf16.msra.mxu0 0
        %2415 = vmatprep.subr.bf16.mxu0 0
        %2416 = vmatpush1.bf16.msra.mxu0 0
        %2417 = vmatprep.subr.bf16.mxu0 0
        %2418 = vmatpush1.bf16.msra.mxu0 0
        %2419 = vmatprep.subr.bf16.mxu0 0
        %2420 = vmatpush1.bf16.msra.mxu0 0
        %2421 = vmatprep.subr.bf16.mxu0 0
        %2422 = vmatpush1.bf16.msra.mxu0 0
        %2423 = vmatprep.subr.bf16.mxu0 0
        %2424 = vmatpush1.bf16.msra.mxu0 0
        %2425 = vmatprep.subr.bf16.mxu0 0
        %2426 = vmatpush1.bf16.msra.mxu0 0
        %2427 = vmatprep.subr.bf16.mxu0 0
        %2428 = vmatpush1.bf16.msra.mxu0 0
        %2429 = vmatprep.subr.bf16.mxu0 0
        %2430 = vmatpush1.bf16.msra.mxu0 0
        %2431 = vmatprep.subr.bf16.mxu0 0
        %2432 = vmatpush1.bf16.msra.mxu0 0
        %2433 = vmatprep.subr.bf16.mxu0 0
        %2434 = vmatpush1.bf16.msra.mxu0 0
        %2435 = vmatprep.subr.bf16.mxu0 0
        %2436 = vmatpush1.bf16.msra.mxu0 0
        %2437 = vmatprep.subr.bf16.mxu0 0
        %2438 = vmatpush1.bf16.msra.mxu0 0
        %2439 = vmatprep.mubr.bf16.mxu0 0
        %2440 = vmatmul.mubr.bf16.gmra.mrb[0].mxu0 %v2357
        %v2441 = vpop.f32.mrb[0].mxu0
        %v2442 = vadd.f32 0.0, %v2441
        %v2443 = vpop.f32.mrb[0].mxu0
        %v2444 = vpop.f32.mrb[0].mxu0
        %v2445 = vadd.f32 0.0, %v2444
        %v2446 = vpop.f32.mrb[0].mxu0
        %2447 = vmatprep.mubr.bf16.mxu0 0
        %2448 = vmatmul.mubr.bf16.gmra.mrb[0].mxu0 %v2360
        %v2449 = vpop.f32.mrb[0].mxu0
        %v2450 = vadd.f32 0.0, %v2449
        %v2451 = vpop.f32.mrb[0].mxu0
        %v2452 = vpop.f32.mrb[0].mxu0
        %v2453 = vadd.f32 0.0, %v2452
        %v2454 = vpop.f32.mrb[0].mxu0
        %2455 = vmatprep.mubr.bf16.mxu0 0
        %2456 = vmatmul.mubr.bf16.gmra.mrb[0].mxu0 %v2363
        %v2457 = vpop.f32.mrb[0].mxu0
        %v2458 = vadd.f32 0.0, %v2457
        %v2459 = vpop.f32.mrb[0].mxu0
        %v2460 = vpop.f32.mrb[0].mxu0
        %v2461 = vadd.f32 0.0, %v2460
        %v2462 = vpop.f32.mrb[0].mxu0
        %2463 = vmatprep.mubr.bf16.mxu0 0
        %2464 = vmatmul.mubr.bf16.gmra.mrb[0].mxu0 %v2366
        %v2465 = vpop.f32.mrb[0].mxu0
        %v2466 = vadd.f32 0.0, %v2465
        %v2467 = vpop.f32.mrb[0].mxu0
        %v2468 = vpop.f32.mrb[0].mxu0
        %v2469 = vadd.f32 0.0, %v2468
        %v2470 = vpop.f32.mrb[0].mxu0
        %2471 = vmatprep.mubr.bf16.mxu0 0
        %2472 = vmatmul.mubr.bf16.gmra.mrb[0].mxu0 %v2369
        %v2473 = vpop.f32.mrb[0].mxu0
        %v2474 = vadd.f32 0.0, %v2473
        %v2475 = vpop.f32.mrb[0].mxu0
        %v2476 = vpop.f32.mrb[0].mxu0
        %v2477 = vadd.f32 0.0, %v2476
        %v2478 = vpop.f32.mrb[0].mxu0
        %2479 = vmatprep.mubr.bf16.mxu0 0
        %2480 = vmatmul.mubr.bf16.gmra.mrb[0].mxu0 %v2372
        %v2481 = vpop.f32.mrb[0].mxu0
        %v2482 = vadd.f32 0.0, %v2481
        %v2483 = vpop.f32.mrb[0].mxu0
        %v2484 = vpop.f32.mrb[0].mxu0
        %v2485 = vadd.f32 0.0, %v2484
        %v2486 = vpop.f32.mrb[0].mxu0
        %2487 = vmatprep.mubr.bf16.mxu0 0
        %2488 = vmatmul.mubr.bf16.gmra.mrb[0].mxu0 %v2375
        %v2489 = vpop.f32.mrb[0].mxu0
        %v2490 = vadd.f32 0.0, %v2489
        %v2491 = vpop.f32.mrb[0].mxu0
        %v2492 = vpop.f32.mrb[0].mxu0
        %v2493 = vadd.f32 0.0, %v2492
        %v2494 = vpop.f32.mrb[0].mxu0
        %2495 = vmatprep.mubr.bf16.mxu0 0
        %2496 = vmatmul.mubr.bf16.gmra.mrb[0].mxu0 %v2378
        %v2497 = vpop.f32.mrb[0].mxu0
        %v2498 = vadd.f32 0.0, %v2497
        %v2499 = vpop.f32.mrb[0].mxu0
        %v2500 = vpop.f32.mrb[0].mxu0
        %v2501 = vadd.f32 0.0, %v2500
        %v2502 = vpop.f32.mrb[0].mxu0
        %2503 = vmatprep.mubr.bf16.mxu0 0
        %2504 = vmatmul.mubr.bf16.gmra.mrb[0].mxu0 %v2381
        %v2505 = vpop.f32.mrb[0].mxu0
        %v2506 = vadd.f32 0.0, %v2505
        %v2507 = vpop.f32.mrb[0].mxu0
        %v2508 = vpop.f32.mrb[0].mxu0
        %v2509 = vadd.f32 0.0, %v2508
        %v2510 = vpop.f32.mrb[0].mxu0
        %2511 = vmatprep.mubr.bf16.mxu0 0
        %2512 = vmatmul.mubr.bf16.gmra.mrb[0].mxu0 %v2384
        %v2513 = vpop.f32.mrb[0].mxu0
        %v2514 = vadd.f32 0.0, %v2513
        %v2515 = vpop.f32.mrb[0].mxu0
        %v2516 = vpop.f32.mrb[0].mxu0
        %v2517 = vadd.f32 0.0, %v2516
        %v2518 = vpop.f32.mrb[0].mxu0
        %2519 = vmatprep.mubr.bf16.mxu0 0
        %2520 = vmatmul.mubr.bf16.gmra.mrb[0].mxu0 %v2387
        %v2521 = vpop.f32.mrb[0].mxu0
        %v2522 = vadd.f32 0.0, %v2521
        %v2523 = vpop.f32.mrb[0].mxu0
        %v2524 = vpop.f32.mrb[0].mxu0
        %v2525 = vadd.f32 0.0, %v2524
        %v2526 = vpop.f32.mrb[0].mxu0
        %2527 = vmatprep.mubr.bf16.mxu0 0
        %2528 = vmatmul.mubr.bf16.gmra.mrb[0].mxu0 %v2390
        %v2529 = vpop.f32.mrb[0].mxu0
        %v2530 = vadd.f32 0.0, %v2529
        %v2531 = vpop.f32.mrb[0].mxu0
        %v2532 = vpop.f32.mrb[0].mxu0
        %v2533 = vadd.f32 0.0, %v2532
        %v2534 = vpop.f32.mrb[0].mxu0
        %2535 = vmatprep.mubr.bf16.mxu0 0
        %2536 = vmatmul.mubr.bf16.gmra.mrb[0].mxu0 %v2393
        %v2537 = vpop.f32.mrb[0].mxu0
        %v2538 = vadd.f32 0.0, %v2537
        %v2539 = vpop.f32.mrb[0].mxu0
        %v2540 = vpop.f32.mrb[0].mxu0
        %v2541 = vadd.f32 0.0, %v2540
        %v2542 = vpop.f32.mrb[0].mxu0
        %2543 = vmatprep.mubr.bf16.mxu0 0
        %2544 = vmatmul.mubr.bf16.gmra.mrb[0].mxu0 %v2396
        %v2545 = vpop.f32.mrb[0].mxu0
        %v2546 = vadd.f32 0.0, %v2545
        %v2547 = vpop.f32.mrb[0].mxu0
        %v2548 = vpop.f32.mrb[0].mxu0
        %v2549 = vadd.f32 0.0, %v2548
        %v2550 = vpop.f32.mrb[0].mxu0
        %2551 = vmatprep.mubr.bf16.mxu0 0
        %2552 = vmatmul.mubr.bf16.gmra.mrb[0].mxu0 %v2399
        %v2553 = vpop.f32.mrb[0].mxu0
        %v2554 = vadd.f32 0.0, %v2553
        %v2555 = vpop.f32.mrb[0].mxu0
        %v2556 = vpop.f32.mrb[0].mxu0
        %v2557 = vadd.f32 0.0, %v2556
        %v2558 = vpop.f32.mrb[0].mxu0
        %2559 = vmatprep.mubr.bf16.mxu0 0
        %2560 = vmatmul.mubr.bf16.gmra.mrb[0].mxu0 %v2402
        %v2561 = vpop.f32.mrb[0].mxu0
        %v2562 = vadd.f32 0.0, %v2561
        %v2563 = vpop.f32.mrb[0].mxu0
        %v2564 = vpop.f32.mrb[0].mxu0
        %v2565 = vadd.f32 0.0, %v2564
        %v2566 = vpop.f32.mrb[0].mxu0
        %2567 = vdwg.mxu0
        %v2568 = vadd.f32 %v2322, %v2442
        %v2569 = vadd.f32 %v2323, %v2445
        %v2570 = vadd.f32 %v2324, %v2450
        %v2571 = vadd.f32 %v2325, %v2453
        %v2572 = vadd.f32 %v2326, %v2458
        %v2573 = vadd.f32 %v2327, %v2461
        %v2574 = vadd.f32 %v2328, %v2466
        %v2575 = vadd.f32 %v2329, %v2469
        %v2576 = vadd.f32 %v2330, %v2474
        %v2577 = vadd.f32 %v2331, %v2477
        %v2578 = vadd.f32 %v2332, %v2482
        %v2579 = vadd.f32 %v2333, %v2485
        %v2580 = vadd.f32 %v2334, %v2490
        %v2581 = vadd.f32 %v2335, %v2493
        %v2582 = vadd.f32 %v2336, %v2498
        %v2583 = vadd.f32 %v2337, %v2501
        %v2584 = vadd.f32 %v2338, %v2506
        %v2585 = vadd.f32 %v2339, %v2509
        %v2586 = vadd.f32 %v2340, %v2514
        %v2587 = vadd.f32 %v2341, %v2517
        %v2588 = vadd.f32 %v2342, %v2522
        %v2589 = vadd.f32 %v2343, %v2525
        %v2590 = vadd.f32 %v2344, %v2530
        %v2591 = vadd.f32 %v2345, %v2533
        %v2592 = vadd.f32 %v2346, %v2538
        %v2593 = vadd.f32 %v2347, %v2541
        %v2594 = vadd.f32 %v2348, %v2546
        %v2595 = vadd.f32 %v2349, %v2549
        %v2596 = vadd.f32 %v2350, %v2554
        %v2597 = vadd.f32 %v2351, %v2557
        %v2598 = vadd.f32 %v2352, %v2562
        %v2599 = vadd.f32 %v2353, %v2565
        %2600 = vst [vmem:[#allocation4] sm:$0xff] %v2568
        %2601 = vst [vmem:[#allocation4 + $0x8] sm:$0xff] %v2569
        %2602 = vst [vmem:[#allocation4 + $0x10] sm:$0xff] %v2570
        %2603 = vst [vmem:[#allocation4 + $0x18] sm:$0xff] %v2571
        %2604 = vst [vmem:[#allocation4 + $0x20] sm:$0xff] %v2572
        %2605 = vst [vmem:[#allocation4 + $0x28] sm:$0xff] %v2573
        %2606 = vst [vmem:[#allocation4 + $0x30] sm:$0xff] %v2574
        %2607 = vst [vmem:[#allocation4 + $0x38] sm:$0xff] %v2575
        %2608 = vst [vmem:[#allocation4 + $0x40] sm:$0xff] %v2576
        %2609 = vst [vmem:[#allocation4 + $0x48] sm:$0xff] %v2577
        %2610 = vst [vmem:[#allocation4 + $0x50] sm:$0xff] %v2578
        %2611 = vst [vmem:[#allocation4 + $0x58] sm:$0xff] %v2579
        %2612 = vst [vmem:[#allocation4 + $0x60] sm:$0xff] %v2580
        %2613 = vst [vmem:[#allocation4 + $0x68] sm:$0xff] %v2581
        %2614 = vst [vmem:[#allocation4 + $0x70] sm:$0xff] %v2582
        %2615 = vst [vmem:[#allocation4 + $0x78] sm:$0xff] %v2583
        %2616 = vst [vmem:[#allocation4 + $0x80] sm:$0xff] %v2584
        %2617 = vst [vmem:[#allocation4 + $0x88] sm:$0xff] %v2585
        %2618 = vst [vmem:[#allocation4 + $0x90] sm:$0xff] %v2586
        %2619 = vst [vmem:[#allocation4 + $0x98] sm:$0xff] %v2587
        %2620 = vst [vmem:[#allocation4 + $0xa0] sm:$0xff] %v2588
        %2621 = vst [vmem:[#allocation4 + $0xa8] sm:$0xff] %v2589
        %2622 = vst [vmem:[#allocation4 + $0xb0] sm:$0xff] %v2590
        %2623 = vst [vmem:[#allocation4 + $0xb8] sm:$0xff] %v2591
        %2624 = vst [vmem:[#allocation4 + $0xc0] sm:$0xff] %v2592
        %2625 = vst [vmem:[#allocation4 + $0xc8] sm:$0xff] %v2593
        %2626 = vst [vmem:[#allocation4 + $0xd0] sm:$0xff] %v2594
        %2627 = vst [vmem:[#allocation4 + $0xd8] sm:$0xff] %v2595
        %2628 = vst [vmem:[#allocation4 + $0xe0] sm:$0xff] %v2596
        %2629 = vst [vmem:[#allocation4 + $0xe8] sm:$0xff] %v2597
        %2630 = vst [vmem:[#allocation4 + $0xf0] sm:$0xff] %v2598
        %2631 = vst [vmem:[#allocation4 + $0xf8] sm:$0xff] %v2599
        %s2632 = scalar_lea.vmem [#allocation2], 336
        %v2633 = vld [vmem:[%s2632 + $0x6] sm:$0xff]
        %v2634 = vld [vmem:[%s2632 + $0xe] sm:$0xff]
        %v2635 = vld [vmem:[%s2632 + $0x3e] sm:$0xff]
        %v2636 = vld [vmem:[%s2632 + $0x46] sm:$0xff]
        %v2637 = vld [vmem:[%s2632 + $0x76] sm:$0xff]
        %v2638 = vld [vmem:[%s2632 + $0x7e] sm:$0xff]
        %v2639 = vld [vmem:[%s2632 + $0xae] sm:$0xff]
        %v2640 = vld [vmem:[%s2632 + $0xb6] sm:$0xff]
        %v2641 = vld [vmem:[%s2632 + $0xe6] sm:$0xff]
        %v2642 = vld [vmem:[%s2632 + $0xee] sm:$0xff]
        %v2643 = vld [vmem:[%s2632 + $0x11e] sm:$0xff]
        %v2644 = vld [vmem:[%s2632 + $0x126] sm:$0xff]
        %v2645 = vld [vmem:[%s2632 + $0x156] sm:$0xff]
        %v2646 = vld [vmem:[%s2632 + $0x15e] sm:$0xff]
        %v2647 = vld [vmem:[%s2632 + $0x18e] sm:$0xff]
        %v2648 = vld [vmem:[%s2632 + $0x196] sm:$0xff]
        %v2649 = vld [vmem:[%s2632 + $0x1c6] sm:$0xff]
        %v2650 = vld [vmem:[%s2632 + $0x1ce] sm:$0xff]
        %v2651 = vld [vmem:[%s2632 + $0x1fe] sm:$0xff]
        %v2652 = vld [vmem:[%s2632 + $0x206] sm:$0xff]
        %v2653 = vld [vmem:[%s2632 + $0x236] sm:$0xff]
        %v2654 = vld [vmem:[%s2632 + $0x23e] sm:$0xff]
        %v2655 = vld [vmem:[%s2632 + $0x26e] sm:$0xff]
        %v2656 = vld [vmem:[%s2632 + $0x276] sm:$0xff]
        %v2657 = vld [vmem:[%s2632 + $0x2a6] sm:$0xff]
        %v2658 = vld [vmem:[%s2632 + $0x2ae] sm:$0xff]
        %v2659 = vld [vmem:[%s2632 + $0x2de] sm:$0xff]
        %v2660 = vld [vmem:[%s2632 + $0x2e6] sm:$0xff]
        %v2661 = vld [vmem:[%s2632 + $0x316] sm:$0xff]
        %v2662 = vld [vmem:[%s2632 + $0x31e] sm:$0xff]
        %v2663 = vld [vmem:[%s2632 + $0x34e] sm:$0xff]
        %v2664 = vld [vmem:[%s2632 + $0x356] sm:$0xff]
        %v2665 = vlaneseq
        %v2666 = vshrl.u32 %v2665, 7
        %v2667 = vsub.s32 0, %v2666
        %v2668 = vrot.slane %v1430, %v2667
        %v2669 = vmul.f32 %v2633, %v2668
        %v2670 = vmul.f32 %v2634, %v2668
        %v2671 = vmul.f32 %v2635, %v2668
        %v2672 = vmul.f32 %v2636, %v2668
        %v2673 = vmul.f32 %v2637, %v2668
        %v2674 = vmul.f32 %v2638, %v2668
        %v2675 = vmul.f32 %v2639, %v2668
        %v2676 = vmul.f32 %v2640, %v2668
        %v2677 = vmul.f32 %v2641, %v2668
        %v2678 = vmul.f32 %v2642, %v2668
        %v2679 = vmul.f32 %v2643, %v2668
        %v2680 = vmul.f32 %v2644, %v2668
        %v2681 = vmul.f32 %v2645, %v2668
        %v2682 = vmul.f32 %v2646, %v2668
        %v2683 = vmul.f32 %v2647, %v2668
        %v2684 = vmul.f32 %v2648, %v2668
        %v2685 = vmul.f32 %v2649, %v2668
        %v2686 = vmul.f32 %v2650, %v2668
        %v2687 = vmul.f32 %v2651, %v2668
        %v2688 = vmul.f32 %v2652, %v2668
        %v2689 = vmul.f32 %v2653, %v2668
        %v2690 = vmul.f32 %v2654, %v2668
        %v2691 = vmul.f32 %v2655, %v2668
        %v2692 = vmul.f32 %v2656, %v2668
        %v2693 = vmul.f32 %v2657, %v2668
        %v2694 = vmul.f32 %v2658, %v2668
        %v2695 = vmul.f32 %v2659, %v2668
        %v2696 = vmul.f32 %v2660, %v2668
        %v2697 = vmul.f32 %v2661, %v2668
        %v2698 = vmul.f32 %v2662, %v2668
        %v2699 = vmul.f32 %v2663, %v2668
        %v2700 = vmul.f32 %v2664, %v2668
        %v2701 = vld [vmem:[%s2632 + $0x12] sm:$0xff]
        %v2702 = vld [vmem:[%s2632 + $0x1a] sm:$0xff]
        %v2703 = vld [vmem:[%s2632 + $0x4a] sm:$0xff]
        %v2704 = vld [vmem:[%s2632 + $0x52] sm:$0xff]
        %v2705 = vld [vmem:[%s2632 + $0x82] sm:$0xff]
        %v2706 = vld [vmem:[%s2632 + $0x8a] sm:$0xff]
        %v2707 = vld [vmem:[%s2632 + $0xba] sm:$0xff]
        %v2708 = vld [vmem:[%s2632 + $0xc2] sm:$0xff]
        %v2709 = vld [vmem:[%s2632 + $0xf2] sm:$0xff]
        %v2710 = vld [vmem:[%s2632 + $0xfa] sm:$0xff]
        %v2711 = vld [vmem:[%s2632 + $0x12a] sm:$0xff]
        %v2712 = vld [vmem:[%s2632 + $0x132] sm:$0xff]
        %v2713 = vld [vmem:[%s2632 + $0x162] sm:$0xff]
        %v2714 = vld [vmem:[%s2632 + $0x16a] sm:$0xff]
        %v2715 = vld [vmem:[%s2632 + $0x19a] sm:$0xff]
        %v2716 = vld [vmem:[%s2632 + $0x1a2] sm:$0xff]
        %v2717 = vld [vmem:[%s2632 + $0x1d2] sm:$0xff]
        %v2718 = vld [vmem:[%s2632 + $0x1da] sm:$0xff]
        %v2719 = vld [vmem:[%s2632 + $0x20a] sm:$0xff]
        %v2720 = vld [vmem:[%s2632 + $0x212] sm:$0xff]
        %v2721 = vld [vmem:[%s2632 + $0x242] sm:$0xff]
        %v2722 = vld [vmem:[%s2632 + $0x24a] sm:$0xff]
        %v2723 = vld [vmem:[%s2632 + $0x27a] sm:$0xff]
        %v2724 = vld [vmem:[%s2632 + $0x282] sm:$0xff]
        %v2725 = vld [vmem:[%s2632 + $0x2b2] sm:$0xff]
        %v2726 = vld [vmem:[%s2632 + $0x2ba] sm:$0xff]
        %v2727 = vld [vmem:[%s2632 + $0x2ea] sm:$0xff]
        %v2728 = vld [vmem:[%s2632 + $0x2f2] sm:$0xff]
        %v2729 = vld [vmem:[%s2632 + $0x322] sm:$0xff]
        %v2730 = vld [vmem:[%s2632 + $0x32a] sm:$0xff]
        %v2731 = vld [vmem:[%s2632 + $0x35a] sm:$0xff]
        %v2732 = vld [vmem:[%s2632 + $0x362] sm:$0xff]
        %v2733 = vlaneseq
        %v2734 = vshrl.u32 %v2733, 7
        %v2735 = vsub.s32 1, %v2734
        %v2736 = vrot.slane %v1430, %v2735
        %v2737 = vmul.f32 %v2701, %v2736
        %v2738 = vmul.f32 %v2702, %v2736
        %v2739 = vmul.f32 %v2703, %v2736
        %v2740 = vmul.f32 %v2704, %v2736
        %v2741 = vmul.f32 %v2705, %v2736
        %v2742 = vmul.f32 %v2706, %v2736
        %v2743 = vmul.f32 %v2707, %v2736
        %v2744 = vmul.f32 %v2708, %v2736
        %v2745 = vmul.f32 %v2709, %v2736
        %v2746 = vmul.f32 %v2710, %v2736
        %v2747 = vmul.f32 %v2711, %v2736
        %v2748 = vmul.f32 %v2712, %v2736
        %v2749 = vmul.f32 %v2713, %v2736
        %v2750 = vmul.f32 %v2714, %v2736
        %v2751 = vmul.f32 %v2715, %v2736
        %v2752 = vmul.f32 %v2716, %v2736
        %v2753 = vmul.f32 %v2717, %v2736
        %v2754 = vmul.f32 %v2718, %v2736
        %v2755 = vmul.f32 %v2719, %v2736
        %v2756 = vmul.f32 %v2720, %v2736
        %v2757 = vmul.f32 %v2721, %v2736
        %v2758 = vmul.f32 %v2722, %v2736
        %v2759 = vmul.f32 %v2723, %v2736
        %v2760 = vmul.f32 %v2724, %v2736
        %v2761 = vmul.f32 %v2725, %v2736
        %v2762 = vmul.f32 %v2726, %v2736
        %v2763 = vmul.f32 %v2727, %v2736
        %v2764 = vmul.f32 %v2728, %v2736
        %v2765 = vmul.f32 %v2729, %v2736
        %v2766 = vmul.f32 %v2730, %v2736
        %v2767 = vmul.f32 %v2731, %v2736
        %v2768 = vmul.f32 %v2732, %v2736
        %v2769 = vadd.f32 %v2669, %v2737
        %v2770 = vadd.f32 %v2670, %v2738
        %v2771 = vadd.f32 %v2671, %v2739
        %v2772 = vadd.f32 %v2672, %v2740
        %v2773 = vadd.f32 %v2673, %v2741
        %v2774 = vadd.f32 %v2674, %v2742
        %v2775 = vadd.f32 %v2675, %v2743
        %v2776 = vadd.f32 %v2676, %v2744
        %v2777 = vadd.f32 %v2677, %v2745
        %v2778 = vadd.f32 %v2678, %v2746
        %v2779 = vadd.f32 %v2679, %v2747
        %v2780 = vadd.f32 %v2680, %v2748
        %v2781 = vadd.f32 %v2681, %v2749
        %v2782 = vadd.f32 %v2682, %v2750
        %v2783 = vadd.f32 %v2683, %v2751
        %v2784 = vadd.f32 %v2684, %v2752
        %v2785 = vadd.f32 %v2685, %v2753
        %v2786 = vadd.f32 %v2686, %v2754
        %v2787 = vadd.f32 %v2687, %v2755
        %v2788 = vadd.f32 %v2688, %v2756
        %v2789 = vadd.f32 %v2689, %v2757
        %v2790 = vadd.f32 %v2690, %v2758
        %v2791 = vadd.f32 %v2691, %v2759
        %v2792 = vadd.f32 %v2692, %v2760
        %v2793 = vadd.f32 %v2693, %v2761
        %v2794 = vadd.f32 %v2694, %v2762
        %v2795 = vadd.f32 %v2695, %v2763
        %v2796 = vadd.f32 %v2696, %v2764
        %v2797 = vadd.f32 %v2697, %v2765
        %v2798 = vadd.f32 %v2698, %v2766
        %v2799 = vadd.f32 %v2699, %v2767
        %v2800 = vadd.f32 %v2700, %v2768
        %v2801 = vld [vmem:[%s2632 + $0x1e] sm:$0xff]
        %v2802 = vld [vmem:[%s2632 + $0x26] sm:$0xff]
        %v2803 = vld [vmem:[%s2632 + $0x56] sm:$0xff]
        %v2804 = vld [vmem:[%s2632 + $0x5e] sm:$0xff]
        %v2805 = vld [vmem:[%s2632 + $0x8e] sm:$0xff]
        %v2806 = vld [vmem:[%s2632 + $0x96] sm:$0xff]
        %v2807 = vld [vmem:[%s2632 + $0xc6] sm:$0xff]
        %v2808 = vld [vmem:[%s2632 + $0xce] sm:$0xff]
        %v2809 = vld [vmem:[%s2632 + $0xfe] sm:$0xff]
        %v2810 = vld [vmem:[%s2632 + $0x106] sm:$0xff]
        %v2811 = vld [vmem:[%s2632 + $0x136] sm:$0xff]
        %v2812 = vld [vmem:[%s2632 + $0x13e] sm:$0xff]
        %v2813 = vld [vmem:[%s2632 + $0x16e] sm:$0xff]
        %v2814 = vld [vmem:[%s2632 + $0x176] sm:$0xff]
        %v2815 = vld [vmem:[%s2632 + $0x1a6] sm:$0xff]
        %v2816 = vld [vmem:[%s2632 + $0x1ae] sm:$0xff]
        %v2817 = vld [vmem:[%s2632 + $0x1de] sm:$0xff]
        %v2818 = vld [vmem:[%s2632 + $0x1e6] sm:$0xff]
        %v2819 = vld [vmem:[%s2632 + $0x216] sm:$0xff]
        %v2820 = vld [vmem:[%s2632 + $0x21e] sm:$0xff]
        %v2821 = vld [vmem:[%s2632 + $0x24e] sm:$0xff]
        %v2822 = vld [vmem:[%s2632 + $0x256] sm:$0xff]
        %v2823 = vld [vmem:[%s2632 + $0x286] sm:$0xff]
        %v2824 = vld [vmem:[%s2632 + $0x28e] sm:$0xff]
        %v2825 = vld [vmem:[%s2632 + $0x2be] sm:$0xff]
        %v2826 = vld [vmem:[%s2632 + $0x2c6] sm:$0xff]
        %v2827 = vld [vmem:[%s2632 + $0x2f6] sm:$0xff]
        %v2828 = vld [vmem:[%s2632 + $0x2fe] sm:$0xff]
        %v2829 = vld [vmem:[%s2632 + $0x32e] sm:$0xff]
        %v2830 = vld [vmem:[%s2632 + $0x336] sm:$0xff]
        %v2831 = vld [vmem:[%s2632 + $0x366] sm:$0xff]
        %v2832 = vld [vmem:[%s2632 + $0x36e] sm:$0xff]
        %v2833 = vlaneseq
        %v2834 = vshrl.u32 %v2833, 7
        %v2835 = vsub.s32 2, %v2834
        %v2836 = vrot.slane %v1430, %v2835
        %v2837 = vmul.f32 %v2801, %v2836
        %v2838 = vmul.f32 %v2802, %v2836
        %v2839 = vmul.f32 %v2803, %v2836
        %v2840 = vmul.f32 %v2804, %v2836
        %v2841 = vmul.f32 %v2805, %v2836
        %v2842 = vmul.f32 %v2806, %v2836
        %v2843 = vmul.f32 %v2807, %v2836
        %v2844 = vmul.f32 %v2808, %v2836
        %v2845 = vmul.f32 %v2809, %v2836
        %v2846 = vmul.f32 %v2810, %v2836
        %v2847 = vmul.f32 %v2811, %v2836
        %v2848 = vmul.f32 %v2812, %v2836
        %v2849 = vmul.f32 %v2813, %v2836
        %v2850 = vmul.f32 %v2814, %v2836
        %v2851 = vmul.f32 %v2815, %v2836
        %v2852 = vmul.f32 %v2816, %v2836
        %v2853 = vmul.f32 %v2817, %v2836
        %v2854 = vmul.f32 %v2818, %v2836
        %v2855 = vmul.f32 %v2819, %v2836
        %v2856 = vmul.f32 %v2820, %v2836
        %v2857 = vmul.f32 %v2821, %v2836
        %v2858 = vmul.f32 %v2822, %v2836
        %v2859 = vmul.f32 %v2823, %v2836
        %v2860 = vmul.f32 %v2824, %v2836
        %v2861 = vmul.f32 %v2825, %v2836
        %v2862 = vmul.f32 %v2826, %v2836
        %v2863 = vmul.f32 %v2827, %v2836
        %v2864 = vmul.f32 %v2828, %v2836
        %v2865 = vmul.f32 %v2829, %v2836
        %v2866 = vmul.f32 %v2830, %v2836
        %v2867 = vmul.f32 %v2831, %v2836
        %v2868 = vmul.f32 %v2832, %v2836
        %v2869 = vadd.f32 %v2769, %v2837
        %v2870 = vadd.f32 %v2770, %v2838
        %v2871 = vadd.f32 %v2771, %v2839
        %v2872 = vadd.f32 %v2772, %v2840
        %v2873 = vadd.f32 %v2773, %v2841
        %v2874 = vadd.f32 %v2774, %v2842
        %v2875 = vadd.f32 %v2775, %v2843
        %v2876 = vadd.f32 %v2776, %v2844
        %v2877 = vadd.f32 %v2777, %v2845
        %v2878 = vadd.f32 %v2778, %v2846
        %v2879 = vadd.f32 %v2779, %v2847
        %v2880 = vadd.f32 %v2780, %v2848
        %v2881 = vadd.f32 %v2781, %v2849
        %v2882 = vadd.f32 %v2782, %v2850
        %v2883 = vadd.f32 %v2783, %v2851
        %v2884 = vadd.f32 %v2784, %v2852
        %v2885 = vadd.f32 %v2785, %v2853
        %v2886 = vadd.f32 %v2786, %v2854
        %v2887 = vadd.f32 %v2787, %v2855
        %v2888 = vadd.f32 %v2788, %v2856
        %v2889 = vadd.f32 %v2789, %v2857
        %v2890 = vadd.f32 %v2790, %v2858
        %v2891 = vadd.f32 %v2791, %v2859
        %v2892 = vadd.f32 %v2792, %v2860
        %v2893 = vadd.f32 %v2793, %v2861
        %v2894 = vadd.f32 %v2794, %v2862
        %v2895 = vadd.f32 %v2795, %v2863
        %v2896 = vadd.f32 %v2796, %v2864
        %v2897 = vadd.f32 %v2797, %v2865
        %v2898 = vadd.f32 %v2798, %v2866
        %v2899 = vadd.f32 %v2799, %v2867
        %v2900 = vadd.f32 %v2800, %v2868
        %v2901 = vld [vmem:[%s932 + $0x6] sm:$0xff]
        %v2902 = vld [vmem:[%s932 + $0xe] sm:$0xff]
        %v2903 = vld [vmem:[%s932 + $0x3e] sm:$0xff]
        %v2904 = vld [vmem:[%s932 + $0x46] sm:$0xff]
        %v2905 = vld [vmem:[%s932 + $0x76] sm:$0xff]
        %v2906 = vld [vmem:[%s932 + $0x7e] sm:$0xff]
        %v2907 = vld [vmem:[%s932 + $0xae] sm:$0xff]
        %v2908 = vld [vmem:[%s932 + $0xb6] sm:$0xff]
        %v2909 = vld [vmem:[%s932 + $0xe6] sm:$0xff]
        %v2910 = vld [vmem:[%s932 + $0xee] sm:$0xff]
        %v2911 = vld [vmem:[%s932 + $0x11e] sm:$0xff]
        %v2912 = vld [vmem:[%s932 + $0x126] sm:$0xff]
        %v2913 = vld [vmem:[%s932 + $0x156] sm:$0xff]
        %v2914 = vld [vmem:[%s932 + $0x15e] sm:$0xff]
        %v2915 = vld [vmem:[%s932 + $0x18e] sm:$0xff]
        %v2916 = vld [vmem:[%s932 + $0x196] sm:$0xff]
        %v2917 = vld [vmem:[%s932 + $0x1c6] sm:$0xff]
        %v2918 = vld [vmem:[%s932 + $0x1ce] sm:$0xff]
        %v2919 = vld [vmem:[%s932 + $0x1fe] sm:$0xff]
        %v2920 = vld [vmem:[%s932 + $0x206] sm:$0xff]
        %v2921 = vld [vmem:[%s932 + $0x236] sm:$0xff]
        %v2922 = vld [vmem:[%s932 + $0x23e] sm:$0xff]
        %v2923 = vld [vmem:[%s932 + $0x26e] sm:$0xff]
        %v2924 = vld [vmem:[%s932 + $0x276] sm:$0xff]
        %v2925 = vld [vmem:[%s932 + $0x2a6] sm:$0xff]
        %v2926 = vld [vmem:[%s932 + $0x2ae] sm:$0xff]
        %v2927 = vld [vmem:[%s932 + $0x2de] sm:$0xff]
        %v2928 = vld [vmem:[%s932 + $0x2e6] sm:$0xff]
        %v2929 = vld [vmem:[%s932 + $0x316] sm:$0xff]
        %v2930 = vld [vmem:[%s932 + $0x31e] sm:$0xff]
        %v2931 = vld [vmem:[%s932 + $0x34e] sm:$0xff]
        %v2932 = vld [vmem:[%s932 + $0x356] sm:$0xff]
        %v2933 = vlaneseq
        %v2934 = vshrl.u32 %v2933, 7
        %v2935 = vsub.s32 0, %v2934
        %v2936 = vrot.slane %v1431, %v2935
        %v2937 = vmul.f32 %v2901, %v2936
        %v2938 = vmul.f32 %v2902, %v2936
        %v2939 = vmul.f32 %v2903, %v2936
        %v2940 = vmul.f32 %v2904, %v2936
        %v2941 = vmul.f32 %v2905, %v2936
        %v2942 = vmul.f32 %v2906, %v2936
        %v2943 = vmul.f32 %v2907, %v2936
        %v2944 = vmul.f32 %v2908, %v2936
        %v2945 = vmul.f32 %v2909, %v2936
        %v2946 = vmul.f32 %v2910, %v2936
        %v2947 = vmul.f32 %v2911, %v2936
        %v2948 = vmul.f32 %v2912, %v2936
        %v2949 = vmul.f32 %v2913, %v2936
        %v2950 = vmul.f32 %v2914, %v2936
        %v2951 = vmul.f32 %v2915, %v2936
        %v2952 = vmul.f32 %v2916, %v2936
        %v2953 = vmul.f32 %v2917, %v2936
        %v2954 = vmul.f32 %v2918, %v2936
        %v2955 = vmul.f32 %v2919, %v2936
        %v2956 = vmul.f32 %v2920, %v2936
        %v2957 = vmul.f32 %v2921, %v2936
        %v2958 = vmul.f32 %v2922, %v2936
        %v2959 = vmul.f32 %v2923, %v2936
        %v2960 = vmul.f32 %v2924, %v2936
        %v2961 = vmul.f32 %v2925, %v2936
        %v2962 = vmul.f32 %v2926, %v2936
        %v2963 = vmul.f32 %v2927, %v2936
        %v2964 = vmul.f32 %v2928, %v2936
        %v2965 = vmul.f32 %v2929, %v2936
        %v2966 = vmul.f32 %v2930, %v2936
        %v2967 = vmul.f32 %v2931, %v2936
        %v2968 = vmul.f32 %v2932, %v2936
        %v2969 = vadd.f32 %v2869, %v2937
        %v2970 = vadd.f32 %v2870, %v2938
        %v2971 = vadd.f32 %v2871, %v2939
        %v2972 = vadd.f32 %v2872, %v2940
        %v2973 = vadd.f32 %v2873, %v2941
        %v2974 = vadd.f32 %v2874, %v2942
        %v2975 = vadd.f32 %v2875, %v2943
        %v2976 = vadd.f32 %v2876, %v2944
        %v2977 = vadd.f32 %v2877, %v2945
        %v2978 = vadd.f32 %v2878, %v2946
        %v2979 = vadd.f32 %v2879, %v2947
        %v2980 = vadd.f32 %v2880, %v2948
        %v2981 = vadd.f32 %v2881, %v2949
        %v2982 = vadd.f32 %v2882, %v2950
        %v2983 = vadd.f32 %v2883, %v2951
        %v2984 = vadd.f32 %v2884, %v2952
        %v2985 = vadd.f32 %v2885, %v2953
        %v2986 = vadd.f32 %v2886, %v2954
        %v2987 = vadd.f32 %v2887, %v2955
        %v2988 = vadd.f32 %v2888, %v2956
        %v2989 = vadd.f32 %v2889, %v2957
        %v2990 = vadd.f32 %v2890, %v2958
        %v2991 = vadd.f32 %v2891, %v2959
        %v2992 = vadd.f32 %v2892, %v2960
        %v2993 = vadd.f32 %v2893, %v2961
        %v2994 = vadd.f32 %v2894, %v2962
        %v2995 = vadd.f32 %v2895, %v2963
        %v2996 = vadd.f32 %v2896, %v2964
        %v2997 = vadd.f32 %v2897, %v2965
        %v2998 = vadd.f32 %v2898, %v2966
        %v2999 = vadd.f32 %v2899, %v2967
        %v3000 = vadd.f32 %v2900, %v2968
        %v3001 = vld [vmem:[%s932 + $0x12] sm:$0xff]
        %v3002 = vld [vmem:[%s932 + $0x1a] sm:$0xff]
        %v3003 = vld [vmem:[%s932 + $0x4a] sm:$0xff]
        %v3004 = vld [vmem:[%s932 + $0x52] sm:$0xff]
        %v3005 = vld [vmem:[%s932 + $0x82] sm:$0xff]
        %v3006 = vld [vmem:[%s932 + $0x8a] sm:$0xff]
        %v3007 = vld [vmem:[%s932 + $0xba] sm:$0xff]
        %v3008 = vld [vmem:[%s932 + $0xc2] sm:$0xff]
        %v3009 = vld [vmem:[%s932 + $0xf2] sm:$0xff]
        %v3010 = vld [vmem:[%s932 + $0xfa] sm:$0xff]
        %v3011 = vld [vmem:[%s932 + $0x12a] sm:$0xff]
        %v3012 = vld [vmem:[%s932 + $0x132] sm:$0xff]
        %v3013 = vld [vmem:[%s932 + $0x162] sm:$0xff]
        %v3014 = vld [vmem:[%s932 + $0x16a] sm:$0xff]
        %v3015 = vld [vmem:[%s932 + $0x19a] sm:$0xff]
        %v3016 = vld [vmem:[%s932 + $0x1a2] sm:$0xff]
        %v3017 = vld [vmem:[%s932 + $0x1d2] sm:$0xff]
        %v3018 = vld [vmem:[%s932 + $0x1da] sm:$0xff]
        %v3019 = vld [vmem:[%s932 + $0x20a] sm:$0xff]
        %v3020 = vld [vmem:[%s932 + $0x212] sm:$0xff]
        %v3021 = vld [vmem:[%s932 + $0x242] sm:$0xff]
        %v3022 = vld [vmem:[%s932 + $0x24a] sm:$0xff]
        %v3023 = vld [vmem:[%s932 + $0x27a] sm:$0xff]
        %v3024 = vld [vmem:[%s932 + $0x282] sm:$0xff]
        %v3025 = vld [vmem:[%s932 + $0x2b2] sm:$0xff]
        %v3026 = vld [vmem:[%s932 + $0x2ba] sm:$0xff]
        %v3027 = vld [vmem:[%s932 + $0x2ea] sm:$0xff]
        %v3028 = vld [vmem:[%s932 + $0x2f2] sm:$0xff]
        %v3029 = vld [vmem:[%s932 + $0x322] sm:$0xff]
        %v3030 = vld [vmem:[%s932 + $0x32a] sm:$0xff]
        %v3031 = vld [vmem:[%s932 + $0x35a] sm:$0xff]
        %v3032 = vld [vmem:[%s932 + $0x362] sm:$0xff]
        %v3033 = vlaneseq
        %v3034 = vshrl.u32 %v3033, 7
        %v3035 = vsub.s32 1, %v3034
        %v3036 = vrot.slane %v1431, %v3035
        %v3037 = vmul.f32 %v3001, %v3036
        %v3038 = vmul.f32 %v3002, %v3036
        %v3039 = vmul.f32 %v3003, %v3036
        %v3040 = vmul.f32 %v3004, %v3036
        %v3041 = vmul.f32 %v3005, %v3036
        %v3042 = vmul.f32 %v3006, %v3036
        %v3043 = vmul.f32 %v3007, %v3036
        %v3044 = vmul.f32 %v3008, %v3036
        %v3045 = vmul.f32 %v3009, %v3036
        %v3046 = vmul.f32 %v3010, %v3036
        %v3047 = vmul.f32 %v3011, %v3036
        %v3048 = vmul.f32 %v3012, %v3036
        %v3049 = vmul.f32 %v3013, %v3036
        %v3050 = vmul.f32 %v3014, %v3036
        %v3051 = vmul.f32 %v3015, %v3036
        %v3052 = vmul.f32 %v3016, %v3036
        %v3053 = vmul.f32 %v3017, %v3036
        %v3054 = vmul.f32 %v3018, %v3036
        %v3055 = vmul.f32 %v3019, %v3036
        %v3056 = vmul.f32 %v3020, %v3036
        %v3057 = vmul.f32 %v3021, %v3036
        %v3058 = vmul.f32 %v3022, %v3036
        %v3059 = vmul.f32 %v3023, %v3036
        %v3060 = vmul.f32 %v3024, %v3036
        %v3061 = vmul.f32 %v3025, %v3036
        %v3062 = vmul.f32 %v3026, %v3036
        %v3063 = vmul.f32 %v3027, %v3036
        %v3064 = vmul.f32 %v3028, %v3036
        %v3065 = vmul.f32 %v3029, %v3036
        %v3066 = vmul.f32 %v3030, %v3036
        %v3067 = vmul.f32 %v3031, %v3036
        %v3068 = vmul.f32 %v3032, %v3036
        %v3069 = vadd.f32 %v2969, %v3037
        %v3070 = vadd.f32 %v2970, %v3038
        %v3071 = vadd.f32 %v2971, %v3039
        %v3072 = vadd.f32 %v2972, %v3040
        %v3073 = vadd.f32 %v2973, %v3041
        %v3074 = vadd.f32 %v2974, %v3042
        %v3075 = vadd.f32 %v2975, %v3043
        %v3076 = vadd.f32 %v2976, %v3044
        %v3077 = vadd.f32 %v2977, %v3045
        %v3078 = vadd.f32 %v2978, %v3046
        %v3079 = vadd.f32 %v2979, %v3047
        %v3080 = vadd.f32 %v2980, %v3048
        %v3081 = vadd.f32 %v2981, %v3049
        %v3082 = vadd.f32 %v2982, %v3050
        %v3083 = vadd.f32 %v2983, %v3051
        %v3084 = vadd.f32 %v2984, %v3052
        %v3085 = vadd.f32 %v2985, %v3053
        %v3086 = vadd.f32 %v2986, %v3054
        %v3087 = vadd.f32 %v2987, %v3055
        %v3088 = vadd.f32 %v2988, %v3056
        %v3089 = vadd.f32 %v2989, %v3057
        %v3090 = vadd.f32 %v2990, %v3058
        %v3091 = vadd.f32 %v2991, %v3059
        %v3092 = vadd.f32 %v2992, %v3060
        %v3093 = vadd.f32 %v2993, %v3061
        %v3094 = vadd.f32 %v2994, %v3062
        %v3095 = vadd.f32 %v2995, %v3063
        %v3096 = vadd.f32 %v2996, %v3064
        %v3097 = vadd.f32 %v2997, %v3065
        %v3098 = vadd.f32 %v2998, %v3066
        %v3099 = vadd.f32 %v2999, %v3067
        %v3100 = vadd.f32 %v3000, %v3068
        %v3101 = vld [vmem:[%s932 + $0x1e] sm:$0xff]
        %v3102 = vld [vmem:[%s932 + $0x26] sm:$0xff]
        %v3103 = vld [vmem:[%s932 + $0x56] sm:$0xff]
        %v3104 = vld [vmem:[%s932 + $0x5e] sm:$0xff]
        %v3105 = vld [vmem:[%s932 + $0x8e] sm:$0xff]
        %v3106 = vld [vmem:[%s932 + $0x96] sm:$0xff]
        %v3107 = vld [vmem:[%s932 + $0xc6] sm:$0xff]
        %v3108 = vld [vmem:[%s932 + $0xce] sm:$0xff]
        %v3109 = vld [vmem:[%s932 + $0xfe] sm:$0xff]
        %v3110 = vld [vmem:[%s932 + $0x106] sm:$0xff]
        %v3111 = vld [vmem:[%s932 + $0x136] sm:$0xff]
        %v3112 = vld [vmem:[%s932 + $0x13e] sm:$0xff]
        %v3113 = vld [vmem:[%s932 + $0x16e] sm:$0xff]
        %v3114 = vld [vmem:[%s932 + $0x176] sm:$0xff]
        %v3115 = vld [vmem:[%s932 + $0x1a6] sm:$0xff]
        %v3116 = vld [vmem:[%s932 + $0x1ae] sm:$0xff]
        %v3117 = vld [vmem:[%s932 + $0x1de] sm:$0xff]
        %v3118 = vld [vmem:[%s932 + $0x1e6] sm:$0xff]
        %v3119 = vld [vmem:[%s932 + $0x216] sm:$0xff]
        %v3120 = vld [vmem:[%s932 + $0x21e] sm:$0xff]
        %v3121 = vld [vmem:[%s932 + $0x24e] sm:$0xff]
        %v3122 = vld [vmem:[%s932 + $0x256] sm:$0xff]
        %v3123 = vld [vmem:[%s932 + $0x286] sm:$0xff]
        %v3124 = vld [vmem:[%s932 + $0x28e] sm:$0xff]
        %v3125 = vld [vmem:[%s932 + $0x2be] sm:$0xff]
        %v3126 = vld [vmem:[%s932 + $0x2c6] sm:$0xff]
        %v3127 = vld [vmem:[%s932 + $0x2f6] sm:$0xff]
        %v3128 = vld [vmem:[%s932 + $0x2fe] sm:$0xff]
        %v3129 = vld [vmem:[%s932 + $0x32e] sm:$0xff]
        %v3130 = vld [vmem:[%s932 + $0x336] sm:$0xff]
        %v3131 = vld [vmem:[%s932 + $0x366] sm:$0xff]
        %v3132 = vld [vmem:[%s932 + $0x36e] sm:$0xff]
        %v3133 = vlaneseq
        %v3134 = vshrl.u32 %v3133, 7
        %v3135 = vsub.s32 2, %v3134
        %v3136 = vrot.slane %v1431, %v3135
        %v3137 = vmul.f32 %v3101, %v3136
        %v3138 = vmul.f32 %v3102, %v3136
        %v3139 = vmul.f32 %v3103, %v3136
        %v3140 = vmul.f32 %v3104, %v3136
        %v3141 = vmul.f32 %v3105, %v3136
        %v3142 = vmul.f32 %v3106, %v3136
        %v3143 = vmul.f32 %v3107, %v3136
        %v3144 = vmul.f32 %v3108, %v3136
        %v3145 = vmul.f32 %v3109, %v3136
        %v3146 = vmul.f32 %v3110, %v3136
        %v3147 = vmul.f32 %v3111, %v3136
        %v3148 = vmul.f32 %v3112, %v3136
        %v3149 = vmul.f32 %v3113, %v3136
        %v3150 = vmul.f32 %v3114, %v3136
        %v3151 = vmul.f32 %v3115, %v3136
        %v3152 = vmul.f32 %v3116, %v3136
        %v3153 = vmul.f32 %v3117, %v3136
        %v3154 = vmul.f32 %v3118, %v3136
        %v3155 = vmul.f32 %v3119, %v3136
        %v3156 = vmul.f32 %v3120, %v3136
        %v3157 = vmul.f32 %v3121, %v3136
        %v3158 = vmul.f32 %v3122, %v3136
        %v3159 = vmul.f32 %v3123, %v3136
        %v3160 = vmul.f32 %v3124, %v3136
        %v3161 = vmul.f32 %v3125, %v3136
        %v3162 = vmul.f32 %v3126, %v3136
        %v3163 = vmul.f32 %v3127, %v3136
        %v3164 = vmul.f32 %v3128, %v3136
        %v3165 = vmul.f32 %v3129, %v3136
        %v3166 = vmul.f32 %v3130, %v3136
        %v3167 = vmul.f32 %v3131, %v3136
        %v3168 = vmul.f32 %v3132, %v3136
        %v3169 = vadd.f32 %v3069, %v3137
        %v3170 = vadd.f32 %v3070, %v3138
        %v3171 = vadd.f32 %v3071, %v3139
        %v3172 = vadd.f32 %v3072, %v3140
        %v3173 = vadd.f32 %v3073, %v3141
        %v3174 = vadd.f32 %v3074, %v3142
        %v3175 = vadd.f32 %v3075, %v3143
        %v3176 = vadd.f32 %v3076, %v3144
        %v3177 = vadd.f32 %v3077, %v3145
        %v3178 = vadd.f32 %v3078, %v3146
        %v3179 = vadd.f32 %v3079, %v3147
        %v3180 = vadd.f32 %v3080, %v3148
        %v3181 = vadd.f32 %v3081, %v3149
        %v3182 = vadd.f32 %v3082, %v3150
        %v3183 = vadd.f32 %v3083, %v3151
        %v3184 = vadd.f32 %v3084, %v3152
        %v3185 = vadd.f32 %v3085, %v3153
        %v3186 = vadd.f32 %v3086, %v3154
        %v3187 = vadd.f32 %v3087, %v3155
        %v3188 = vadd.f32 %v3088, %v3156
        %v3189 = vadd.f32 %v3089, %v3157
        %v3190 = vadd.f32 %v3090, %v3158
        %v3191 = vadd.f32 %v3091, %v3159
        %v3192 = vadd.f32 %v3092, %v3160
        %v3193 = vadd.f32 %v3093, %v3161
        %v3194 = vadd.f32 %v3094, %v3162
        %v3195 = vadd.f32 %v3095, %v3163
        %v3196 = vadd.f32 %v3096, %v3164
        %v3197 = vadd.f32 %v3097, %v3165
        %v3198 = vadd.f32 %v3098, %v3166
        %v3199 = vadd.f32 %v3099, %v3167
        %v3200 = vadd.f32 %v3100, %v3168
        %s3201 = scalar_lea.vmem [#allocation2], 1680
        %v3202 = vld [vmem:[%s3201 + $0x6] sm:$0xff]
        %v3203 = vld [vmem:[%s3201 + $0xe] sm:$0xff]
        %v3204 = vld [vmem:[%s3201 + $0x3e] sm:$0xff]
        %v3205 = vld [vmem:[%s3201 + $0x46] sm:$0xff]
        %v3206 = vld [vmem:[%s3201 + $0x76] sm:$0xff]
        %v3207 = vld [vmem:[%s3201 + $0x7e] sm:$0xff]
        %v3208 = vld [vmem:[%s3201 + $0xae] sm:$0xff]
        %v3209 = vld [vmem:[%s3201 + $0xb6] sm:$0xff]
        %v3210 = vld [vmem:[%s3201 + $0xe6] sm:$0xff]
        %v3211 = vld [vmem:[%s3201 + $0xee] sm:$0xff]
        %v3212 = vld [vmem:[%s3201 + $0x11e] sm:$0xff]
        %v3213 = vld [vmem:[%s3201 + $0x126] sm:$0xff]
        %v3214 = vld [vmem:[%s3201 + $0x156] sm:$0xff]
        %v3215 = vld [vmem:[%s3201 + $0x15e] sm:$0xff]
        %v3216 = vld [vmem:[%s3201 + $0x18e] sm:$0xff]
        %v3217 = vld [vmem:[%s3201 + $0x196] sm:$0xff]
        %v3218 = vld [vmem:[%s3201 + $0x1c6] sm:$0xff]
        %v3219 = vld [vmem:[%s3201 + $0x1ce] sm:$0xff]
        %v3220 = vld [vmem:[%s3201 + $0x1fe] sm:$0xff]
        %v3221 = vld [vmem:[%s3201 + $0x206] sm:$0xff]
        %v3222 = vld [vmem:[%s3201 + $0x236] sm:$0xff]
        %v3223 = vld [vmem:[%s3201 + $0x23e] sm:$0xff]
        %v3224 = vld [vmem:[%s3201 + $0x26e] sm:$0xff]
        %v3225 = vld [vmem:[%s3201 + $0x276] sm:$0xff]
        %v3226 = vld [vmem:[%s3201 + $0x2a6] sm:$0xff]
        %v3227 = vld [vmem:[%s3201 + $0x2ae] sm:$0xff]
        %v3228 = vld [vmem:[%s3201 + $0x2de] sm:$0xff]
        %v3229 = vld [vmem:[%s3201 + $0x2e6] sm:$0xff]
        %v3230 = vld [vmem:[%s3201 + $0x316] sm:$0xff]
        %v3231 = vld [vmem:[%s3201 + $0x31e] sm:$0xff]
        %v3232 = vld [vmem:[%s3201 + $0x34e] sm:$0xff]
        %v3233 = vld [vmem:[%s3201 + $0x356] sm:$0xff]
        %v3234 = vlaneseq
        %v3235 = vshrl.u32 %v3234, 7
        %v3236 = vsub.s32 0, %v3235
        %v3237 = vrot.slane %v1432, %v3236
        %v3238 = vmul.f32 %v3202, %v3237
        %v3239 = vmul.f32 %v3203, %v3237
        %v3240 = vmul.f32 %v3204, %v3237
        %v3241 = vmul.f32 %v3205, %v3237
        %v3242 = vmul.f32 %v3206, %v3237
        %v3243 = vmul.f32 %v3207, %v3237
        %v3244 = vmul.f32 %v3208, %v3237
        %v3245 = vmul.f32 %v3209, %v3237
        %v3246 = vmul.f32 %v3210, %v3237
        %v3247 = vmul.f32 %v3211, %v3237
        %v3248 = vmul.f32 %v3212, %v3237
        %v3249 = vmul.f32 %v3213, %v3237
        %v3250 = vmul.f32 %v3214, %v3237
        %v3251 = vmul.f32 %v3215, %v3237
        %v3252 = vmul.f32 %v3216, %v3237
        %v3253 = vmul.f32 %v3217, %v3237
        %v3254 = vmul.f32 %v3218, %v3237
        %v3255 = vmul.f32 %v3219, %v3237
        %v3256 = vmul.f32 %v3220, %v3237
        %v3257 = vmul.f32 %v3221, %v3237
        %v3258 = vmul.f32 %v3222, %v3237
        %v3259 = vmul.f32 %v3223, %v3237
        %v3260 = vmul.f32 %v3224, %v3237
        %v3261 = vmul.f32 %v3225, %v3237
        %v3262 = vmul.f32 %v3226, %v3237
        %v3263 = vmul.f32 %v3227, %v3237
        %v3264 = vmul.f32 %v3228, %v3237
        %v3265 = vmul.f32 %v3229, %v3237
        %v3266 = vmul.f32 %v3230, %v3237
        %v3267 = vmul.f32 %v3231, %v3237
        %v3268 = vmul.f32 %v3232, %v3237
        %v3269 = vmul.f32 %v3233, %v3237
        %v3270 = vadd.f32 %v3169, %v3238
        %v3271 = vadd.f32 %v3170, %v3239
        %v3272 = vadd.f32 %v3171, %v3240
        %v3273 = vadd.f32 %v3172, %v3241
        %v3274 = vadd.f32 %v3173, %v3242
        %v3275 = vadd.f32 %v3174, %v3243
        %v3276 = vadd.f32 %v3175, %v3244
        %v3277 = vadd.f32 %v3176, %v3245
        %v3278 = vadd.f32 %v3177, %v3246
        %v3279 = vadd.f32 %v3178, %v3247
        %v3280 = vadd.f32 %v3179, %v3248
        %v3281 = vadd.f32 %v3180, %v3249
        %v3282 = vadd.f32 %v3181, %v3250
        %v3283 = vadd.f32 %v3182, %v3251
        %v3284 = vadd.f32 %v3183, %v3252
        %v3285 = vadd.f32 %v3184, %v3253
        %v3286 = vadd.f32 %v3185, %v3254
        %v3287 = vadd.f32 %v3186, %v3255
        %v3288 = vadd.f32 %v3187, %v3256
        %v3289 = vadd.f32 %v3188, %v3257
        %v3290 = vadd.f32 %v3189, %v3258
        %v3291 = vadd.f32 %v3190, %v3259
        %v3292 = vadd.f32 %v3191, %v3260
        %v3293 = vadd.f32 %v3192, %v3261
        %v3294 = vadd.f32 %v3193, %v3262
        %v3295 = vadd.f32 %v3194, %v3263
        %v3296 = vadd.f32 %v3195, %v3264
        %v3297 = vadd.f32 %v3196, %v3265
        %v3298 = vadd.f32 %v3197, %v3266
        %v3299 = vadd.f32 %v3198, %v3267
        %v3300 = vadd.f32 %v3199, %v3268
        %v3301 = vadd.f32 %v3200, %v3269
        %v3302 = vld [vmem:[%s3201 + $0x12] sm:$0xff]
        %v3303 = vld [vmem:[%s3201 + $0x1a] sm:$0xff]
        %v3304 = vld [vmem:[%s3201 + $0x4a] sm:$0xff]
        %v3305 = vld [vmem:[%s3201 + $0x52] sm:$0xff]
        %v3306 = vld [vmem:[%s3201 + $0x82] sm:$0xff]
        %v3307 = vld [vmem:[%s3201 + $0x8a] sm:$0xff]
        %v3308 = vld [vmem:[%s3201 + $0xba] sm:$0xff]
        %v3309 = vld [vmem:[%s3201 + $0xc2] sm:$0xff]
        %v3310 = vld [vmem:[%s3201 + $0xf2] sm:$0xff]
        %v3311 = vld [vmem:[%s3201 + $0xfa] sm:$0xff]
        %v3312 = vld [vmem:[%s3201 + $0x12a] sm:$0xff]
        %v3313 = vld [vmem:[%s3201 + $0x132] sm:$0xff]
        %v3314 = vld [vmem:[%s3201 + $0x162] sm:$0xff]
        %v3315 = vld [vmem:[%s3201 + $0x16a] sm:$0xff]
        %v3316 = vld [vmem:[%s3201 + $0x19a] sm:$0xff]
        %v3317 = vld [vmem:[%s3201 + $0x1a2] sm:$0xff]
        %v3318 = vld [vmem:[%s3201 + $0x1d2] sm:$0xff]
        %v3319 = vld [vmem:[%s3201 + $0x1da] sm:$0xff]
        %v3320 = vld [vmem:[%s3201 + $0x20a] sm:$0xff]
        %v3321 = vld [vmem:[%s3201 + $0x212] sm:$0xff]
        %v3322 = vld [vmem:[%s3201 + $0x242] sm:$0xff]
        %v3323 = vld [vmem:[%s3201 + $0x24a] sm:$0xff]
        %v3324 = vld [vmem:[%s3201 + $0x27a] sm:$0xff]
        %v3325 = vld [vmem:[%s3201 + $0x282] sm:$0xff]
        %v3326 = vld [vmem:[%s3201 + $0x2b2] sm:$0xff]
        %v3327 = vld [vmem:[%s3201 + $0x2ba] sm:$0xff]
        %v3328 = vld [vmem:[%s3201 + $0x2ea] sm:$0xff]
        %v3329 = vld [vmem:[%s3201 + $0x2f2] sm:$0xff]
        %v3330 = vld [vmem:[%s3201 + $0x322] sm:$0xff]
        %v3331 = vld [vmem:[%s3201 + $0x32a] sm:$0xff]
        %v3332 = vld [vmem:[%s3201 + $0x35a] sm:$0xff]
        %v3333 = vld [vmem:[%s3201 + $0x362] sm:$0xff]
        %v3334 = vlaneseq
        %v3335 = vshrl.u32 %v3334, 7
        %v3336 = vsub.s32 1, %v3335
        %v3337 = vrot.slane %v1432, %v3336
        %v3338 = vmul.f32 %v3302, %v3337
        %v3339 = vmul.f32 %v3303, %v3337
        %v3340 = vmul.f32 %v3304, %v3337
        %v3341 = vmul.f32 %v3305, %v3337
        %v3342 = vmul.f32 %v3306, %v3337
        %v3343 = vmul.f32 %v3307, %v3337
        %v3344 = vmul.f32 %v3308, %v3337
        %v3345 = vmul.f32 %v3309, %v3337
        %v3346 = vmul.f32 %v3310, %v3337
        %v3347 = vmul.f32 %v3311, %v3337
        %v3348 = vmul.f32 %v3312, %v3337
        %v3349 = vmul.f32 %v3313, %v3337
        %v3350 = vmul.f32 %v3314, %v3337
        %v3351 = vmul.f32 %v3315, %v3337
        %v3352 = vmul.f32 %v3316, %v3337
        %v3353 = vmul.f32 %v3317, %v3337
        %v3354 = vmul.f32 %v3318, %v3337
        %v3355 = vmul.f32 %v3319, %v3337
        %v3356 = vmul.f32 %v3320, %v3337
        %v3357 = vmul.f32 %v3321, %v3337
        %v3358 = vmul.f32 %v3322, %v3337
        %v3359 = vmul.f32 %v3323, %v3337
        %v3360 = vmul.f32 %v3324, %v3337
        %v3361 = vmul.f32 %v3325, %v3337
        %v3362 = vmul.f32 %v3326, %v3337
        %v3363 = vmul.f32 %v3327, %v3337
        %v3364 = vmul.f32 %v3328, %v3337
        %v3365 = vmul.f32 %v3329, %v3337
        %v3366 = vmul.f32 %v3330, %v3337
        %v3367 = vmul.f32 %v3331, %v3337
        %v3368 = vmul.f32 %v3332, %v3337
        %v3369 = vmul.f32 %v3333, %v3337
        %v3370 = vadd.f32 %v3270, %v3338
        %v3371 = vadd.f32 %v3271, %v3339
        %v3372 = vadd.f32 %v3272, %v3340
        %v3373 = vadd.f32 %v3273, %v3341
        %v3374 = vadd.f32 %v3274, %v3342
        %v3375 = vadd.f32 %v3275, %v3343
        %v3376 = vadd.f32 %v3276, %v3344
        %v3377 = vadd.f32 %v3277, %v3345
        %v3378 = vadd.f32 %v3278, %v3346
        %v3379 = vadd.f32 %v3279, %v3347
        %v3380 = vadd.f32 %v3280, %v3348
        %v3381 = vadd.f32 %v3281, %v3349
        %v3382 = vadd.f32 %v3282, %v3350
        %v3383 = vadd.f32 %v3283, %v3351
        %v3384 = vadd.f32 %v3284, %v3352
        %v3385 = vadd.f32 %v3285, %v3353
        %v3386 = vadd.f32 %v3286, %v3354
        %v3387 = vadd.f32 %v3287, %v3355
        %v3388 = vadd.f32 %v3288, %v3356
        %v3389 = vadd.f32 %v3289, %v3357
        %v3390 = vadd.f32 %v3290, %v3358
        %v3391 = vadd.f32 %v3291, %v3359
        %v3392 = vadd.f32 %v3292, %v3360
        %v3393 = vadd.f32 %v3293, %v3361
        %v3394 = vadd.f32 %v3294, %v3362
        %v3395 = vadd.f32 %v3295, %v3363
        %v3396 = vadd.f32 %v3296, %v3364
        %v3397 = vadd.f32 %v3297, %v3365
        %v3398 = vadd.f32 %v3298, %v3366
        %v3399 = vadd.f32 %v3299, %v3367
        %v3400 = vadd.f32 %v3300, %v3368
        %v3401 = vadd.f32 %v3301, %v3369
        %v3402 = vld [vmem:[%s3201 + $0x1e] sm:$0xff]
        %v3403 = vld [vmem:[%s3201 + $0x26] sm:$0xff]
        %v3404 = vld [vmem:[%s3201 + $0x56] sm:$0xff]
        %v3405 = vld [vmem:[%s3201 + $0x5e] sm:$0xff]
        %v3406 = vld [vmem:[%s3201 + $0x8e] sm:$0xff]
        %v3407 = vld [vmem:[%s3201 + $0x96] sm:$0xff]
        %v3408 = vld [vmem:[%s3201 + $0xc6] sm:$0xff]
        %v3409 = vld [vmem:[%s3201 + $0xce] sm:$0xff]
        %v3410 = vld [vmem:[%s3201 + $0xfe] sm:$0xff]
        %v3411 = vld [vmem:[%s3201 + $0x106] sm:$0xff]
        %v3412 = vld [vmem:[%s3201 + $0x136] sm:$0xff]
        %v3413 = vld [vmem:[%s3201 + $0x13e] sm:$0xff]
        %v3414 = vld [vmem:[%s3201 + $0x16e] sm:$0xff]
        %v3415 = vld [vmem:[%s3201 + $0x176] sm:$0xff]
        %v3416 = vld [vmem:[%s3201 + $0x1a6] sm:$0xff]
        %v3417 = vld [vmem:[%s3201 + $0x1ae] sm:$0xff]
        %v3418 = vld [vmem:[%s3201 + $0x1de] sm:$0xff]
        %v3419 = vld [vmem:[%s3201 + $0x1e6] sm:$0xff]
        %v3420 = vld [vmem:[%s3201 + $0x216] sm:$0xff]
        %v3421 = vld [vmem:[%s3201 + $0x21e] sm:$0xff]
        %v3422 = vld [vmem:[%s3201 + $0x24e] sm:$0xff]
        %v3423 = vld [vmem:[%s3201 + $0x256] sm:$0xff]
        %v3424 = vld [vmem:[%s3201 + $0x286] sm:$0xff]
        %v3425 = vld [vmem:[%s3201 + $0x28e] sm:$0xff]
        %v3426 = vld [vmem:[%s3201 + $0x2be] sm:$0xff]
        %v3427 = vld [vmem:[%s3201 + $0x2c6] sm:$0xff]
        %v3428 = vld [vmem:[%s3201 + $0x2f6] sm:$0xff]
        %v3429 = vld [vmem:[%s3201 + $0x2fe] sm:$0xff]
        %v3430 = vld [vmem:[%s3201 + $0x32e] sm:$0xff]
        %v3431 = vld [vmem:[%s3201 + $0x336] sm:$0xff]
        %v3432 = vld [vmem:[%s3201 + $0x366] sm:$0xff]
        %v3433 = vld [vmem:[%s3201 + $0x36e] sm:$0xff]
        %v3434 = vlaneseq
        %v3435 = vshrl.u32 %v3434, 7
        %v3436 = vsub.s32 2, %v3435
        %v3437 = vrot.slane %v1432, %v3436
        %v3438 = vmul.f32 %v3402, %v3437
        %v3439 = vmul.f32 %v3403, %v3437
        %v3440 = vmul.f32 %v3404, %v3437
        %v3441 = vmul.f32 %v3405, %v3437
        %v3442 = vmul.f32 %v3406, %v3437
        %v3443 = vmul.f32 %v3407, %v3437
        %v3444 = vmul.f32 %v3408, %v3437
        %v3445 = vmul.f32 %v3409, %v3437
        %v3446 = vmul.f32 %v3410, %v3437
        %v3447 = vmul.f32 %v3411, %v3437
        %v3448 = vmul.f32 %v3412, %v3437
        %v3449 = vmul.f32 %v3413, %v3437
        %v3450 = vmul.f32 %v3414, %v3437
        %v3451 = vmul.f32 %v3415, %v3437
        %v3452 = vmul.f32 %v3416, %v3437
        %v3453 = vmul.f32 %v3417, %v3437
        %v3454 = vmul.f32 %v3418, %v3437
        %v3455 = vmul.f32 %v3419, %v3437
        %v3456 = vmul.f32 %v3420, %v3437
        %v3457 = vmul.f32 %v3421, %v3437
        %v3458 = vmul.f32 %v3422, %v3437
        %v3459 = vmul.f32 %v3423, %v3437
        %v3460 = vmul.f32 %v3424, %v3437
        %v3461 = vmul.f32 %v3425, %v3437
        %v3462 = vmul.f32 %v3426, %v3437
        %v3463 = vmul.f32 %v3427, %v3437
        %v3464 = vmul.f32 %v3428, %v3437
        %v3465 = vmul.f32 %v3429, %v3437
        %v3466 = vmul.f32 %v3430, %v3437
        %v3467 = vmul.f32 %v3431, %v3437
        %v3468 = vmul.f32 %v3432, %v3437
        %v3469 = vmul.f32 %v3433, %v3437
        %v3470 = vadd.f32 %v3370, %v3438
        %v3471 = vadd.f32 %v3371, %v3439
        %v3472 = vadd.f32 %v3372, %v3440
        %v3473 = vadd.f32 %v3373, %v3441
        %v3474 = vadd.f32 %v3374, %v3442
        %v3475 = vadd.f32 %v3375, %v3443
        %v3476 = vadd.f32 %v3376, %v3444
        %v3477 = vadd.f32 %v3377, %v3445
        %v3478 = vadd.f32 %v3378, %v3446
        %v3479 = vadd.f32 %v3379, %v3447
        %v3480 = vadd.f32 %v3380, %v3448
        %v3481 = vadd.f32 %v3381, %v3449
        %v3482 = vadd.f32 %v3382, %v3450
        %v3483 = vadd.f32 %v3383, %v3451
        %v3484 = vadd.f32 %v3384, %v3452
        %v3485 = vadd.f32 %v3385, %v3453
        %v3486 = vadd.f32 %v3386, %v3454
        %v3487 = vadd.f32 %v3387, %v3455
        %v3488 = vadd.f32 %v3388, %v3456
        %v3489 = vadd.f32 %v3389, %v3457
        %v3490 = vadd.f32 %v3390, %v3458
        %v3491 = vadd.f32 %v3391, %v3459
        %v3492 = vadd.f32 %v3392, %v3460
        %v3493 = vadd.f32 %v3393, %v3461
        %v3494 = vadd.f32 %v3394, %v3462
        %v3495 = vadd.f32 %v3395, %v3463
        %v3496 = vadd.f32 %v3396, %v3464
        %v3497 = vadd.f32 %v3397, %v3465
        %v3498 = vadd.f32 %v3398, %v3466
        %v3499 = vadd.f32 %v3399, %v3467
        %v3500 = vadd.f32 %v3400, %v3468
        %v3501 = vadd.f32 %v3401, %v3469
        %v3502 = vpack.c.bf16 %v3471, %v3470
        %v3503 = vpack.c.bf16 %v3473, %v3472
        %v3504 = vpack.c.bf16 %v3475, %v3474
        %v3505 = vpack.c.bf16 %v3477, %v3476
        %v3506 = vpack.c.bf16 %v3479, %v3478
        %v3507 = vpack.c.bf16 %v3481, %v3480
        %v3508 = vpack.c.bf16 %v3483, %v3482
        %v3509 = vpack.c.bf16 %v3485, %v3484
        %v3510 = vpack.c.bf16 %v3487, %v3486
        %v3511 = vpack.c.bf16 %v3489, %v3488
        %v3512 = vpack.c.bf16 %v3491, %v3490
        %v3513 = vpack.c.bf16 %v3493, %v3492
        %v3514 = vpack.c.bf16 %v3495, %v3494
        %v3515 = vpack.c.bf16 %v3497, %v3496
        %v3516 = vpack.c.bf16 %v3499, %v3498
        %v3517 = vpack.c.bf16 %v3501, %v3500
        %v3518 = vld [vmem:[#allocation5] sm:$0xff]
        %v3519 = vld [vmem:[#allocation5 + $0x8] sm:$0xff]
        %v3520 = vld [vmem:[#allocation5 + $0x10] sm:$0xff]
        %v3521 = vld [vmem:[#allocation5 + $0x18] sm:$0xff]
        %v3522 = vld [vmem:[#allocation5 + $0x20] sm:$0xff]
        %v3523 = vld [vmem:[#allocation5 + $0x28] sm:$0xff]
        %v3524 = vld [vmem:[#allocation5 + $0x30] sm:$0xff]
        %v3525 = vld [vmem:[#allocation5 + $0x38] sm:$0xff]
        %v3526 = vld [vmem:[#allocation5 + $0x40] sm:$0xff]
        %v3527 = vld [vmem:[#allocation5 + $0x48] sm:$0xff]
        %v3528 = vld [vmem:[#allocation5 + $0x50] sm:$0xff]
        %v3529 = vld [vmem:[#allocation5 + $0x58] sm:$0xff]
        %v3530 = vld [vmem:[#allocation5 + $0x60] sm:$0xff]
        %v3531 = vld [vmem:[#allocation5 + $0x68] sm:$0xff]
        %v3532 = vld [vmem:[#allocation5 + $0x70] sm:$0xff]
        %v3533 = vld [vmem:[#allocation5 + $0x78] sm:$0xff]
        %v3534 = vld [vmem:[#allocation5 + $0x80] sm:$0xff]
        %v3535 = vld [vmem:[#allocation5 + $0x88] sm:$0xff]
        %v3536 = vld [vmem:[#allocation5 + $0x90] sm:$0xff]
        %v3537 = vld [vmem:[#allocation5 + $0x98] sm:$0xff]
        %v3538 = vld [vmem:[#allocation5 + $0xa0] sm:$0xff]
        %v3539 = vld [vmem:[#allocation5 + $0xa8] sm:$0xff]
        %v3540 = vld [vmem:[#allocation5 + $0xb0] sm:$0xff]
        %v3541 = vld [vmem:[#allocation5 + $0xb8] sm:$0xff]
        %v3542 = vld [vmem:[#allocation5 + $0xc0] sm:$0xff]
        %v3543 = vld [vmem:[#allocation5 + $0xc8] sm:$0xff]
        %v3544 = vld [vmem:[#allocation5 + $0xd0] sm:$0xff]
        %v3545 = vld [vmem:[#allocation5 + $0xd8] sm:$0xff]
        %v3546 = vld [vmem:[#allocation5 + $0xe0] sm:$0xff]
        %v3547 = vld [vmem:[#allocation5 + $0xe8] sm:$0xff]
        %v3548 = vld [vmem:[#allocation5 + $0xf0] sm:$0xff]
        %v3549 = vld [vmem:[#allocation5 + $0xf8] sm:$0xff]
        %s3550 = scalar_lea.vmem [#allocation12], 4
        %v3551 = vld [vmem:[%s3550] sm:$0x3]
        %v3553 = vsel %vm933, %v3502, 0
        %v3556 = vsel %vm933, %v3503, 0
        %v3559 = vsel %vm933, %v3504, 0
        %v3562 = vsel %vm933, %v3505, 0
        %v3565 = vsel %vm933, %v3506, 0
        %v3568 = vsel %vm933, %v3507, 0
        %v3571 = vsel %vm933, %v3508, 0
        %v3574 = vsel %vm933, %v3509, 0
        %v3577 = vsel %vm933, %v3510, 0
        %v3580 = vsel %vm933, %v3511, 0
        %v3583 = vsel %vm933, %v3512, 0
        %v3586 = vsel %vm933, %v3513, 0
        %v3589 = vsel %vm933, %v3514, 0
        %v3592 = vsel %vm933, %v3515, 0
        %v3595 = vsel %vm933, %v3516, 0
        %v3598 = vsel %vm933, %v3517, 0
        %v3601 = vsel %vm1198, %v3551, 0
        %3603 = vmatprep.subr.bf16.mxu0 0
        %3604 = vmatpush1.bf16.msra.mxu0 %v3601
        %3605 = vmatprep.subr.bf16.mxu0 0
        %3606 = vmatpush1.bf16.msra.mxu0 0
        %3607 = vmatprep.subr.bf16.mxu0 0
        %3608 = vmatpush1.bf16.msra.mxu0 0
        %3609 = vmatprep.subr.bf16.mxu0 0
        %3610 = vmatpush1.bf16.msra.mxu0 0
        %3611 = vmatprep.subr.bf16.mxu0 0
        %3612 = vmatpush1.bf16.msra.mxu0 0
        %3613 = vmatprep.subr.bf16.mxu0 0
        %3614 = vmatpush1.bf16.msra.mxu0 0
        %3615 = vmatprep.subr.bf16.mxu0 0
        %3616 = vmatpush1.bf16.msra.mxu0 0
        %3617 = vmatprep.subr.bf16.mxu0 0
        %3618 = vmatpush1.bf16.msra.mxu0 0
        %3619 = vmatprep.subr.bf16.mxu0 0
        %3620 = vmatpush1.bf16.msra.mxu0 0
        %3621 = vmatprep.subr.bf16.mxu0 0
        %3622 = vmatpush1.bf16.msra.mxu0 0
        %3623 = vmatprep.subr.bf16.mxu0 0
        %3624 = vmatpush1.bf16.msra.mxu0 0
        %3625 = vmatprep.subr.bf16.mxu0 0
        %3626 = vmatpush1.bf16.msra.mxu0 0
        %3627 = vmatprep.subr.bf16.mxu0 0
        %3628 = vmatpush1.bf16.msra.mxu0 0
        %3629 = vmatprep.subr.bf16.mxu0 0
        %3630 = vmatpush1.bf16.msra.mxu0 0
        %3631 = vmatprep.subr.bf16.mxu0 0
        %3632 = vmatpush1.bf16.msra.mxu0 0
        %3633 = vmatprep.subr.bf16.mxu0 0
        %3634 = vmatpush1.bf16.msra.mxu0 0
        %3635 = vmatprep.mubr.bf16.mxu0 0
        %3636 = vmatmul.mubr.bf16.gmra.mrb[0].mxu0 %v3553
        %v3637 = vpop.f32.mrb[0].mxu0
        %v3638 = vadd.f32 0.0, %v3637
        %v3639 = vpop.f32.mrb[0].mxu0
        %v3640 = vpop.f32.mrb[0].mxu0
        %v3641 = vadd.f32 0.0, %v3640
        %v3642 = vpop.f32.mrb[0].mxu0
        %3643 = vmatprep.mubr.bf16.mxu0 0
        %3644 = vmatmul.mubr.bf16.gmra.mrb[0].mxu0 %v3556
        %v3645 = vpop.f32.mrb[0].mxu0
        %v3646 = vadd.f32 0.0, %v3645
        %v3647 = vpop.f32.mrb[0].mxu0
        %v3648 = vpop.f32.mrb[0].mxu0
        %v3649 = vadd.f32 0.0, %v3648
        %v3650 = vpop.f32.mrb[0].mxu0
        %3651 = vmatprep.mubr.bf16.mxu0 0
        %3652 = vmatmul.mubr.bf16.gmra.mrb[0].mxu0 %v3559
        %v3653 = vpop.f32.mrb[0].mxu0
        %v3654 = vadd.f32 0.0, %v3653
        %v3655 = vpop.f32.mrb[0].mxu0
        %v3656 = vpop.f32.mrb[0].mxu0
        %v3657 = vadd.f32 0.0, %v3656
        %v3658 = vpop.f32.mrb[0].mxu0
        %3659 = vmatprep.mubr.bf16.mxu0 0
        %3660 = vmatmul.mubr.bf16.gmra.mrb[0].mxu0 %v3562
        %v3661 = vpop.f32.mrb[0].mxu0
        %v3662 = vadd.f32 0.0, %v3661
        %v3663 = vpop.f32.mrb[0].mxu0
        %v3664 = vpop.f32.mrb[0].mxu0
        %v3665 = vadd.f32 0.0, %v3664
        %v3666 = vpop.f32.mrb[0].mxu0
        %3667 = vmatprep.mubr.bf16.mxu0 0
        %3668 = vmatmul.mubr.bf16.gmra.mrb[0].mxu0 %v3565
        %v3669 = vpop.f32.mrb[0].mxu0
        %v3670 = vadd.f32 0.0, %v3669
        %v3671 = vpop.f32.mrb[0].mxu0
        %v3672 = vpop.f32.mrb[0].mxu0
        %v3673 = vadd.f32 0.0, %v3672
        %v3674 = vpop.f32.mrb[0].mxu0
        %3675 = vmatprep.mubr.bf16.mxu0 0
        %3676 = vmatmul.mubr.bf16.gmra.mrb[0].mxu0 %v3568
        %v3677 = vpop.f32.mrb[0].mxu0
        %v3678 = vadd.f32 0.0, %v3677
        %v3679 = vpop.f32.mrb[0].mxu0
        %v3680 = vpop.f32.mrb[0].mxu0
        %v3681 = vadd.f32 0.0, %v3680
        %v3682 = vpop.f32.mrb[0].mxu0
        %3683 = vmatprep.mubr.bf16.mxu0 0
        %3684 = vmatmul.mubr.bf16.gmra.mrb[0].mxu0 %v3571
        %v3685 = vpop.f32.mrb[0].mxu0
        %v3686 = vadd.f32 0.0, %v3685
        %v3687 = vpop.f32.mrb[0].mxu0
        %v3688 = vpop.f32.mrb[0].mxu0
        %v3689 = vadd.f32 0.0, %v3688
        %v3690 = vpop.f32.mrb[0].mxu0
        %3691 = vmatprep.mubr.bf16.mxu0 0
        %3692 = vmatmul.mubr.bf16.gmra.mrb[0].mxu0 %v3574
        %v3693 = vpop.f32.mrb[0].mxu0
        %v3694 = vadd.f32 0.0, %v3693
        %v3695 = vpop.f32.mrb[0].mxu0
        %v3696 = vpop.f32.mrb[0].mxu0
        %v3697 = vadd.f32 0.0, %v3696
        %v3698 = vpop.f32.mrb[0].mxu0
        %3699 = vmatprep.mubr.bf16.mxu0 0
        %3700 = vmatmul.mubr.bf16.gmra.mrb[0].mxu0 %v3577
        %v3701 = vpop.f32.mrb[0].mxu0
        %v3702 = vadd.f32 0.0, %v3701
        %v3703 = vpop.f32.mrb[0].mxu0
        %v3704 = vpop.f32.mrb[0].mxu0
        %v3705 = vadd.f32 0.0, %v3704
        %v3706 = vpop.f32.mrb[0].mxu0
        %3707 = vmatprep.mubr.bf16.mxu0 0
        %3708 = vmatmul.mubr.bf16.gmra.mrb[0].mxu0 %v3580
        %v3709 = vpop.f32.mrb[0].mxu0
        %v3710 = vadd.f32 0.0, %v3709
        %v3711 = vpop.f32.mrb[0].mxu0
        %v3712 = vpop.f32.mrb[0].mxu0
        %v3713 = vadd.f32 0.0, %v3712
        %v3714 = vpop.f32.mrb[0].mxu0
        %3715 = vmatprep.mubr.bf16.mxu0 0
        %3716 = vmatmul.mubr.bf16.gmra.mrb[0].mxu0 %v3583
        %v3717 = vpop.f32.mrb[0].mxu0
        %v3718 = vadd.f32 0.0, %v3717
        %v3719 = vpop.f32.mrb[0].mxu0
        %v3720 = vpop.f32.mrb[0].mxu0
        %v3721 = vadd.f32 0.0, %v3720
        %v3722 = vpop.f32.mrb[0].mxu0
        %3723 = vmatprep.mubr.bf16.mxu0 0
        %3724 = vmatmul.mubr.bf16.gmra.mrb[0].mxu0 %v3586
        %v3725 = vpop.f32.mrb[0].mxu0
        %v3726 = vadd.f32 0.0, %v3725
        %v3727 = vpop.f32.mrb[0].mxu0
        %v3728 = vpop.f32.mrb[0].mxu0
        %v3729 = vadd.f32 0.0, %v3728
        %v3730 = vpop.f32.mrb[0].mxu0
        %3731 = vmatprep.mubr.bf16.mxu0 0
        %3732 = vmatmul.mubr.bf16.gmra.mrb[0].mxu0 %v3589
        %v3733 = vpop.f32.mrb[0].mxu0
        %v3734 = vadd.f32 0.0, %v3733
        %v3735 = vpop.f32.mrb[0].mxu0
        %v3736 = vpop.f32.mrb[0].mxu0
        %v3737 = vadd.f32 0.0, %v3736
        %v3738 = vpop.f32.mrb[0].mxu0
        %3739 = vmatprep.mubr.bf16.mxu0 0
        %3740 = vmatmul.mubr.bf16.gmra.mrb[0].mxu0 %v3592
        %v3741 = vpop.f32.mrb[0].mxu0
        %v3742 = vadd.f32 0.0, %v3741
        %v3743 = vpop.f32.mrb[0].mxu0
        %v3744 = vpop.f32.mrb[0].mxu0
        %v3745 = vadd.f32 0.0, %v3744
        %v3746 = vpop.f32.mrb[0].mxu0
        %3747 = vmatprep.mubr.bf16.mxu0 0
        %3748 = vmatmul.mubr.bf16.gmra.mrb[0].mxu0 %v3595
        %v3749 = vpop.f32.mrb[0].mxu0
        %v3750 = vadd.f32 0.0, %v3749
        %v3751 = vpop.f32.mrb[0].mxu0
        %v3752 = vpop.f32.mrb[0].mxu0
        %v3753 = vadd.f32 0.0, %v3752
        %v3754 = vpop.f32.mrb[0].mxu0
        %3755 = vmatprep.mubr.bf16.mxu0 0
        %3756 = vmatmul.mubr.bf16.gmra.mrb[0].mxu0 %v3598
        %v3757 = vpop.f32.mrb[0].mxu0
        %v3758 = vadd.f32 0.0, %v3757
        %v3759 = vpop.f32.mrb[0].mxu0
        %v3760 = vpop.f32.mrb[0].mxu0
        %v3761 = vadd.f32 0.0, %v3760
        %v3762 = vpop.f32.mrb[0].mxu0
        %3763 = vdwg.mxu0
        %v3764 = vadd.f32 %v3518, %v3638
        %v3765 = vadd.f32 %v3519, %v3641
        %v3766 = vadd.f32 %v3520, %v3646
        %v3767 = vadd.f32 %v3521, %v3649
        %v3768 = vadd.f32 %v3522, %v3654
        %v3769 = vadd.f32 %v3523, %v3657
        %v3770 = vadd.f32 %v3524, %v3662
        %v3771 = vadd.f32 %v3525, %v3665
        %v3772 = vadd.f32 %v3526, %v3670
        %v3773 = vadd.f32 %v3527, %v3673
        %v3774 = vadd.f32 %v3528, %v3678
        %v3775 = vadd.f32 %v3529, %v3681
        %v3776 = vadd.f32 %v3530, %v3686
        %v3777 = vadd.f32 %v3531, %v3689
        %v3778 = vadd.f32 %v3532, %v3694
        %v3779 = vadd.f32 %v3533, %v3697
        %v3780 = vadd.f32 %v3534, %v3702
        %v3781 = vadd.f32 %v3535, %v3705
        %v3782 = vadd.f32 %v3536, %v3710
        %v3783 = vadd.f32 %v3537, %v3713
        %v3784 = vadd.f32 %v3538, %v3718
        %v3785 = vadd.f32 %v3539, %v3721
        %v3786 = vadd.f32 %v3540, %v3726
        %v3787 = vadd.f32 %v3541, %v3729
        %v3788 = vadd.f32 %v3542, %v3734
        %v3789 = vadd.f32 %v3543, %v3737
        %v3790 = vadd.f32 %v3544, %v3742
        %v3791 = vadd.f32 %v3545, %v3745
        %v3792 = vadd.f32 %v3546, %v3750
        %v3793 = vadd.f32 %v3547, %v3753
        %v3794 = vadd.f32 %v3548, %v3758
        %v3795 = vadd.f32 %v3549, %v3761
        %3796 = vst [vmem:[#allocation5] sm:$0xff] %v3764
        %3797 = vst [vmem:[#allocation5 + $0x8] sm:$0xff] %v3765
        %3798 = vst [vmem:[#allocation5 + $0x10] sm:$0xff] %v3766
        %3799 = vst [vmem:[#allocation5 + $0x18] sm:$0xff] %v3767
        %3800 = vst [vmem:[#allocation5 + $0x20] sm:$0xff] %v3768
        %3801 = vst [vmem:[#allocation5 + $0x28] sm:$0xff] %v3769
        %3802 = vst [vmem:[#allocation5 + $0x30] sm:$0xff] %v3770
        %3803 = vst [vmem:[#allocation5 + $0x38] sm:$0xff] %v3771
        %3804 = vst [vmem:[#allocation5 + $0x40] sm:$0xff] %v3772
        %3805 = vst [vmem:[#allocation5 + $0x48] sm:$0xff] %v3773
        %3806 = vst [vmem:[#allocation5 + $0x50] sm:$0xff] %v3774
        %3807 = vst [vmem:[#allocation5 + $0x58] sm:$0xff] %v3775
        %3808 = vst [vmem:[#allocation5 + $0x60] sm:$0xff] %v3776
        %3809 = vst [vmem:[#allocation5 + $0x68] sm:$0xff] %v3777
        %3810 = vst [vmem:[#allocation5 + $0x70] sm:$0xff] %v3778
        %3811 = vst [vmem:[#allocation5 + $0x78] sm:$0xff] %v3779
        %3812 = vst [vmem:[#allocation5 + $0x80] sm:$0xff] %v3780
        %3813 = vst [vmem:[#allocation5 + $0x88] sm:$0xff] %v3781
        %3814 = vst [vmem:[#allocation5 + $0x90] sm:$0xff] %v3782
        %3815 = vst [vmem:[#allocation5 + $0x98] sm:$0xff] %v3783
        %3816 = vst [vmem:[#allocation5 + $0xa0] sm:$0xff] %v3784
        %3817 = vst [vmem:[#allocation5 + $0xa8] sm:$0xff] %v3785
        %3818 = vst [vmem:[#allocation5 + $0xb0] sm:$0xff] %v3786
        %3819 = vst [vmem:[#allocation5 + $0xb8] sm:$0xff] %v3787
        %3820 = vst [vmem:[#allocation5 + $0xc0] sm:$0xff] %v3788
        %3821 = vst [vmem:[#allocation5 + $0xc8] sm:$0xff] %v3789
        %3822 = vst [vmem:[#allocation5 + $0xd0] sm:$0xff] %v3790
        %3823 = vst [vmem:[#allocation5 + $0xd8] sm:$0xff] %v3791
        %3824 = vst [vmem:[#allocation5 + $0xe0] sm:$0xff] %v3792
        %3825 = vst [vmem:[#allocation5 + $0xe8] sm:$0xff] %v3793
        %3826 = vst [vmem:[#allocation5 + $0xf0] sm:$0xff] %v3794
        %3827 = vst [vmem:[#allocation5 + $0xf8] sm:$0xff] %v3795
        %v3828 = vld [vmem:[#allocation2] sm:$0xff]
        %v3829 = vld [vmem:[#allocation2 + $0x8] sm:$0xff]
        %v3830 = vld [vmem:[#allocation2 + $0x38] sm:$0xff]
        %v3831 = vld [vmem:[#allocation2 + $0x40] sm:$0xff]
        %v3832 = vld [vmem:[#allocation2 + $0x70] sm:$0xff]
        %v3833 = vld [vmem:[#allocation2 + $0x78] sm:$0xff]
        %v3834 = vld [vmem:[#allocation2 + $0xa8] sm:$0xff]
        %v3835 = vld [vmem:[#allocation2 + $0xb0] sm:$0xff]
        %v3836 = vld [vmem:[#allocation2 + $0xe0] sm:$0xff]
        %v3837 = vld [vmem:[#allocation2 + $0xe8] sm:$0xff]
        %v3838 = vld [vmem:[#allocation2 + $0x118] sm:$0xff]
        %v3839 = vld [vmem:[#allocation2 + $0x120] sm:$0xff]
        %v3840 = vld [vmem:[#allocation2 + $0x150] sm:$0xff]
        %v3841 = vld [vmem:[#allocation2 + $0x158] sm:$0xff]
        %v3842 = vld [vmem:[#allocation2 + $0x188] sm:$0xff]
        %v3843 = vld [vmem:[#allocation2 + $0x190] sm:$0xff]
        %v3844 = vld [vmem:[#allocation2 + $0x1c0] sm:$0xff]
        %v3845 = vld [vmem:[#allocation2 + $0x1c8] sm:$0xff]
        %v3846 = vld [vmem:[#allocation2 + $0x1f8] sm:$0xff]
        %v3847 = vld [vmem:[#allocation2 + $0x200] sm:$0xff]
        %v3848 = vld [vmem:[#allocation2 + $0x230] sm:$0xff]
        %v3849 = vld [vmem:[#allocation2 + $0x238] sm:$0xff]
        %v3850 = vld [vmem:[#allocation2 + $0x268] sm:$0xff]
        %v3851 = vld [vmem:[#allocation2 + $0x270] sm:$0xff]
        %v3852 = vld [vmem:[#allocation2 + $0x2a0] sm:$0xff]
        %v3853 = vld [vmem:[#allocation2 + $0x2a8] sm:$0xff]
        %v3854 = vld [vmem:[#allocation2 + $0x2d8] sm:$0xff]
        %v3855 = vld [vmem:[#allocation2 + $0x2e0] sm:$0xff]
        %v3856 = vld [vmem:[#allocation2 + $0x310] sm:$0xff]
        %v3857 = vld [vmem:[#allocation2 + $0x318] sm:$0xff]
        %v3858 = vld [vmem:[#allocation2 + $0x348] sm:$0xff]
        %v3859 = vld [vmem:[#allocation2 + $0x350] sm:$0xff]
        %v3860 = vlaneseq
        %v3861 = vshrl.u32 %v3860, 7
        %v3862 = vsub.s32 0, %v3861
        %v3863 = vrot.slane %v1433, %v3862
        %v3864 = vmul.f32 %v3828, %v3863
        %v3865 = vmul.f32 %v3829, %v3863
        %v3866 = vmul.f32 %v3830, %v3863
        %v3867 = vmul.f32 %v3831, %v3863
        %v3868 = vmul.f32 %v3832, %v3863
        %v3869 = vmul.f32 %v3833, %v3863
        %v3870 = vmul.f32 %v3834, %v3863
        %v3871 = vmul.f32 %v3835, %v3863
        %v3872 = vmul.f32 %v3836, %v3863
        %v3873 = vmul.f32 %v3837, %v3863
        %v3874 = vmul.f32 %v3838, %v3863
        %v3875 = vmul.f32 %v3839, %v3863
        %v3876 = vmul.f32 %v3840, %v3863
        %v3877 = vmul.f32 %v3841, %v3863
        %v3878 = vmul.f32 %v3842, %v3863
        %v3879 = vmul.f32 %v3843, %v3863
        %v3880 = vmul.f32 %v3844, %v3863
        %v3881 = vmul.f32 %v3845, %v3863
        %v3882 = vmul.f32 %v3846, %v3863
        %v3883 = vmul.f32 %v3847, %v3863
        %v3884 = vmul.f32 %v3848, %v3863
        %v3885 = vmul.f32 %v3849, %v3863
        %v3886 = vmul.f32 %v3850, %v3863
        %v3887 = vmul.f32 %v3851, %v3863
        %v3888 = vmul.f32 %v3852, %v3863
        %v3889 = vmul.f32 %v3853, %v3863
        %v3890 = vmul.f32 %v3854, %v3863
        %v3891 = vmul.f32 %v3855, %v3863
        %v3892 = vmul.f32 %v3856, %v3863
        %v3893 = vmul.f32 %v3857, %v3863
        %v3894 = vmul.f32 %v3858, %v3863
        %v3895 = vmul.f32 %v3859, %v3863
        %v3896 = vld [vmem:[#allocation2 + $0x12] sm:$0xff]
        %v3897 = vld [vmem:[#allocation2 + $0x1a] sm:$0xff]
        %v3898 = vld [vmem:[#allocation2 + $0x4a] sm:$0xff]
        %v3899 = vld [vmem:[#allocation2 + $0x52] sm:$0xff]
        %v3900 = vld [vmem:[#allocation2 + $0x82] sm:$0xff]
        %v3901 = vld [vmem:[#allocation2 + $0x8a] sm:$0xff]
        %v3902 = vld [vmem:[#allocation2 + $0xba] sm:$0xff]
        %v3903 = vld [vmem:[#allocation2 + $0xc2] sm:$0xff]
        %v3904 = vld [vmem:[#allocation2 + $0xf2] sm:$0xff]
        %v3905 = vld [vmem:[#allocation2 + $0xfa] sm:$0xff]
        %v3906 = vld [vmem:[#allocation2 + $0x12a] sm:$0xff]
        %v3907 = vld [vmem:[#allocation2 + $0x132] sm:$0xff]
        %v3908 = vld [vmem:[#allocation2 + $0x162] sm:$0xff]
        %v3909 = vld [vmem:[#allocation2 + $0x16a] sm:$0xff]
        %v3910 = vld [vmem:[#allocation2 + $0x19a] sm:$0xff]
        %v3911 = vld [vmem:[#allocation2 + $0x1a2] sm:$0xff]
        %v3912 = vld [vmem:[#allocation2 + $0x1d2] sm:$0xff]
        %v3913 = vld [vmem:[#allocation2 + $0x1da] sm:$0xff]
        %v3914 = vld [vmem:[#allocation2 + $0x20a] sm:$0xff]
        %v3915 = vld [vmem:[#allocation2 + $0x212] sm:$0xff]
        %v3916 = vld [vmem:[#allocation2 + $0x242] sm:$0xff]
        %v3917 = vld [vmem:[#allocation2 + $0x24a] sm:$0xff]
        %v3918 = vld [vmem:[#allocation2 + $0x27a] sm:$0xff]
        %v3919 = vld [vmem:[#allocation2 + $0x282] sm:$0xff]
        %v3920 = vld [vmem:[#allocation2 + $0x2b2] sm:$0xff]
        %v3921 = vld [vmem:[#allocation2 + $0x2ba] sm:$0xff]
        %v3922 = vld [vmem:[#allocation2 + $0x2ea] sm:$0xff]
        %v3923 = vld [vmem:[#allocation2 + $0x2f2] sm:$0xff]
        %v3924 = vld [vmem:[#allocation2 + $0x322] sm:$0xff]
        %v3925 = vld [vmem:[#allocation2 + $0x32a] sm:$0xff]
        %v3926 = vld [vmem:[#allocation2 + $0x35a] sm:$0xff]
        %v3927 = vld [vmem:[#allocation2 + $0x362] sm:$0xff]
        %v3928 = vlaneseq
        %v3929 = vshrl.u32 %v3928, 7
        %v3930 = vsub.s32 1, %v3929
        %v3931 = vrot.slane %v1433, %v3930
        %v3932 = vmul.f32 %v3896, %v3931
        %v3933 = vmul.f32 %v3897, %v3931
        %v3934 = vmul.f32 %v3898, %v3931
        %v3935 = vmul.f32 %v3899, %v3931
        %v3936 = vmul.f32 %v3900, %v3931
        %v3937 = vmul.f32 %v3901, %v3931
        %v3938 = vmul.f32 %v3902, %v3931
        %v3939 = vmul.f32 %v3903, %v3931
        %v3940 = vmul.f32 %v3904, %v3931
        %v3941 = vmul.f32 %v3905, %v3931
        %v3942 = vmul.f32 %v3906, %v3931
        %v3943 = vmul.f32 %v3907, %v3931
        %v3944 = vmul.f32 %v3908, %v3931
        %v3945 = vmul.f32 %v3909, %v3931
        %v3946 = vmul.f32 %v3910, %v3931
        %v3947 = vmul.f32 %v3911, %v3931
        %v3948 = vmul.f32 %v3912, %v3931
        %v3949 = vmul.f32 %v3913, %v3931
        %v3950 = vmul.f32 %v3914, %v3931
        %v3951 = vmul.f32 %v3915, %v3931
        %v3952 = vmul.f32 %v3916, %v3931
        %v3953 = vmul.f32 %v3917, %v3931
        %v3954 = vmul.f32 %v3918, %v3931
        %v3955 = vmul.f32 %v3919, %v3931
        %v3956 = vmul.f32 %v3920, %v3931
        %v3957 = vmul.f32 %v3921, %v3931
        %v3958 = vmul.f32 %v3922, %v3931
        %v3959 = vmul.f32 %v3923, %v3931
        %v3960 = vmul.f32 %v3924, %v3931
        %v3961 = vmul.f32 %v3925, %v3931
        %v3962 = vmul.f32 %v3926, %v3931
        %v3963 = vmul.f32 %v3927, %v3931
        %v3964 = vadd.f32 %v3864, %v3932
        %v3965 = vadd.f32 %v3865, %v3933
        %v3966 = vadd.f32 %v3866, %v3934
        %v3967 = vadd.f32 %v3867, %v3935
        %v3968 = vadd.f32 %v3868, %v3936
        %v3969 = vadd.f32 %v3869, %v3937
        %v3970 = vadd.f32 %v3870, %v3938
        %v3971 = vadd.f32 %v3871, %v3939
        %v3972 = vadd.f32 %v3872, %v3940
        %v3973 = vadd.f32 %v3873, %v3941
        %v3974 = vadd.f32 %v3874, %v3942
        %v3975 = vadd.f32 %v3875, %v3943
        %v3976 = vadd.f32 %v3876, %v3944
        %v3977 = vadd.f32 %v3877, %v3945
        %v3978 = vadd.f32 %v3878, %v3946
        %v3979 = vadd.f32 %v3879, %v3947
        %v3980 = vadd.f32 %v3880, %v3948
        %v3981 = vadd.f32 %v3881, %v3949
        %v3982 = vadd.f32 %v3882, %v3950
        %v3983 = vadd.f32 %v3883, %v3951
        %v3984 = vadd.f32 %v3884, %v3952
        %v3985 = vadd.f32 %v3885, %v3953
        %v3986 = vadd.f32 %v3886, %v3954
        %v3987 = vadd.f32 %v3887, %v3955
        %v3988 = vadd.f32 %v3888, %v3956
        %v3989 = vadd.f32 %v3889, %v3957
        %v3990 = vadd.f32 %v3890, %v3958
        %v3991 = vadd.f32 %v3891, %v3959
        %v3992 = vadd.f32 %v3892, %v3960
        %v3993 = vadd.f32 %v3893, %v3961
        %v3994 = vadd.f32 %v3894, %v3962
        %v3995 = vadd.f32 %v3895, %v3963
        %v3996 = vld [vmem:[#allocation2 + $0x24] sm:$0xff]
        %v3997 = vld [vmem:[#allocation2 + $0x2c] sm:$0xff]
        %v3998 = vld [vmem:[#allocation2 + $0x5c] sm:$0xff]
        %v3999 = vld [vmem:[#allocation2 + $0x64] sm:$0xff]
        %v4000 = vld [vmem:[#allocation2 + $0x94] sm:$0xff]
        %v4001 = vld [vmem:[#allocation2 + $0x9c] sm:$0xff]
        %v4002 = vld [vmem:[#allocation2 + $0xcc] sm:$0xff]
        %v4003 = vld [vmem:[#allocation2 + $0xd4] sm:$0xff]
        %v4004 = vld [vmem:[#allocation2 + $0x104] sm:$0xff]
        %v4005 = vld [vmem:[#allocation2 + $0x10c] sm:$0xff]
        %v4006 = vld [vmem:[#allocation2 + $0x13c] sm:$0xff]
        %v4007 = vld [vmem:[#allocation2 + $0x144] sm:$0xff]
        %v4008 = vld [vmem:[#allocation2 + $0x174] sm:$0xff]
        %v4009 = vld [vmem:[#allocation2 + $0x17c] sm:$0xff]
        %v4010 = vld [vmem:[#allocation2 + $0x1ac] sm:$0xff]
        %v4011 = vld [vmem:[#allocation2 + $0x1b4] sm:$0xff]
        %v4012 = vld [vmem:[#allocation2 + $0x1e4] sm:$0xff]
        %v4013 = vld [vmem:[#allocation2 + $0x1ec] sm:$0xff]
        %v4014 = vld [vmem:[#allocation2 + $0x21c] sm:$0xff]
        %v4015 = vld [vmem:[#allocation2 + $0x224] sm:$0xff]
        %v4016 = vld [vmem:[#allocation2 + $0x254] sm:$0xff]
        %v4017 = vld [vmem:[#allocation2 + $0x25c] sm:$0xff]
        %v4018 = vld [vmem:[#allocation2 + $0x28c] sm:$0xff]
        %v4019 = vld [vmem:[#allocation2 + $0x294] sm:$0xff]
        %v4020 = vld [vmem:[#allocation2 + $0x2c4] sm:$0xff]
        %v4021 = vld [vmem:[#allocation2 + $0x2cc] sm:$0xff]
        %v4022 = vld [vmem:[#allocation2 + $0x2fc] sm:$0xff]
        %v4023 = vld [vmem:[#allocation2 + $0x304] sm:$0xff]
        %v4024 = vld [vmem:[#allocation2 + $0x334] sm:$0xff]
        %v4025 = vld [vmem:[#allocation2 + $0x33c] sm:$0xff]
        %v4026 = vld [vmem:[#allocation2 + $0x36c] sm:$0xff]
        %v4027 = vld [vmem:[#allocation2 + $0x374] sm:$0xff]
        %v4028 = vlaneseq
        %v4029 = vshrl.u32 %v4028, 7
        %v4030 = vsub.s32 2, %v4029
        %v4031 = vrot.slane %v1433, %v4030
        %v4032 = vmul.f32 %v3996, %v4031
        %v4033 = vmul.f32 %v3997, %v4031
        %v4034 = vmul.f32 %v3998, %v4031
        %v4035 = vmul.f32 %v3999, %v4031
        %v4036 = vmul.f32 %v4000, %v4031
        %v4037 = vmul.f32 %v4001, %v4031
        %v4038 = vmul.f32 %v4002, %v4031
        %v4039 = vmul.f32 %v4003, %v4031
        %v4040 = vmul.f32 %v4004, %v4031
        %v4041 = vmul.f32 %v4005, %v4031
        %v4042 = vmul.f32 %v4006, %v4031
        %v4043 = vmul.f32 %v4007, %v4031
        %v4044 = vmul.f32 %v4008, %v4031
        %v4045 = vmul.f32 %v4009, %v4031
        %v4046 = vmul.f32 %v4010, %v4031
        %v4047 = vmul.f32 %v4011, %v4031
        %v4048 = vmul.f32 %v4012, %v4031
        %v4049 = vmul.f32 %v4013, %v4031
        %v4050 = vmul.f32 %v4014, %v4031
        %v4051 = vmul.f32 %v4015, %v4031
        %v4052 = vmul.f32 %v4016, %v4031
        %v4053 = vmul.f32 %v4017, %v4031
        %v4054 = vmul.f32 %v4018, %v4031
        %v4055 = vmul.f32 %v4019, %v4031
        %v4056 = vmul.f32 %v4020, %v4031
        %v4057 = vmul.f32 %v4021, %v4031
        %v4058 = vmul.f32 %v4022, %v4031
        %v4059 = vmul.f32 %v4023, %v4031
        %v4060 = vmul.f32 %v4024, %v4031
        %v4061 = vmul.f32 %v4025, %v4031
        %v4062 = vmul.f32 %v4026, %v4031
        %v4063 = vmul.f32 %v4027, %v4031
        %v4064 = vadd.f32 %v3964, %v4032
        %v4065 = vadd.f32 %v3965, %v4033
        %v4066 = vadd.f32 %v3966, %v4034
        %v4067 = vadd.f32 %v3967, %v4035
        %v4068 = vadd.f32 %v3968, %v4036
        %v4069 = vadd.f32 %v3969, %v4037
        %v4070 = vadd.f32 %v3970, %v4038
        %v4071 = vadd.f32 %v3971, %v4039
        %v4072 = vadd.f32 %v3972, %v4040
        %v4073 = vadd.f32 %v3973, %v4041
        %v4074 = vadd.f32 %v3974, %v4042
        %v4075 = vadd.f32 %v3975, %v4043
        %v4076 = vadd.f32 %v3976, %v4044
        %v4077 = vadd.f32 %v3977, %v4045
        %v4078 = vadd.f32 %v3978, %v4046
        %v4079 = vadd.f32 %v3979, %v4047
        %v4080 = vadd.f32 %v3980, %v4048
        %v4081 = vadd.f32 %v3981, %v4049
        %v4082 = vadd.f32 %v3982, %v4050
        %v4083 = vadd.f32 %v3983, %v4051
        %v4084 = vadd.f32 %v3984, %v4052
        %v4085 = vadd.f32 %v3985, %v4053
        %v4086 = vadd.f32 %v3986, %v4054
        %v4087 = vadd.f32 %v3987, %v4055
        %v4088 = vadd.f32 %v3988, %v4056
        %v4089 = vadd.f32 %v3989, %v4057
        %v4090 = vadd.f32 %v3990, %v4058
        %v4091 = vadd.f32 %v3991, %v4059
        %v4092 = vadd.f32 %v3992, %v4060
        %v4093 = vadd.f32 %v3993, %v4061
        %v4094 = vadd.f32 %v3994, %v4062
        %v4095 = vadd.f32 %v3995, %v4063
        %v4096 = vld [vmem:[%s932] sm:$0xff]
        %v4097 = vld [vmem:[%s932 + $0x8] sm:$0xff]
        %v4098 = vld [vmem:[%s932 + $0x38] sm:$0xff]
        %v4099 = vld [vmem:[%s932 + $0x40] sm:$0xff]
        %v4100 = vld [vmem:[%s932 + $0x70] sm:$0xff]
        %v4101 = vld [vmem:[%s932 + $0x78] sm:$0xff]
        %v4102 = vld [vmem:[%s932 + $0xa8] sm:$0xff]
        %v4103 = vld [vmem:[%s932 + $0xb0] sm:$0xff]
        %v4104 = vld [vmem:[%s932 + $0xe0] sm:$0xff]
        %v4105 = vld [vmem:[%s932 + $0xe8] sm:$0xff]
        %v4106 = vld [vmem:[%s932 + $0x118] sm:$0xff]
        %v4107 = vld [vmem:[%s932 + $0x120] sm:$0xff]
        %v4108 = vld [vmem:[%s932 + $0x150] sm:$0xff]
        %v4109 = vld [vmem:[%s932 + $0x158] sm:$0xff]
        %v4110 = vld [vmem:[%s932 + $0x188] sm:$0xff]
        %v4111 = vld [vmem:[%s932 + $0x190] sm:$0xff]
        %v4112 = vld [vmem:[%s932 + $0x1c0] sm:$0xff]
        %v4113 = vld [vmem:[%s932 + $0x1c8] sm:$0xff]
        %v4114 = vld [vmem:[%s932 + $0x1f8] sm:$0xff]
        %v4115 = vld [vmem:[%s932 + $0x200] sm:$0xff]
        %v4116 = vld [vmem:[%s932 + $0x230] sm:$0xff]
        %v4117 = vld [vmem:[%s932 + $0x238] sm:$0xff]
        %v4118 = vld [vmem:[%s932 + $0x268] sm:$0xff]
        %v4119 = vld [vmem:[%s932 + $0x270] sm:$0xff]
        %v4120 = vld [vmem:[%s932 + $0x2a0] sm:$0xff]
        %v4121 = vld [vmem:[%s932 + $0x2a8] sm:$0xff]
        %v4122 = vld [vmem:[%s932 + $0x2d8] sm:$0xff]
        %v4123 = vld [vmem:[%s932 + $0x2e0] sm:$0xff]
        %v4124 = vld [vmem:[%s932 + $0x310] sm:$0xff]
        %v4125 = vld [vmem:[%s932 + $0x318] sm:$0xff]
        %v4126 = vld [vmem:[%s932 + $0x348] sm:$0xff]
        %v4127 = vld [vmem:[%s932 + $0x350] sm:$0xff]
        %v4128 = vlaneseq
        %v4129 = vshrl.u32 %v4128, 7
        %v4130 = vsub.s32 0, %v4129
        %v4131 = vrot.slane %v1434, %v4130
        %v4132 = vmul.f32 %v4096, %v4131
        %v4133 = vmul.f32 %v4097, %v4131
        %v4134 = vmul.f32 %v4098, %v4131
        %v4135 = vmul.f32 %v4099, %v4131
        %v4136 = vmul.f32 %v4100, %v4131
        %v4137 = vmul.f32 %v4101, %v4131
        %v4138 = vmul.f32 %v4102, %v4131
        %v4139 = vmul.f32 %v4103, %v4131
        %v4140 = vmul.f32 %v4104, %v4131
        %v4141 = vmul.f32 %v4105, %v4131
        %v4142 = vmul.f32 %v4106, %v4131
        %v4143 = vmul.f32 %v4107, %v4131
        %v4144 = vmul.f32 %v4108, %v4131
        %v4145 = vmul.f32 %v4109, %v4131
        %v4146 = vmul.f32 %v4110, %v4131
        %v4147 = vmul.f32 %v4111, %v4131
        %v4148 = vmul.f32 %v4112, %v4131
        %v4149 = vmul.f32 %v4113, %v4131
        %v4150 = vmul.f32 %v4114, %v4131
        %v4151 = vmul.f32 %v4115, %v4131
        %v4152 = vmul.f32 %v4116, %v4131
        %v4153 = vmul.f32 %v4117, %v4131
        %v4154 = vmul.f32 %v4118, %v4131
        %v4155 = vmul.f32 %v4119, %v4131
        %v4156 = vmul.f32 %v4120, %v4131
        %v4157 = vmul.f32 %v4121, %v4131
        %v4158 = vmul.f32 %v4122, %v4131
        %v4159 = vmul.f32 %v4123, %v4131
        %v4160 = vmul.f32 %v4124, %v4131
        %v4161 = vmul.f32 %v4125, %v4131
        %v4162 = vmul.f32 %v4126, %v4131
        %v4163 = vmul.f32 %v4127, %v4131
        %v4164 = vadd.f32 %v4064, %v4132
        %v4165 = vadd.f32 %v4065, %v4133
        %v4166 = vadd.f32 %v4066, %v4134
        %v4167 = vadd.f32 %v4067, %v4135
        %v4168 = vadd.f32 %v4068, %v4136
        %v4169 = vadd.f32 %v4069, %v4137
        %v4170 = vadd.f32 %v4070, %v4138
        %v4171 = vadd.f32 %v4071, %v4139
        %v4172 = vadd.f32 %v4072, %v4140
        %v4173 = vadd.f32 %v4073, %v4141
        %v4174 = vadd.f32 %v4074, %v4142
        %v4175 = vadd.f32 %v4075, %v4143
        %v4176 = vadd.f32 %v4076, %v4144
        %v4177 = vadd.f32 %v4077, %v4145
        %v4178 = vadd.f32 %v4078, %v4146
        %v4179 = vadd.f32 %v4079, %v4147
        %v4180 = vadd.f32 %v4080, %v4148
        %v4181 = vadd.f32 %v4081, %v4149
        %v4182 = vadd.f32 %v4082, %v4150
        %v4183 = vadd.f32 %v4083, %v4151
        %v4184 = vadd.f32 %v4084, %v4152
        %v4185 = vadd.f32 %v4085, %v4153
        %v4186 = vadd.f32 %v4086, %v4154
        %v4187 = vadd.f32 %v4087, %v4155
        %v4188 = vadd.f32 %v4088, %v4156
        %v4189 = vadd.f32 %v4089, %v4157
        %v4190 = vadd.f32 %v4090, %v4158
        %v4191 = vadd.f32 %v4091, %v4159
        %v4192 = vadd.f32 %v4092, %v4160
        %v4193 = vadd.f32 %v4093, %v4161
        %v4194 = vadd.f32 %v4094, %v4162
        %v4195 = vadd.f32 %v4095, %v4163
        %v4196 = vld [vmem:[%s932 + $0x12] sm:$0xff]
        %v4197 = vld [vmem:[%s932 + $0x1a] sm:$0xff]
        %v4198 = vld [vmem:[%s932 + $0x4a] sm:$0xff]
        %v4199 = vld [vmem:[%s932 + $0x52] sm:$0xff]
        %v4200 = vld [vmem:[%s932 + $0x82] sm:$0xff]
        %v4201 = vld [vmem:[%s932 + $0x8a] sm:$0xff]
        %v4202 = vld [vmem:[%s932 + $0xba] sm:$0xff]
        %v4203 = vld [vmem:[%s932 + $0xc2] sm:$0xff]
        %v4204 = vld [vmem:[%s932 + $0xf2] sm:$0xff]
        %v4205 = vld [vmem:[%s932 + $0xfa] sm:$0xff]
        %v4206 = vld [vmem:[%s932 + $0x12a] sm:$0xff]
        %v4207 = vld [vmem:[%s932 + $0x132] sm:$0xff]
        %v4208 = vld [vmem:[%s932 + $0x162] sm:$0xff]
        %v4209 = vld [vmem:[%s932 + $0x16a] sm:$0xff]
        %v4210 = vld [vmem:[%s932 + $0x19a] sm:$0xff]
        %v4211 = vld [vmem:[%s932 + $0x1a2] sm:$0xff]
        %v4212 = vld [vmem:[%s932 + $0x1d2] sm:$0xff]
        %v4213 = vld [vmem:[%s932 + $0x1da] sm:$0xff]
        %v4214 = vld [vmem:[%s932 + $0x20a] sm:$0xff]
        %v4215 = vld [vmem:[%s932 + $0x212] sm:$0xff]
        %v4216 = vld [vmem:[%s932 + $0x242] sm:$0xff]
        %v4217 = vld [vmem:[%s932 + $0x24a] sm:$0xff]
        %v4218 = vld [vmem:[%s932 + $0x27a] sm:$0xff]
        %v4219 = vld [vmem:[%s932 + $0x282] sm:$0xff]
        %v4220 = vld [vmem:[%s932 + $0x2b2] sm:$0xff]
        %v4221 = vld [vmem:[%s932 + $0x2ba] sm:$0xff]
        %v4222 = vld [vmem:[%s932 + $0x2ea] sm:$0xff]
        %v4223 = vld [vmem:[%s932 + $0x2f2] sm:$0xff]
        %v4224 = vld [vmem:[%s932 + $0x322] sm:$0xff]
        %v4225 = vld [vmem:[%s932 + $0x32a] sm:$0xff]
        %v4226 = vld [vmem:[%s932 + $0x35a] sm:$0xff]
        %v4227 = vld [vmem:[%s932 + $0x362] sm:$0xff]
        %v4228 = vlaneseq
        %v4229 = vshrl.u32 %v4228, 7
        %v4230 = vsub.s32 1, %v4229
        %v4231 = vrot.slane %v1434, %v4230
        %v4232 = vmul.f32 %v4196, %v4231
        %v4233 = vmul.f32 %v4197, %v4231
        %v4234 = vmul.f32 %v4198, %v4231
        %v4235 = vmul.f32 %v4199, %v4231
        %v4236 = vmul.f32 %v4200, %v4231
        %v4237 = vmul.f32 %v4201, %v4231
        %v4238 = vmul.f32 %v4202, %v4231
        %v4239 = vmul.f32 %v4203, %v4231
        %v4240 = vmul.f32 %v4204, %v4231
        %v4241 = vmul.f32 %v4205, %v4231
        %v4242 = vmul.f32 %v4206, %v4231
        %v4243 = vmul.f32 %v4207, %v4231
        %v4244 = vmul.f32 %v4208, %v4231
        %v4245 = vmul.f32 %v4209, %v4231
        %v4246 = vmul.f32 %v4210, %v4231
        %v4247 = vmul.f32 %v4211, %v4231
        %v4248 = vmul.f32 %v4212, %v4231
        %v4249 = vmul.f32 %v4213, %v4231
        %v4250 = vmul.f32 %v4214, %v4231
        %v4251 = vmul.f32 %v4215, %v4231
        %v4252 = vmul.f32 %v4216, %v4231
        %v4253 = vmul.f32 %v4217, %v4231
        %v4254 = vmul.f32 %v4218, %v4231
        %v4255 = vmul.f32 %v4219, %v4231
        %v4256 = vmul.f32 %v4220, %v4231
        %v4257 = vmul.f32 %v4221, %v4231
        %v4258 = vmul.f32 %v4222, %v4231
        %v4259 = vmul.f32 %v4223, %v4231
        %v4260 = vmul.f32 %v4224, %v4231
        %v4261 = vmul.f32 %v4225, %v4231
        %v4262 = vmul.f32 %v4226, %v4231
        %v4263 = vmul.f32 %v4227, %v4231
        %v4264 = vadd.f32 %v4164, %v4232
        %v4265 = vadd.f32 %v4165, %v4233
        %v4266 = vadd.f32 %v4166, %v4234
        %v4267 = vadd.f32 %v4167, %v4235
        %v4268 = vadd.f32 %v4168, %v4236
        %v4269 = vadd.f32 %v4169, %v4237
        %v4270 = vadd.f32 %v4170, %v4238
        %v4271 = vadd.f32 %v4171, %v4239
        %v4272 = vadd.f32 %v4172, %v4240
        %v4273 = vadd.f32 %v4173, %v4241
        %v4274 = vadd.f32 %v4174, %v4242
        %v4275 = vadd.f32 %v4175, %v4243
        %v4276 = vadd.f32 %v4176, %v4244
        %v4277 = vadd.f32 %v4177, %v4245
        %v4278 = vadd.f32 %v4178, %v4246
        %v4279 = vadd.f32 %v4179, %v4247
        %v4280 = vadd.f32 %v4180, %v4248
        %v4281 = vadd.f32 %v4181, %v4249
        %v4282 = vadd.f32 %v4182, %v4250
        %v4283 = vadd.f32 %v4183, %v4251
        %v4284 = vadd.f32 %v4184, %v4252
        %v4285 = vadd.f32 %v4185, %v4253
        %v4286 = vadd.f32 %v4186, %v4254
        %v4287 = vadd.f32 %v4187, %v4255
        %v4288 = vadd.f32 %v4188, %v4256
        %v4289 = vadd.f32 %v4189, %v4257
        %v4290 = vadd.f32 %v4190, %v4258
        %v4291 = vadd.f32 %v4191, %v4259
        %v4292 = vadd.f32 %v4192, %v4260
        %v4293 = vadd.f32 %v4193, %v4261
        %v4294 = vadd.f32 %v4194, %v4262
        %v4295 = vadd.f32 %v4195, %v4263
        %v4296 = vld [vmem:[%s932 + $0x24] sm:$0xff]
        %v4297 = vld [vmem:[%s932 + $0x2c] sm:$0xff]
        %v4298 = vld [vmem:[%s932 + $0x5c] sm:$0xff]
        %v4299 = vld [vmem:[%s932 + $0x64] sm:$0xff]
        %v4300 = vld [vmem:[%s932 + $0x94] sm:$0xff]
        %v4301 = vld [vmem:[%s932 + $0x9c] sm:$0xff]
        %v4302 = vld [vmem:[%s932 + $0xcc] sm:$0xff]
        %v4303 = vld [vmem:[%s932 + $0xd4] sm:$0xff]
        %v4304 = vld [vmem:[%s932 + $0x104] sm:$0xff]
        %v4305 = vld [vmem:[%s932 + $0x10c] sm:$0xff]
        %v4306 = vld [vmem:[%s932 + $0x13c] sm:$0xff]
        %v4307 = vld [vmem:[%s932 + $0x144] sm:$0xff]
        %v4308 = vld [vmem:[%s932 + $0x174] sm:$0xff]
        %v4309 = vld [vmem:[%s932 + $0x17c] sm:$0xff]
        %v4310 = vld [vmem:[%s932 + $0x1ac] sm:$0xff]
        %v4311 = vld [vmem:[%s932 + $0x1b4] sm:$0xff]
        %v4312 = vld [vmem:[%s932 + $0x1e4] sm:$0xff]
        %v4313 = vld [vmem:[%s932 + $0x1ec] sm:$0xff]
        %v4314 = vld [vmem:[%s932 + $0x21c] sm:$0xff]
        %v4315 = vld [vmem:[%s932 + $0x224] sm:$0xff]
        %v4316 = vld [vmem:[%s932 + $0x254] sm:$0xff]
        %v4317 = vld [vmem:[%s932 + $0x25c] sm:$0xff]
        %v4318 = vld [vmem:[%s932 + $0x28c] sm:$0xff]
        %v4319 = vld [vmem:[%s932 + $0x294] sm:$0xff]
        %v4320 = vld [vmem:[%s932 + $0x2c4] sm:$0xff]
        %v4321 = vld [vmem:[%s932 + $0x2cc] sm:$0xff]
        %v4322 = vld [vmem:[%s932 + $0x2fc] sm:$0xff]
        %v4323 = vld [vmem:[%s932 + $0x304] sm:$0xff]
        %v4324 = vld [vmem:[%s932 + $0x334] sm:$0xff]
        %v4325 = vld [vmem:[%s932 + $0x33c] sm:$0xff]
        %v4326 = vld [vmem:[%s932 + $0x36c] sm:$0xff]
        %v4327 = vld [vmem:[%s932 + $0x374] sm:$0xff]
        %v4328 = vlaneseq
        %v4329 = vshrl.u32 %v4328, 7
        %v4330 = vsub.s32 2, %v4329
        %v4331 = vrot.slane %v1434, %v4330
        %v4332 = vmul.f32 %v4296, %v4331
        %v4333 = vmul.f32 %v4297, %v4331
        %v4334 = vmul.f32 %v4298, %v4331
        %v4335 = vmul.f32 %v4299, %v4331
        %v4336 = vmul.f32 %v4300, %v4331
        %v4337 = vmul.f32 %v4301, %v4331
        %v4338 = vmul.f32 %v4302, %v4331
        %v4339 = vmul.f32 %v4303, %v4331
        %v4340 = vmul.f32 %v4304, %v4331
        %v4341 = vmul.f32 %v4305, %v4331
        %v4342 = vmul.f32 %v4306, %v4331
        %v4343 = vmul.f32 %v4307, %v4331
        %v4344 = vmul.f32 %v4308, %v4331
        %v4345 = vmul.f32 %v4309, %v4331
        %v4346 = vmul.f32 %v4310, %v4331
        %v4347 = vmul.f32 %v4311, %v4331
        %v4348 = vmul.f32 %v4312, %v4331
        %v4349 = vmul.f32 %v4313, %v4331
        %v4350 = vmul.f32 %v4314, %v4331
        %v4351 = vmul.f32 %v4315, %v4331
        %v4352 = vmul.f32 %v4316, %v4331
        %v4353 = vmul.f32 %v4317, %v4331
        %v4354 = vmul.f32 %v4318, %v4331
        %v4355 = vmul.f32 %v4319, %v4331
        %v4356 = vmul.f32 %v4320, %v4331
        %v4357 = vmul.f32 %v4321, %v4331
        %v4358 = vmul.f32 %v4322, %v4331
        %v4359 = vmul.f32 %v4323, %v4331
        %v4360 = vmul.f32 %v4324, %v4331
        %v4361 = vmul.f32 %v4325, %v4331
        %v4362 = vmul.f32 %v4326, %v4331
        %v4363 = vmul.f32 %v4327, %v4331
        %v4364 = vadd.f32 %v4264, %v4332
        %v4365 = vadd.f32 %v4265, %v4333
        %v4366 = vadd.f32 %v4266, %v4334
        %v4367 = vadd.f32 %v4267, %v4335
        %v4368 = vadd.f32 %v4268, %v4336
        %v4369 = vadd.f32 %v4269, %v4337
        %v4370 = vadd.f32 %v4270, %v4338
        %v4371 = vadd.f32 %v4271, %v4339
        %v4372 = vadd.f32 %v4272, %v4340
        %v4373 = vadd.f32 %v4273, %v4341
        %v4374 = vadd.f32 %v4274, %v4342
        %v4375 = vadd.f32 %v4275, %v4343
        %v4376 = vadd.f32 %v4276, %v4344
        %v4377 = vadd.f32 %v4277, %v4345
        %v4378 = vadd.f32 %v4278, %v4346
        %v4379 = vadd.f32 %v4279, %v4347
        %v4380 = vadd.f32 %v4280, %v4348
        %v4381 = vadd.f32 %v4281, %v4349
        %v4382 = vadd.f32 %v4282, %v4350
        %v4383 = vadd.f32 %v4283, %v4351
        %v4384 = vadd.f32 %v4284, %v4352
        %v4385 = vadd.f32 %v4285, %v4353
        %v4386 = vadd.f32 %v4286, %v4354
        %v4387 = vadd.f32 %v4287, %v4355
        %v4388 = vadd.f32 %v4288, %v4356
        %v4389 = vadd.f32 %v4289, %v4357
        %v4390 = vadd.f32 %v4290, %v4358
        %v4391 = vadd.f32 %v4291, %v4359
        %v4392 = vadd.f32 %v4292, %v4360
        %v4393 = vadd.f32 %v4293, %v4361
        %v4394 = vadd.f32 %v4294, %v4362
        %v4395 = vadd.f32 %v4295, %v4363
        %s4396 = scalar_lea.vmem [#allocation2], 2016
        %v4397 = vld [vmem:[%s4396] sm:$0xff]
        %v4398 = vld [vmem:[%s4396 + $0x8] sm:$0xff]
        %v4399 = vld [vmem:[%s4396 + $0x38] sm:$0xff]
        %v4400 = vld [vmem:[%s4396 + $0x40] sm:$0xff]
        %v4401 = vld [vmem:[%s4396 + $0x70] sm:$0xff]
        %v4402 = vld [vmem:[%s4396 + $0x78] sm:$0xff]
        %v4403 = vld [vmem:[%s4396 + $0xa8] sm:$0xff]
        %v4404 = vld [vmem:[%s4396 + $0xb0] sm:$0xff]
        %v4405 = vld [vmem:[%s4396 + $0xe0] sm:$0xff]
        %v4406 = vld [vmem:[%s4396 + $0xe8] sm:$0xff]
        %v4407 = vld [vmem:[%s4396 + $0x118] sm:$0xff]
        %v4408 = vld [vmem:[%s4396 + $0x120] sm:$0xff]
        %v4409 = vld [vmem:[%s4396 + $0x150] sm:$0xff]
        %v4410 = vld [vmem:[%s4396 + $0x158] sm:$0xff]
        %v4411 = vld [vmem:[%s4396 + $0x188] sm:$0xff]
        %v4412 = vld [vmem:[%s4396 + $0x190] sm:$0xff]
        %v4413 = vld [vmem:[%s4396 + $0x1c0] sm:$0xff]
        %v4414 = vld [vmem:[%s4396 + $0x1c8] sm:$0xff]
        %v4415 = vld [vmem:[%s4396 + $0x1f8] sm:$0xff]
        %v4416 = vld [vmem:[%s4396 + $0x200] sm:$0xff]
        %v4417 = vld [vmem:[%s4396 + $0x230] sm:$0xff]
        %v4418 = vld [vmem:[%s4396 + $0x238] sm:$0xff]
        %v4419 = vld [vmem:[%s4396 + $0x268] sm:$0xff]
        %v4420 = vld [vmem:[%s4396 + $0x270] sm:$0xff]
        %v4421 = vld [vmem:[%s4396 + $0x2a0] sm:$0xff]
        %v4422 = vld [vmem:[%s4396 + $0x2a8] sm:$0xff]
        %v4423 = vld [vmem:[%s4396 + $0x2d8] sm:$0xff]
        %v4424 = vld [vmem:[%s4396 + $0x2e0] sm:$0xff]
        %v4425 = vld [vmem:[%s4396 + $0x310] sm:$0xff]
        %v4426 = vld [vmem:[%s4396 + $0x318] sm:$0xff]
        %v4427 = vld [vmem:[%s4396 + $0x348] sm:$0xff]
        %v4428 = vld [vmem:[%s4396 + $0x350] sm:$0xff]
        %v4429 = vlaneseq
        %v4430 = vshrl.u32 %v4429, 7
        %v4431 = vsub.s32 0, %v4430
        %v4432 = vrot.slane %v1435, %v4431
        %v4433 = vmul.f32 %v4397, %v4432
        %v4434 = vmul.f32 %v4398, %v4432
        %v4435 = vmul.f32 %v4399, %v4432
        %v4436 = vmul.f32 %v4400, %v4432
        %v4437 = vmul.f32 %v4401, %v4432
        %v4438 = vmul.f32 %v4402, %v4432
        %v4439 = vmul.f32 %v4403, %v4432
        %v4440 = vmul.f32 %v4404, %v4432
        %v4441 = vmul.f32 %v4405, %v4432
        %v4442 = vmul.f32 %v4406, %v4432
        %v4443 = vmul.f32 %v4407, %v4432
        %v4444 = vmul.f32 %v4408, %v4432
        %v4445 = vmul.f32 %v4409, %v4432
        %v4446 = vmul.f32 %v4410, %v4432
        %v4447 = vmul.f32 %v4411, %v4432
        %v4448 = vmul.f32 %v4412, %v4432
        %v4449 = vmul.f32 %v4413, %v4432
        %v4450 = vmul.f32 %v4414, %v4432
        %v4451 = vmul.f32 %v4415, %v4432
        %v4452 = vmul.f32 %v4416, %v4432
        %v4453 = vmul.f32 %v4417, %v4432
        %v4454 = vmul.f32 %v4418, %v4432
        %v4455 = vmul.f32 %v4419, %v4432
        %v4456 = vmul.f32 %v4420, %v4432
        %v4457 = vmul.f32 %v4421, %v4432
        %v4458 = vmul.f32 %v4422, %v4432
        %v4459 = vmul.f32 %v4423, %v4432
        %v4460 = vmul.f32 %v4424, %v4432
        %v4461 = vmul.f32 %v4425, %v4432
        %v4462 = vmul.f32 %v4426, %v4432
        %v4463 = vmul.f32 %v4427, %v4432
        %v4464 = vmul.f32 %v4428, %v4432
        %v4465 = vadd.f32 %v4364, %v4433
        %v4466 = vadd.f32 %v4365, %v4434
        %v4467 = vadd.f32 %v4366, %v4435
        %v4468 = vadd.f32 %v4367, %v4436
        %v4469 = vadd.f32 %v4368, %v4437
        %v4470 = vadd.f32 %v4369, %v4438
        %v4471 = vadd.f32 %v4370, %v4439
        %v4472 = vadd.f32 %v4371, %v4440
        %v4473 = vadd.f32 %v4372, %v4441
        %v4474 = vadd.f32 %v4373, %v4442
        %v4475 = vadd.f32 %v4374, %v4443
        %v4476 = vadd.f32 %v4375, %v4444
        %v4477 = vadd.f32 %v4376, %v4445
        %v4478 = vadd.f32 %v4377, %v4446
        %v4479 = vadd.f32 %v4378, %v4447
        %v4480 = vadd.f32 %v4379, %v4448
        %v4481 = vadd.f32 %v4380, %v4449
        %v4482 = vadd.f32 %v4381, %v4450
        %v4483 = vadd.f32 %v4382, %v4451
        %v4484 = vadd.f32 %v4383, %v4452
        %v4485 = vadd.f32 %v4384, %v4453
        %v4486 = vadd.f32 %v4385, %v4454
        %v4487 = vadd.f32 %v4386, %v4455
        %v4488 = vadd.f32 %v4387, %v4456
        %v4489 = vadd.f32 %v4388, %v4457
        %v4490 = vadd.f32 %v4389, %v4458
        %v4491 = vadd.f32 %v4390, %v4459
        %v4492 = vadd.f32 %v4391, %v4460
        %v4493 = vadd.f32 %v4392, %v4461
        %v4494 = vadd.f32 %v4393, %v4462
        %v4495 = vadd.f32 %v4394, %v4463
        %v4496 = vadd.f32 %v4395, %v4464
        %v4497 = vld [vmem:[%s4396 + $0x12] sm:$0xff]
        %v4498 = vld [vmem:[%s4396 + $0x1a] sm:$0xff]
        %v4499 = vld [vmem:[%s4396 + $0x4a] sm:$0xff]
        %v4500 = vld [vmem:[%s4396 + $0x52] sm:$0xff]
        %v4501 = vld [vmem:[%s4396 + $0x82] sm:$0xff]
        %v4502 = vld [vmem:[%s4396 + $0x8a] sm:$0xff]
        %v4503 = vld [vmem:[%s4396 + $0xba] sm:$0xff]
        %v4504 = vld [vmem:[%s4396 + $0xc2] sm:$0xff]
        %v4505 = vld [vmem:[%s4396 + $0xf2] sm:$0xff]
        %v4506 = vld [vmem:[%s4396 + $0xfa] sm:$0xff]
        %v4507 = vld [vmem:[%s4396 + $0x12a] sm:$0xff]
        %v4508 = vld [vmem:[%s4396 + $0x132] sm:$0xff]
        %v4509 = vld [vmem:[%s4396 + $0x162] sm:$0xff]
        %v4510 = vld [vmem:[%s4396 + $0x16a] sm:$0xff]
        %v4511 = vld [vmem:[%s4396 + $0x19a] sm:$0xff]
        %v4512 = vld [vmem:[%s4396 + $0x1a2] sm:$0xff]
        %v4513 = vld [vmem:[%s4396 + $0x1d2] sm:$0xff]
        %v4514 = vld [vmem:[%s4396 + $0x1da] sm:$0xff]
        %v4515 = vld [vmem:[%s4396 + $0x20a] sm:$0xff]
        %v4516 = vld [vmem:[%s4396 + $0x212] sm:$0xff]
        %v4517 = vld [vmem:[%s4396 + $0x242] sm:$0xff]
        %v4518 = vld [vmem:[%s4396 + $0x24a] sm:$0xff]
        %v4519 = vld [vmem:[%s4396 + $0x27a] sm:$0xff]
        %v4520 = vld [vmem:[%s4396 + $0x282] sm:$0xff]
        %v4521 = vld [vmem:[%s4396 + $0x2b2] sm:$0xff]
        %v4522 = vld [vmem:[%s4396 + $0x2ba] sm:$0xff]
        %v4523 = vld [vmem:[%s4396 + $0x2ea] sm:$0xff]
        %v4524 = vld [vmem:[%s4396 + $0x2f2] sm:$0xff]
        %v4525 = vld [vmem:[%s4396 + $0x322] sm:$0xff]
        %v4526 = vld [vmem:[%s4396 + $0x32a] sm:$0xff]
        %v4527 = vld [vmem:[%s4396 + $0x35a] sm:$0xff]
        %v4528 = vld [vmem:[%s4396 + $0x362] sm:$0xff]
        %v4529 = vlaneseq
        %v4530 = vshrl.u32 %v4529, 7
        %v4531 = vsub.s32 1, %v4530
        %v4532 = vrot.slane %v1435, %v4531
        %v4533 = vmul.f32 %v4497, %v4532
        %v4534 = vmul.f32 %v4498, %v4532
        %v4535 = vmul.f32 %v4499, %v4532
        %v4536 = vmul.f32 %v4500, %v4532
        %v4537 = vmul.f32 %v4501, %v4532
        %v4538 = vmul.f32 %v4502, %v4532
        %v4539 = vmul.f32 %v4503, %v4532
        %v4540 = vmul.f32 %v4504, %v4532
        %v4541 = vmul.f32 %v4505, %v4532
        %v4542 = vmul.f32 %v4506, %v4532
        %v4543 = vmul.f32 %v4507, %v4532
        %v4544 = vmul.f32 %v4508, %v4532
        %v4545 = vmul.f32 %v4509, %v4532
        %v4546 = vmul.f32 %v4510, %v4532
        %v4547 = vmul.f32 %v4511, %v4532
        %v4548 = vmul.f32 %v4512, %v4532
        %v4549 = vmul.f32 %v4513, %v4532
        %v4550 = vmul.f32 %v4514, %v4532
        %v4551 = vmul.f32 %v4515, %v4532
        %v4552 = vmul.f32 %v4516, %v4532
        %v4553 = vmul.f32 %v4517, %v4532
        %v4554 = vmul.f32 %v4518, %v4532
        %v4555 = vmul.f32 %v4519, %v4532
        %v4556 = vmul.f32 %v4520, %v4532
        %v4557 = vmul.f32 %v4521, %v4532
        %v4558 = vmul.f32 %v4522, %v4532
        %v4559 = vmul.f32 %v4523, %v4532
        %v4560 = vmul.f32 %v4524, %v4532
        %v4561 = vmul.f32 %v4525, %v4532
        %v4562 = vmul.f32 %v4526, %v4532
        %v4563 = vmul.f32 %v4527, %v4532
        %v4564 = vmul.f32 %v4528, %v4532
        %v4565 = vadd.f32 %v4465, %v4533
        %v4566 = vadd.f32 %v4466, %v4534
        %v4567 = vadd.f32 %v4467, %v4535
        %v4568 = vadd.f32 %v4468, %v4536
        %v4569 = vadd.f32 %v4469, %v4537
        %v4570 = vadd.f32 %v4470, %v4538
        %v4571 = vadd.f32 %v4471, %v4539
        %v4572 = vadd.f32 %v4472, %v4540
        %v4573 = vadd.f32 %v4473, %v4541
        %v4574 = vadd.f32 %v4474, %v4542
        %v4575 = vadd.f32 %v4475, %v4543
        %v4576 = vadd.f32 %v4476, %v4544
        %v4577 = vadd.f32 %v4477, %v4545
        %v4578 = vadd.f32 %v4478, %v4546
        %v4579 = vadd.f32 %v4479, %v4547
        %v4580 = vadd.f32 %v4480, %v4548
        %v4581 = vadd.f32 %v4481, %v4549
        %v4582 = vadd.f32 %v4482, %v4550
        %v4583 = vadd.f32 %v4483, %v4551
        %v4584 = vadd.f32 %v4484, %v4552
        %v4585 = vadd.f32 %v4485, %v4553
        %v4586 = vadd.f32 %v4486, %v4554
        %v4587 = vadd.f32 %v4487, %v4555
        %v4588 = vadd.f32 %v4488, %v4556
        %v4589 = vadd.f32 %v4489, %v4557
        %v4590 = vadd.f32 %v4490, %v4558
        %v4591 = vadd.f32 %v4491, %v4559
        %v4592 = vadd.f32 %v4492, %v4560
        %v4593 = vadd.f32 %v4493, %v4561
        %v4594 = vadd.f32 %v4494, %v4562
        %v4595 = vadd.f32 %v4495, %v4563
        %v4596 = vadd.f32 %v4496, %v4564
        %v4597 = vld [vmem:[%s4396 + $0x24] sm:$0xff]
        %v4598 = vld [vmem:[%s4396 + $0x2c] sm:$0xff]
        %v4599 = vld [vmem:[%s4396 + $0x5c] sm:$0xff]
        %v4600 = vld [vmem:[%s4396 + $0x64] sm:$0xff]
        %v4601 = vld [vmem:[%s4396 + $0x94] sm:$0xff]
        %v4602 = vld [vmem:[%s4396 + $0x9c] sm:$0xff]
        %v4603 = vld [vmem:[%s4396 + $0xcc] sm:$0xff]
        %v4604 = vld [vmem:[%s4396 + $0xd4] sm:$0xff]
        %v4605 = vld [vmem:[%s4396 + $0x104] sm:$0xff]
        %v4606 = vld [vmem:[%s4396 + $0x10c] sm:$0xff]
        %v4607 = vld [vmem:[%s4396 + $0x13c] sm:$0xff]
        %v4608 = vld [vmem:[%s4396 + $0x144] sm:$0xff]
        %v4609 = vld [vmem:[%s4396 + $0x174] sm:$0xff]
        %v4610 = vld [vmem:[%s4396 + $0x17c] sm:$0xff]
        %v4611 = vld [vmem:[%s4396 + $0x1ac] sm:$0xff]
        %v4612 = vld [vmem:[%s4396 + $0x1b4] sm:$0xff]
        %v4613 = vld [vmem:[%s4396 + $0x1e4] sm:$0xff]
        %v4614 = vld [vmem:[%s4396 + $0x1ec] sm:$0xff]
        %v4615 = vld [vmem:[%s4396 + $0x21c] sm:$0xff]
        %v4616 = vld [vmem:[%s4396 + $0x224] sm:$0xff]
        %v4617 = vld [vmem:[%s4396 + $0x254] sm:$0xff]
        %v4618 = vld [vmem:[%s4396 + $0x25c] sm:$0xff]
        %v4619 = vld [vmem:[%s4396 + $0x28c] sm:$0xff]
        %v4620 = vld [vmem:[%s4396 + $0x294] sm:$0xff]
        %v4621 = vld [vmem:[%s4396 + $0x2c4] sm:$0xff]
        %v4622 = vld [vmem:[%s4396 + $0x2cc] sm:$0xff]
        %v4623 = vld [vmem:[%s4396 + $0x2fc] sm:$0xff]
        %v4624 = vld [vmem:[%s4396 + $0x304] sm:$0xff]
        %v4625 = vld [vmem:[%s4396 + $0x334] sm:$0xff]
        %v4626 = vld [vmem:[%s4396 + $0x33c] sm:$0xff]
        %v4627 = vld [vmem:[%s4396 + $0x36c] sm:$0xff]
        %v4628 = vld [vmem:[%s4396 + $0x374] sm:$0xff]
        %v4629 = vlaneseq
        %v4630 = vshrl.u32 %v4629, 7
        %v4631 = vsub.s32 2, %v4630
        %v4632 = vrot.slane %v1435, %v4631
        %v4633 = vmul.f32 %v4597, %v4632
        %v4634 = vmul.f32 %v4598, %v4632
        %v4635 = vmul.f32 %v4599, %v4632
        %v4636 = vmul.f32 %v4600, %v4632
        %v4637 = vmul.f32 %v4601, %v4632
        %v4638 = vmul.f32 %v4602, %v4632
        %v4639 = vmul.f32 %v4603, %v4632
        %v4640 = vmul.f32 %v4604, %v4632
        %v4641 = vmul.f32 %v4605, %v4632
        %v4642 = vmul.f32 %v4606, %v4632
        %v4643 = vmul.f32 %v4607, %v4632
        %v4644 = vmul.f32 %v4608, %v4632
        %v4645 = vmul.f32 %v4609, %v4632
        %v4646 = vmul.f32 %v4610, %v4632
        %v4647 = vmul.f32 %v4611, %v4632
        %v4648 = vmul.f32 %v4612, %v4632
        %v4649 = vmul.f32 %v4613, %v4632
        %v4650 = vmul.f32 %v4614, %v4632
        %v4651 = vmul.f32 %v4615, %v4632
        %v4652 = vmul.f32 %v4616, %v4632
        %v4653 = vmul.f32 %v4617, %v4632
        %v4654 = vmul.f32 %v4618, %v4632
        %v4655 = vmul.f32 %v4619, %v4632
        %v4656 = vmul.f32 %v4620, %v4632
        %v4657 = vmul.f32 %v4621, %v4632
        %v4658 = vmul.f32 %v4622, %v4632
        %v4659 = vmul.f32 %v4623, %v4632
        %v4660 = vmul.f32 %v4624, %v4632
        %v4661 = vmul.f32 %v4625, %v4632
        %v4662 = vmul.f32 %v4626, %v4632
        %v4663 = vmul.f32 %v4627, %v4632
        %v4664 = vmul.f32 %v4628, %v4632
        %v4665 = vadd.f32 %v4565, %v4633
        %v4666 = vadd.f32 %v4566, %v4634
        %v4667 = vadd.f32 %v4567, %v4635
        %v4668 = vadd.f32 %v4568, %v4636
        %v4669 = vadd.f32 %v4569, %v4637
        %v4670 = vadd.f32 %v4570, %v4638
        %v4671 = vadd.f32 %v4571, %v4639
        %v4672 = vadd.f32 %v4572, %v4640
        %v4673 = vadd.f32 %v4573, %v4641
        %v4674 = vadd.f32 %v4574, %v4642
        %v4675 = vadd.f32 %v4575, %v4643
        %v4676 = vadd.f32 %v4576, %v4644
        %v4677 = vadd.f32 %v4577, %v4645
        %v4678 = vadd.f32 %v4578, %v4646
        %v4679 = vadd.f32 %v4579, %v4647
        %v4680 = vadd.f32 %v4580, %v4648
        %v4681 = vadd.f32 %v4581, %v4649
        %v4682 = vadd.f32 %v4582, %v4650
        %v4683 = vadd.f32 %v4583, %v4651
        %v4684 = vadd.f32 %v4584, %v4652
        %v4685 = vadd.f32 %v4585, %v4653
        %v4686 = vadd.f32 %v4586, %v4654
        %v4687 = vadd.f32 %v4587, %v4655
        %v4688 = vadd.f32 %v4588, %v4656
        %v4689 = vadd.f32 %v4589, %v4657
        %v4690 = vadd.f32 %v4590, %v4658
        %v4691 = vadd.f32 %v4591, %v4659
        %v4692 = vadd.f32 %v4592, %v4660
        %v4693 = vadd.f32 %v4593, %v4661
        %v4694 = vadd.f32 %v4594, %v4662
        %v4695 = vadd.f32 %v4595, %v4663
        %v4696 = vadd.f32 %v4596, %v4664
        %v4697 = vpack.c.bf16 %v4666, %v4665
        %v4698 = vpack.c.bf16 %v4668, %v4667
        %v4699 = vpack.c.bf16 %v4670, %v4669
        %v4700 = vpack.c.bf16 %v4672, %v4671
        %v4701 = vpack.c.bf16 %v4674, %v4673
        %v4702 = vpack.c.bf16 %v4676, %v4675
        %v4703 = vpack.c.bf16 %v4678, %v4677
        %v4704 = vpack.c.bf16 %v4680, %v4679
        %v4705 = vpack.c.bf16 %v4682, %v4681
        %v4706 = vpack.c.bf16 %v4684, %v4683
        %v4707 = vpack.c.bf16 %v4686, %v4685
        %v4708 = vpack.c.bf16 %v4688, %v4687
        %v4709 = vpack.c.bf16 %v4690, %v4689
        %v4710 = vpack.c.bf16 %v4692, %v4691
        %v4711 = vpack.c.bf16 %v4694, %v4693
        %v4712 = vpack.c.bf16 %v4696, %v4695
        %v4713 = vld [vmem:[#allocation6] sm:$0xff]
        %v4714 = vld [vmem:[#allocation6 + $0x8] sm:$0xff]
        %v4715 = vld [vmem:[#allocation6 + $0x10] sm:$0xff]
        %v4716 = vld [vmem:[#allocation6 + $0x18] sm:$0xff]
        %v4717 = vld [vmem:[#allocation6 + $0x20] sm:$0xff]
        %v4718 = vld [vmem:[#allocation6 + $0x28] sm:$0xff]
        %v4719 = vld [vmem:[#allocation6 + $0x30] sm:$0xff]
        %v4720 = vld [vmem:[#allocation6 + $0x38] sm:$0xff]
        %v4721 = vld [vmem:[#allocation6 + $0x40] sm:$0xff]
        %v4722 = vld [vmem:[#allocation6 + $0x48] sm:$0xff]
        %v4723 = vld [vmem:[#allocation6 + $0x50] sm:$0xff]
        %v4724 = vld [vmem:[#allocation6 + $0x58] sm:$0xff]
        %v4725 = vld [vmem:[#allocation6 + $0x60] sm:$0xff]
        %v4726 = vld [vmem:[#allocation6 + $0x68] sm:$0xff]
        %v4727 = vld [vmem:[#allocation6 + $0x70] sm:$0xff]
        %v4728 = vld [vmem:[#allocation6 + $0x78] sm:$0xff]
        %v4729 = vld [vmem:[#allocation6 + $0x80] sm:$0xff]
        %v4730 = vld [vmem:[#allocation6 + $0x88] sm:$0xff]
        %v4731 = vld [vmem:[#allocation6 + $0x90] sm:$0xff]
        %v4732 = vld [vmem:[#allocation6 + $0x98] sm:$0xff]
        %v4733 = vld [vmem:[#allocation6 + $0xa0] sm:$0xff]
        %v4734 = vld [vmem:[#allocation6 + $0xa8] sm:$0xff]
        %v4735 = vld [vmem:[#allocation6 + $0xb0] sm:$0xff]
        %v4736 = vld [vmem:[#allocation6 + $0xb8] sm:$0xff]
        %v4737 = vld [vmem:[#allocation6 + $0xc0] sm:$0xff]
        %v4738 = vld [vmem:[#allocation6 + $0xc8] sm:$0xff]
        %v4739 = vld [vmem:[#allocation6 + $0xd0] sm:$0xff]
        %v4740 = vld [vmem:[#allocation6 + $0xd8] sm:$0xff]
        %v4741 = vld [vmem:[#allocation6 + $0xe0] sm:$0xff]
        %v4742 = vld [vmem:[#allocation6 + $0xe8] sm:$0xff]
        %v4743 = vld [vmem:[#allocation6 + $0xf0] sm:$0xff]
        %v4744 = vld [vmem:[#allocation6 + $0xf8] sm:$0xff]
        %s4745 = scalar_lea.vmem [#allocation12], 6
        %v4746 = vld [vmem:[%s4745] sm:$0x3]
        %v4748 = vsel %vm933, %v4697, 0
        %v4751 = vsel %vm933, %v4698, 0
        %v4754 = vsel %vm933, %v4699, 0
        %v4757 = vsel %vm933, %v4700, 0
        %v4760 = vsel %vm933, %v4701, 0
        %v4763 = vsel %vm933, %v4702, 0
        %v4766 = vsel %vm933, %v4703, 0
        %v4769 = vsel %vm933, %v4704, 0
        %v4772 = vsel %vm933, %v4705, 0
        %v4775 = vsel %vm933, %v4706, 0
        %v4778 = vsel %vm933, %v4707, 0
        %v4781 = vsel %vm933, %v4708, 0
        %v4784 = vsel %vm933, %v4709, 0
        %v4787 = vsel %vm933, %v4710, 0
        %v4790 = vsel %vm933, %v4711, 0
        %v4793 = vsel %vm933, %v4712, 0
        %v4796 = vsel %vm1198, %v4746, 0
        %4798 = vmatprep.subr.bf16.mxu0 0
        %4799 = vmatpush1.bf16.msra.mxu0 %v4796
        %4800 = vmatprep.subr.bf16.mxu0 0
        %4801 = vmatpush1.bf16.msra.mxu0 0
        %4802 = vmatprep.subr.bf16.mxu0 0
        %4803 = vmatpush1.bf16.msra.mxu0 0
        %4804 = vmatprep.subr.bf16.mxu0 0
        %4805 = vmatpush1.bf16.msra.mxu0 0
        %4806 = vmatprep.subr.bf16.mxu0 0
        %4807 = vmatpush1.bf16.msra.mxu0 0
        %4808 = vmatprep.subr.bf16.mxu0 0
        %4809 = vmatpush1.bf16.msra.mxu0 0
        %4810 = vmatprep.subr.bf16.mxu0 0
        %4811 = vmatpush1.bf16.msra.mxu0 0
        %4812 = vmatprep.subr.bf16.mxu0 0
        %4813 = vmatpush1.bf16.msra.mxu0 0
        %4814 = vmatprep.subr.bf16.mxu0 0
        %4815 = vmatpush1.bf16.msra.mxu0 0
        %4816 = vmatprep.subr.bf16.mxu0 0
        %4817 = vmatpush1.bf16.msra.mxu0 0
        %4818 = vmatprep.subr.bf16.mxu0 0
        %4819 = vmatpush1.bf16.msra.mxu0 0
        %4820 = vmatprep.subr.bf16.mxu0 0
        %4821 = vmatpush1.bf16.msra.mxu0 0
        %4822 = vmatprep.subr.bf16.mxu0 0
        %4823 = vmatpush1.bf16.msra.mxu0 0
        %4824 = vmatprep.subr.bf16.mxu0 0
        %4825 = vmatpush1.bf16.msra.mxu0 0
        %4826 = vmatprep.subr.bf16.mxu0 0
        %4827 = vmatpush1.bf16.msra.mxu0 0
        %4828 = vmatprep.subr.bf16.mxu0 0
        %4829 = vmatpush1.bf16.msra.mxu0 0
        %4830 = vmatprep.mubr.bf16.mxu0 0
        %4831 = vmatmul.mubr.bf16.gmra.mrb[0].mxu0 %v4748
        %v4832 = vpop.f32.mrb[0].mxu0
        %v4833 = vadd.f32 0.0, %v4832
        %v4834 = vpop.f32.mrb[0].mxu0
        %v4835 = vpop.f32.mrb[0].mxu0
        %v4836 = vadd.f32 0.0, %v4835
        %v4837 = vpop.f32.mrb[0].mxu0
        %4838 = vmatprep.mubr.bf16.mxu0 0
        %4839 = vmatmul.mubr.bf16.gmra.mrb[0].mxu0 %v4751
        %v4840 = vpop.f32.mrb[0].mxu0
        %v4841 = vadd.f32 0.0, %v4840
        %v4842 = vpop.f32.mrb[0].mxu0
        %v4843 = vpop.f32.mrb[0].mxu0
        %v4844 = vadd.f32 0.0, %v4843
        %v4845 = vpop.f32.mrb[0].mxu0
        %4846 = vmatprep.mubr.bf16.mxu0 0
        %4847 = vmatmul.mubr.bf16.gmra.mrb[0].mxu0 %v4754
        %v4848 = vpop.f32.mrb[0].mxu0
        %v4849 = vadd.f32 0.0, %v4848
        %v4850 = vpop.f32.mrb[0].mxu0
        %v4851 = vpop.f32.mrb[0].mxu0
        %v4852 = vadd.f32 0.0, %v4851
        %v4853 = vpop.f32.mrb[0].mxu0
        %4854 = vmatprep.mubr.bf16.mxu0 0
        %4855 = vmatmul.mubr.bf16.gmra.mrb[0].mxu0 %v4757
        %v4856 = vpop.f32.mrb[0].mxu0
        %v4857 = vadd.f32 0.0, %v4856
        %v4858 = vpop.f32.mrb[0].mxu0
        %v4859 = vpop.f32.mrb[0].mxu0
        %v4860 = vadd.f32 0.0, %v4859
        %v4861 = vpop.f32.mrb[0].mxu0
        %4862 = vmatprep.mubr.bf16.mxu0 0
        %4863 = vmatmul.mubr.bf16.gmra.mrb[0].mxu0 %v4760
        %v4864 = vpop.f32.mrb[0].mxu0
        %v4865 = vadd.f32 0.0, %v4864
        %v4866 = vpop.f32.mrb[0].mxu0
        %v4867 = vpop.f32.mrb[0].mxu0
        %v4868 = vadd.f32 0.0, %v4867
        %v4869 = vpop.f32.mrb[0].mxu0
        %4870 = vmatprep.mubr.bf16.mxu0 0
        %4871 = vmatmul.mubr.bf16.gmra.mrb[0].mxu0 %v4763
        %v4872 = vpop.f32.mrb[0].mxu0
        %v4873 = vadd.f32 0.0, %v4872
        %v4874 = vpop.f32.mrb[0].mxu0
        %v4875 = vpop.f32.mrb[0].mxu0
        %v4876 = vadd.f32 0.0, %v4875
        %v4877 = vpop.f32.mrb[0].mxu0
        %4878 = vmatprep.mubr.bf16.mxu0 0
        %4879 = vmatmul.mubr.bf16.gmra.mrb[0].mxu0 %v4766
        %v4880 = vpop.f32.mrb[0].mxu0
        %v4881 = vadd.f32 0.0, %v4880
        %v4882 = vpop.f32.mrb[0].mxu0
        %v4883 = vpop.f32.mrb[0].mxu0
        %v4884 = vadd.f32 0.0, %v4883
        %v4885 = vpop.f32.mrb[0].mxu0
        %4886 = vmatprep.mubr.bf16.mxu0 0
        %4887 = vmatmul.mubr.bf16.gmra.mrb[0].mxu0 %v4769
        %v4888 = vpop.f32.mrb[0].mxu0
        %v4889 = vadd.f32 0.0, %v4888
        %v4890 = vpop.f32.mrb[0].mxu0
        %v4891 = vpop.f32.mrb[0].mxu0
        %v4892 = vadd.f32 0.0, %v4891
        %v4893 = vpop.f32.mrb[0].mxu0
        %4894 = vmatprep.mubr.bf16.mxu0 0
        %4895 = vmatmul.mubr.bf16.gmra.mrb[0].mxu0 %v4772
        %v4896 = vpop.f32.mrb[0].mxu0
        %v4897 = vadd.f32 0.0, %v4896
        %v4898 = vpop.f32.mrb[0].mxu0
        %v4899 = vpop.f32.mrb[0].mxu0
        %v4900 = vadd.f32 0.0, %v4899
        %v4901 = vpop.f32.mrb[0].mxu0
        %4902 = vmatprep.mubr.bf16.mxu0 0
        %4903 = vmatmul.mubr.bf16.gmra.mrb[0].mxu0 %v4775
        %v4904 = vpop.f32.mrb[0].mxu0
        %v4905 = vadd.f32 0.0, %v4904
        %v4906 = vpop.f32.mrb[0].mxu0
        %v4907 = vpop.f32.mrb[0].mxu0
        %v4908 = vadd.f32 0.0, %v4907
        %v4909 = vpop.f32.mrb[0].mxu0
        %4910 = vmatprep.mubr.bf16.mxu0 0
        %4911 = vmatmul.mubr.bf16.gmra.mrb[0].mxu0 %v4778
        %v4912 = vpop.f32.mrb[0].mxu0
        %v4913 = vadd.f32 0.0, %v4912
        %v4914 = vpop.f32.mrb[0].mxu0
        %v4915 = vpop.f32.mrb[0].mxu0
        %v4916 = vadd.f32 0.0, %v4915
        %v4917 = vpop.f32.mrb[0].mxu0
        %4918 = vmatprep.mubr.bf16.mxu0 0
        %4919 = vmatmul.mubr.bf16.gmra.mrb[0].mxu0 %v4781
        %v4920 = vpop.f32.mrb[0].mxu0
        %v4921 = vadd.f32 0.0, %v4920
        %v4922 = vpop.f32.mrb[0].mxu0
        %v4923 = vpop.f32.mrb[0].mxu0
        %v4924 = vadd.f32 0.0, %v4923
        %v4925 = vpop.f32.mrb[0].mxu0
        %4926 = vmatprep.mubr.bf16.mxu0 0
        %4927 = vmatmul.mubr.bf16.gmra.mrb[0].mxu0 %v4784
        %v4928 = vpop.f32.mrb[0].mxu0
        %v4929 = vadd.f32 0.0, %v4928
        %v4930 = vpop.f32.mrb[0].mxu0
        %v4931 = vpop.f32.mrb[0].mxu0
        %v4932 = vadd.f32 0.0, %v4931
        %v4933 = vpop.f32.mrb[0].mxu0
        %4934 = vmatprep.mubr.bf16.mxu0 0
        %4935 = vmatmul.mubr.bf16.gmra.mrb[0].mxu0 %v4787
        %v4936 = vpop.f32.mrb[0].mxu0
        %v4937 = vadd.f32 0.0, %v4936
        %v4938 = vpop.f32.mrb[0].mxu0
        %v4939 = vpop.f32.mrb[0].mxu0
        %v4940 = vadd.f32 0.0, %v4939
        %v4941 = vpop.f32.mrb[0].mxu0
        %4942 = vmatprep.mubr.bf16.mxu0 0
        %4943 = vmatmul.mubr.bf16.gmra.mrb[0].mxu0 %v4790
        %v4944 = vpop.f32.mrb[0].mxu0
        %v4945 = vadd.f32 0.0, %v4944
        %v4946 = vpop.f32.mrb[0].mxu0
        %v4947 = vpop.f32.mrb[0].mxu0
        %v4948 = vadd.f32 0.0, %v4947
        %v4949 = vpop.f32.mrb[0].mxu0
        %4950 = vmatprep.mubr.bf16.mxu0 0
        %4951 = vmatmul.mubr.bf16.gmra.mrb[0].mxu0 %v4793
        %v4952 = vpop.f32.mrb[0].mxu0
        %v4953 = vadd.f32 0.0, %v4952
        %v4954 = vpop.f32.mrb[0].mxu0
        %v4955 = vpop.f32.mrb[0].mxu0
        %v4956 = vadd.f32 0.0, %v4955
        %v4957 = vpop.f32.mrb[0].mxu0
        %4958 = vdwg.mxu0
        %v4959 = vadd.f32 %v4713, %v4833
        %v4960 = vadd.f32 %v4714, %v4836
        %v4961 = vadd.f32 %v4715, %v4841
        %v4962 = vadd.f32 %v4716, %v4844
        %v4963 = vadd.f32 %v4717, %v4849
        %v4964 = vadd.f32 %v4718, %v4852
        %v4965 = vadd.f32 %v4719, %v4857
        %v4966 = vadd.f32 %v4720, %v4860
        %v4967 = vadd.f32 %v4721, %v4865
        %v4968 = vadd.f32 %v4722, %v4868
        %v4969 = vadd.f32 %v4723, %v4873
        %v4970 = vadd.f32 %v4724, %v4876
        %v4971 = vadd.f32 %v4725, %v4881
        %v4972 = vadd.f32 %v4726, %v4884
        %v4973 = vadd.f32 %v4727, %v4889
        %v4974 = vadd.f32 %v4728, %v4892
        %v4975 = vadd.f32 %v4729, %v4897
        %v4976 = vadd.f32 %v4730, %v4900
        %v4977 = vadd.f32 %v4731, %v4905
        %v4978 = vadd.f32 %v4732, %v4908
        %v4979 = vadd.f32 %v4733, %v4913
        %v4980 = vadd.f32 %v4734, %v4916
        %v4981 = vadd.f32 %v4735, %v4921
        %v4982 = vadd.f32 %v4736, %v4924
        %v4983 = vadd.f32 %v4737, %v4929
        %v4984 = vadd.f32 %v4738, %v4932
        %v4985 = vadd.f32 %v4739, %v4937
        %v4986 = vadd.f32 %v4740, %v4940
        %v4987 = vadd.f32 %v4741, %v4945
        %v4988 = vadd.f32 %v4742, %v4948
        %v4989 = vadd.f32 %v4743, %v4953
        %v4990 = vadd.f32 %v4744, %v4956
        %4991 = vst [vmem:[#allocation6] sm:$0xff] %v4959
        %4992 = vst [vmem:[#allocation6 + $0x8] sm:$0xff] %v4960
        %4993 = vst [vmem:[#allocation6 + $0x10] sm:$0xff] %v4961
        %4994 = vst [vmem:[#allocation6 + $0x18] sm:$0xff] %v4962
        %4995 = vst [vmem:[#allocation6 + $0x20] sm:$0xff] %v4963
        %4996 = vst [vmem:[#allocation6 + $0x28] sm:$0xff] %v4964
        %4997 = vst [vmem:[#allocation6 + $0x30] sm:$0xff] %v4965
        %4998 = vst [vmem:[#allocation6 + $0x38] sm:$0xff] %v4966
        %4999 = vst [vmem:[#allocation6 + $0x40] sm:$0xff] %v4967
        %5000 = vst [vmem:[#allocation6 + $0x48] sm:$0xff] %v4968
        %5001 = vst [vmem:[#allocation6 + $0x50] sm:$0xff] %v4969
        %5002 = vst [vmem:[#allocation6 + $0x58] sm:$0xff] %v4970
        %5003 = vst [vmem:[#allocation6 + $0x60] sm:$0xff] %v4971
        %5004 = vst [vmem:[#allocation6 + $0x68] sm:$0xff] %v4972
        %5005 = vst [vmem:[#allocation6 + $0x70] sm:$0xff] %v4973
        %5006 = vst [vmem:[#allocation6 + $0x78] sm:$0xff] %v4974
        %5007 = vst [vmem:[#allocation6 + $0x80] sm:$0xff] %v4975
        %5008 = vst [vmem:[#allocation6 + $0x88] sm:$0xff] %v4976
        %5009 = vst [vmem:[#allocation6 + $0x90] sm:$0xff] %v4977
        %5010 = vst [vmem:[#allocation6 + $0x98] sm:$0xff] %v4978
        %5011 = vst [vmem:[#allocation6 + $0xa0] sm:$0xff] %v4979
        %5012 = vst [vmem:[#allocation6 + $0xa8] sm:$0xff] %v4980
        %5013 = vst [vmem:[#allocation6 + $0xb0] sm:$0xff] %v4981
        %5014 = vst [vmem:[#allocation6 + $0xb8] sm:$0xff] %v4982
        %5015 = vst [vmem:[#allocation6 + $0xc0] sm:$0xff] %v4983
        %5016 = vst [vmem:[#allocation6 + $0xc8] sm:$0xff] %v4984
        %5017 = vst [vmem:[#allocation6 + $0xd0] sm:$0xff] %v4985
        %5018 = vst [vmem:[#allocation6 + $0xd8] sm:$0xff] %v4986
        %5019 = vst [vmem:[#allocation6 + $0xe0] sm:$0xff] %v4987
        %5020 = vst [vmem:[#allocation6 + $0xe8] sm:$0xff] %v4988
        %5021 = vst [vmem:[#allocation6 + $0xf0] sm:$0xff] %v4989
        %5022 = vst [vmem:[#allocation6 + $0xf8] sm:$0xff] %v4990
        // Predicated region
        $region65: #{aspp_forward.2} parent=39 // pred_check
          %p5023 = pneg %p370
        $region66: #{aspp_forward.2} parent=39 // pred_check_branch
          %5025 = sbr.rel (%p5023) target = $region68
        $region67: #{aspp_forward.2} parent=39 // pred_region
          %v5026 = vld [vmem:[#allocation3] sm:$0xff]
          %v5027 = vld [vmem:[#allocation3 + $0x8] sm:$0xff]
          %v5028 = vld [vmem:[#allocation3 + $0x10] sm:$0xff]
          %v5029 = vld [vmem:[#allocation3 + $0x18] sm:$0xff]
          %v5030 = vld [vmem:[#allocation3 + $0x20] sm:$0xff]
          %v5031 = vld [vmem:[#allocation3 + $0x28] sm:$0xff]
          %v5032 = vld [vmem:[#allocation3 + $0x30] sm:$0xff]
          %v5033 = vld [vmem:[#allocation3 + $0x38] sm:$0xff]
          %v5034 = vld [vmem:[#allocation3 + $0x40] sm:$0xff]
          %v5035 = vld [vmem:[#allocation3 + $0x48] sm:$0xff]
          %v5036 = vld [vmem:[#allocation3 + $0x50] sm:$0xff]
          %v5037 = vld [vmem:[#allocation3 + $0x58] sm:$0xff]
          %v5038 = vld [vmem:[#allocation3 + $0x60] sm:$0xff]
          %v5039 = vld [vmem:[#allocation3 + $0x68] sm:$0xff]
          %v5040 = vld [vmem:[#allocation3 + $0x70] sm:$0xff]
          %v5041 = vld [vmem:[#allocation3 + $0x78] sm:$0xff]
          %v5042 = vld [vmem:[#allocation3 + $0x80] sm:$0xff]
          %v5043 = vld [vmem:[#allocation3 + $0x88] sm:$0xff]
          %v5044 = vld [vmem:[#allocation3 + $0x90] sm:$0xff]
          %v5045 = vld [vmem:[#allocation3 + $0x98] sm:$0xff]
          %v5046 = vld [vmem:[#allocation3 + $0xa0] sm:$0xff]
          %v5047 = vld [vmem:[#allocation3 + $0xa8] sm:$0xff]
          %v5048 = vld [vmem:[#allocation3 + $0xb0] sm:$0xff]
          %v5049 = vld [vmem:[#allocation3 + $0xb8] sm:$0xff]
          %v5050 = vld [vmem:[#allocation3 + $0xc0] sm:$0xff]
          %v5051 = vld [vmem:[#allocation3 + $0xc8] sm:$0xff]
          %v5052 = vld [vmem:[#allocation3 + $0xd0] sm:$0xff]
          %v5053 = vld [vmem:[#allocation3 + $0xd8] sm:$0xff]
          %v5054 = vld [vmem:[#allocation3 + $0xe0] sm:$0xff]
          %v5055 = vld [vmem:[#allocation3 + $0xe8] sm:$0xff]
          %v5056 = vld [vmem:[#allocation3 + $0xf0] sm:$0xff]
          %v5057 = vld [vmem:[#allocation3 + $0xf8] sm:$0xff]
          %v5058 = vld [vmem:[#allocation15] sm:$0x1]
          %v5060 = vlaneseq
          %v5061 = vshrl.u32 %v5060, 7
          %v5062 = vsub.s32 0, %v5061
          %v5063 = vrot.slane %v5058, %v5062
          %v5065 = vadd.f32 %v5026, %v5063
          %v5066 = vadd.f32 %v5027, %v5063
          %v5067 = vadd.f32 %v5028, %v5063
          %v5068 = vadd.f32 %v5029, %v5063
          %v5069 = vadd.f32 %v5030, %v5063
          %v5070 = vadd.f32 %v5031, %v5063
          %v5071 = vadd.f32 %v5032, %v5063
          %v5072 = vadd.f32 %v5033, %v5063
          %v5073 = vadd.f32 %v5034, %v5063
          %v5074 = vadd.f32 %v5035, %v5063
          %v5075 = vadd.f32 %v5036, %v5063
          %v5076 = vadd.f32 %v5037, %v5063
          %v5077 = vadd.f32 %v5038, %v5063
          %v5078 = vadd.f32 %v5039, %v5063
          %v5079 = vadd.f32 %v5040, %v5063
          %v5080 = vadd.f32 %v5041, %v5063
          %v5081 = vadd.f32 %v5042, %v5063
          %v5082 = vadd.f32 %v5043, %v5063
          %v5083 = vadd.f32 %v5044, %v5063
          %v5084 = vadd.f32 %v5045, %v5063
          %v5085 = vadd.f32 %v5046, %v5063
          %v5086 = vadd.f32 %v5047, %v5063
          %v5087 = vadd.f32 %v5048, %v5063
          %v5088 = vadd.f32 %v5049, %v5063
          %v5089 = vadd.f32 %v5050, %v5063
          %v5090 = vadd.f32 %v5051, %v5063
          %v5091 = vadd.f32 %v5052, %v5063
          %v5092 = vadd.f32 %v5053, %v5063
          %v5093 = vadd.f32 %v5054, %v5063
          %v5094 = vadd.f32 %v5055, %v5063
          %v5095 = vadd.f32 %v5056, %v5063
          %v5096 = vadd.f32 %v5057, %v5063
          %v5097 = vmax.f32 %v5065, 0.0
          %v5098 = vmax.f32 %v5066, 0.0
          %v5099 = vmax.f32 %v5067, 0.0
          %v5100 = vmax.f32 %v5068, 0.0
          %v5101 = vmax.f32 %v5069, 0.0
          %v5102 = vmax.f32 %v5070, 0.0
          %v5103 = vmax.f32 %v5071, 0.0
          %v5104 = vmax.f32 %v5072, 0.0
          %v5105 = vmax.f32 %v5073, 0.0
          %v5106 = vmax.f32 %v5074, 0.0
          %v5107 = vmax.f32 %v5075, 0.0
          %v5108 = vmax.f32 %v5076, 0.0
          %v5109 = vmax.f32 %v5077, 0.0
          %v5110 = vmax.f32 %v5078, 0.0
          %v5111 = vmax.f32 %v5079, 0.0
          %v5112 = vmax.f32 %v5080, 0.0
          %v5113 = vmax.f32 %v5081, 0.0
          %v5114 = vmax.f32 %v5082, 0.0
          %v5115 = vmax.f32 %v5083, 0.0
          %v5116 = vmax.f32 %v5084, 0.0
          %v5117 = vmax.f32 %v5085, 0.0
          %v5118 = vmax.f32 %v5086, 0.0
          %v5119 = vmax.f32 %v5087, 0.0
          %v5120 = vmax.f32 %v5088, 0.0
          %v5121 = vmax.f32 %v5089, 0.0
          %v5122 = vmax.f32 %v5090, 0.0
          %v5123 = vmax.f32 %v5091, 0.0
          %v5124 = vmax.f32 %v5092, 0.0
          %v5125 = vmax.f32 %v5093, 0.0
          %v5126 = vmax.f32 %v5094, 0.0
          %v5127 = vmax.f32 %v5095, 0.0
          %v5128 = vmax.f32 %v5096, 0.0
          %v5129 = vpack.c.bf16 %v5098, %v5097
          %v5130 = vpack.c.bf16 %v5100, %v5099
          %v5131 = vpack.c.bf16 %v5102, %v5101
          %v5132 = vpack.c.bf16 %v5104, %v5103
          %v5133 = vpack.c.bf16 %v5106, %v5105
          %v5134 = vpack.c.bf16 %v5108, %v5107
          %v5135 = vpack.c.bf16 %v5110, %v5109
          %v5136 = vpack.c.bf16 %v5112, %v5111
          %v5137 = vpack.c.bf16 %v5114, %v5113
          %v5138 = vpack.c.bf16 %v5116, %v5115
          %v5139 = vpack.c.bf16 %v5118, %v5117
          %v5140 = vpack.c.bf16 %v5120, %v5119
          %v5141 = vpack.c.bf16 %v5122, %v5121
          %v5142 = vpack.c.bf16 %v5124, %v5123
          %v5143 = vpack.c.bf16 %v5126, %v5125
          %v5144 = vpack.c.bf16 %v5128, %v5127
          %v5145 = vld [vmem:[#allocation13] sm:$0xf]
          %v5146 = vld [vmem:[#allocation13 + $0x4] sm:$0xf]
          %v5147 = vld [vmem:[#allocation13 + $0x8] sm:$0xf]
          %v5148 = vld [vmem:[#allocation13 + $0xc] sm:$0xf]
          %v5149 = vld [vmem:[#allocation13 + $0x10] sm:$0xf]
          %v5150 = vld [vmem:[#allocation13 + $0x14] sm:$0xf]
          %v5151 = vld [vmem:[#allocation13 + $0x18] sm:$0xf]
          %v5152 = vld [vmem:[#allocation13 + $0x1c] sm:$0xf]
          %v5153 = vld [vmem:[#allocation13 + $0x20] sm:$0xf]
          %v5154 = vld [vmem:[#allocation13 + $0x24] sm:$0xf]
          %v5155 = vld [vmem:[#allocation13 + $0x28] sm:$0xf]
          %v5156 = vld [vmem:[#allocation13 + $0x2c] sm:$0xf]
          %v5157 = vld [vmem:[#allocation13 + $0x30] sm:$0xf]
          %v5158 = vld [vmem:[#allocation13 + $0x34] sm:$0xf]
          %v5159 = vld [vmem:[#allocation13 + $0x38] sm:$0xf]
          %v5160 = vld [vmem:[#allocation13 + $0x3c] sm:$0xf]
          %v5161 = vld [vmem:[#allocation4] sm:$0xff]
          %v5162 = vld [vmem:[#allocation4 + $0x8] sm:$0xff]
          %v5163 = vld [vmem:[#allocation4 + $0x10] sm:$0xff]
          %v5164 = vld [vmem:[#allocation4 + $0x18] sm:$0xff]
          %v5165 = vld [vmem:[#allocation4 + $0x20] sm:$0xff]
          %v5166 = vld [vmem:[#allocation4 + $0x28] sm:$0xff]
          %v5167 = vld [vmem:[#allocation4 + $0x30] sm:$0xff]
          %v5168 = vld [vmem:[#allocation4 + $0x38] sm:$0xff]
          %v5169 = vld [vmem:[#allocation4 + $0x40] sm:$0xff]
          %v5170 = vld [vmem:[#allocation4 + $0x48] sm:$0xff]
          %v5171 = vld [vmem:[#allocation4 + $0x50] sm:$0xff]
          %v5172 = vld [vmem:[#allocation4 + $0x58] sm:$0xff]
          %v5173 = vld [vmem:[#allocation4 + $0x60] sm:$0xff]
          %v5174 = vld [vmem:[#allocation4 + $0x68] sm:$0xff]
          %v5175 = vld [vmem:[#allocation4 + $0x70] sm:$0xff]
          %v5176 = vld [vmem:[#allocation4 + $0x78] sm:$0xff]
          %v5177 = vld [vmem:[#allocation4 + $0x80] sm:$0xff]
          %v5178 = vld [vmem:[#allocation4 + $0x88] sm:$0xff]
          %v5179 = vld [vmem:[#allocation4 + $0x90] sm:$0xff]
          %v5180 = vld [vmem:[#allocation4 + $0x98] sm:$0xff]
          %v5181 = vld [vmem:[#allocation4 + $0xa0] sm:$0xff]
          %v5182 = vld [vmem:[#allocation4 + $0xa8] sm:$0xff]
          %v5183 = vld [vmem:[#allocation4 + $0xb0] sm:$0xff]
          %v5184 = vld [vmem:[#allocation4 + $0xb8] sm:$0xff]
          %v5185 = vld [vmem:[#allocation4 + $0xc0] sm:$0xff]
          %v5186 = vld [vmem:[#allocation4 + $0xc8] sm:$0xff]
          %v5187 = vld [vmem:[#allocation4 + $0xd0] sm:$0xff]
          %v5188 = vld [vmem:[#allocation4 + $0xd8] sm:$0xff]
          %v5189 = vld [vmem:[#allocation4 + $0xe0] sm:$0xff]
          %v5190 = vld [vmem:[#allocation4 + $0xe8] sm:$0xff]
          %v5191 = vld [vmem:[#allocation4 + $0xf0] sm:$0xff]
          %v5192 = vld [vmem:[#allocation4 + $0xf8] sm:$0xff]
          %s5193 = scalar_lea.vmem [#allocation15], 1
          %v5194 = vld [vmem:[%s5193] sm:$0x1]
          %v5196 = vlaneseq
          %v5197 = vshrl.u32 %v5196, 7
          %v5198 = vsub.s32 0, %v5197
          %v5199 = vrot.slane %v5194, %v5198
          %v5201 = vadd.f32 %v5161, %v5199
          %v5202 = vadd.f32 %v5162, %v5199
          %v5203 = vadd.f32 %v5163, %v5199
          %v5204 = vadd.f32 %v5164, %v5199
          %v5205 = vadd.f32 %v5165, %v5199
          %v5206 = vadd.f32 %v5166, %v5199
          %v5207 = vadd.f32 %v5167, %v5199
          %v5208 = vadd.f32 %v5168, %v5199
          %v5209 = vadd.f32 %v5169, %v5199
          %v5210 = vadd.f32 %v5170, %v5199
          %v5211 = vadd.f32 %v5171, %v5199
          %v5212 = vadd.f32 %v5172, %v5199
          %v5213 = vadd.f32 %v5173, %v5199
          %v5214 = vadd.f32 %v5174, %v5199
          %v5215 = vadd.f32 %v5175, %v5199
          %v5216 = vadd.f32 %v5176, %v5199
          %v5217 = vadd.f32 %v5177, %v5199
          %v5218 = vadd.f32 %v5178, %v5199
          %v5219 = vadd.f32 %v5179, %v5199
          %v5220 = vadd.f32 %v5180, %v5199
          %v5221 = vadd.f32 %v5181, %v5199
          %v5222 = vadd.f32 %v5182, %v5199
          %v5223 = vadd.f32 %v5183, %v5199
          %v5224 = vadd.f32 %v5184, %v5199
          %v5225 = vadd.f32 %v5185, %v5199
          %v5226 = vadd.f32 %v5186, %v5199
          %v5227 = vadd.f32 %v5187, %v5199
          %v5228 = vadd.f32 %v5188, %v5199
          %v5229 = vadd.f32 %v5189, %v5199
          %v5230 = vadd.f32 %v5190, %v5199
          %v5231 = vadd.f32 %v5191, %v5199
          %v5232 = vadd.f32 %v5192, %v5199
          %v5233 = vmax.f32 %v5201, 0.0
          %v5234 = vmax.f32 %v5202, 0.0
          %v5235 = vmax.f32 %v5203, 0.0
          %v5236 = vmax.f32 %v5204, 0.0
          %v5237 = vmax.f32 %v5205, 0.0
          %v5238 = vmax.f32 %v5206, 0.0
          %v5239 = vmax.f32 %v5207, 0.0
          %v5240 = vmax.f32 %v5208, 0.0
          %v5241 = vmax.f32 %v5209, 0.0
          %v5242 = vmax.f32 %v5210, 0.0
          %v5243 = vmax.f32 %v5211, 0.0
          %v5244 = vmax.f32 %v5212, 0.0
          %v5245 = vmax.f32 %v5213, 0.0
          %v5246 = vmax.f32 %v5214, 0.0
          %v5247 = vmax.f32 %v5215, 0.0
          %v5248 = vmax.f32 %v5216, 0.0
          %v5249 = vmax.f32 %v5217, 0.0
          %v5250 = vmax.f32 %v5218, 0.0
          %v5251 = vmax.f32 %v5219, 0.0
          %v5252 = vmax.f32 %v5220, 0.0
          %v5253 = vmax.f32 %v5221, 0.0
          %v5254 = vmax.f32 %v5222, 0.0
          %v5255 = vmax.f32 %v5223, 0.0
          %v5256 = vmax.f32 %v5224, 0.0
          %v5257 = vmax.f32 %v5225, 0.0
          %v5258 = vmax.f32 %v5226, 0.0
          %v5259 = vmax.f32 %v5227, 0.0
          %v5260 = vmax.f32 %v5228, 0.0
          %v5261 = vmax.f32 %v5229, 0.0
          %v5262 = vmax.f32 %v5230, 0.0
          %v5263 = vmax.f32 %v5231, 0.0
          %v5264 = vmax.f32 %v5232, 0.0
          %v5265 = vpack.c.bf16 %v5234, %v5233
          %v5266 = vpack.c.bf16 %v5236, %v5235
          %v5267 = vpack.c.bf16 %v5238, %v5237
          %v5268 = vpack.c.bf16 %v5240, %v5239
          %v5269 = vpack.c.bf16 %v5242, %v5241
          %v5270 = vpack.c.bf16 %v5244, %v5243
          %v5271 = vpack.c.bf16 %v5246, %v5245
          %v5272 = vpack.c.bf16 %v5248, %v5247
          %v5273 = vpack.c.bf16 %v5250, %v5249
          %v5274 = vpack.c.bf16 %v5252, %v5251
          %v5275 = vpack.c.bf16 %v5254, %v5253
          %v5276 = vpack.c.bf16 %v5256, %v5255
          %v5277 = vpack.c.bf16 %v5258, %v5257
          %v5278 = vpack.c.bf16 %v5260, %v5259
          %v5279 = vpack.c.bf16 %v5262, %v5261
          %v5280 = vpack.c.bf16 %v5264, %v5263
          %s5281 = scalar_lea.vmem [#allocation13], 64
          %v5282 = vld [vmem:[%s5281] sm:$0xf]
          %v5283 = vld [vmem:[%s5281 + $0x4] sm:$0xf]
          %v5284 = vld [vmem:[%s5281 + $0x8] sm:$0xf]
          %v5285 = vld [vmem:[%s5281 + $0xc] sm:$0xf]
          %v5286 = vld [vmem:[%s5281 + $0x10] sm:$0xf]
          %v5287 = vld [vmem:[%s5281 + $0x14] sm:$0xf]
          %v5288 = vld [vmem:[%s5281 + $0x18] sm:$0xf]
          %v5289 = vld [vmem:[%s5281 + $0x1c] sm:$0xf]
          %v5290 = vld [vmem:[%s5281 + $0x20] sm:$0xf]
          %v5291 = vld [vmem:[%s5281 + $0x24] sm:$0xf]
          %v5292 = vld [vmem:[%s5281 + $0x28] sm:$0xf]
          %v5293 = vld [vmem:[%s5281 + $0x2c] sm:$0xf]
          %v5294 = vld [vmem:[%s5281 + $0x30] sm:$0xf]
          %v5295 = vld [vmem:[%s5281 + $0x34] sm:$0xf]
          %v5296 = vld [vmem:[%s5281 + $0x38] sm:$0xf]
          %v5297 = vld [vmem:[%s5281 + $0x3c] sm:$0xf]
          %v5314 = vunpack.c.l.b16 %v5282
          %v5315 = vunpack.c.l.b16 %v5283
          %v5316 = vunpack.c.l.b16 %v5284
          %v5317 = vunpack.c.l.b16 %v5285
          %v5318 = vunpack.c.l.b16 %v5286
          %v5319 = vunpack.c.l.b16 %v5287
          %v5320 = vunpack.c.l.b16 %v5288
          %v5321 = vunpack.c.l.b16 %v5289
          %v5322 = vunpack.c.l.b16 %v5290
          %v5323 = vunpack.c.l.b16 %v5291
          %v5324 = vunpack.c.l.b16 %v5292
          %v5325 = vunpack.c.l.b16 %v5293
          %v5326 = vunpack.c.l.b16 %v5294
          %v5327 = vunpack.c.l.b16 %v5295
          %v5328 = vunpack.c.l.b16 %v5296
          %v5329 = vunpack.c.l.b16 %v5297
          %v5330 = vpack.c.b16 %v5315, %v5314
          %v5331 = vpack.c.b16 %v5317, %v5316
          %v5332 = vpack.c.b16 %v5319, %v5318
          %v5333 = vpack.c.b16 %v5321, %v5320
          %v5334 = vpack.c.b16 %v5323, %v5322
          %v5335 = vpack.c.b16 %v5325, %v5324
          %v5336 = vpack.c.b16 %v5327, %v5326
          %v5337 = vpack.c.b16 %v5329, %v5328
          %5346 = vmatprep.subr.bf16.mxu0 0
          %5347 = vmatpush1.bf16.msra.mxu0 %v5330
          %5348 = vmatprep.subr.bf16.mxu0 0
          %5349 = vmatpush1.bf16.msra.mxu0 %v5331
          %5350 = vmatprep.subr.bf16.mxu0 0
          %5351 = vmatpush1.bf16.msra.mxu0 %v5332
          %5352 = vmatprep.subr.bf16.mxu0 0
          %5353 = vmatpush1.bf16.msra.mxu0 %v5333
          %5354 = vmatprep.subr.bf16.mxu0 0
          %5355 = vmatpush1.bf16.msra.mxu0 %v5334
          %5356 = vmatprep.subr.bf16.mxu0 0
          %5357 = vmatpush1.bf16.msra.mxu0 %v5335
          %5358 = vmatprep.subr.bf16.mxu0 0
          %5359 = vmatpush1.bf16.msra.mxu0 %v5336
          %5360 = vmatprep.subr.bf16.mxu0 0
          %5361 = vmatpush1.bf16.msra.mxu0 %v5337
          %5362 = vmatprep.subr.bf16.mxu0 0
          %5363 = vmatpush1.bf16.msra.mxu0 0
          %5364 = vmatprep.subr.bf16.mxu0 0
          %5365 = vmatpush1.bf16.msra.mxu0 0
          %5366 = vmatprep.subr.bf16.mxu0 0
          %5367 = vmatpush1.bf16.msra.mxu0 0
          %5368 = vmatprep.subr.bf16.mxu0 0
          %5369 = vmatpush1.bf16.msra.mxu0 0
          %5370 = vmatprep.subr.bf16.mxu0 0
          %5371 = vmatpush1.bf16.msra.mxu0 0
          %5372 = vmatprep.subr.bf16.mxu0 0
          %5373 = vmatpush1.bf16.msra.mxu0 0
          %5374 = vmatprep.subr.bf16.mxu0 0
          %5375 = vmatpush1.bf16.msra.mxu0 0
          %5376 = vmatprep.subr.bf16.mxu0 0
          %5377 = vmatpush1.bf16.msra.mxu0 0
          %5378 = vmatprep.mubr.bf16.mxu0 0
          %5379 = vmatmul.mubr.bf16.gmra.mrb[0].mxu0 %v5265
          %v5380 = vpop.f32.mrb[0].mxu0
          %v5381 = vadd.f32 0.0, %v5380
          %v5382 = vpop.f32.mrb[0].mxu0
          %v5383 = vpop.f32.mrb[0].mxu0
          %v5384 = vadd.f32 0.0, %v5383
          %v5385 = vpop.f32.mrb[0].mxu0
          %5386 = vmatprep.mubr.bf16.mxu0 0
          %5387 = vmatmul.mubr.bf16.gmra.mrb[0].mxu0 %v5266
          %v5388 = vpop.f32.mrb[0].mxu0
          %v5389 = vadd.f32 0.0, %v5388
          %v5390 = vpop.f32.mrb[0].mxu0
          %v5391 = vpop.f32.mrb[0].mxu0
          %v5392 = vadd.f32 0.0, %v5391
          %v5393 = vpop.f32.mrb[0].mxu0
          %5394 = vmatprep.mubr.bf16.mxu0 0
          %5395 = vmatmul.mubr.bf16.gmra.mrb[0].mxu0 %v5267
          %v5396 = vpop.f32.mrb[0].mxu0
          %v5397 = vadd.f32 0.0, %v5396
          %v5398 = vpop.f32.mrb[0].mxu0
          %v5399 = vpop.f32.mrb[0].mxu0
          %v5400 = vadd.f32 0.0, %v5399
          %v5401 = vpop.f32.mrb[0].mxu0
          %5402 = vmatprep.mubr.bf16.mxu0 0
          %5403 = vmatmul.mubr.bf16.gmra.mrb[0].mxu0 %v5268
          %v5404 = vpop.f32.mrb[0].mxu0
          %v5405 = vadd.f32 0.0, %v5404
          %v5406 = vpop.f32.mrb[0].mxu0
          %v5407 = vpop.f32.mrb[0].mxu0
          %v5408 = vadd.f32 0.0, %v5407
          %v5409 = vpop.f32.mrb[0].mxu0
          %5410 = vmatprep.mubr.bf16.mxu0 0
          %5411 = vmatmul.mubr.bf16.gmra.mrb[0].mxu0 %v5269
          %v5412 = vpop.f32.mrb[0].mxu0
          %v5413 = vadd.f32 0.0, %v5412
          %v5414 = vpop.f32.mrb[0].mxu0
          %v5415 = vpop.f32.mrb[0].mxu0
          %v5416 = vadd.f32 0.0, %v5415
          %v5417 = vpop.f32.mrb[0].mxu0
          %5418 = vmatprep.mubr.bf16.mxu0 0
          %5419 = vmatmul.mubr.bf16.gmra.mrb[0].mxu0 %v5270
          %v5420 = vpop.f32.mrb[0].mxu0
          %v5421 = vadd.f32 0.0, %v5420
          %v5422 = vpop.f32.mrb[0].mxu0
          %v5423 = vpop.f32.mrb[0].mxu0
          %v5424 = vadd.f32 0.0, %v5423
          %v5425 = vpop.f32.mrb[0].mxu0
          %5426 = vmatprep.mubr.bf16.mxu0 0
          %5427 = vmatmul.mubr.bf16.gmra.mrb[0].mxu0 %v5271
          %v5428 = vpop.f32.mrb[0].mxu0
          %v5429 = vadd.f32 0.0, %v5428
          %v5430 = vpop.f32.mrb[0].mxu0
          %v5431 = vpop.f32.mrb[0].mxu0
          %v5432 = vadd.f32 0.0, %v5431
          %v5433 = vpop.f32.mrb[0].mxu0
          %5434 = vmatprep.mubr.bf16.mxu0 0
          %5435 = vmatmul.mubr.bf16.gmra.mrb[0].mxu0 %v5272
          %v5436 = vpop.f32.mrb[0].mxu0
          %v5437 = vadd.f32 0.0, %v5436
          %v5438 = vpop.f32.mrb[0].mxu0
          %v5439 = vpop.f32.mrb[0].mxu0
          %v5440 = vadd.f32 0.0, %v5439
          %v5441 = vpop.f32.mrb[0].mxu0
          %5442 = vmatprep.mubr.bf16.mxu0 0
          %5443 = vmatmul.mubr.bf16.gmra.mrb[0].mxu0 %v5273
          %v5444 = vpop.f32.mrb[0].mxu0
          %v5445 = vadd.f32 0.0, %v5444
          %v5446 = vpop.f32.mrb[0].mxu0
          %v5447 = vpop.f32.mrb[0].mxu0
          %v5448 = vadd.f32 0.0, %v5447
          %v5449 = vpop.f32.mrb[0].mxu0
          %5450 = vmatprep.mubr.bf16.mxu0 0
          %5451 = vmatmul.mubr.bf16.gmra.mrb[0].mxu0 %v5274
          %v5452 = vpop.f32.mrb[0].mxu0
          %v5453 = vadd.f32 0.0, %v5452
          %v5454 = vpop.f32.mrb[0].mxu0
          %v5455 = vpop.f32.mrb[0].mxu0
          %v5456 = vadd.f32 0.0, %v5455
          %v5457 = vpop.f32.mrb[0].mxu0
          %5458 = vmatprep.mubr.bf16.mxu0 0
          %5459 = vmatmul.mubr.bf16.gmra.mrb[0].mxu0 %v5275
          %v5460 = vpop.f32.mrb[0].mxu0
          %v5461 = vadd.f32 0.0, %v5460
          %v5462 = vpop.f32.mrb[0].mxu0
          %v5463 = vpop.f32.mrb[0].mxu0
          %v5464 = vadd.f32 0.0, %v5463
          %v5465 = vpop.f32.mrb[0].mxu0
          %5466 = vmatprep.mubr.bf16.mxu0 0
          %5467 = vmatmul.mubr.bf16.gmra.mrb[0].mxu0 %v5276
          %v5468 = vpop.f32.mrb[0].mxu0
          %v5469 = vadd.f32 0.0, %v5468
          %v5470 = vpop.f32.mrb[0].mxu0
          %v5471 = vpop.f32.mrb[0].mxu0
          %v5472 = vadd.f32 0.0, %v5471
          %v5473 = vpop.f32.mrb[0].mxu0
          %5474 = vmatprep.mubr.bf16.mxu0 0
          %5475 = vmatmul.mubr.bf16.gmra.mrb[0].mxu0 %v5277
          %v5476 = vpop.f32.mrb[0].mxu0
          %v5477 = vadd.f32 0.0, %v5476
          %v5478 = vpop.f32.mrb[0].mxu0
          %v5479 = vpop.f32.mrb[0].mxu0
          %v5480 = vadd.f32 0.0, %v5479
          %v5481 = vpop.f32.mrb[0].mxu0
          %5482 = vmatprep.mubr.bf16.mxu0 0
          %5483 = vmatmul.mubr.bf16.gmra.mrb[0].mxu0 %v5278
          %v5484 = vpop.f32.mrb[0].mxu0
          %v5485 = vadd.f32 0.0, %v5484
          %v5486 = vpop.f32.mrb[0].mxu0
          %v5487 = vpop.f32.mrb[0].mxu0
          %v5488 = vadd.f32 0.0, %v5487
          %v5489 = vpop.f32.mrb[0].mxu0
          %5490 = vmatprep.mubr.bf16.mxu0 0
          %5491 = vmatmul.mubr.bf16.gmra.mrb[0].mxu0 %v5279
          %v5492 = vpop.f32.mrb[0].mxu0
          %v5493 = vadd.f32 0.0, %v5492
          %v5494 = vpop.f32.mrb[0].mxu0
          %v5495 = vpop.f32.mrb[0].mxu0
          %v5496 = vadd.f32 0.0, %v5495
          %v5497 = vpop.f32.mrb[0].mxu0
          %5498 = vmatprep.mubr.bf16.mxu0 0
          %5499 = vmatmul.mubr.bf16.gmra.mrb[0].mxu0 %v5280
          %v5500 = vpop.f32.mrb[0].mxu0
          %v5501 = vadd.f32 0.0, %v5500
          %v5502 = vpop.f32.mrb[0].mxu0
          %v5503 = vpop.f32.mrb[0].mxu0
          %v5504 = vadd.f32 0.0, %v5503
          %v5505 = vpop.f32.mrb[0].mxu0
          %5506 = vdwg.mxu0
          %v5523 = vunpack.c.l.b16 %v5145
          %v5524 = vunpack.c.l.b16 %v5146
          %v5525 = vunpack.c.l.b16 %v5147
          %v5526 = vunpack.c.l.b16 %v5148
          %v5527 = vunpack.c.l.b16 %v5149
          %v5528 = vunpack.c.l.b16 %v5150
          %v5529 = vunpack.c.l.b16 %v5151
          %v5530 = vunpack.c.l.b16 %v5152
          %v5531 = vunpack.c.l.b16 %v5153
          %v5532 = vunpack.c.l.b16 %v5154
          %v5533 = vunpack.c.l.b16 %v5155
          %v5534 = vunpack.c.l.b16 %v5156
          %v5535 = vunpack.c.l.b16 %v5157
          %v5536 = vunpack.c.l.b16 %v5158
          %v5537 = vunpack.c.l.b16 %v5159
          %v5538 = vunpack.c.l.b16 %v5160
          %v5539 = vpack.c.b16 %v5524, %v5523
          %v5540 = vpack.c.b16 %v5526, %v5525
          %v5541 = vpack.c.b16 %v5528, %v5527
          %v5542 = vpack.c.b16 %v5530, %v5529
          %v5543 = vpack.c.b16 %v5532, %v5531
          %v5544 = vpack.c.b16 %v5534, %v5533
          %v5545 = vpack.c.b16 %v5536, %v5535
          %v5546 = vpack.c.b16 %v5538, %v5537
          %5555 = vmatprep.subr.bf16.mxu0 0
          %5556 = vmatpush1.bf16.msra.mxu0 %v5539
          %5557 = vmatprep.subr.bf16.mxu0 0
          %5558 = vmatpush1.bf16.msra.mxu0 %v5540
          %5559 = vmatprep.subr.bf16.mxu0 0
          %5560 = vmatpush1.bf16.msra.mxu0 %v5541
          %5561 = vmatprep.subr.bf16.mxu0 0
          %5562 = vmatpush1.bf16.msra.mxu0 %v5542
          %5563 = vmatprep.subr.bf16.mxu0 0
          %5564 = vmatpush1.bf16.msra.mxu0 %v5543
          %5565 = vmatprep.subr.bf16.mxu0 0
          %5566 = vmatpush1.bf16.msra.mxu0 %v5544
          %5567 = vmatprep.subr.bf16.mxu0 0
          %5568 = vmatpush1.bf16.msra.mxu0 %v5545
          %5569 = vmatprep.subr.bf16.mxu0 0
          %5570 = vmatpush1.bf16.msra.mxu0 %v5546
          %5571 = vmatprep.subr.bf16.mxu0 0
          %5572 = vmatpush1.bf16.msra.mxu0 0
          %5573 = vmatprep.subr.bf16.mxu0 0
          %5574 = vmatpush1.bf16.msra.mxu0 0
          %5575 = vmatprep.subr.bf16.mxu0 0
          %5576 = vmatpush1.bf16.msra.mxu0 0
          %5577 = vmatprep.subr.bf16.mxu0 0
          %5578 = vmatpush1.bf16.msra.mxu0 0
          %5579 = vmatprep.subr.bf16.mxu0 0
          %5580 = vmatpush1.bf16.msra.mxu0 0
          %5581 = vmatprep.subr.bf16.mxu0 0
          %5582 = vmatpush1.bf16.msra.mxu0 0
          %5583 = vmatprep.subr.bf16.mxu0 0
          %5584 = vmatpush1.bf16.msra.mxu0 0
          %5585 = vmatprep.subr.bf16.mxu0 0
          %5586 = vmatpush1.bf16.msra.mxu0 0
          %5587 = vmatprep.mubr.bf16.mxu0 0
          %5588 = vmatmul.mubr.bf16.gmra.mrb[0].mxu0 %v5129
          %v5589 = vpop.f32.mrb[0].mxu0
          %v5590 = vadd.f32 %v5381, %v5589
          %v5591 = vpop.f32.mrb[0].mxu0
          %v5592 = vpop.f32.mrb[0].mxu0
          %v5593 = vadd.f32 %v5384, %v5592
          %v5594 = vpop.f32.mrb[0].mxu0
          %5595 = vmatprep.mubr.bf16.mxu0 0
          %5596 = vmatmul.mubr.bf16.gmra.mrb[0].mxu0 %v5130
          %v5597 = vpop.f32.mrb[0].mxu0
          %v5598 = vadd.f32 %v5389, %v5597
          %v5599 = vpop.f32.mrb[0].mxu0
          %v5600 = vpop.f32.mrb[0].mxu0
          %v5601 = vadd.f32 %v5392, %v5600
          %v5602 = vpop.f32.mrb[0].mxu0
          %5603 = vmatprep.mubr.bf16.mxu0 0
          %5604 = vmatmul.mubr.bf16.gmra.mrb[0].mxu0 %v5131
          %v5605 = vpop.f32.mrb[0].mxu0
          %v5606 = vadd.f32 %v5397, %v5605
          %v5607 = vpop.f32.mrb[0].mxu0
          %v5608 = vpop.f32.mrb[0].mxu0
          %v5609 = vadd.f32 %v5400, %v5608
          %v5610 = vpop.f32.mrb[0].mxu0
          %5611 = vmatprep.mubr.bf16.mxu0 0
          %5612 = vmatmul.mubr.bf16.gmra.mrb[0].mxu0 %v5132
          %v5613 = vpop.f32.mrb[0].mxu0
          %v5614 = vadd.f32 %v5405, %v5613
          %v5615 = vpop.f32.mrb[0].mxu0
          %v5616 = vpop.f32.mrb[0].mxu0
          %v5617 = vadd.f32 %v5408, %v5616
          %v5618 = vpop.f32.mrb[0].mxu0
          %5619 = vmatprep.mubr.bf16.mxu0 0
          %5620 = vmatmul.mubr.bf16.gmra.mrb[0].mxu0 %v5133
          %v5621 = vpop.f32.mrb[0].mxu0
          %v5622 = vadd.f32 %v5413, %v5621
          %v5623 = vpop.f32.mrb[0].mxu0
          %v5624 = vpop.f32.mrb[0].mxu0
          %v5625 = vadd.f32 %v5416, %v5624
          %v5626 = vpop.f32.mrb[0].mxu0
          %5627 = vmatprep.mubr.bf16.mxu0 0
          %5628 = vmatmul.mubr.bf16.gmra.mrb[0].mxu0 %v5134
          %v5629 = vpop.f32.mrb[0].mxu0
          %v5630 = vadd.f32 %v5421, %v5629
          %v5631 = vpop.f32.mrb[0].mxu0
          %v5632 = vpop.f32.mrb[0].mxu0
          %v5633 = vadd.f32 %v5424, %v5632
          %v5634 = vpop.f32.mrb[0].mxu0
          %5635 = vmatprep.mubr.bf16.mxu0 0
          %5636 = vmatmul.mubr.bf16.gmra.mrb[0].mxu0 %v5135
          %v5637 = vpop.f32.mrb[0].mxu0
          %v5638 = vadd.f32 %v5429, %v5637
          %v5639 = vpop.f32.mrb[0].mxu0
          %v5640 = vpop.f32.mrb[0].mxu0
          %v5641 = vadd.f32 %v5432, %v5640
          %v5642 = vpop.f32.mrb[0].mxu0
          %5643 = vmatprep.mubr.bf16.mxu0 0
          %5644 = vmatmul.mubr.bf16.gmra.mrb[0].mxu0 %v5136
          %v5645 = vpop.f32.mrb[0].mxu0
          %v5646 = vadd.f32 %v5437, %v5645
          %v5647 = vpop.f32.mrb[0].mxu0
          %v5648 = vpop.f32.mrb[0].mxu0
          %v5649 = vadd.f32 %v5440, %v5648
          %v5650 = vpop.f32.mrb[0].mxu0
          %5651 = vmatprep.mubr.bf16.mxu0 0
          %5652 = vmatmul.mubr.bf16.gmra.mrb[0].mxu0 %v5137
          %v5653 = vpop.f32.mrb[0].mxu0
          %v5654 = vadd.f32 %v5445, %v5653
          %v5655 = vpop.f32.mrb[0].mxu0
          %v5656 = vpop.f32.mrb[0].mxu0
          %v5657 = vadd.f32 %v5448, %v5656
          %v5658 = vpop.f32.mrb[0].mxu0
          %5659 = vmatprep.mubr.bf16.mxu0 0
          %5660 = vmatmul.mubr.bf16.gmra.mrb[0].mxu0 %v5138
          %v5661 = vpop.f32.mrb[0].mxu0
          %v5662 = vadd.f32 %v5453, %v5661
          %v5663 = vpop.f32.mrb[0].mxu0
          %v5664 = vpop.f32.mrb[0].mxu0
          %v5665 = vadd.f32 %v5456, %v5664
          %v5666 = vpop.f32.mrb[0].mxu0
          %5667 = vmatprep.mubr.bf16.mxu0 0
          %5668 = vmatmul.mubr.bf16.gmra.mrb[0].mxu0 %v5139
          %v5669 = vpop.f32.mrb[0].mxu0
          %v5670 = vadd.f32 %v5461, %v5669
          %v5671 = vpop.f32.mrb[0].mxu0
          %v5672 = vpop.f32.mrb[0].mxu0
          %v5673 = vadd.f32 %v5464, %v5672
          %v5674 = vpop.f32.mrb[0].mxu0
          %5675 = vmatprep.mubr.bf16.mxu0 0
          %5676 = vmatmul.mubr.bf16.gmra.mrb[0].mxu0 %v5140
          %v5677 = vpop.f32.mrb[0].mxu0
          %v5678 = vadd.f32 %v5469, %v5677
          %v5679 = vpop.f32.mrb[0].mxu0
          %v5680 = vpop.f32.mrb[0].mxu0
          %v5681 = vadd.f32 %v5472, %v5680
          %v5682 = vpop.f32.mrb[0].mxu0
          %5683 = vmatprep.mubr.bf16.mxu0 0
          %5684 = vmatmul.mubr.bf16.gmra.mrb[0].mxu0 %v5141
          %v5685 = vpop.f32.mrb[0].mxu0
          %v5686 = vadd.f32 %v5477, %v5685
          %v5687 = vpop.f32.mrb[0].mxu0
          %v5688 = vpop.f32.mrb[0].mxu0
          %v5689 = vadd.f32 %v5480, %v5688
          %v5690 = vpop.f32.mrb[0].mxu0
          %5691 = vmatprep.mubr.bf16.mxu0 0
          %5692 = vmatmul.mubr.bf16.gmra.mrb[0].mxu0 %v5142
          %v5693 = vpop.f32.mrb[0].mxu0
          %v5694 = vadd.f32 %v5485, %v5693
          %v5695 = vpop.f32.mrb[0].mxu0
          %v5696 = vpop.f32.mrb[0].mxu0
          %v5697 = vadd.f32 %v5488, %v5696
          %v5698 = vpop.f32.mrb[0].mxu0
          %5699 = vmatprep.mubr.bf16.mxu0 0
          %5700 = vmatmul.mubr.bf16.gmra.mrb[0].mxu0 %v5143
          %v5701 = vpop.f32.mrb[0].mxu0
          %v5702 = vadd.f32 %v5493, %v5701
          %v5703 = vpop.f32.mrb[0].mxu0
          %v5704 = vpop.f32.mrb[0].mxu0
          %v5705 = vadd.f32 %v5496, %v5704
          %v5706 = vpop.f32.mrb[0].mxu0
          %5707 = vmatprep.mubr.bf16.mxu0 0
          %5708 = vmatmul.mubr.bf16.gmra.mrb[0].mxu0 %v5144
          %v5709 = vpop.f32.mrb[0].mxu0
          %v5710 = vadd.f32 %v5501, %v5709
          %v5711 = vpop.f32.mrb[0].mxu0
          %v5712 = vpop.f32.mrb[0].mxu0
          %v5713 = vadd.f32 %v5504, %v5712
          %v5714 = vpop.f32.mrb[0].mxu0
          %5715 = vdwg.mxu0
          %v5716 = vld [vmem:[#allocation5] sm:$0xff]
          %v5717 = vld [vmem:[#allocation5 + $0x8] sm:$0xff]
          %v5718 = vld [vmem:[#allocation5 + $0x10] sm:$0xff]
          %v5719 = vld [vmem:[#allocation5 + $0x18] sm:$0xff]
          %v5720 = vld [vmem:[#allocation5 + $0x20] sm:$0xff]
          %v5721 = vld [vmem:[#allocation5 + $0x28] sm:$0xff]
          %v5722 = vld [vmem:[#allocation5 + $0x30] sm:$0xff]
          %v5723 = vld [vmem:[#allocation5 + $0x38] sm:$0xff]
          %v5724 = vld [vmem:[#allocation5 + $0x40] sm:$0xff]
          %v5725 = vld [vmem:[#allocation5 + $0x48] sm:$0xff]
          %v5726 = vld [vmem:[#allocation5 + $0x50] sm:$0xff]
          %v5727 = vld [vmem:[#allocation5 + $0x58] sm:$0xff]
          %v5728 = vld [vmem:[#allocation5 + $0x60] sm:$0xff]
          %v5729 = vld [vmem:[#allocation5 + $0x68] sm:$0xff]
          %v5730 = vld [vmem:[#allocation5 + $0x70] sm:$0xff]
          %v5731 = vld [vmem:[#allocation5 + $0x78] sm:$0xff]
          %v5732 = vld [vmem:[#allocation5 + $0x80] sm:$0xff]
          %v5733 = vld [vmem:[#allocation5 + $0x88] sm:$0xff]
          %v5734 = vld [vmem:[#allocation5 + $0x90] sm:$0xff]
          %v5735 = vld [vmem:[#allocation5 + $0x98] sm:$0xff]
          %v5736 = vld [vmem:[#allocation5 + $0xa0] sm:$0xff]
          %v5737 = vld [vmem:[#allocation5 + $0xa8] sm:$0xff]
          %v5738 = vld [vmem:[#allocation5 + $0xb0] sm:$0xff]
          %v5739 = vld [vmem:[#allocation5 + $0xb8] sm:$0xff]
          %v5740 = vld [vmem:[#allocation5 + $0xc0] sm:$0xff]
          %v5741 = vld [vmem:[#allocation5 + $0xc8] sm:$0xff]
          %v5742 = vld [vmem:[#allocation5 + $0xd0] sm:$0xff]
          %v5743 = vld [vmem:[#allocation5 + $0xd8] sm:$0xff]
          %v5744 = vld [vmem:[#allocation5 + $0xe0] sm:$0xff]
          %v5745 = vld [vmem:[#allocation5 + $0xe8] sm:$0xff]
          %v5746 = vld [vmem:[#allocation5 + $0xf0] sm:$0xff]
          %v5747 = vld [vmem:[#allocation5 + $0xf8] sm:$0xff]
          %s5748 = scalar_lea.vmem [#allocation15], 2
          %v5749 = vld [vmem:[%s5748] sm:$0x1]
          %v5751 = vlaneseq
          %v5752 = vshrl.u32 %v5751, 7
          %v5753 = vsub.s32 0, %v5752
          %v5754 = vrot.slane %v5749, %v5753
          %v5756 = vadd.f32 %v5716, %v5754
          %v5757 = vadd.f32 %v5717, %v5754
          %v5758 = vadd.f32 %v5718, %v5754
          %v5759 = vadd.f32 %v5719, %v5754
          %v5760 = vadd.f32 %v5720, %v5754
          %v5761 = vadd.f32 %v5721, %v5754
          %v5762 = vadd.f32 %v5722, %v5754
          %v5763 = vadd.f32 %v5723, %v5754
          %v5764 = vadd.f32 %v5724, %v5754
          %v5765 = vadd.f32 %v5725, %v5754
          %v5766 = vadd.f32 %v5726, %v5754
          %v5767 = vadd.f32 %v5727, %v5754
          %v5768 = vadd.f32 %v5728, %v5754
          %v5769 = vadd.f32 %v5729, %v5754
          %v5770 = vadd.f32 %v5730, %v5754
          %v5771 = vadd.f32 %v5731, %v5754
          %v5772 = vadd.f32 %v5732, %v5754
          %v5773 = vadd.f32 %v5733, %v5754
          %v5774 = vadd.f32 %v5734, %v5754
          %v5775 = vadd.f32 %v5735, %v5754
          %v5776 = vadd.f32 %v5736, %v5754
          %v5777 = vadd.f32 %v5737, %v5754
          %v5778 = vadd.f32 %v5738, %v5754
          %v5779 = vadd.f32 %v5739, %v5754
          %v5780 = vadd.f32 %v5740, %v5754
          %v5781 = vadd.f32 %v5741, %v5754
          %v5782 = vadd.f32 %v5742, %v5754
          %v5783 = vadd.f32 %v5743, %v5754
          %v5784 = vadd.f32 %v5744, %v5754
          %v5785 = vadd.f32 %v5745, %v5754
          %v5786 = vadd.f32 %v5746, %v5754
          %v5787 = vadd.f32 %v5747, %v5754
          %v5788 = vmax.f32 %v5756, 0.0
          %v5789 = vmax.f32 %v5757, 0.0
          %v5790 = vmax.f32 %v5758, 0.0
          %v5791 = vmax.f32 %v5759, 0.0
          %v5792 = vmax.f32 %v5760, 0.0
          %v5793 = vmax.f32 %v5761, 0.0
          %v5794 = vmax.f32 %v5762, 0.0
          %v5795 = vmax.f32 %v5763, 0.0
          %v5796 = vmax.f32 %v5764, 0.0
          %v5797 = vmax.f32 %v5765, 0.0
          %v5798 = vmax.f32 %v5766, 0.0
          %v5799 = vmax.f32 %v5767, 0.0
          %v5800 = vmax.f32 %v5768, 0.0
          %v5801 = vmax.f32 %v5769, 0.0
          %v5802 = vmax.f32 %v5770, 0.0
          %v5803 = vmax.f32 %v5771, 0.0
          %v5804 = vmax.f32 %v5772, 0.0
          %v5805 = vmax.f32 %v5773, 0.0
          %v5806 = vmax.f32 %v5774, 0.0
          %v5807 = vmax.f32 %v5775, 0.0
          %v5808 = vmax.f32 %v5776, 0.0
          %v5809 = vmax.f32 %v5777, 0.0
          %v5810 = vmax.f32 %v5778, 0.0
          %v5811 = vmax.f32 %v5779, 0.0
          %v5812 = vmax.f32 %v5780, 0.0
          %v5813 = vmax.f32 %v5781, 0.0
          %v5814 = vmax.f32 %v5782, 0.0
          %v5815 = vmax.f32 %v5783, 0.0
          %v5816 = vmax.f32 %v5784, 0.0
          %v5817 = vmax.f32 %v5785, 0.0
          %v5818 = vmax.f32 %v5786, 0.0
          %v5819 = vmax.f32 %v5787, 0.0
          %v5820 = vpack.c.bf16 %v5789, %v5788
          %v5821 = vpack.c.bf16 %v5791, %v5790
          %v5822 = vpack.c.bf16 %v5793, %v5792
          %v5823 = vpack.c.bf16 %v5795, %v5794
          %v5824 = vpack.c.bf16 %v5797, %v5796
          %v5825 = vpack.c.bf16 %v5799, %v5798
          %v5826 = vpack.c.bf16 %v5801, %v5800
          %v5827 = vpack.c.bf16 %v5803, %v5802
          %v5828 = vpack.c.bf16 %v5805, %v5804
          %v5829 = vpack.c.bf16 %v5807, %v5806
          %v5830 = vpack.c.bf16 %v5809, %v5808
          %v5831 = vpack.c.bf16 %v5811, %v5810
          %v5832 = vpack.c.bf16 %v5813, %v5812
          %v5833 = vpack.c.bf16 %v5815, %v5814
          %v5834 = vpack.c.bf16 %v5817, %v5816
          %v5835 = vpack.c.bf16 %v5819, %v5818
          %s5836 = scalar_lea.vmem [#allocation13], 128
          %v5837 = vld [vmem:[%s5836] sm:$0xf]
          %v5838 = vld [vmem:[%s5836 + $0x4] sm:$0xf]
          %v5839 = vld [vmem:[%s5836 + $0x8] sm:$0xf]
          %v5840 = vld [vmem:[%s5836 + $0xc] sm:$0xf]
          %v5841 = vld [vmem:[%s5836 + $0x10] sm:$0xf]
          %v5842 = vld [vmem:[%s5836 + $0x14] sm:$0xf]
          %v5843 = vld [vmem:[%s5836 + $0x18] sm:$0xf]
          %v5844 = vld [vmem:[%s5836 + $0x1c] sm:$0xf]
          %v5845 = vld [vmem:[%s5836 + $0x20] sm:$0xf]
          %v5846 = vld [vmem:[%s5836 + $0x24] sm:$0xf]
          %v5847 = vld [vmem:[%s5836 + $0x28] sm:$0xf]
          %v5848 = vld [vmem:[%s5836 + $0x2c] sm:$0xf]
          %v5849 = vld [vmem:[%s5836 + $0x30] sm:$0xf]
          %v5850 = vld [vmem:[%s5836 + $0x34] sm:$0xf]
          %v5851 = vld [vmem:[%s5836 + $0x38] sm:$0xf]
          %v5852 = vld [vmem:[%s5836 + $0x3c] sm:$0xf]
          %v5869 = vunpack.c.l.b16 %v5837
          %v5870 = vunpack.c.l.b16 %v5838
          %v5871 = vunpack.c.l.b16 %v5839
          %v5872 = vunpack.c.l.b16 %v5840
          %v5873 = vunpack.c.l.b16 %v5841
          %v5874 = vunpack.c.l.b16 %v5842
          %v5875 = vunpack.c.l.b16 %v5843
          %v5876 = vunpack.c.l.b16 %v5844
          %v5877 = vunpack.c.l.b16 %v5845
          %v5878 = vunpack.c.l.b16 %v5846
          %v5879 = vunpack.c.l.b16 %v5847
          %v5880 = vunpack.c.l.b16 %v5848
          %v5881 = vunpack.c.l.b16 %v5849
          %v5882 = vunpack.c.l.b16 %v5850
          %v5883 = vunpack.c.l.b16 %v5851
          %v5884 = vunpack.c.l.b16 %v5852
          %v5885 = vpack.c.b16 %v5870, %v5869
          %v5886 = vpack.c.b16 %v5872, %v5871
          %v5887 = vpack.c.b16 %v5874, %v5873
          %v5888 = vpack.c.b16 %v5876, %v5875
          %v5889 = vpack.c.b16 %v5878, %v5877
          %v5890 = vpack.c.b16 %v5880, %v5879
          %v5891 = vpack.c.b16 %v5882, %v5881
          %v5892 = vpack.c.b16 %v5884, %v5883
          %5901 = vmatprep.subr.bf16.mxu0 0
          %5902 = vmatpush1.bf16.msra.mxu0 %v5885
          %5903 = vmatprep.subr.bf16.mxu0 0
          %5904 = vmatpush1.bf16.msra.mxu0 %v5886
          %5905 = vmatprep.subr.bf16.mxu0 0
          %5906 = vmatpush1.bf16.msra.mxu0 %v5887
          %5907 = vmatprep.subr.bf16.mxu0 0
          %5908 = vmatpush1.bf16.msra.mxu0 %v5888
          %5909 = vmatprep.subr.bf16.mxu0 0
          %5910 = vmatpush1.bf16.msra.mxu0 %v5889
          %5911 = vmatprep.subr.bf16.mxu0 0
          %5912 = vmatpush1.bf16.msra.mxu0 %v5890
          %5913 = vmatprep.subr.bf16.mxu0 0
          %5914 = vmatpush1.bf16.msra.mxu0 %v5891
          %5915 = vmatprep.subr.bf16.mxu0 0
          %5916 = vmatpush1.bf16.msra.mxu0 %v5892
          %5917 = vmatprep.subr.bf16.mxu0 0
          %5918 = vmatpush1.bf16.msra.mxu0 0
          %5919 = vmatprep.subr.bf16.mxu0 0
          %5920 = vmatpush1.bf16.msra.mxu0 0
          %5921 = vmatprep.subr.bf16.mxu0 0
          %5922 = vmatpush1.bf16.msra.mxu0 0
          %5923 = vmatprep.subr.bf16.mxu0 0
          %5924 = vmatpush1.bf16.msra.mxu0 0
          %5925 = vmatprep.subr.bf16.mxu0 0
          %5926 = vmatpush1.bf16.msra.mxu0 0
          %5927 = vmatprep.subr.bf16.mxu0 0
          %5928 = vmatpush1.bf16.msra.mxu0 0
          %5929 = vmatprep.subr.bf16.mxu0 0
          %5930 = vmatpush1.bf16.msra.mxu0 0
          %5931 = vmatprep.subr.bf16.mxu0 0
          %5932 = vmatpush1.bf16.msra.mxu0 0
          %5933 = vmatprep.mubr.bf16.mxu0 0
          %5934 = vmatmul.mubr.bf16.gmra.mrb[0].mxu0 %v5820
          %v5935 = vpop.f32.mrb[0].mxu0
          %v5936 = vadd.f32 0.0, %v5935
          %v5937 = vpop.f32.mrb[0].mxu0
          %v5938 = vpop.f32.mrb[0].mxu0
          %v5939 = vadd.f32 0.0, %v5938
          %v5940 = vpop.f32.mrb[0].mxu0
          %5941 = vmatprep.mubr.bf16.mxu0 0
          %5942 = vmatmul.mubr.bf16.gmra.mrb[0].mxu0 %v5821
          %v5943 = vpop.f32.mrb[0].mxu0
          %v5944 = vadd.f32 0.0, %v5943
          %v5945 = vpop.f32.mrb[0].mxu0
          %v5946 = vpop.f32.mrb[0].mxu0
          %v5947 = vadd.f32 0.0, %v5946
          %v5948 = vpop.f32.mrb[0].mxu0
          %5949 = vmatprep.mubr.bf16.mxu0 0
          %5950 = vmatmul.mubr.bf16.gmra.mrb[0].mxu0 %v5822
          %v5951 = vpop.f32.mrb[0].mxu0
          %v5952 = vadd.f32 0.0, %v5951
          %v5953 = vpop.f32.mrb[0].mxu0
          %v5954 = vpop.f32.mrb[0].mxu0
          %v5955 = vadd.f32 0.0, %v5954
          %v5956 = vpop.f32.mrb[0].mxu0
          %5957 = vmatprep.mubr.bf16.mxu0 0
          %5958 = vmatmul.mubr.bf16.gmra.mrb[0].mxu0 %v5823
          %v5959 = vpop.f32.mrb[0].mxu0
          %v5960 = vadd.f32 0.0, %v5959
          %v5961 = vpop.f32.mrb[0].mxu0
          %v5962 = vpop.f32.mrb[0].mxu0
          %v5963 = vadd.f32 0.0, %v5962
          %v5964 = vpop.f32.mrb[0].mxu0
          %5965 = vmatprep.mubr.bf16.mxu0 0
          %5966 = vmatmul.mubr.bf16.gmra.mrb[0].mxu0 %v5824
          %v5967 = vpop.f32.mrb[0].mxu0
          %v5968 = vadd.f32 0.0, %v5967
          %v5969 = vpop.f32.mrb[0].mxu0
          %v5970 = vpop.f32.mrb[0].mxu0
          %v5971 = vadd.f32 0.0, %v5970
          %v5972 = vpop.f32.mrb[0].mxu0
          %5973 = vmatprep.mubr.bf16.mxu0 0
          %5974 = vmatmul.mubr.bf16.gmra.mrb[0].mxu0 %v5825
          %v5975 = vpop.f32.mrb[0].mxu0
          %v5976 = vadd.f32 0.0, %v5975
          %v5977 = vpop.f32.mrb[0].mxu0
          %v5978 = vpop.f32.mrb[0].mxu0
          %v5979 = vadd.f32 0.0, %v5978
          %v5980 = vpop.f32.mrb[0].mxu0
          %5981 = vmatprep.mubr.bf16.mxu0 0
          %5982 = vmatmul.mubr.bf16.gmra.mrb[0].mxu0 %v5826
          %v5983 = vpop.f32.mrb[0].mxu0
          %v5984 = vadd.f32 0.0, %v5983
          %v5985 = vpop.f32.mrb[0].mxu0
          %v5986 = vpop.f32.mrb[0].mxu0
          %v5987 = vadd.f32 0.0, %v5986
          %v5988 = vpop.f32.mrb[0].mxu0
          %5989 = vmatprep.mubr.bf16.mxu0 0
          %5990 = vmatmul.mubr.bf16.gmra.mrb[0].mxu0 %v5827
          %v5991 = vpop.f32.mrb[0].mxu0
          %v5992 = vadd.f32 0.0, %v5991
          %v5993 = vpop.f32.mrb[0].mxu0
          %v5994 = vpop.f32.mrb[0].mxu0
          %v5995 = vadd.f32 0.0, %v5994
          %v5996 = vpop.f32.mrb[0].mxu0
          %5997 = vmatprep.mubr.bf16.mxu0 0
          %5998 = vmatmul.mubr.bf16.gmra.mrb[0].mxu0 %v5828
          %v5999 = vpop.f32.mrb[0].mxu0
          %v6000 = vadd.f32 0.0, %v5999
          %v6001 = vpop.f32.mrb[0].mxu0
          %v6002 = vpop.f32.mrb[0].mxu0
          %v6003 = vadd.f32 0.0, %v6002
          %v6004 = vpop.f32.mrb[0].mxu0
          %6005 = vmatprep.mubr.bf16.mxu0 0
          %6006 = vmatmul.mubr.bf16.gmra.mrb[0].mxu0 %v5829
          %v6007 = vpop.f32.mrb[0].mxu0
          %v6008 = vadd.f32 0.0, %v6007
          %v6009 = vpop.f32.mrb[0].mxu0
          %v6010 = vpop.f32.mrb[0].mxu0
          %v6011 = vadd.f32 0.0, %v6010
          %v6012 = vpop.f32.mrb[0].mxu0
          %6013 = vmatprep.mubr.bf16.mxu0 0
          %6014 = vmatmul.mubr.bf16.gmra.mrb[0].mxu0 %v5830
          %v6015 = vpop.f32.mrb[0].mxu0
          %v6016 = vadd.f32 0.0, %v6015
          %v6017 = vpop.f32.mrb[0].mxu0
          %v6018 = vpop.f32.mrb[0].mxu0
          %v6019 = vadd.f32 0.0, %v6018
          %v6020 = vpop.f32.mrb[0].mxu0
          %6021 = vmatprep.mubr.bf16.mxu0 0
          %6022 = vmatmul.mubr.bf16.gmra.mrb[0].mxu0 %v5831
          %v6023 = vpop.f32.mrb[0].mxu0
          %v6024 = vadd.f32 0.0, %v6023
          %v6025 = vpop.f32.mrb[0].mxu0
          %v6026 = vpop.f32.mrb[0].mxu0
          %v6027 = vadd.f32 0.0, %v6026
          %v6028 = vpop.f32.mrb[0].mxu0
          %6029 = vmatprep.mubr.bf16.mxu0 0
          %6030 = vmatmul.mubr.bf16.gmra.mrb[0].mxu0 %v5832
          %v6031 = vpop.f32.mrb[0].mxu0
          %v6032 = vadd.f32 0.0, %v6031
          %v6033 = vpop.f32.mrb[0].mxu0
          %v6034 = vpop.f32.mrb[0].mxu0
          %v6035 = vadd.f32 0.0, %v6034
          %v6036 = vpop.f32.mrb[0].mxu0
          %6037 = vmatprep.mubr.bf16.mxu0 0
          %6038 = vmatmul.mubr.bf16.gmra.mrb[0].mxu0 %v5833
          %v6039 = vpop.f32.mrb[0].mxu0
          %v6040 = vadd.f32 0.0, %v6039
          %v6041 = vpop.f32.mrb[0].mxu0
          %v6042 = vpop.f32.mrb[0].mxu0
          %v6043 = vadd.f32 0.0, %v6042
          %v6044 = vpop.f32.mrb[0].mxu0
          %6045 = vmatprep.mubr.bf16.mxu0 0
          %6046 = vmatmul.mubr.bf16.gmra.mrb[0].mxu0 %v5834
          %v6047 = vpop.f32.mrb[0].mxu0
          %v6048 = vadd.f32 0.0, %v6047
          %v6049 = vpop.f32.mrb[0].mxu0
          %v6050 = vpop.f32.mrb[0].mxu0
          %v6051 = vadd.f32 0.0, %v6050
          %v6052 = vpop.f32.mrb[0].mxu0
          %6053 = vmatprep.mubr.bf16.mxu0 0
          %6054 = vmatmul.mubr.bf16.gmra.mrb[0].mxu0 %v5835
          %v6055 = vpop.f32.mrb[0].mxu0
          %v6056 = vadd.f32 0.0, %v6055
          %v6057 = vpop.f32.mrb[0].mxu0
          %v6058 = vpop.f32.mrb[0].mxu0
          %v6059 = vadd.f32 0.0, %v6058
          %v6060 = vpop.f32.mrb[0].mxu0
          %6061 = vdwg.mxu0
          %v6062 = vadd.f32 %v5590, %v5936
          %v6063 = vadd.f32 %v5593, %v5939
          %v6064 = vadd.f32 %v5598, %v5944
          %v6065 = vadd.f32 %v5601, %v5947
          %v6066 = vadd.f32 %v5606, %v5952
          %v6067 = vadd.f32 %v5609, %v5955
          %v6068 = vadd.f32 %v5614, %v5960
          %v6069 = vadd.f32 %v5617, %v5963
          %v6070 = vadd.f32 %v5622, %v5968
          %v6071 = vadd.f32 %v5625, %v5971
          %v6072 = vadd.f32 %v5630, %v5976
          %v6073 = vadd.f32 %v5633, %v5979
          %v6074 = vadd.f32 %v5638, %v5984
          %v6075 = vadd.f32 %v5641, %v5987
          %v6076 = vadd.f32 %v5646, %v5992
          %v6077 = vadd.f32 %v5649, %v5995
          %v6078 = vadd.f32 %v5654, %v6000
          %v6079 = vadd.f32 %v5657, %v6003
          %v6080 = vadd.f32 %v5662, %v6008
          %v6081 = vadd.f32 %v5665, %v6011
          %v6082 = vadd.f32 %v5670, %v6016
          %v6083 = vadd.f32 %v5673, %v6019
          %v6084 = vadd.f32 %v5678, %v6024
          %v6085 = vadd.f32 %v5681, %v6027
          %v6086 = vadd.f32 %v5686, %v6032
          %v6087 = vadd.f32 %v5689, %v6035
          %v6088 = vadd.f32 %v5694, %v6040
          %v6089 = vadd.f32 %v5697, %v6043
          %v6090 = vadd.f32 %v5702, %v6048
          %v6091 = vadd.f32 %v5705, %v6051
          %v6092 = vadd.f32 %v5710, %v6056
          %v6093 = vadd.f32 %v5713, %v6059
          %v6094 = vld [vmem:[#allocation6] sm:$0xff]
          %v6095 = vld [vmem:[#allocation6 + $0x8] sm:$0xff]
          %v6096 = vld [vmem:[#allocation6 + $0x10] sm:$0xff]
          %v6097 = vld [vmem:[#allocation6 + $0x18] sm:$0xff]
          %v6098 = vld [vmem:[#allocation6 + $0x20] sm:$0xff]
          %v6099 = vld [vmem:[#allocation6 + $0x28] sm:$0xff]
          %v6100 = vld [vmem:[#allocation6 + $0x30] sm:$0xff]
          %v6101 = vld [vmem:[#allocation6 + $0x38] sm:$0xff]
          %v6102 = vld [vmem:[#allocation6 + $0x40] sm:$0xff]
          %v6103 = vld [vmem:[#allocation6 + $0x48] sm:$0xff]
          %v6104 = vld [vmem:[#allocation6 + $0x50] sm:$0xff]
          %v6105 = vld [vmem:[#allocation6 + $0x58] sm:$0xff]
          %v6106 = vld [vmem:[#allocation6 + $0x60] sm:$0xff]
          %v6107 = vld [vmem:[#allocation6 + $0x68] sm:$0xff]
          %v6108 = vld [vmem:[#allocation6 + $0x70] sm:$0xff]
          %v6109 = vld [vmem:[#allocation6 + $0x78] sm:$0xff]
          %v6110 = vld [vmem:[#allocation6 + $0x80] sm:$0xff]
          %v6111 = vld [vmem:[#allocation6 + $0x88] sm:$0xff]
          %v6112 = vld [vmem:[#allocation6 + $0x90] sm:$0xff]
          %v6113 = vld [vmem:[#allocation6 + $0x98] sm:$0xff]
          %v6114 = vld [vmem:[#allocation6 + $0xa0] sm:$0xff]
          %v6115 = vld [vmem:[#allocation6 + $0xa8] sm:$0xff]
          %v6116 = vld [vmem:[#allocation6 + $0xb0] sm:$0xff]
          %v6117 = vld [vmem:[#allocation6 + $0xb8] sm:$0xff]
          %v6118 = vld [vmem:[#allocation6 + $0xc0] sm:$0xff]
          %v6119 = vld [vmem:[#allocation6 + $0xc8] sm:$0xff]
          %v6120 = vld [vmem:[#allocation6 + $0xd0] sm:$0xff]
          %v6121 = vld [vmem:[#allocation6 + $0xd8] sm:$0xff]
          %v6122 = vld [vmem:[#allocation6 + $0xe0] sm:$0xff]
          %v6123 = vld [vmem:[#allocation6 + $0xe8] sm:$0xff]
          %v6124 = vld [vmem:[#allocation6 + $0xf0] sm:$0xff]
          %v6125 = vld [vmem:[#allocation6 + $0xf8] sm:$0xff]
          %s6126 = scalar_lea.vmem [#allocation15], 3
          %v6127 = vld [vmem:[%s6126] sm:$0x1]
          %v6129 = vlaneseq
          %v6130 = vshrl.u32 %v6129, 7
          %v6131 = vsub.s32 0, %v6130
          %v6132 = vrot.slane %v6127, %v6131
          %v6134 = vadd.f32 %v6094, %v6132
          %v6135 = vadd.f32 %v6095, %v6132
          %v6136 = vadd.f32 %v6096, %v6132
          %v6137 = vadd.f32 %v6097, %v6132
          %v6138 = vadd.f32 %v6098, %v6132
          %v6139 = vadd.f32 %v6099, %v6132
          %v6140 = vadd.f32 %v6100, %v6132
          %v6141 = vadd.f32 %v6101, %v6132
          %v6142 = vadd.f32 %v6102, %v6132
          %v6143 = vadd.f32 %v6103, %v6132
          %v6144 = vadd.f32 %v6104, %v6132
          %v6145 = vadd.f32 %v6105, %v6132
          %v6146 = vadd.f32 %v6106, %v6132
          %v6147 = vadd.f32 %v6107, %v6132
          %v6148 = vadd.f32 %v6108, %v6132
          %v6149 = vadd.f32 %v6109, %v6132
          %v6150 = vadd.f32 %v6110, %v6132
          %v6151 = vadd.f32 %v6111, %v6132
          %v6152 = vadd.f32 %v6112, %v6132
          %v6153 = vadd.f32 %v6113, %v6132
          %v6154 = vadd.f32 %v6114, %v6132
          %v6155 = vadd.f32 %v6115, %v6132
          %v6156 = vadd.f32 %v6116, %v6132
          %v6157 = vadd.f32 %v6117, %v6132
          %v6158 = vadd.f32 %v6118, %v6132
          %v6159 = vadd.f32 %v6119, %v6132
          %v6160 = vadd.f32 %v6120, %v6132
          %v6161 = vadd.f32 %v6121, %v6132
          %v6162 = vadd.f32 %v6122, %v6132
          %v6163 = vadd.f32 %v6123, %v6132
          %v6164 = vadd.f32 %v6124, %v6132
          %v6165 = vadd.f32 %v6125, %v6132
          %v6166 = vmax.f32 %v6134, 0.0
          %v6167 = vmax.f32 %v6135, 0.0
          %v6168 = vmax.f32 %v6136, 0.0
          %v6169 = vmax.f32 %v6137, 0.0
          %v6170 = vmax.f32 %v6138, 0.0
          %v6171 = vmax.f32 %v6139, 0.0
          %v6172 = vmax.f32 %v6140, 0.0
          %v6173 = vmax.f32 %v6141, 0.0
          %v6174 = vmax.f32 %v6142, 0.0
          %v6175 = vmax.f32 %v6143, 0.0
          %v6176 = vmax.f32 %v6144, 0.0
          %v6177 = vmax.f32 %v6145, 0.0
          %v6178 = vmax.f32 %v6146, 0.0
          %v6179 = vmax.f32 %v6147, 0.0
          %v6180 = vmax.f32 %v6148, 0.0
          %v6181 = vmax.f32 %v6149, 0.0
          %v6182 = vmax.f32 %v6150, 0.0
          %v6183 = vmax.f32 %v6151, 0.0
          %v6184 = vmax.f32 %v6152, 0.0
          %v6185 = vmax.f32 %v6153, 0.0
          %v6186 = vmax.f32 %v6154, 0.0
          %v6187 = vmax.f32 %v6155, 0.0
          %v6188 = vmax.f32 %v6156, 0.0
          %v6189 = vmax.f32 %v6157, 0.0
          %v6190 = vmax.f32 %v6158, 0.0
          %v6191 = vmax.f32 %v6159, 0.0
          %v6192 = vmax.f32 %v6160, 0.0
          %v6193 = vmax.f32 %v6161, 0.0
          %v6194 = vmax.f32 %v6162, 0.0
          %v6195 = vmax.f32 %v6163, 0.0
          %v6196 = vmax.f32 %v6164, 0.0
          %v6197 = vmax.f32 %v6165, 0.0
          %v6198 = vpack.c.bf16 %v6167, %v6166
          %v6199 = vpack.c.bf16 %v6169, %v6168
          %v6200 = vpack.c.bf16 %v6171, %v6170
          %v6201 = vpack.c.bf16 %v6173, %v6172
          %v6202 = vpack.c.bf16 %v6175, %v6174
          %v6203 = vpack.c.bf16 %v6177, %v6176
          %v6204 = vpack.c.bf16 %v6179, %v6178
          %v6205 = vpack.c.bf16 %v6181, %v6180
          %v6206 = vpack.c.bf16 %v6183, %v6182
          %v6207 = vpack.c.bf16 %v6185, %v6184
          %v6208 = vpack.c.bf16 %v6187, %v6186
          %v6209 = vpack.c.bf16 %v6189, %v6188
          %v6210 = vpack.c.bf16 %v6191, %v6190
          %v6211 = vpack.c.bf16 %v6193, %v6192
          %v6212 = vpack.c.bf16 %v6195, %v6194
          %v6213 = vpack.c.bf16 %v6197, %v6196
          %s6214 = scalar_lea.vmem [#allocation13], 192
          %v6215 = vld [vmem:[%s6214] sm:$0xf]
          %v6216 = vld [vmem:[%s6214 + $0x4] sm:$0xf]
          %v6217 = vld [vmem:[%s6214 + $0x8] sm:$0xf]
          %v6218 = vld [vmem:[%s6214 + $0xc] sm:$0xf]
          %v6219 = vld [vmem:[%s6214 + $0x10] sm:$0xf]
          %v6220 = vld [vmem:[%s6214 + $0x14] sm:$0xf]
          %v6221 = vld [vmem:[%s6214 + $0x18] sm:$0xf]
          %v6222 = vld [vmem:[%s6214 + $0x1c] sm:$0xf]
          %v6223 = vld [vmem:[%s6214 + $0x20] sm:$0xf]
          %v6224 = vld [vmem:[%s6214 + $0x24] sm:$0xf]
          %v6225 = vld [vmem:[%s6214 + $0x28] sm:$0xf]
          %v6226 = vld [vmem:[%s6214 + $0x2c] sm:$0xf]
          %v6227 = vld [vmem:[%s6214 + $0x30] sm:$0xf]
          %v6228 = vld [vmem:[%s6214 + $0x34] sm:$0xf]
          %v6229 = vld [vmem:[%s6214 + $0x38] sm:$0xf]
          %v6230 = vld [vmem:[%s6214 + $0x3c] sm:$0xf]
          %v6247 = vunpack.c.l.b16 %v6215
          %v6248 = vunpack.c.l.b16 %v6216
          %v6249 = vunpack.c.l.b16 %v6217
          %v6250 = vunpack.c.l.b16 %v6218
          %v6251 = vunpack.c.l.b16 %v6219
          %v6252 = vunpack.c.l.b16 %v6220
          %v6253 = vunpack.c.l.b16 %v6221
          %v6254 = vunpack.c.l.b16 %v6222
          %v6255 = vunpack.c.l.b16 %v6223
          %v6256 = vunpack.c.l.b16 %v6224
          %v6257 = vunpack.c.l.b16 %v6225
          %v6258 = vunpack.c.l.b16 %v6226
          %v6259 = vunpack.c.l.b16 %v6227
          %v6260 = vunpack.c.l.b16 %v6228
          %v6261 = vunpack.c.l.b16 %v6229
          %v6262 = vunpack.c.l.b16 %v6230
          %v6263 = vpack.c.b16 %v6248, %v6247
          %v6264 = vpack.c.b16 %v6250, %v6249
          %v6265 = vpack.c.b16 %v6252, %v6251
          %v6266 = vpack.c.b16 %v6254, %v6253
          %v6267 = vpack.c.b16 %v6256, %v6255
          %v6268 = vpack.c.b16 %v6258, %v6257
          %v6269 = vpack.c.b16 %v6260, %v6259
          %v6270 = vpack.c.b16 %v6262, %v6261
          %6279 = vmatprep.subr.bf16.mxu0 0
          %6280 = vmatpush1.bf16.msra.mxu0 %v6263
          %6281 = vmatprep.subr.bf16.mxu0 0
          %6282 = vmatpush1.bf16.msra.mxu0 %v6264
          %6283 = vmatprep.subr.bf16.mxu0 0
          %6284 = vmatpush1.bf16.msra.mxu0 %v6265
          %6285 = vmatprep.subr.bf16.mxu0 0
          %6286 = vmatpush1.bf16.msra.mxu0 %v6266
          %6287 = vmatprep.subr.bf16.mxu0 0
          %6288 = vmatpush1.bf16.msra.mxu0 %v6267
          %6289 = vmatprep.subr.bf16.mxu0 0
          %6290 = vmatpush1.bf16.msra.mxu0 %v6268
          %6291 = vmatprep.subr.bf16.mxu0 0
          %6292 = vmatpush1.bf16.msra.mxu0 %v6269
          %6293 = vmatprep.subr.bf16.mxu0 0
          %6294 = vmatpush1.bf16.msra.mxu0 %v6270
          %6295 = vmatprep.subr.bf16.mxu0 0
          %6296 = vmatpush1.bf16.msra.mxu0 0
          %6297 = vmatprep.subr.bf16.mxu0 0
          %6298 = vmatpush1.bf16.msra.mxu0 0
          %6299 = vmatprep.subr.bf16.mxu0 0
          %6300 = vmatpush1.bf16.msra.mxu0 0
          %6301 = vmatprep.subr.bf16.mxu0 0
          %6302 = vmatpush1.bf16.msra.mxu0 0
          %6303 = vmatprep.subr.bf16.mxu0 0
          %6304 = vmatpush1.bf16.msra.mxu0 0
          %6305 = vmatprep.subr.bf16.mxu0 0
          %6306 = vmatpush1.bf16.msra.mxu0 0
          %6307 = vmatprep.subr.bf16.mxu0 0
          %6308 = vmatpush1.bf16.msra.mxu0 0
          %6309 = vmatprep.subr.bf16.mxu0 0
          %6310 = vmatpush1.bf16.msra.mxu0 0
          %6311 = vmatprep.mubr.bf16.mxu0 0
          %6312 = vmatmul.mubr.bf16.gmra.mrb[0].mxu0 %v6198
          %v6313 = vpop.f32.mrb[0].mxu0
          %v6314 = vadd.f32 0.0, %v6313
          %v6315 = vpop.f32.mrb[0].mxu0
          %v6316 = vpop.f32.mrb[0].mxu0
          %v6317 = vadd.f32 0.0, %v6316
          %v6318 = vpop.f32.mrb[0].mxu0
          %6319 = vmatprep.mubr.bf16.mxu0 0
          %6320 = vmatmul.mubr.bf16.gmra.mrb[0].mxu0 %v6199
          %v6321 = vpop.f32.mrb[0].mxu0
          %v6322 = vadd.f32 0.0, %v6321
          %v6323 = vpop.f32.mrb[0].mxu0
          %v6324 = vpop.f32.mrb[0].mxu0
          %v6325 = vadd.f32 0.0, %v6324
          %v6326 = vpop.f32.mrb[0].mxu0
          %6327 = vmatprep.mubr.bf16.mxu0 0
          %6328 = vmatmul.mubr.bf16.gmra.mrb[0].mxu0 %v6200
          %v6329 = vpop.f32.mrb[0].mxu0
          %v6330 = vadd.f32 0.0, %v6329
          %v6331 = vpop.f32.mrb[0].mxu0
          %v6332 = vpop.f32.mrb[0].mxu0
          %v6333 = vadd.f32 0.0, %v6332
          %v6334 = vpop.f32.mrb[0].mxu0
          %6335 = vmatprep.mubr.bf16.mxu0 0
          %6336 = vmatmul.mubr.bf16.gmra.mrb[0].mxu0 %v6201
          %v6337 = vpop.f32.mrb[0].mxu0
          %v6338 = vadd.f32 0.0, %v6337
          %v6339 = vpop.f32.mrb[0].mxu0
          %v6340 = vpop.f32.mrb[0].mxu0
          %v6341 = vadd.f32 0.0, %v6340
          %v6342 = vpop.f32.mrb[0].mxu0
          %6343 = vmatprep.mubr.bf16.mxu0 0
          %6344 = vmatmul.mubr.bf16.gmra.mrb[0].mxu0 %v6202
          %v6345 = vpop.f32.mrb[0].mxu0
          %v6346 = vadd.f32 0.0, %v6345
          %v6347 = vpop.f32.mrb[0].mxu0
          %v6348 = vpop.f32.mrb[0].mxu0
          %v6349 = vadd.f32 0.0, %v6348
          %v6350 = vpop.f32.mrb[0].mxu0
          %6351 = vmatprep.mubr.bf16.mxu0 0
          %6352 = vmatmul.mubr.bf16.gmra.mrb[0].mxu0 %v6203
          %v6353 = vpop.f32.mrb[0].mxu0
          %v6354 = vadd.f32 0.0, %v6353
          %v6355 = vpop.f32.mrb[0].mxu0
          %v6356 = vpop.f32.mrb[0].mxu0
          %v6357 = vadd.f32 0.0, %v6356
          %v6358 = vpop.f32.mrb[0].mxu0
          %6359 = vmatprep.mubr.bf16.mxu0 0
          %6360 = vmatmul.mubr.bf16.gmra.mrb[0].mxu0 %v6204
          %v6361 = vpop.f32.mrb[0].mxu0
          %v6362 = vadd.f32 0.0, %v6361
          %v6363 = vpop.f32.mrb[0].mxu0
          %v6364 = vpop.f32.mrb[0].mxu0
          %v6365 = vadd.f32 0.0, %v6364
          %v6366 = vpop.f32.mrb[0].mxu0
          %6367 = vmatprep.mubr.bf16.mxu0 0
          %6368 = vmatmul.mubr.bf16.gmra.mrb[0].mxu0 %v6205
          %v6369 = vpop.f32.mrb[0].mxu0
          %v6370 = vadd.f32 0.0, %v6369
          %v6371 = vpop.f32.mrb[0].mxu0
          %v6372 = vpop.f32.mrb[0].mxu0
          %v6373 = vadd.f32 0.0, %v6372
          %v6374 = vpop.f32.mrb[0].mxu0
          %6375 = vmatprep.mubr.bf16.mxu0 0
          %6376 = vmatmul.mubr.bf16.gmra.mrb[0].mxu0 %v6206
          %v6377 = vpop.f32.mrb[0].mxu0
          %v6378 = vadd.f32 0.0, %v6377
          %v6379 = vpop.f32.mrb[0].mxu0
          %v6380 = vpop.f32.mrb[0].mxu0
          %v6381 = vadd.f32 0.0, %v6380
          %v6382 = vpop.f32.mrb[0].mxu0
          %6383 = vmatprep.mubr.bf16.mxu0 0
          %6384 = vmatmul.mubr.bf16.gmra.mrb[0].mxu0 %v6207
          %v6385 = vpop.f32.mrb[0].mxu0
          %v6386 = vadd.f32 0.0, %v6385
          %v6387 = vpop.f32.mrb[0].mxu0
          %v6388 = vpop.f32.mrb[0].mxu0
          %v6389 = vadd.f32 0.0, %v6388
          %v6390 = vpop.f32.mrb[0].mxu0
          %6391 = vmatprep.mubr.bf16.mxu0 0
          %6392 = vmatmul.mubr.bf16.gmra.mrb[0].mxu0 %v6208
          %v6393 = vpop.f32.mrb[0].mxu0
          %v6394 = vadd.f32 0.0, %v6393
          %v6395 = vpop.f32.mrb[0].mxu0
          %v6396 = vpop.f32.mrb[0].mxu0
          %v6397 = vadd.f32 0.0, %v6396
          %v6398 = vpop.f32.mrb[0].mxu0
          %6399 = vmatprep.mubr.bf16.mxu0 0
          %6400 = vmatmul.mubr.bf16.gmra.mrb[0].mxu0 %v6209
          %v6401 = vpop.f32.mrb[0].mxu0
          %v6402 = vadd.f32 0.0, %v6401
          %v6403 = vpop.f32.mrb[0].mxu0
          %v6404 = vpop.f32.mrb[0].mxu0
          %v6405 = vadd.f32 0.0, %v6404
          %v6406 = vpop.f32.mrb[0].mxu0
          %6407 = vmatprep.mubr.bf16.mxu0 0
          %6408 = vmatmul.mubr.bf16.gmra.mrb[0].mxu0 %v6210
          %v6409 = vpop.f32.mrb[0].mxu0
          %v6410 = vadd.f32 0.0, %v6409
          %v6411 = vpop.f32.mrb[0].mxu0
          %v6412 = vpop.f32.mrb[0].mxu0
          %v6413 = vadd.f32 0.0, %v6412
          %v6414 = vpop.f32.mrb[0].mxu0
          %6415 = vmatprep.mubr.bf16.mxu0 0
          %6416 = vmatmul.mubr.bf16.gmra.mrb[0].mxu0 %v6211
          %v6417 = vpop.f32.mrb[0].mxu0
          %v6418 = vadd.f32 0.0, %v6417
          %v6419 = vpop.f32.mrb[0].mxu0
          %v6420 = vpop.f32.mrb[0].mxu0
          %v6421 = vadd.f32 0.0, %v6420
          %v6422 = vpop.f32.mrb[0].mxu0
          %6423 = vmatprep.mubr.bf16.mxu0 0
          %6424 = vmatmul.mubr.bf16.gmra.mrb[0].mxu0 %v6212
          %v6425 = vpop.f32.mrb[0].mxu0
          %v6426 = vadd.f32 0.0, %v6425
          %v6427 = vpop.f32.mrb[0].mxu0
          %v6428 = vpop.f32.mrb[0].mxu0
          %v6429 = vadd.f32 0.0, %v6428
          %v6430 = vpop.f32.mrb[0].mxu0
          %6431 = vmatprep.mubr.bf16.mxu0 0
          %6432 = vmatmul.mubr.bf16.gmra.mrb[0].mxu0 %v6213
          %v6433 = vpop.f32.mrb[0].mxu0
          %v6434 = vadd.f32 0.0, %v6433
          %v6435 = vpop.f32.mrb[0].mxu0
          %v6436 = vpop.f32.mrb[0].mxu0
          %v6437 = vadd.f32 0.0, %v6436
          %v6438 = vpop.f32.mrb[0].mxu0
          %6439 = vdwg.mxu0
          %v6440 = vadd.f32 %v6062, %v6314
          %v6441 = vadd.f32 %v6063, %v6317
          %v6442 = vadd.f32 %v6064, %v6322
          %v6443 = vadd.f32 %v6065, %v6325
          %v6444 = vadd.f32 %v6066, %v6330
          %v6445 = vadd.f32 %v6067, %v6333
          %v6446 = vadd.f32 %v6068, %v6338
          %v6447 = vadd.f32 %v6069, %v6341
          %v6448 = vadd.f32 %v6070, %v6346
          %v6449 = vadd.f32 %v6071, %v6349
          %v6450 = vadd.f32 %v6072, %v6354
          %v6451 = vadd.f32 %v6073, %v6357
          %v6452 = vadd.f32 %v6074, %v6362
          %v6453 = vadd.f32 %v6075, %v6365
          %v6454 = vadd.f32 %v6076, %v6370
          %v6455 = vadd.f32 %v6077, %v6373
          %v6456 = vadd.f32 %v6078, %v6378
          %v6457 = vadd.f32 %v6079, %v6381
          %v6458 = vadd.f32 %v6080, %v6386
          %v6459 = vadd.f32 %v6081, %v6389
          %v6460 = vadd.f32 %v6082, %v6394
          %v6461 = vadd.f32 %v6083, %v6397
          %v6462 = vadd.f32 %v6084, %v6402
          %v6463 = vadd.f32 %v6085, %v6405
          %v6464 = vadd.f32 %v6086, %v6410
          %v6465 = vadd.f32 %v6087, %v6413
          %v6466 = vadd.f32 %v6088, %v6418
          %v6467 = vadd.f32 %v6089, %v6421
          %v6468 = vadd.f32 %v6090, %v6426
          %v6469 = vadd.f32 %v6091, %v6429
          %v6470 = vadd.f32 %v6092, %v6434
          %v6471 = vadd.f32 %v6093, %v6437
          %v6472 = vpack.c.bf16 %v6441, %v6440
          %v6473 = vpack.c.bf16 %v6443, %v6442
          %v6474 = vpack.c.bf16 %v6445, %v6444
          %v6475 = vpack.c.bf16 %v6447, %v6446
          %v6476 = vpack.c.bf16 %v6449, %v6448
          %v6477 = vpack.c.bf16 %v6451, %v6450
          %v6478 = vpack.c.bf16 %v6453, %v6452
          %v6479 = vpack.c.bf16 %v6455, %v6454
          %v6480 = vpack.c.bf16 %v6457, %v6456
          %v6481 = vpack.c.bf16 %v6459, %v6458
          %v6482 = vpack.c.bf16 %v6461, %v6460
          %v6483 = vpack.c.bf16 %v6463, %v6462
          %v6484 = vpack.c.bf16 %v6465, %v6464
          %v6485 = vpack.c.bf16 %v6467, %v6466
          %v6486 = vpack.c.bf16 %v6469, %v6468
          %v6487 = vpack.c.bf16 %v6471, %v6470
          %v6504 = vunpack.c.l.b16 %v6472
          %v6505 = vunpack.c.h.b16 %v6472
          %v6506 = vunpack.c.l.b16 %v6473
          %v6507 = vunpack.c.h.b16 %v6473
          %v6508 = vunpack.c.l.b16 %v6474
          %v6509 = vunpack.c.h.b16 %v6474
          %v6510 = vunpack.c.l.b16 %v6475
          %v6511 = vunpack.c.h.b16 %v6475
          %v6512 = vunpack.c.l.b16 %v6476
          %v6513 = vunpack.c.h.b16 %v6476
          %v6514 = vunpack.c.l.b16 %v6477
          %v6515 = vunpack.c.h.b16 %v6477
          %v6516 = vunpack.c.l.b16 %v6478
          %v6517 = vunpack.c.h.b16 %v6478
          %v6518 = vunpack.c.l.b16 %v6479
          %v6519 = vunpack.c.h.b16 %v6479
          %v6520 = vunpack.c.l.b16 %v6480
          %v6521 = vunpack.c.h.b16 %v6480
          %v6522 = vunpack.c.l.b16 %v6481
          %v6523 = vunpack.c.h.b16 %v6481
          %v6524 = vunpack.c.l.b16 %v6482
          %v6525 = vunpack.c.h.b16 %v6482
          %v6526 = vunpack.c.l.b16 %v6483
          %v6527 = vunpack.c.h.b16 %v6483
          %v6528 = vunpack.c.l.b16 %v6484
          %v6529 = vunpack.c.h.b16 %v6484
          %v6530 = vunpack.c.l.b16 %v6485
          %v6531 = vunpack.c.h.b16 %v6485
          %v6532 = vunpack.c.l.b16 %v6486
          %v6533 = vunpack.c.h.b16 %v6486
          %v6534 = vunpack.c.l.b16 %v6487
          %v6535 = vunpack.c.h.b16 %v6487
          %v6536 = vpack.c.b16 %v6504, %v6504
          %v6537 = vpack.c.b16 %v6505, %v6505
          %v6538 = vpack.c.b16 %v6506, %v6506
          %v6539 = vpack.c.b16 %v6507, %v6507
          %v6540 = vpack.c.b16 %v6508, %v6508
          %v6541 = vpack.c.b16 %v6509, %v6509
          %v6542 = vpack.c.b16 %v6510, %v6510
          %v6543 = vpack.c.b16 %v6511, %v6511
          %v6544 = vpack.c.b16 %v6512, %v6512
          %v6545 = vpack.c.b16 %v6513, %v6513
          %v6546 = vpack.c.b16 %v6514, %v6514
          %v6547 = vpack.c.b16 %v6515, %v6515
          %v6548 = vpack.c.b16 %v6516, %v6516
          %v6549 = vpack.c.b16 %v6517, %v6517
          %v6550 = vpack.c.b16 %v6518, %v6518
          %v6551 = vpack.c.b16 %v6519, %v6519
          %v6552 = vpack.c.b16 %v6520, %v6520
          %v6553 = vpack.c.b16 %v6521, %v6521
          %v6554 = vpack.c.b16 %v6522, %v6522
          %v6555 = vpack.c.b16 %v6523, %v6523
          %v6556 = vpack.c.b16 %v6524, %v6524
          %v6557 = vpack.c.b16 %v6525, %v6525
          %v6558 = vpack.c.b16 %v6526, %v6526
          %v6559 = vpack.c.b16 %v6527, %v6527
          %v6560 = vpack.c.b16 %v6528, %v6528
          %v6561 = vpack.c.b16 %v6529, %v6529
          %v6562 = vpack.c.b16 %v6530, %v6530
          %v6563 = vpack.c.b16 %v6531, %v6531
          %v6564 = vpack.c.b16 %v6532, %v6532
          %v6565 = vpack.c.b16 %v6533, %v6533
          %v6566 = vpack.c.b16 %v6534, %v6534
          %v6567 = vpack.c.b16 %v6535, %v6535
          %6600 = vst [vmem:[%s362] sm:$0xf] %v6536
          %6601 = vst [vmem:[%s362 + $0x4] sm:$0xf] %v6537
          %6602 = vst [vmem:[%s362 + $0x8] sm:$0xf] %v6538
          %6603 = vst [vmem:[%s362 + $0xc] sm:$0xf] %v6539
          %6604 = vst [vmem:[%s362 + $0x10] sm:$0xf] %v6540
          %6605 = vst [vmem:[%s362 + $0x14] sm:$0xf] %v6541
          %6606 = vst [vmem:[%s362 + $0x18] sm:$0xf] %v6542
          %6607 = vst [vmem:[%s362 + $0x1c] sm:$0xf] %v6543
          %6608 = vst [vmem:[%s362 + $0x20] sm:$0xf] %v6544
          %6609 = vst [vmem:[%s362 + $0x24] sm:$0xf] %v6545
          %6610 = vst [vmem:[%s362 + $0x28] sm:$0xf] %v6546
          %6611 = vst [vmem:[%s362 + $0x2c] sm:$0xf] %v6547
          %6612 = vst [vmem:[%s362 + $0x30] sm:$0xf] %v6548
          %6613 = vst [vmem:[%s362 + $0x34] sm:$0xf] %v6549
          %6614 = vst [vmem:[%s362 + $0x38] sm:$0xf] %v6550
          %6615 = vst [vmem:[%s362 + $0x3c] sm:$0xf] %v6551
          %6616 = vst [vmem:[%s362 + $0x40] sm:$0xf] %v6552
          %6617 = vst [vmem:[%s362 + $0x44] sm:$0xf] %v6553
          %6618 = vst [vmem:[%s362 + $0x48] sm:$0xf] %v6554
          %6619 = vst [vmem:[%s362 + $0x4c] sm:$0xf] %v6555
          %6620 = vst [vmem:[%s362 + $0x50] sm:$0xf] %v6556
          %6621 = vst [vmem:[%s362 + $0x54] sm:$0xf] %v6557
          %6622 = vst [vmem:[%s362 + $0x58] sm:$0xf] %v6558
          %6623 = vst [vmem:[%s362 + $0x5c] sm:$0xf] %v6559
          %6624 = vst [vmem:[%s362 + $0x60] sm:$0xf] %v6560
          %6625 = vst [vmem:[%s362 + $0x64] sm:$0xf] %v6561
          %6626 = vst [vmem:[%s362 + $0x68] sm:$0xf] %v6562
          %6627 = vst [vmem:[%s362 + $0x6c] sm:$0xf] %v6563
          %6628 = vst [vmem:[%s362 + $0x70] sm:$0xf] %v6564
          %6629 = vst [vmem:[%s362 + $0x74] sm:$0xf] %v6565
          %6630 = vst [vmem:[%s362 + $0x78] sm:$0xf] %v6566
          %6631 = vst [vmem:[%s362 + $0x7c] sm:$0xf] %v6567
        $region68: #{aspp_forward.2} parent=39 // pred_fallthru
          _
        %s6632 = sand.u32 %s171, 1
        %s6633 = scalar_lea.sflag [#allocation9], %s6632
        %s6634 = sand.u32 %s171, 1
        %s6635 = smul.addr %s6634, 128
        %s6636 = scalar_lea.vmem [#allocation16], %s6635
        %s6637 = sand.u32 %s199, 1
        %s6638 = scalar_lea.sflag [#allocation18], %s6637
        %s6639 = sand.u32 %s199, 1
        %s6640 = scalar_lea.vmem [#allocation17], %s6639
        // Predicated region
        $region69: #{aspp_forward.2} parent=39 // pred_check
          %p6641 = pneg %p181
        $region70: #{aspp_forward.2} parent=39 // pred_check_branch
          %6643 = sbr.rel (%p6641) target = $region72
        $region71: #{aspp_forward.2} parent=39 // pred_region
          %s6645 = ssub.s32 2048, 2048
          %6646 = vsyncadd %s6633, %s6645
          %s6647 = smul.addr %s33, 32
          %s6648 = smul.addr %s6647, 64
          %s6649 = scalar_lea.hbm %s5, %s6648
          %s6650 = sshll.u32 %s6636, 4
          %s6651 = int_to_ptr.vmem [resolvable:$true] %s6650
          %6656 = dma.vmem_to_hbm [thread:$0]  %s6651, 2048, %s6649, %s6633, 64, 64, 4
        $region72: #{aspp_forward.2} parent=39 // pred_fallthru
          _
        // Predicated region
        $region73: #{aspp_forward.2} parent=39 // pred_check
          %p6657 = pneg %p209
        $region74: #{aspp_forward.2} parent=39 // pred_check_branch
          %6659 = sbr.rel (%p6657) target = $region76
        $region75: #{aspp_forward.2} parent=39 // pred_region
          %s6661 = ssub.s32 16, 16
          %6662 = vsyncadd %s6638, %s6661
          %s6663 = sadd.s32 %s34, %s33
          %s6664 = smul.addr %s6663, 16
          %s6665 = scalar_lea.hbm %s6, %s6664
          %s6667 = sshll.u32 %s6640, 4
          %s6668 = int_to_ptr.vmem [resolvable:$true] %s6667
          %6670 = dma.vmem_to_hbm [thread:$0]  %s6668, 16, %s6665, %s6638
        $region76: #{aspp_forward.2} parent=39 // pred_fallthru
          _
      $region40: #{aspp_forward.2} parent=5 // pred_fallthru
        _
      %p6671 = scmp.le.s32.totalorder 2, %s24
      // Predicated region
      $region77: #{aspp_forward.2} parent=5 // pred_check
        %p6672 = pneg %p6671
      $region78: #{aspp_forward.2} parent=5 // pred_check_branch
        %6674 = sbr.rel (%p6672) target = $region80
      $region79: #{aspp_forward.2} parent=5 // pred_region
        %s6675 = ssub.s32 %s24, 2
        // Predicated region
        $region81: #{aspp_forward.2} parent=79 // pred_check
          %p6676 = pneg %p187
        $region82: #{aspp_forward.2} parent=79 // pred_check_branch
          %6678 = sbr.rel (%p6676) target = $region84
        $region83: #{aspp_forward.2} parent=79 // pred_region
          %s6679 = sand.u32 %s172, 1
          %s6680 = scalar_lea.sflag [#allocation9], %s6679
          %s6681 = sand.u32 %s172, 1
          %s6682 = smul.addr %s6681, 128
          %s6683 = scalar_lea.vmem [#allocation16], %s6682
          %6684 = dma.done %s6680, 2048
        $region84: #{aspp_forward.2} parent=79 // pred_fallthru
          _
        // Predicated region
        $region85: #{aspp_forward.2} parent=79 // pred_check
          %p6685 = pneg %p215
        $region86: #{aspp_forward.2} parent=79 // pred_check_branch
          %6687 = sbr.rel (%p6685) target = $region88
        $region87: #{aspp_forward.2} parent=79 // pred_region
          %s6688 = sand.u32 %s200, 1
          %s6689 = scalar_lea.sflag [#allocation18], %s6688
          %s6690 = sand.u32 %s200, 1
          %s6691 = scalar_lea.vmem [#allocation17], %s6690
          %6692 = dma.done %s6689, 16
        $region88: #{aspp_forward.2} parent=79 // pred_fallthru
          _
      $region80: #{aspp_forward.2} parent=5 // pred_fallthru
        _
    $region6: #{aspp_forward.2} parent=1 // loop_footer
      %s28 = sadd.s32 1, %s24
    $region7: #{aspp_forward.2} parent=1 // loop_footer_branch
      %23 = sbr.rel target = $region3
    $region8: #{aspp_forward.2} parent=1 // loop_exit
      _
    %6693 = vsyncpa [#allocation8], 1
    %s6694 = scalar_lea.sflag [#allocation8], 1
    %6695 = vsyncpa %s6694, 1
    %6696 = vsyncpa [#allocation11], 1
    %6697 = vsyncpa [#allocation14], 1
    %6698 = vsyncpa [#allocation9], 1
    %s6699 = scalar_lea.sflag [#allocation9], 1
    %6700 = vsyncpa %s6699, 1
    %6701 = vsyncpa [#allocation18], 1
    %s6702 = scalar_lea.sflag [#allocation18], 1
    %6703 = vsyncpa %s6702, 1

</llo_original>
